<compile_context>
chip_gen: v7x
topology: tpu7x:2x2x1
jax: 0.10.0
libtpu: 0.0.40
codegen_flags: <defaults>
</compile_context>

<pallas_src>
import functools
import math

import jax
import jax.numpy as jnp
from jax.experimental import pallas as pl
from jax.experimental.pallas import tpu as pltpu


# ------------------------------ in-kernel helpers ---------------------------

def _gelu(x):
    # TODO(synk): PyTorch nn.GELU / F.gelu default to the exact erf form; erf
    # has no clean Mosaic lowering, so the tanh approximation is used here.
    c = math.sqrt(2.0 / math.pi)
    return 0.5 * x * (1.0 + jnp.tanh(c * (x + 0.044715 * x * x * x)))


def _layer_norm(x, w, b, eps=1e-5):
    mu = jnp.mean(x, axis=-1, keepdims=True)
    var = jnp.mean((x - mu) ** 2, axis=-1, keepdims=True)
    return (x - mu) * jax.lax.rsqrt(var + eps) * w + b


# ------------------------------ fused kernel --------------------------------

def make_fused_kernel(*, seq_len, d_model, n_heads, conv_channels, conv_kernels,
                      n_layers):
    S, D, H = seq_len, d_model, n_heads
    assert D % H == 0
    dh = D // H
    scale = 1.0 / math.sqrt(dh)
    bf16 = jnp.bfloat16
    f32 = jnp.float32

    def kernel(*refs):
        pref_ref, risk_ref = refs[-2], refs[-1]
        x_ref, pe_ref = refs[0], refs[1]
        it = iter(refs[2:-2])

        def nxt():
            return next(it)

        # ---- input projection -------------------------------------------------
        x2 = x_ref[0]                                            # [S, din] f32
        Wi, bi = nxt(), nxt()
        h0 = jnp.dot(x2.astype(bf16), Wi[...],
                     preferred_element_type=f32) + bi[...]        # [S, D] f32

        # ---- multi-scale temporal conv stack ---------------------------------
        # Conv1d(k, pad=(k-1)//2) expressed as sum_t Shift_t @ cf @ W[t], where
        # Shift_t is an (S,S) 0/1 selection matrix (zero padding is implicit:
        # out-of-range source rows simply select nothing).  Everything stays
        # aligned -- no unaligned sublane slices, no in-kernel pad.
        row_i = jax.lax.broadcasted_iota(jnp.int32, (S, S), 0)
        col_i = jax.lax.broadcasted_iota(jnp.int32, (S, S), 1)
        cf = h0
        for k, cout in zip(conv_kernels, conv_channels):
            W, b = nxt(), nxt()
            g, be, mu, var = nxt(), nxt(), nxt(), nxt()
            pad = (k - 1) // 2
            acc = jnp.zeros((S, cout), f32)
            for t in range(k):
                sel = jnp.where(col_i - row_i == (t - pad), 1.0, 0.0)     # f32
                xt = jnp.dot(sel, cf, preferred_element_type=f32)         # row shift
                acc = acc + jnp.dot(xt.astype(bf16), W[t],
                                    preferred_element_type=f32)
            y = acc + b[...]
            # BatchNorm1d (eval mode, running stats)
            y = (y - mu[...]) * jax.lax.rsqrt(var[...] + 1e-5) * g[...] + be[...]
            cf = _gelu(y)                                        # Dropout = identity

        # ---- conv projection + residual + positional encoding ----------------
        Wcp, bcp = nxt(), nxt()
        proj = jnp.dot(cf.astype(bf16), Wcp[...],
                       preferred_element_type=f32) + bcp[...]
        h = h0 + proj + pe_ref[...]                               # [S, D] f32

        # ---- transformer encoder layers (post-norm, gelu) ---------------------
        for _ in range(n_layers):
            Wq, bq, Wk, bk, Wv, bv = nxt(), nxt(), nxt(), nxt(), nxt(), nxt()
            Wo, bo = nxt(), nxt()
            W1, b1, W2, b2 = nxt(), nxt(), nxt(), nxt()
            ln1w, ln1b, ln2w, ln2b = nxt(), nxt(), nxt(), nxt()

            xb = h.astype(bf16)
            attn = jnp.zeros((S, D), f32)
            for hh in range(H):                                   # static head loop,
                qh = jnp.dot(xb, Wq[hh], preferred_element_type=f32) + bq[hh]
                kh = jnp.dot(xb, Wk[hh], preferred_element_type=f32) + bk[hh]
                vh = jnp.dot(xb, Wv[hh], preferred_element_type=f32) + bv[hh]
                s = jax.lax.dot_general(                          # q @ k^T (no transpose op)
                    qh.astype(bf16), kh.astype(bf16),
                    (((1,), (1,)), ((), ())),
                    preferred_element_type=f32) * scale           # [S, S]
                s = s - jnp.max(s, axis=-1, keepdims=True)
                p = jnp.exp(s)
                p = p * pl.reciprocal(jnp.sum(p, axis=-1, keepdims=True),
                                      approx=True)
                ctx = jnp.dot(p.astype(bf16), vh.astype(bf16),
                              preferred_element_type=f32)          # [S, dh]
                # per-head output projection summed -> no head concat / lane repack
                attn = attn + jnp.dot(ctx.astype(bf16), Wo[hh],
                                      preferred_element_type=f32)
            attn = attn + bo[...]
            y = _layer_norm(h + attn, ln1w[...], ln1b[...])
            h1 = _gelu(jnp.dot(y.astype(bf16), W1[...],
                               preferred_element_type=f32) + b1[...])
            ff = jnp.dot(h1.astype(bf16), W2[...],
                         preferred_element_type=f32) + b2[...]
            h = _layer_norm(y + ff, ln2w[...], ln2b[...])

        # ---- attention pooling -------------------------------------------------
        Wa, ba = nxt(), nxt()
        scores = jnp.dot(h.astype(bf16), Wa[...],
                         preferred_element_type=f32) + ba[...]      # [S, 1]
        scores = scores - jnp.max(scores, axis=0, keepdims=True)
        e = jnp.exp(scores)
        w = e * pl.reciprocal(jnp.sum(e, axis=0, keepdims=True), approx=True)
        pooled = jnp.sum(h * w, axis=0, keepdims=True)              # [1, D]

        # ---- preference head ---------------------------------------------------
        Wp1, bp1, Wp2, bp2 = nxt(), nxt(), nxt(), nxt()
        hp = _gelu(jnp.dot(pooled.astype(bf16), Wp1[...],
                           preferred_element_type=f32) + bp1[...])
        pref = jnp.dot(hp.astype(bf16), Wp2[...],
                       preferred_element_type=f32) + bp2[...]
        pref_ref[...] = pref.reshape(1, 1, 1)

        # ---- risk head (Softplus, beta=1, threshold=20) ------------------------
        Wr1, br1, Wr2, br2 = nxt(), nxt(), nxt(), nxt()
        hr = _gelu(jnp.dot(pooled.astype(bf16), Wr1[...],
                           preferred_element_type=f32) + br1[...])
        r = jnp.dot(hr.astype(bf16), Wr2[...],
                    preferred_element_type=f32) + br2[...]
        risk_ref[...] = jnp.where(
            r > 20.0, r, jnp.log(1.0 + jnp.exp(jnp.minimum(r, 20.0)))
        ).reshape(1, 1, 1)

    return kernel


# ------------------------------ parameters -----------------------------------

def init_params(key, *, input_dim, d_model, n_heads, n_layers, d_ff,
                conv_channels, conv_kernels):
    keys = iter(jax.random.split(key, 128))

    def wmat(shape, scl=0.05):        # matmul weights -> bf16 (MXU-native)
        return (scl * jax.random.normal(next(keys), shape)).astype(jnp.bfloat16)

    def wvec(shape, scl=0.05):        # biases / norm params stay f32
        return (scl * jax.random.normal(next(keys), shape)).astype(jnp.float32)

    dh = d_model // n_heads
    p = {}
    p["Wi"], p["bi"] = wmat((input_dim, d_model)), wvec((1, d_model))

    blocks, cin = [], d_model
    for cout, k in zip(conv_channels, conv_kernels):
        blocks.append(dict(
            W=wmat((k, cin, cout)), b=wvec((1, cout)),
            gamma=jnp.ones((1, cout), jnp.float32),
            beta=jnp.zeros((1, cout), jnp.float32),
            mean=jnp.zeros((1, cout), jnp.float32),   # BatchNorm1d running stats
            var=jnp.ones((1, cout), jnp.float32),
        ))
        cin = cout
    p["conv_blocks"] = blocks
    p["Wcp"], p["bcp"] = wmat((conv_channels[-1], d_model)), wvec((1, d_model))

    layers = []
    for _ in range(n_layers):
        layers.append(dict(
            # per-head layout avoids in-kernel lane slicing of packed QKV
            Wq=wmat((n_heads, d_model, dh)), bq=wvec((n_heads, 1, dh)),
            Wk=wmat((n_heads, d_model, dh)), bk=wvec((n_heads, 1, dh)),
            Wv=wmat((n_heads, d_model, dh)), bv=wvec((n_heads, 1, dh)),
            Wo=wmat((n_heads, dh, d_model)), bo=wvec((1, d_model)),
            W1=wmat((d_model, d_ff)), b1=wvec((1, d_ff)),
            W2=wmat((d_ff, d_model)), b2=wvec((1, d_model)),
            ln1w=jnp.ones((1, d_model), jnp.float32),
            ln1b=jnp.zeros((1, d_model), jnp.float32),
            ln2w=jnp.ones((1, d_model), jnp.float32),
            ln2b=jnp.zeros((1, d_model), jnp.float32),
        ))
    p["layers"] = layers

    p["Wa"], p["ba"] = wmat((d_model, 1)), wvec((1, 1))     # attention-pool Linear(D,1)
    dhid = d_model // 2
    p["Wp1"], p["bp1"] = wmat((d_model, dhid)), wvec((1, dhid))
    p["Wp2"], p["bp2"] = wmat((dhid, 1)), wvec((1, 1))
    p["Wr1"], p["br1"] = wmat((d_model, dhid)), wvec((1, dhid))
    p["Wr2"], p["br2"] = wmat((dhid, 1)), wvec((1, 1))
    return p


def flatten_params(p):
    """Canonical flat ordering -- MUST match the kernel's consumption order."""
    flat = [p["Wi"], p["bi"]]
    for blk in p["conv_blocks"]:
        flat += [blk["W"], blk["b"], blk["gamma"], blk["beta"],
                 blk["mean"], blk["var"]]
    flat += [p["Wcp"], p["bcp"]]
    for lyr in p["layers"]:
        flat += [lyr["Wq"], lyr["bq"], lyr["Wk"], lyr["bk"],
                 lyr["Wv"], lyr["bv"], lyr["Wo"], lyr["bo"],
                 lyr["W1"], lyr["b1"], lyr["W2"], lyr["b2"],
                 lyr["ln1w"], lyr["ln1b"], lyr["ln2w"], lyr["ln2b"]]
    flat += [p["Wa"], p["ba"],
             p["Wp1"], p["bp1"], p["Wp2"], p["bp2"],
             p["Wr1"], p["br1"], p["Wr2"], p["br2"]]
    return flat


# ------------------------------ forward --------------------------------------

def _const_spec(shape):
    nd = len(shape)
    return pl.BlockSpec(shape, lambda b, _nd=nd: (0,) * _nd)   # stays VMEM-resident


def forward(x, params, *, d_model, n_heads, d_ff, conv_channels, conv_kernels,
            n_layers, return_risk=True):
    if x.ndim == 2:
        x = x[:, None, :]
    B, S, din = x.shape
    D = d_model
    # The reference RelativePositionalEncoding's broadcasting only works when
    # seq_len == d_model // 2; keep that contract explicit.
    assert S == D // 2, "reference PE broadcasting requires seq_len == d_model // 2"

    # Positional-encoding table (constant given S, D; rows identical, which
    # replicates the reference module's broadcasting quirk).  Built with an
    # interleave instead of strided scatters; constant-folded under jit.
    pos = jnp.arange(S, dtype=jnp.float32)
    div = jnp.exp(jnp.arange(0, D, 2, dtype=jnp.float32) * (-math.log(10000.0) / D))
    arg = pos * div                                   # elementwise, needs S == D//2
    pe_row = jnp.stack([jnp.sin(arg), jnp.cos(arg)], axis=1).reshape(1, D)
    pe = jnp.broadcast_to(pe_row, (S, D)).astype(jnp.float32)

    kernel = make_fused_kernel(seq_len=S, d_model=D, n_heads=n_heads,
                               conv_channels=tuple(conv_channels),
                               conv_kernels=tuple(conv_kernels),
                               n_layers=n_layers)

    flat = flatten_params(params)
    inputs = [x.astype(jnp.float32), pe] + flat

    in_specs = [pl.BlockSpec((1, S, din), lambda b: (b, 0, 0))]
    in_specs += [_const_spec(tuple(a.shape)) for a in inputs[1:]]
    out_shape = (jax.ShapeDtypeStruct((B, 1, 1), jnp.float32),
                 jax.ShapeDtypeStruct((B, 1, 1), jnp.float32))
    out_specs = (pl.BlockSpec((1, 1, 1), lambda b: (b, 0, 0)),
                 pl.BlockSpec((1, 1, 1), lambda b: (b, 0, 0)))

    # Single fused call; grid over batch is 'parallel' so v7x's two TensorCores
    # split it.  Per-step working set is ~100 KiB -> far under every
    # generation's VMEM limit (64 MiB on v7x), so no vmem_limit override needed.
    pref, risk = pl.pallas_call(
        kernel,
        grid=(B,),
        in_specs=in_specs,
        out_specs=out_specs,
        out_shape=out_shape,
        compiler_params=pltpu.CompilerParams(dimension_semantics=("parallel",)),
    )(*inputs)

    pref = pref.reshape(B, 1)
    risk = risk.reshape(B, 1)
    if return_risk:
        return pref, risk
    return pref


# ------------------------------ main ------------------------------------------

if __name__ == "__main__":
    # Small shapes consistent with the module; S == d_model // 2 is required by
    # the reference positional-encoding broadcasting.
    B, S, INPUT_DIM = 2, 16, 8
    D_MODEL, N_HEADS, N_LAYERS, D_FF = 32, 4, 2, 64
    CONV_CHANNELS, CONV_KERNELS = [16, 24, 32], [3, 5, 7]

    root = jax.random.PRNGKey(0)
    kp, kx = jax.random.split(root)
    params = init_params(kp, input_dim=INPUT_DIM, d_model=D_MODEL,
                         n_heads=N_HEADS, n_layers=N_LAYERS, d_ff=D_FF,
                         conv_channels=CONV_CHANNELS, conv_kernels=CONV_KERNELS)

    x = jax.random.normal(kx, (B, S, INPUT_DIM), dtype=jnp.float32)

    fwd = jax.jit(functools.partial(
        forward, d_model=D_MODEL, n_heads=N_HEADS, d_ff=D_FF,
        conv_channels=CONV_CHANNELS, conv_kernels=CONV_KERNELS,
        n_layers=N_LAYERS, return_risk=True))

    pref, risk = fwd(x, params)
    jax.block_until_ready((pref, risk))
    assert pref.shape == (B, 1) and risk.shape == (B, 1)
    assert bool(jnp.all(jnp.isfinite(pref))) and bool(jnp.all(risk >= 0.0))
    print("KERNEL_OK")
</pallas_src>

<mosaic_0001>
module attributes {stable_mosaic.version = 11 : i64} {
  func.func @kernel(%arg0: i32, %arg1: memref<1x16x8xf32, #tpu.memory_space<vmem>>, %arg2: memref<16x32xf32, #tpu.memory_space<vmem>>, %arg3: memref<8x32xbf16, #tpu.memory_space<vmem>>, %arg4: memref<1x32xf32, #tpu.memory_space<vmem>>, %arg5: memref<3x32x16xbf16, #tpu.memory_space<vmem>>, %arg6: memref<1x16xf32, #tpu.memory_space<vmem>>, %arg7: memref<1x16xf32, #tpu.memory_space<vmem>>, %arg8: memref<1x16xf32, #tpu.memory_space<vmem>>, %arg9: memref<1x16xf32, #tpu.memory_space<vmem>>, %arg10: memref<1x16xf32, #tpu.memory_space<vmem>>, %arg11: memref<5x16x24xbf16, #tpu.memory_space<vmem>>, %arg12: memref<1x24xf32, #tpu.memory_space<vmem>>, %arg13: memref<1x24xf32, #tpu.memory_space<vmem>>, %arg14: memref<1x24xf32, #tpu.memory_space<vmem>>, %arg15: memref<1x24xf32, #tpu.memory_space<vmem>>, %arg16: memref<1x24xf32, #tpu.memory_space<vmem>>, %arg17: memref<7x24x32xbf16, #tpu.memory_space<vmem>>, %arg18: memref<1x32xf32, #tpu.memory_space<vmem>>, %arg19: memref<1x32xf32, #tpu.memory_space<vmem>>, %arg20: memref<1x32xf32, #tpu.memory_space<vmem>>, %arg21: memref<1x32xf32, #tpu.memory_space<vmem>>, %arg22: memref<1x32xf32, #tpu.memory_space<vmem>>, %arg23: memref<32x32xbf16, #tpu.memory_space<vmem>>, %arg24: memref<1x32xf32, #tpu.memory_space<vmem>>, %arg25: memref<4x32x8xbf16, #tpu.memory_space<vmem>>, %arg26: memref<4x1x8xf32, #tpu.memory_space<vmem>>, %arg27: memref<4x32x8xbf16, #tpu.memory_space<vmem>>, %arg28: memref<4x1x8xf32, #tpu.memory_space<vmem>>, %arg29: memref<4x32x8xbf16, #tpu.memory_space<vmem>>, %arg30: memref<4x1x8xf32, #tpu.memory_space<vmem>>, %arg31: memref<4x8x32xbf16, #tpu.memory_space<vmem>>, %arg32: memref<1x32xf32, #tpu.memory_space<vmem>>, %arg33: memref<32x64xbf16, #tpu.memory_space<vmem>>, %arg34: memref<1x64xf32, #tpu.memory_space<vmem>>, %arg35: memref<64x32xbf16, #tpu.memory_space<vmem>>, %arg36: memref<1x32xf32, #tpu.memory_space<vmem>>, %arg37: memref<1x32xf32, #tpu.memory_space<vmem>>, %arg38: memref<1x32xf32, #tpu.memory_space<vmem>>, %arg39: memref<1x32xf32, #tpu.memory_space<vmem>>, %arg40: memref<1x32xf32, #tpu.memory_space<vmem>>, %arg41: memref<4x32x8xbf16, #tpu.memory_space<vmem>>, %arg42: memref<4x1x8xf32, #tpu.memory_space<vmem>>, %arg43: memref<4x32x8xbf16, #tpu.memory_space<vmem>>, %arg44: memref<4x1x8xf32, #tpu.memory_space<vmem>>, %arg45: memref<4x32x8xbf16, #tpu.memory_space<vmem>>, %arg46: memref<4x1x8xf32, #tpu.memory_space<vmem>>, %arg47: memref<4x8x32xbf16, #tpu.memory_space<vmem>>, %arg48: memref<1x32xf32, #tpu.memory_space<vmem>>, %arg49: memref<32x64xbf16, #tpu.memory_space<vmem>>, %arg50: memref<1x64xf32, #tpu.memory_space<vmem>>, %arg51: memref<64x32xbf16, #tpu.memory_space<vmem>>, %arg52: memref<1x32xf32, #tpu.memory_space<vmem>>, %arg53: memref<1x32xf32, #tpu.memory_space<vmem>>, %arg54: memref<1x32xf32, #tpu.memory_space<vmem>>, %arg55: memref<1x32xf32, #tpu.memory_space<vmem>>, %arg56: memref<1x32xf32, #tpu.memory_space<vmem>>, %arg57: memref<32x1xbf16, #tpu.memory_space<vmem>>, %arg58: memref<1x1xf32, #tpu.memory_space<vmem>>, %arg59: memref<32x16xbf16, #tpu.memory_space<vmem>>, %arg60: memref<1x16xf32, #tpu.memory_space<vmem>>, %arg61: memref<16x1xbf16, #tpu.memory_space<vmem>>, %arg62: memref<1x1xf32, #tpu.memory_space<vmem>>, %arg63: memref<32x16xbf16, #tpu.memory_space<vmem>>, %arg64: memref<1x16xf32, #tpu.memory_space<vmem>>, %arg65: memref<16x1xbf16, #tpu.memory_space<vmem>>, %arg66: memref<1x1xf32, #tpu.memory_space<vmem>>, %arg67: memref<1x1x1xf32, #tpu.memory_space<vmem>>, %arg68: memref<1x1x1xf32, #tpu.memory_space<vmem>>) attributes {dimension_semantics = [#tpu.dimension_semantics<parallel>], iteration_bounds = array<i64: 2>, scalar_prefetch = 0 : i64, scratch_operands = 0 : i64, tpu.core_type = #tpu.core_type<tc>, window_params = [{transform_indices = @transform_0, window_bounds = array<i64: 1, 16, 8>}, {pipeline_mode = #tpu.pipeline_mode<synchronous>, transform_indices = @transform_1, window_bounds = array<i64: 16, 32>}, {pipeline_mode = #tpu.pipeline_mode<synchronous>, transform_indices = @transform_2, window_bounds = array<i64: 8, 32>}, {pipeline_mode = #tpu.pipeline_mode<synchronous>, transform_indices = @transform_3, window_bounds = array<i64: 1, 32>}, {pipeline_mode = #tpu.pipeline_mode<synchronous>, transform_indices = @transform_4, window_bounds = array<i64: 3, 32, 16>}, {pipeline_mode = #tpu.pipeline_mode<synchronous>, transform_indices = @transform_5, window_bounds = array<i64: 1, 16>}, {pipeline_mode = #tpu.pipeline_mode<synchronous>, transform_indices = @transform_6, window_bounds = array<i64: 1, 16>}, {pipeline_mode = #tpu.pipeline_mode<synchronous>, transform_indices = @transform_7, window_bounds = array<i64: 1, 16>}, {pipeline_mode = #tpu.pipeline_mode<synchronous>, transform_indices = @transform_8, window_bounds = array<i64: 1, 16>}, {pipeline_mode = #tpu.pipeline_mode<synchronous>, transform_indices = @transform_9, window_bounds = array<i64: 1, 16>}, {pipeline_mode = #tpu.pipeline_mode<synchronous>, transform_indices = @transform_10, window_bounds = array<i64: 5, 16, 24>}, {pipeline_mode = #tpu.pipeline_mode<synchronous>, transform_indices = @transform_11, window_bounds = array<i64: 1, 24>}, {pipeline_mode = #tpu.pipeline_mode<synchronous>, transform_indices = @transform_12, window_bounds = array<i64: 1, 24>}, {pipeline_mode = #tpu.pipeline_mode<synchronous>, transform_indices = @transform_13, window_bounds = array<i64: 1, 24>}, {pipeline_mode = #tpu.pipeline_mode<synchronous>, transform_indices = @transform_14, window_bounds = array<i64: 1, 24>}, {pipeline_mode = #tpu.pipeline_mode<synchronous>, transform_indices = @transform_15, window_bounds = array<i64: 1, 24>}, {pipeline_mode = #tpu.pipeline_mode<synchronous>, transform_indices = @transform_16, window_bounds = array<i64: 7, 24, 32>}, {pipeline_mode = #tpu.pipeline_mode<synchronous>, transform_indices = @transform_17, window_bounds = array<i64: 1, 32>}, {pipeline_mode = #tpu.pipeline_mode<synchronous>, transform_indices = @transform_18, window_bounds = array<i64: 1, 32>}, {pipeline_mode = #tpu.pipeline_mode<synchronous>, transform_indices = @transform_19, window_bounds = array<i64: 1, 32>}, {pipeline_mode = #tpu.pipeline_mode<synchronous>, transform_indices = @transform_20, window_bounds = array<i64: 1, 32>}, {pipeline_mode = #tpu.pipeline_mode<synchronous>, transform_indices = @transform_21, window_bounds = array<i64: 1, 32>}, {pipeline_mode = #tpu.pipeline_mode<synchronous>, transform_indices = @transform_22, window_bounds = array<i64: 32, 32>}, {pipeline_mode = #tpu.pipeline_mode<synchronous>, transform_indices = @transform_23, window_bounds = array<i64: 1, 32>}, {pipeline_mode = #tpu.pipeline_mode<synchronous>, transform_indices = @transform_24, window_bounds = array<i64: 4, 32, 8>}, {pipeline_mode = #tpu.pipeline_mode<synchronous>, transform_indices = @transform_25, window_bounds = array<i64: 4, 1, 8>}, {pipeline_mode = #tpu.pipeline_mode<synchronous>, transform_indices = @transform_26, window_bounds = array<i64: 4, 32, 8>}, {pipeline_mode = #tpu.pipeline_mode<synchronous>, transform_indices = @transform_27, window_bounds = array<i64: 4, 1, 8>}, {pipeline_mode = #tpu.pipeline_mode<synchronous>, transform_indices = @transform_28, window_bounds = array<i64: 4, 32, 8>}, {pipeline_mode = #tpu.pipeline_mode<synchronous>, transform_indices = @transform_29, window_bounds = array<i64: 4, 1, 8>}, {pipeline_mode = #tpu.pipeline_mode<synchronous>, transform_indices = @transform_30, window_bounds = array<i64: 4, 8, 32>}, {pipeline_mode = #tpu.pipeline_mode<synchronous>, transform_indices = @transform_31, window_bounds = array<i64: 1, 32>}, {pipeline_mode = #tpu.pipeline_mode<synchronous>, transform_indices = @transform_32, window_bounds = array<i64: 32, 64>}, {pipeline_mode = #tpu.pipeline_mode<synchronous>, transform_indices = @transform_33, window_bounds = array<i64: 1, 64>}, {pipeline_mode = #tpu.pipeline_mode<synchronous>, transform_indices = @transform_34, window_bounds = array<i64: 64, 32>}, {pipeline_mode = #tpu.pipeline_mode<synchronous>, transform_indices = @transform_35, window_bounds = array<i64: 1, 32>}, {pipeline_mode = #tpu.pipeline_mode<synchronous>, transform_indices = @transform_36, window_bounds = array<i64: 1, 32>}, {pipeline_mode = #tpu.pipeline_mode<synchronous>, transform_indices = @transform_37, window_bounds = array<i64: 1, 32>}, {pipeline_mode = #tpu.pipeline_mode<synchronous>, transform_indices = @transform_38, window_bounds = array<i64: 1, 32>}, {pipeline_mode = #tpu.pipeline_mode<synchronous>, transform_indices = @transform_39, window_bounds = array<i64: 1, 32>}, {pipeline_mode = #tpu.pipeline_mode<synchronous>, transform_indices = @transform_40, window_bounds = array<i64: 4, 32, 8>}, {pipeline_mode = #tpu.pipeline_mode<synchronous>, transform_indices = @transform_41, window_bounds = array<i64: 4, 1, 8>}, {pipeline_mode = #tpu.pipeline_mode<synchronous>, transform_indices = @transform_42, window_bounds = array<i64: 4, 32, 8>}, {pipeline_mode = #tpu.pipeline_mode<synchronous>, transform_indices = @transform_43, window_bounds = array<i64: 4, 1, 8>}, {pipeline_mode = #tpu.pipeline_mode<synchronous>, transform_indices = @transform_44, window_bounds = array<i64: 4, 32, 8>}, {pipeline_mode = #tpu.pipeline_mode<synchronous>, transform_indices = @transform_45, window_bounds = array<i64: 4, 1, 8>}, {pipeline_mode = #tpu.pipeline_mode<synchronous>, transform_indices = @transform_46, window_bounds = array<i64: 4, 8, 32>}, {pipeline_mode = #tpu.pipeline_mode<synchronous>, transform_indices = @transform_47, window_bounds = array<i64: 1, 32>}, {pipeline_mode = #tpu.pipeline_mode<synchronous>, transform_indices = @transform_48, window_bounds = array<i64: 32, 64>}, {pipeline_mode = #tpu.pipeline_mode<synchronous>, transform_indices = @transform_49, window_bounds = array<i64: 1, 64>}, {pipeline_mode = #tpu.pipeline_mode<synchronous>, transform_indices = @transform_50, window_bounds = array<i64: 64, 32>}, {pipeline_mode = #tpu.pipeline_mode<synchronous>, transform_indices = @transform_51, window_bounds = array<i64: 1, 32>}, {pipeline_mode = #tpu.pipeline_mode<synchronous>, transform_indices = @transform_52, window_bounds = array<i64: 1, 32>}, {pipeline_mode = #tpu.pipeline_mode<synchronous>, transform_indices = @transform_53, window_bounds = array<i64: 1, 32>}, {pipeline_mode = #tpu.pipeline_mode<synchronous>, transform_indices = @transform_54, window_bounds = array<i64: 1, 32>}, {pipeline_mode = #tpu.pipeline_mode<synchronous>, transform_indices = @transform_55, window_bounds = array<i64: 1, 32>}, {pipeline_mode = #tpu.pipeline_mode<synchronous>, transform_indices = @transform_56, window_bounds = array<i64: 32, 1>}, {pipeline_mode = #tpu.pipeline_mode<synchronous>, transform_indices = @transform_57, window_bounds = array<i64: 1, 1>}, {pipeline_mode = #tpu.pipeline_mode<synchronous>, transform_indices = @transform_58, window_bounds = array<i64: 32, 16>}, {pipeline_mode = #tpu.pipeline_mode<synchronous>, transform_indices = @transform_59, window_bounds = array<i64: 1, 16>}, {pipeline_mode = #tpu.pipeline_mode<synchronous>, transform_indices = @transform_60, window_bounds = array<i64: 16, 1>}, {pipeline_mode = #tpu.pipeline_mode<synchronous>, transform_indices = @transform_61, window_bounds = array<i64: 1, 1>}, {pipeline_mode = #tpu.pipeline_mode<synchronous>, transform_indices = @transform_62, window_bounds = array<i64: 32, 16>}, {pipeline_mode = #tpu.pipeline_mode<synchronous>, transform_indices = @transform_63, window_bounds = array<i64: 1, 16>}, {pipeline_mode = #tpu.pipeline_mode<synchronous>, transform_indices = @transform_64, window_bounds = array<i64: 16, 1>}, {pipeline_mode = #tpu.pipeline_mode<synchronous>, transform_indices = @transform_65, window_bounds = array<i64: 1, 1>}, {transform_indices = @transform_66, window_bounds = array<i64: 1, 1, 1>}, {transform_indices = @transform_67, window_bounds = array<i64: 1, 1, 1>}]} {
    %c0 = arith.constant 0 : index
    %c0_0 = arith.constant 0 : index
    %c0_1 = arith.constant 0 : index
    %0 = vector.load %arg1[%c0, %c0_0, %c0_1] : memref<1x16x8xf32, #tpu.memory_space<vmem>>, vector<1x16x8xf32>
    %1 = vector.shape_cast %0 : vector<1x16x8xf32> to vector<16x8xf32>
    %2 = arith.truncf %1 : vector<16x8xf32> to vector<16x8xbf16>
    %c0_2 = arith.constant 0 : index
    %c0_3 = arith.constant 0 : index
    %3 = vector.load %arg3[%c0_2, %c0_3] : memref<8x32xbf16, #tpu.memory_space<vmem>>, vector<8x32xbf16>
    %cst = arith.constant dense<0.000000e+00> : vector<16x32xf32>
    %4 = tpu.matmul %2, %3, %cst {dimension_numbers = #tpu.dot_dimension_numbers<[1], [0], [0], [1], [0, 0, 1, 1], [], []>} : vector<16x8xbf16>, vector<8x32xbf16>, vector<16x32xf32> -> vector<16x32xf32>
    %c0_4 = arith.constant 0 : index
    %c0_5 = arith.constant 0 : index
    %5 = vector.load %arg4[%c0_4, %c0_5] : memref<1x32xf32, #tpu.memory_space<vmem>>, vector<1x32xf32>
    %6 = vector.broadcast %5 : vector<1x32xf32> to vector<16x32xf32>
    %7 = arith.addf %4, %6 : vector<16x32xf32>
    %8 = tpu.iota {dimensions = array<i32: 0>} : vector<16x16xi32>
    %9 = tpu.iota {dimensions = array<i32: 1>} : vector<16x16xi32>
    %cst_6 = arith.constant 0.000000e+00 : f32
    %10 = vector.broadcast %cst_6 : f32 to vector<16x16xf32>
    %11 = arith.subi %9, %8 : vector<16x16xi32>
    %c-1_i32 = arith.constant -1 : i32
    %12 = vector.broadcast %c-1_i32 : i32 to vector<16x16xi32>
    %13 = arith.cmpi eq, %11, %12 : vector<16x16xi32>
    %cst_7 = arith.constant 1.000000e+00 : f32
    %cst_8 = arith.constant 0.000000e+00 : f32
    %14 = vector.broadcast %cst_7 : f32 to vector<16x16xf32>
    %15 = vector.broadcast %cst_8 : f32 to vector<16x16xf32>
    %16 = arith.select %13, %14, %15 : vector<16x16xi1>, vector<16x16xf32>
    %cst_9 = arith.constant dense<0.000000e+00> : vector<16x32xf32>
    %17 = tpu.matmul %16, %7, %cst_9 {dimension_numbers = #tpu.dot_dimension_numbers<[1], [0], [0], [1], [0, 0, 1, 1], [], []>} : vector<16x16xf32>, vector<16x32xf32>, vector<16x32xf32> -> vector<16x32xf32>
    %18 = arith.truncf %17 : vector<16x32xf32> to vector<16x32xbf16>
    %c0_10 = arith.constant 0 : index
    %c0_11 = arith.constant 0 : index
    %c0_12 = arith.constant 0 : index
    %19 = vector.load %arg5[%c0_10, %c0_11, %c0_12] : memref<3x32x16xbf16, #tpu.memory_space<vmem>>, vector<1x32x16xbf16>
    %20 = vector.shape_cast %19 : vector<1x32x16xbf16> to vector<32x16xbf16>
    %cst_13 = arith.constant dense<0.000000e+00> : vector<16x16xf32>
    %21 = tpu.matmul %18, %20, %cst_13 {dimension_numbers = #tpu.dot_dimension_numbers<[1], [0], [0], [1], [0, 0, 1, 1], [], []>} : vector<16x32xbf16>, vector<32x16xbf16>, vector<16x16xf32> -> vector<16x16xf32>
    %22 = arith.addf %10, %21 : vector<16x16xf32>
    %23 = arith.subi %9, %8 : vector<16x16xi32>
    %c0_i32 = arith.constant 0 : i32
    %24 = vector.broadcast %c0_i32 : i32 to vector<16x16xi32>
    %25 = arith.cmpi eq, %23, %24 : vector<16x16xi32>
    %cst_14 = arith.constant 1.000000e+00 : f32
    %cst_15 = arith.constant 0.000000e+00 : f32
    %26 = vector.broadcast %cst_14 : f32 to vector<16x16xf32>
    %27 = vector.broadcast %cst_15 : f32 to vector<16x16xf32>
    %28 = arith.select %25, %26, %27 : vector<16x16xi1>, vector<16x16xf32>
    %cst_16 = arith.constant dense<0.000000e+00> : vector<16x32xf32>
    %29 = tpu.matmul %28, %7, %cst_16 {dimension_numbers = #tpu.dot_dimension_numbers<[1], [0], [0], [1], [0, 0, 1, 1], [], []>} : vector<16x16xf32>, vector<16x32xf32>, vector<16x32xf32> -> vector<16x32xf32>
    %30 = arith.truncf %29 : vector<16x32xf32> to vector<16x32xbf16>
    %c1 = arith.constant 1 : index
    %c0_17 = arith.constant 0 : index
    %c0_18 = arith.constant 0 : index
    %31 = vector.load %arg5[%c1, %c0_17, %c0_18] : memref<3x32x16xbf16, #tpu.memory_space<vmem>>, vector<1x32x16xbf16>
    %32 = vector.shape_cast %31 : vector<1x32x16xbf16> to vector<32x16xbf16>
    %cst_19 = arith.constant dense<0.000000e+00> : vector<16x16xf32>
    %33 = tpu.matmul %30, %32, %cst_19 {dimension_numbers = #tpu.dot_dimension_numbers<[1], [0], [0], [1], [0, 0, 1, 1], [], []>} : vector<16x32xbf16>, vector<32x16xbf16>, vector<16x16xf32> -> vector<16x16xf32>
    %34 = arith.addf %22, %33 : vector<16x16xf32>
    %35 = arith.subi %9, %8 : vector<16x16xi32>
    %c1_i32 = arith.constant 1 : i32
    %36 = vector.broadcast %c1_i32 : i32 to vector<16x16xi32>
    %37 = arith.cmpi eq, %35, %36 : vector<16x16xi32>
    %cst_20 = arith.constant 1.000000e+00 : f32
    %cst_21 = arith.constant 0.000000e+00 : f32
    %38 = vector.broadcast %cst_20 : f32 to vector<16x16xf32>
    %39 = vector.broadcast %cst_21 : f32 to vector<16x16xf32>
    %40 = arith.select %37, %38, %39 : vector<16x16xi1>, vector<16x16xf32>
    %cst_22 = arith.constant dense<0.000000e+00> : vector<16x32xf32>
    %41 = tpu.matmul %40, %7, %cst_22 {dimension_numbers = #tpu.dot_dimension_numbers<[1], [0], [0], [1], [0, 0, 1, 1], [], []>} : vector<16x16xf32>, vector<16x32xf32>, vector<16x32xf32> -> vector<16x32xf32>
    %42 = arith.truncf %41 : vector<16x32xf32> to vector<16x32xbf16>
    %c2 = arith.constant 2 : index
    %c0_23 = arith.constant 0 : index
    %c0_24 = arith.constant 0 : index
    %43 = vector.load %arg5[%c2, %c0_23, %c0_24] : memref<3x32x16xbf16, #tpu.memory_space<vmem>>, vector<1x32x16xbf16>
    %44 = vector.shape_cast %43 : vector<1x32x16xbf16> to vector<32x16xbf16>
    %cst_25 = arith.constant dense<0.000000e+00> : vector<16x16xf32>
    %45 = tpu.matmul %42, %44, %cst_25 {dimension_numbers = #tpu.dot_dimension_numbers<[1], [0], [0], [1], [0, 0, 1, 1], [], []>} : vector<16x32xbf16>, vector<32x16xbf16>, vector<16x16xf32> -> vector<16x16xf32>
    %46 = arith.addf %34, %45 : vector<16x16xf32>
    %c0_26 = arith.constant 0 : index
    %c0_27 = arith.constant 0 : index
    %47 = vector.load %arg6[%c0_26, %c0_27] : memref<1x16xf32, #tpu.memory_space<vmem>>, vector<1x16xf32>
    %48 = vector.broadcast %47 : vector<1x16xf32> to vector<16x16xf32>
    %49 = arith.addf %46, %48 : vector<16x16xf32>
    %c0_28 = arith.constant 0 : index
    %c0_29 = arith.constant 0 : index
    %50 = vector.load %arg9[%c0_28, %c0_29] : memref<1x16xf32, #tpu.memory_space<vmem>>, vector<1x16xf32>
    %51 = vector.broadcast %50 : vector<1x16xf32> to vector<16x16xf32>
    %52 = arith.subf %49, %51 : vector<16x16xf32>
    %c0_30 = arith.constant 0 : index
    %c0_31 = arith.constant 0 : index
    %53 = vector.load %arg10[%c0_30, %c0_31] : memref<1x16xf32, #tpu.memory_space<vmem>>, vector<1x16xf32>
    %cst_32 = arith.constant 9.99999974E-6 : f32
    %54 = vector.broadcast %cst_32 : f32 to vector<1x16xf32>
    %55 = arith.addf %53, %54 : vector<1x16xf32>
    %56 = math.rsqrt %55 : vector<1x16xf32>
    %57 = vector.broadcast %56 : vector<1x16xf32> to vector<16x16xf32>
    %58 = arith.mulf %52, %57 : vector<16x16xf32>
    %c0_33 = arith.constant 0 : index
    %c0_34 = arith.constant 0 : index
    %59 = vector.load %arg7[%c0_33, %c0_34] : memref<1x16xf32, #tpu.memory_space<vmem>>, vector<1x16xf32>
    %60 = vector.broadcast %59 : vector<1x16xf32> to vector<16x16xf32>
    %61 = arith.mulf %58, %60 : vector<16x16xf32>
    %c0_35 = arith.constant 0 : index
    %c0_36 = arith.constant 0 : index
    %62 = vector.load %arg8[%c0_35, %c0_36] : memref<1x16xf32, #tpu.memory_space<vmem>>, vector<1x16xf32>
    %63 = vector.broadcast %62 : vector<1x16xf32> to vector<16x16xf32>
    %64 = arith.addf %61, %63 : vector<16x16xf32>
    %cst_37 = arith.constant 5.000000e-01 : f32
    %65 = vector.broadcast %cst_37 : f32 to vector<16x16xf32>
    %66 = arith.mulf %65, %64 : vector<16x16xf32>
    %cst_38 = arith.constant 4.471500e-02 : f32
    %67 = vector.broadcast %cst_38 : f32 to vector<16x16xf32>
    %68 = arith.mulf %67, %64 : vector<16x16xf32>
    %69 = arith.mulf %68, %64 : vector<16x16xf32>
    %70 = arith.mulf %69, %64 : vector<16x16xf32>
    %71 = arith.addf %64, %70 : vector<16x16xf32>
    %cst_39 = arith.constant 0.797884583 : f32
    %72 = vector.broadcast %cst_39 : f32 to vector<16x16xf32>
    %73 = arith.mulf %72, %71 : vector<16x16xf32>
    %74 = math.tanh %73 : vector<16x16xf32>
    %cst_40 = arith.constant 1.000000e+00 : f32
    %75 = vector.broadcast %cst_40 : f32 to vector<16x16xf32>
    %76 = arith.addf %75, %74 : vector<16x16xf32>
    %77 = arith.mulf %66, %76 : vector<16x16xf32>
    %cst_41 = arith.constant 0.000000e+00 : f32
    %78 = vector.broadcast %cst_41 : f32 to vector<16x24xf32>
    %79 = arith.subi %9, %8 : vector<16x16xi32>
    %c-2_i32 = arith.constant -2 : i32
    %80 = vector.broadcast %c-2_i32 : i32 to vector<16x16xi32>
    %81 = arith.cmpi eq, %79, %80 : vector<16x16xi32>
    %cst_42 = arith.constant 1.000000e+00 : f32
    %cst_43 = arith.constant 0.000000e+00 : f32
    %82 = vector.broadcast %cst_42 : f32 to vector<16x16xf32>
    %83 = vector.broadcast %cst_43 : f32 to vector<16x16xf32>
    %84 = arith.select %81, %82, %83 : vector<16x16xi1>, vector<16x16xf32>
    %cst_44 = arith.constant dense<0.000000e+00> : vector<16x16xf32>
    %85 = tpu.matmul %84, %77, %cst_44 {dimension_numbers = #tpu.dot_dimension_numbers<[1], [0], [0], [1], [0, 0, 1, 1], [], []>} : vector<16x16xf32>, vector<16x16xf32>, vector<16x16xf32> -> vector<16x16xf32>
    %86 = arith.truncf %85 : vector<16x16xf32> to vector<16x16xbf16>
    %c0_45 = arith.constant 0 : index
    %c0_46 = arith.constant 0 : index
    %c0_47 = arith.constant 0 : index
    %87 = vector.load %arg11[%c0_45, %c0_46, %c0_47] : memref<5x16x24xbf16, #tpu.memory_space<vmem>>, vector<1x16x24xbf16>
    %88 = vector.shape_cast %87 : vector<1x16x24xbf16> to vector<16x24xbf16>
    %cst_48 = arith.constant dense<0.000000e+00> : vector<16x24xf32>
    %89 = tpu.matmul %86, %88, %cst_48 {dimension_numbers = #tpu.dot_dimension_numbers<[1], [0], [0], [1], [0, 0, 1, 1], [], []>} : vector<16x16xbf16>, vector<16x24xbf16>, vector<16x24xf32> -> vector<16x24xf32>
    %90 = arith.addf %78, %89 : vector<16x24xf32>
    %91 = arith.subi %9, %8 : vector<16x16xi32>
    %c-1_i32_49 = arith.constant -1 : i32
    %92 = vector.broadcast %c-1_i32_49 : i32 to vector<16x16xi32>
    %93 = arith.cmpi eq, %91, %92 : vector<16x16xi32>
    %cst_50 = arith.constant 1.000000e+00 : f32
    %cst_51 = arith.constant 0.000000e+00 : f32
    %94 = vector.broadcast %cst_50 : f32 to vector<16x16xf32>
    %95 = vector.broadcast %cst_51 : f32 to vector<16x16xf32>
    %96 = arith.select %93, %94, %95 : vector<16x16xi1>, vector<16x16xf32>
    %cst_52 = arith.constant dense<0.000000e+00> : vector<16x16xf32>
    %97 = tpu.matmul %96, %77, %cst_52 {dimension_numbers = #tpu.dot_dimension_numbers<[1], [0], [0], [1], [0, 0, 1, 1], [], []>} : vector<16x16xf32>, vector<16x16xf32>, vector<16x16xf32> -> vector<16x16xf32>
    %98 = arith.truncf %97 : vector<16x16xf32> to vector<16x16xbf16>
    %c1_53 = arith.constant 1 : index
    %c0_54 = arith.constant 0 : index
    %c0_55 = arith.constant 0 : index
    %99 = vector.load %arg11[%c1_53, %c0_54, %c0_55] : memref<5x16x24xbf16, #tpu.memory_space<vmem>>, vector<1x16x24xbf16>
    %100 = vector.shape_cast %99 : vector<1x16x24xbf16> to vector<16x24xbf16>
    %cst_56 = arith.constant dense<0.000000e+00> : vector<16x24xf32>
    %101 = tpu.matmul %98, %100, %cst_56 {dimension_numbers = #tpu.dot_dimension_numbers<[1], [0], [0], [1], [0, 0, 1, 1], [], []>} : vector<16x16xbf16>, vector<16x24xbf16>, vector<16x24xf32> -> vector<16x24xf32>
    %102 = arith.addf %90, %101 : vector<16x24xf32>
    %103 = arith.subi %9, %8 : vector<16x16xi32>
    %c0_i32_57 = arith.constant 0 : i32
    %104 = vector.broadcast %c0_i32_57 : i32 to vector<16x16xi32>
    %105 = arith.cmpi eq, %103, %104 : vector<16x16xi32>
    %cst_58 = arith.constant 1.000000e+00 : f32
    %cst_59 = arith.constant 0.000000e+00 : f32
    %106 = vector.broadcast %cst_58 : f32 to vector<16x16xf32>
    %107 = vector.broadcast %cst_59 : f32 to vector<16x16xf32>
    %108 = arith.select %105, %106, %107 : vector<16x16xi1>, vector<16x16xf32>
    %cst_60 = arith.constant dense<0.000000e+00> : vector<16x16xf32>
    %109 = tpu.matmul %108, %77, %cst_60 {dimension_numbers = #tpu.dot_dimension_numbers<[1], [0], [0], [1], [0, 0, 1, 1], [], []>} : vector<16x16xf32>, vector<16x16xf32>, vector<16x16xf32> -> vector<16x16xf32>
    %110 = arith.truncf %109 : vector<16x16xf32> to vector<16x16xbf16>
    %c2_61 = arith.constant 2 : index
    %c0_62 = arith.constant 0 : index
    %c0_63 = arith.constant 0 : index
    %111 = vector.load %arg11[%c2_61, %c0_62, %c0_63] : memref<5x16x24xbf16, #tpu.memory_space<vmem>>, vector<1x16x24xbf16>
    %112 = vector.shape_cast %111 : vector<1x16x24xbf16> to vector<16x24xbf16>
    %cst_64 = arith.constant dense<0.000000e+00> : vector<16x24xf32>
    %113 = tpu.matmul %110, %112, %cst_64 {dimension_numbers = #tpu.dot_dimension_numbers<[1], [0], [0], [1], [0, 0, 1, 1], [], []>} : vector<16x16xbf16>, vector<16x24xbf16>, vector<16x24xf32> -> vector<16x24xf32>
    %114 = arith.addf %102, %113 : vector<16x24xf32>
    %115 = arith.subi %9, %8 : vector<16x16xi32>
    %c1_i32_65 = arith.constant 1 : i32
    %116 = vector.broadcast %c1_i32_65 : i32 to vector<16x16xi32>
    %117 = arith.cmpi eq, %115, %116 : vector<16x16xi32>
    %cst_66 = arith.constant 1.000000e+00 : f32
    %cst_67 = arith.constant 0.000000e+00 : f32
    %118 = vector.broadcast %cst_66 : f32 to vector<16x16xf32>
    %119 = vector.broadcast %cst_67 : f32 to vector<16x16xf32>
    %120 = arith.select %117, %118, %119 : vector<16x16xi1>, vector<16x16xf32>
    %cst_68 = arith.constant dense<0.000000e+00> : vector<16x16xf32>
    %121 = tpu.matmul %120, %77, %cst_68 {dimension_numbers = #tpu.dot_dimension_numbers<[1], [0], [0], [1], [0, 0, 1, 1], [], []>} : vector<16x16xf32>, vector<16x16xf32>, vector<16x16xf32> -> vector<16x16xf32>
    %122 = arith.truncf %121 : vector<16x16xf32> to vector<16x16xbf16>
    %c3 = arith.constant 3 : index
    %c0_69 = arith.constant 0 : index
    %c0_70 = arith.constant 0 : index
    %123 = vector.load %arg11[%c3, %c0_69, %c0_70] : memref<5x16x24xbf16, #tpu.memory_space<vmem>>, vector<1x16x24xbf16>
    %124 = vector.shape_cast %123 : vector<1x16x24xbf16> to vector<16x24xbf16>
    %cst_71 = arith.constant dense<0.000000e+00> : vector<16x24xf32>
    %125 = tpu.matmul %122, %124, %cst_71 {dimension_numbers = #tpu.dot_dimension_numbers<[1], [0], [0], [1], [0, 0, 1, 1], [], []>} : vector<16x16xbf16>, vector<16x24xbf16>, vector<16x24xf32> -> vector<16x24xf32>
    %126 = arith.addf %114, %125 : vector<16x24xf32>
    %127 = arith.subi %9, %8 : vector<16x16xi32>
    %c2_i32 = arith.constant 2 : i32
    %128 = vector.broadcast %c2_i32 : i32 to vector<16x16xi32>
    %129 = arith.cmpi eq, %127, %128 : vector<16x16xi32>
    %cst_72 = arith.constant 1.000000e+00 : f32
    %cst_73 = arith.constant 0.000000e+00 : f32
    %130 = vector.broadcast %cst_72 : f32 to vector<16x16xf32>
    %131 = vector.broadcast %cst_73 : f32 to vector<16x16xf32>
    %132 = arith.select %129, %130, %131 : vector<16x16xi1>, vector<16x16xf32>
    %cst_74 = arith.constant dense<0.000000e+00> : vector<16x16xf32>
    %133 = tpu.matmul %132, %77, %cst_74 {dimension_numbers = #tpu.dot_dimension_numbers<[1], [0], [0], [1], [0, 0, 1, 1], [], []>} : vector<16x16xf32>, vector<16x16xf32>, vector<16x16xf32> -> vector<16x16xf32>
    %134 = arith.truncf %133 : vector<16x16xf32> to vector<16x16xbf16>
    %c4 = arith.constant 4 : index
    %c0_75 = arith.constant 0 : index
    %c0_76 = arith.constant 0 : index
    %135 = vector.load %arg11[%c4, %c0_75, %c0_76] : memref<5x16x24xbf16, #tpu.memory_space<vmem>>, vector<1x16x24xbf16>
    %136 = vector.shape_cast %135 : vector<1x16x24xbf16> to vector<16x24xbf16>
    %cst_77 = arith.constant dense<0.000000e+00> : vector<16x24xf32>
    %137 = tpu.matmul %134, %136, %cst_77 {dimension_numbers = #tpu.dot_dimension_numbers<[1], [0], [0], [1], [0, 0, 1, 1], [], []>} : vector<16x16xbf16>, vector<16x24xbf16>, vector<16x24xf32> -> vector<16x24xf32>
    %138 = arith.addf %126, %137 : vector<16x24xf32>
    %c0_78 = arith.constant 0 : index
    %c0_79 = arith.constant 0 : index
    %139 = vector.load %arg12[%c0_78, %c0_79] : memref<1x24xf32, #tpu.memory_space<vmem>>, vector<1x24xf32>
    %140 = vector.broadcast %139 : vector<1x24xf32> to vector<16x24xf32>
    %141 = arith.addf %138, %140 : vector<16x24xf32>
    %c0_80 = arith.constant 0 : index
    %c0_81 = arith.constant 0 : index
    %142 = vector.load %arg15[%c0_80, %c0_81] : memref<1x24xf32, #tpu.memory_space<vmem>>, vector<1x24xf32>
    %143 = vector.broadcast %142 : vector<1x24xf32> to vector<16x24xf32>
    %144 = arith.subf %141, %143 : vector<16x24xf32>
    %c0_82 = arith.constant 0 : index
    %c0_83 = arith.constant 0 : index
    %145 = vector.load %arg16[%c0_82, %c0_83] : memref<1x24xf32, #tpu.memory_space<vmem>>, vector<1x24xf32>
    %cst_84 = arith.constant 9.99999974E-6 : f32
    %146 = vector.broadcast %cst_84 : f32 to vector<1x24xf32>
    %147 = arith.addf %145, %146 : vector<1x24xf32>
    %148 = math.rsqrt %147 : vector<1x24xf32>
    %149 = vector.broadcast %148 : vector<1x24xf32> to vector<16x24xf32>
    %150 = arith.mulf %144, %149 : vector<16x24xf32>
    %c0_85 = arith.constant 0 : index
    %c0_86 = arith.constant 0 : index
    %151 = vector.load %arg13[%c0_85, %c0_86] : memref<1x24xf32, #tpu.memory_space<vmem>>, vector<1x24xf32>
    %152 = vector.broadcast %151 : vector<1x24xf32> to vector<16x24xf32>
    %153 = arith.mulf %150, %152 : vector<16x24xf32>
    %c0_87 = arith.constant 0 : index
    %c0_88 = arith.constant 0 : index
    %154 = vector.load %arg14[%c0_87, %c0_88] : memref<1x24xf32, #tpu.memory_space<vmem>>, vector<1x24xf32>
    %155 = vector.broadcast %154 : vector<1x24xf32> to vector<16x24xf32>
    %156 = arith.addf %153, %155 : vector<16x24xf32>
    %cst_89 = arith.constant 5.000000e-01 : f32
    %157 = vector.broadcast %cst_89 : f32 to vector<16x24xf32>
    %158 = arith.mulf %157, %156 : vector<16x24xf32>
    %cst_90 = arith.constant 4.471500e-02 : f32
    %159 = vector.broadcast %cst_90 : f32 to vector<16x24xf32>
    %160 = arith.mulf %159, %156 : vector<16x24xf32>
    %161 = arith.mulf %160, %156 : vector<16x24xf32>
    %162 = arith.mulf %161, %156 : vector<16x24xf32>
    %163 = arith.addf %156, %162 : vector<16x24xf32>
    %cst_91 = arith.constant 0.797884583 : f32
    %164 = vector.broadcast %cst_91 : f32 to vector<16x24xf32>
    %165 = arith.mulf %164, %163 : vector<16x24xf32>
    %166 = math.tanh %165 : vector<16x24xf32>
    %cst_92 = arith.constant 1.000000e+00 : f32
    %167 = vector.broadcast %cst_92 : f32 to vector<16x24xf32>
    %168 = arith.addf %167, %166 : vector<16x24xf32>
    %169 = arith.mulf %158, %168 : vector<16x24xf32>
    %cst_93 = arith.constant 0.000000e+00 : f32
    %170 = vector.broadcast %cst_93 : f32 to vector<16x32xf32>
    %171 = arith.subi %9, %8 : vector<16x16xi32>
    %c-3_i32 = arith.constant -3 : i32
    %172 = vector.broadcast %c-3_i32 : i32 to vector<16x16xi32>
    %173 = arith.cmpi eq, %171, %172 : vector<16x16xi32>
    %cst_94 = arith.constant 1.000000e+00 : f32
    %cst_95 = arith.constant 0.000000e+00 : f32
    %174 = vector.broadcast %cst_94 : f32 to vector<16x16xf32>
    %175 = vector.broadcast %cst_95 : f32 to vector<16x16xf32>
    %176 = arith.select %173, %174, %175 : vector<16x16xi1>, vector<16x16xf32>
    %cst_96 = arith.constant dense<0.000000e+00> : vector<16x24xf32>
    %177 = tpu.matmul %176, %169, %cst_96 {dimension_numbers = #tpu.dot_dimension_numbers<[1], [0], [0], [1], [0, 0, 1, 1], [], []>} : vector<16x16xf32>, vector<16x24xf32>, vector<16x24xf32> -> vector<16x24xf32>
    %178 = arith.truncf %177 : vector<16x24xf32> to vector<16x24xbf16>
    %c0_97 = arith.constant 0 : index
    %c0_98 = arith.constant 0 : index
    %c0_99 = arith.constant 0 : index
    %179 = vector.load %arg17[%c0_97, %c0_98, %c0_99] : memref<7x24x32xbf16, #tpu.memory_space<vmem>>, vector<1x24x32xbf16>
    %180 = vector.shape_cast %179 : vector<1x24x32xbf16> to vector<24x32xbf16>
    %cst_100 = arith.constant dense<0.000000e+00> : vector<16x32xf32>
    %181 = tpu.matmul %178, %180, %cst_100 {dimension_numbers = #tpu.dot_dimension_numbers<[1], [0], [0], [1], [0, 0, 1, 1], [], []>} : vector<16x24xbf16>, vector<24x32xbf16>, vector<16x32xf32> -> vector<16x32xf32>
    %182 = arith.addf %170, %181 : vector<16x32xf32>
    %183 = arith.subi %9, %8 : vector<16x16xi32>
    %c-2_i32_101 = arith.constant -2 : i32
    %184 = vector.broadcast %c-2_i32_101 : i32 to vector<16x16xi32>
    %185 = arith.cmpi eq, %183, %184 : vector<16x16xi32>
    %cst_102 = arith.constant 1.000000e+00 : f32
    %cst_103 = arith.constant 0.000000e+00 : f32
    %186 = vector.broadcast %cst_102 : f32 to vector<16x16xf32>
    %187 = vector.broadcast %cst_103 : f32 to vector<16x16xf32>
    %188 = arith.select %185, %186, %187 : vector<16x16xi1>, vector<16x16xf32>
    %cst_104 = arith.constant dense<0.000000e+00> : vector<16x24xf32>
    %189 = tpu.matmul %188, %169, %cst_104 {dimension_numbers = #tpu.dot_dimension_numbers<[1], [0], [0], [1], [0, 0, 1, 1], [], []>} : vector<16x16xf32>, vector<16x24xf32>, vector<16x24xf32> -> vector<16x24xf32>
    %190 = arith.truncf %189 : vector<16x24xf32> to vector<16x24xbf16>
    %c1_105 = arith.constant 1 : index
    %c0_106 = arith.constant 0 : index
    %c0_107 = arith.constant 0 : index
    %191 = vector.load %arg17[%c1_105, %c0_106, %c0_107] : memref<7x24x32xbf16, #tpu.memory_space<vmem>>, vector<1x24x32xbf16>
    %192 = vector.shape_cast %191 : vector<1x24x32xbf16> to vector<24x32xbf16>
    %cst_108 = arith.constant dense<0.000000e+00> : vector<16x32xf32>
    %193 = tpu.matmul %190, %192, %cst_108 {dimension_numbers = #tpu.dot_dimension_numbers<[1], [0], [0], [1], [0, 0, 1, 1], [], []>} : vector<16x24xbf16>, vector<24x32xbf16>, vector<16x32xf32> -> vector<16x32xf32>
    %194 = arith.addf %182, %193 : vector<16x32xf32>
    %195 = arith.subi %9, %8 : vector<16x16xi32>
    %c-1_i32_109 = arith.constant -1 : i32
    %196 = vector.broadcast %c-1_i32_109 : i32 to vector<16x16xi32>
    %197 = arith.cmpi eq, %195, %196 : vector<16x16xi32>
    %cst_110 = arith.constant 1.000000e+00 : f32
    %cst_111 = arith.constant 0.000000e+00 : f32
    %198 = vector.broadcast %cst_110 : f32 to vector<16x16xf32>
    %199 = vector.broadcast %cst_111 : f32 to vector<16x16xf32>
    %200 = arith.select %197, %198, %199 : vector<16x16xi1>, vector<16x16xf32>
    %cst_112 = arith.constant dense<0.000000e+00> : vector<16x24xf32>
    %201 = tpu.matmul %200, %169, %cst_112 {dimension_numbers = #tpu.dot_dimension_numbers<[1], [0], [0], [1], [0, 0, 1, 1], [], []>} : vector<16x16xf32>, vector<16x24xf32>, vector<16x24xf32> -> vector<16x24xf32>
    %202 = arith.truncf %201 : vector<16x24xf32> to vector<16x24xbf16>
    %c2_113 = arith.constant 2 : index
    %c0_114 = arith.constant 0 : index
    %c0_115 = arith.constant 0 : index
    %203 = vector.load %arg17[%c2_113, %c0_114, %c0_115] : memref<7x24x32xbf16, #tpu.memory_space<vmem>>, vector<1x24x32xbf16>
    %204 = vector.shape_cast %203 : vector<1x24x32xbf16> to vector<24x32xbf16>
    %cst_116 = arith.constant dense<0.000000e+00> : vector<16x32xf32>
    %205 = tpu.matmul %202, %204, %cst_116 {dimension_numbers = #tpu.dot_dimension_numbers<[1], [0], [0], [1], [0, 0, 1, 1], [], []>} : vector<16x24xbf16>, vector<24x32xbf16>, vector<16x32xf32> -> vector<16x32xf32>
    %206 = arith.addf %194, %205 : vector<16x32xf32>
    %207 = arith.subi %9, %8 : vector<16x16xi32>
    %c0_i32_117 = arith.constant 0 : i32
    %208 = vector.broadcast %c0_i32_117 : i32 to vector<16x16xi32>
    %209 = arith.cmpi eq, %207, %208 : vector<16x16xi32>
    %cst_118 = arith.constant 1.000000e+00 : f32
    %cst_119 = arith.constant 0.000000e+00 : f32
    %210 = vector.broadcast %cst_118 : f32 to vector<16x16xf32>
    %211 = vector.broadcast %cst_119 : f32 to vector<16x16xf32>
    %212 = arith.select %209, %210, %211 : vector<16x16xi1>, vector<16x16xf32>
    %cst_120 = arith.constant dense<0.000000e+00> : vector<16x24xf32>
    %213 = tpu.matmul %212, %169, %cst_120 {dimension_numbers = #tpu.dot_dimension_numbers<[1], [0], [0], [1], [0, 0, 1, 1], [], []>} : vector<16x16xf32>, vector<16x24xf32>, vector<16x24xf32> -> vector<16x24xf32>
    %214 = arith.truncf %213 : vector<16x24xf32> to vector<16x24xbf16>
    %c3_121 = arith.constant 3 : index
    %c0_122 = arith.constant 0 : index
    %c0_123 = arith.constant 0 : index
    %215 = vector.load %arg17[%c3_121, %c0_122, %c0_123] : memref<7x24x32xbf16, #tpu.memory_space<vmem>>, vector<1x24x32xbf16>
    %216 = vector.shape_cast %215 : vector<1x24x32xbf16> to vector<24x32xbf16>
    %cst_124 = arith.constant dense<0.000000e+00> : vector<16x32xf32>
    %217 = tpu.matmul %214, %216, %cst_124 {dimension_numbers = #tpu.dot_dimension_numbers<[1], [0], [0], [1], [0, 0, 1, 1], [], []>} : vector<16x24xbf16>, vector<24x32xbf16>, vector<16x32xf32> -> vector<16x32xf32>
    %218 = arith.addf %206, %217 : vector<16x32xf32>
    %219 = arith.subi %9, %8 : vector<16x16xi32>
    %c1_i32_125 = arith.constant 1 : i32
    %220 = vector.broadcast %c1_i32_125 : i32 to vector<16x16xi32>
    %221 = arith.cmpi eq, %219, %220 : vector<16x16xi32>
    %cst_126 = arith.constant 1.000000e+00 : f32
    %cst_127 = arith.constant 0.000000e+00 : f32
    %222 = vector.broadcast %cst_126 : f32 to vector<16x16xf32>
    %223 = vector.broadcast %cst_127 : f32 to vector<16x16xf32>
    %224 = arith.select %221, %222, %223 : vector<16x16xi1>, vector<16x16xf32>
    %cst_128 = arith.constant dense<0.000000e+00> : vector<16x24xf32>
    %225 = tpu.matmul %224, %169, %cst_128 {dimension_numbers = #tpu.dot_dimension_numbers<[1], [0], [0], [1], [0, 0, 1, 1], [], []>} : vector<16x16xf32>, vector<16x24xf32>, vector<16x24xf32> -> vector<16x24xf32>
    %226 = arith.truncf %225 : vector<16x24xf32> to vector<16x24xbf16>
    %c4_129 = arith.constant 4 : index
    %c0_130 = arith.constant 0 : index
    %c0_131 = arith.constant 0 : index
    %227 = vector.load %arg17[%c4_129, %c0_130, %c0_131] : memref<7x24x32xbf16, #tpu.memory_space<vmem>>, vector<1x24x32xbf16>
    %228 = vector.shape_cast %227 : vector<1x24x32xbf16> to vector<24x32xbf16>
    %cst_132 = arith.constant dense<0.000000e+00> : vector<16x32xf32>
    %229 = tpu.matmul %226, %228, %cst_132 {dimension_numbers = #tpu.dot_dimension_numbers<[1], [0], [0], [1], [0, 0, 1, 1], [], []>} : vector<16x24xbf16>, vector<24x32xbf16>, vector<16x32xf32> -> vector<16x32xf32>
    %230 = arith.addf %218, %229 : vector<16x32xf32>
    %231 = arith.subi %9, %8 : vector<16x16xi32>
    %c2_i32_133 = arith.constant 2 : i32
    %232 = vector.broadcast %c2_i32_133 : i32 to vector<16x16xi32>
    %233 = arith.cmpi eq, %231, %232 : vector<16x16xi32>
    %cst_134 = arith.constant 1.000000e+00 : f32
    %cst_135 = arith.constant 0.000000e+00 : f32
    %234 = vector.broadcast %cst_134 : f32 to vector<16x16xf32>
    %235 = vector.broadcast %cst_135 : f32 to vector<16x16xf32>
    %236 = arith.select %233, %234, %235 : vector<16x16xi1>, vector<16x16xf32>
    %cst_136 = arith.constant dense<0.000000e+00> : vector<16x24xf32>
    %237 = tpu.matmul %236, %169, %cst_136 {dimension_numbers = #tpu.dot_dimension_numbers<[1], [0], [0], [1], [0, 0, 1, 1], [], []>} : vector<16x16xf32>, vector<16x24xf32>, vector<16x24xf32> -> vector<16x24xf32>
    %238 = arith.truncf %237 : vector<16x24xf32> to vector<16x24xbf16>
    %c5 = arith.constant 5 : index
    %c0_137 = arith.constant 0 : index
    %c0_138 = arith.constant 0 : index
    %239 = vector.load %arg17[%c5, %c0_137, %c0_138] : memref<7x24x32xbf16, #tpu.memory_space<vmem>>, vector<1x24x32xbf16>
    %240 = vector.shape_cast %239 : vector<1x24x32xbf16> to vector<24x32xbf16>
    %cst_139 = arith.constant dense<0.000000e+00> : vector<16x32xf32>
    %241 = tpu.matmul %238, %240, %cst_139 {dimension_numbers = #tpu.dot_dimension_numbers<[1], [0], [0], [1], [0, 0, 1, 1], [], []>} : vector<16x24xbf16>, vector<24x32xbf16>, vector<16x32xf32> -> vector<16x32xf32>
    %242 = arith.addf %230, %241 : vector<16x32xf32>
    %243 = arith.subi %9, %8 : vector<16x16xi32>
    %c3_i32 = arith.constant 3 : i32
    %244 = vector.broadcast %c3_i32 : i32 to vector<16x16xi32>
    %245 = arith.cmpi eq, %243, %244 : vector<16x16xi32>
    %cst_140 = arith.constant 1.000000e+00 : f32
    %cst_141 = arith.constant 0.000000e+00 : f32
    %246 = vector.broadcast %cst_140 : f32 to vector<16x16xf32>
    %247 = vector.broadcast %cst_141 : f32 to vector<16x16xf32>
    %248 = arith.select %245, %246, %247 : vector<16x16xi1>, vector<16x16xf32>
    %cst_142 = arith.constant dense<0.000000e+00> : vector<16x24xf32>
    %249 = tpu.matmul %248, %169, %cst_142 {dimension_numbers = #tpu.dot_dimension_numbers<[1], [0], [0], [1], [0, 0, 1, 1], [], []>} : vector<16x16xf32>, vector<16x24xf32>, vector<16x24xf32> -> vector<16x24xf32>
    %250 = arith.truncf %249 : vector<16x24xf32> to vector<16x24xbf16>
    %c6 = arith.constant 6 : index
    %c0_143 = arith.constant 0 : index
    %c0_144 = arith.constant 0 : index
    %251 = vector.load %arg17[%c6, %c0_143, %c0_144] : memref<7x24x32xbf16, #tpu.memory_space<vmem>>, vector<1x24x32xbf16>
    %252 = vector.shape_cast %251 : vector<1x24x32xbf16> to vector<24x32xbf16>
    %cst_145 = arith.constant dense<0.000000e+00> : vector<16x32xf32>
    %253 = tpu.matmul %250, %252, %cst_145 {dimension_numbers = #tpu.dot_dimension_numbers<[1], [0], [0], [1], [0, 0, 1, 1], [], []>} : vector<16x24xbf16>, vector<24x32xbf16>, vector<16x32xf32> -> vector<16x32xf32>
    %254 = arith.addf %242, %253 : vector<16x32xf32>
    %c0_146 = arith.constant 0 : index
    %c0_147 = arith.constant 0 : index
    %255 = vector.load %arg18[%c0_146, %c0_147] : memref<1x32xf32, #tpu.memory_space<vmem>>, vector<1x32xf32>
    %256 = vector.broadcast %255 : vector<1x32xf32> to vector<16x32xf32>
    %257 = arith.addf %254, %256 : vector<16x32xf32>
    %c0_148 = arith.constant 0 : index
    %c0_149 = arith.constant 0 : index
    %258 = vector.load %arg21[%c0_148, %c0_149] : memref<1x32xf32, #tpu.memory_space<vmem>>, vector<1x32xf32>
    %259 = vector.broadcast %258 : vector<1x32xf32> to vector<16x32xf32>
    %260 = arith.subf %257, %259 : vector<16x32xf32>
    %c0_150 = arith.constant 0 : index
    %c0_151 = arith.constant 0 : index
    %261 = vector.load %arg22[%c0_150, %c0_151] : memref<1x32xf32, #tpu.memory_space<vmem>>, vector<1x32xf32>
    %cst_152 = arith.constant 9.99999974E-6 : f32
    %262 = vector.broadcast %cst_152 : f32 to vector<1x32xf32>
    %263 = arith.addf %261, %262 : vector<1x32xf32>
    %264 = math.rsqrt %263 : vector<1x32xf32>
    %265 = vector.broadcast %264 : vector<1x32xf32> to vector<16x32xf32>
    %266 = arith.mulf %260, %265 : vector<16x32xf32>
    %c0_153 = arith.constant 0 : index
    %c0_154 = arith.constant 0 : index
    %267 = vector.load %arg19[%c0_153, %c0_154] : memref<1x32xf32, #tpu.memory_space<vmem>>, vector<1x32xf32>
    %268 = vector.broadcast %267 : vector<1x32xf32> to vector<16x32xf32>
    %269 = arith.mulf %266, %268 : vector<16x32xf32>
    %c0_155 = arith.constant 0 : index
    %c0_156 = arith.constant 0 : index
    %270 = vector.load %arg20[%c0_155, %c0_156] : memref<1x32xf32, #tpu.memory_space<vmem>>, vector<1x32xf32>
    %271 = vector.broadcast %270 : vector<1x32xf32> to vector<16x32xf32>
    %272 = arith.addf %269, %271 : vector<16x32xf32>
    %cst_157 = arith.constant 5.000000e-01 : f32
    %273 = vector.broadcast %cst_157 : f32 to vector<16x32xf32>
    %274 = arith.mulf %273, %272 : vector<16x32xf32>
    %cst_158 = arith.constant 4.471500e-02 : f32
    %275 = vector.broadcast %cst_158 : f32 to vector<16x32xf32>
    %276 = arith.mulf %275, %272 : vector<16x32xf32>
    %277 = arith.mulf %276, %272 : vector<16x32xf32>
    %278 = arith.mulf %277, %272 : vector<16x32xf32>
    %279 = arith.addf %272, %278 : vector<16x32xf32>
    %cst_159 = arith.constant 0.797884583 : f32
    %280 = vector.broadcast %cst_159 : f32 to vector<16x32xf32>
    %281 = arith.mulf %280, %279 : vector<16x32xf32>
    %282 = math.tanh %281 : vector<16x32xf32>
    %cst_160 = arith.constant 1.000000e+00 : f32
    %283 = vector.broadcast %cst_160 : f32 to vector<16x32xf32>
    %284 = arith.addf %283, %282 : vector<16x32xf32>
    %285 = arith.mulf %274, %284 : vector<16x32xf32>
    %286 = arith.truncf %285 : vector<16x32xf32> to vector<16x32xbf16>
    %c0_161 = arith.constant 0 : index
    %c0_162 = arith.constant 0 : index
    %287 = vector.load %arg23[%c0_161, %c0_162] : memref<32x32xbf16, #tpu.memory_space<vmem>>, vector<32x32xbf16>
    %cst_163 = arith.constant dense<0.000000e+00> : vector<16x32xf32>
    %288 = tpu.matmul %286, %287, %cst_163 {dimension_numbers = #tpu.dot_dimension_numbers<[1], [0], [0], [1], [0, 0, 1, 1], [], []>} : vector<16x32xbf16>, vector<32x32xbf16>, vector<16x32xf32> -> vector<16x32xf32>
    %c0_164 = arith.constant 0 : index
    %c0_165 = arith.constant 0 : index
    %289 = vector.load %arg24[%c0_164, %c0_165] : memref<1x32xf32, #tpu.memory_space<vmem>>, vector<1x32xf32>
    %290 = vector.broadcast %289 : vector<1x32xf32> to vector<16x32xf32>
    %291 = arith.addf %288, %290 : vector<16x32xf32>
    %292 = arith.addf %7, %291 : vector<16x32xf32>
    %c0_166 = arith.constant 0 : index
    %c0_167 = arith.constant 0 : index
    %293 = vector.load %arg2[%c0_166, %c0_167] : memref<16x32xf32, #tpu.memory_space<vmem>>, vector<16x32xf32>
    %294 = arith.addf %292, %293 : vector<16x32xf32>
    %295 = arith.truncf %294 : vector<16x32xf32> to vector<16x32xbf16>
    %cst_168 = arith.constant 0.000000e+00 : f32
    %296 = vector.broadcast %cst_168 : f32 to vector<16x32xf32>
    %c0_169 = arith.constant 0 : index
    %c0_170 = arith.constant 0 : index
    %c0_171 = arith.constant 0 : index
    %297 = vector.load %arg25[%c0_169, %c0_170, %c0_171] : memref<4x32x8xbf16, #tpu.memory_space<vmem>>, vector<1x32x8xbf16>
    %298 = vector.shape_cast %297 : vector<1x32x8xbf16> to vector<32x8xbf16>
    %cst_172 = arith.constant dense<0.000000e+00> : vector<16x8xf32>
    %299 = tpu.matmul %295, %298, %cst_172 {dimension_numbers = #tpu.dot_dimension_numbers<[1], [0], [0], [1], [0, 0, 1, 1], [], []>} : vector<16x32xbf16>, vector<32x8xbf16>, vector<16x8xf32> -> vector<16x8xf32>
    %c0_173 = arith.constant 0 : index
    %c0_174 = arith.constant 0 : index
    %c0_175 = arith.constant 0 : index
    %300 = vector.load %arg26[%c0_173, %c0_174, %c0_175] : memref<4x1x8xf32, #tpu.memory_space<vmem>>, vector<1x1x8xf32>
    %301 = vector.shape_cast %300 : vector<1x1x8xf32> to vector<1x8xf32>
    %302 = vector.broadcast %301 : vector<1x8xf32> to vector<16x8xf32>
    %303 = arith.addf %299, %302 : vector<16x8xf32>
    %c0_176 = arith.constant 0 : index
    %c0_177 = arith.constant 0 : index
    %c0_178 = arith.constant 0 : index
    %304 = vector.load %arg27[%c0_176, %c0_177, %c0_178] : memref<4x32x8xbf16, #tpu.memory_space<vmem>>, vector<1x32x8xbf16>
    %305 = vector.shape_cast %304 : vector<1x32x8xbf16> to vector<32x8xbf16>
    %cst_179 = arith.constant dense<0.000000e+00> : vector<16x8xf32>
    %306 = tpu.matmul %295, %305, %cst_179 {dimension_numbers = #tpu.dot_dimension_numbers<[1], [0], [0], [1], [0, 0, 1, 1], [], []>} : vector<16x32xbf16>, vector<32x8xbf16>, vector<16x8xf32> -> vector<16x8xf32>
    %c0_180 = arith.constant 0 : index
    %c0_181 = arith.constant 0 : index
    %c0_182 = arith.constant 0 : index
    %307 = vector.load %arg28[%c0_180, %c0_181, %c0_182] : memref<4x1x8xf32, #tpu.memory_space<vmem>>, vector<1x1x8xf32>
    %308 = vector.shape_cast %307 : vector<1x1x8xf32> to vector<1x8xf32>
    %309 = vector.broadcast %308 : vector<1x8xf32> to vector<16x8xf32>
    %310 = arith.addf %306, %309 : vector<16x8xf32>
    %c0_183 = arith.constant 0 : index
    %c0_184 = arith.constant 0 : index
    %c0_185 = arith.constant 0 : index
    %311 = vector.load %arg29[%c0_183, %c0_184, %c0_185] : memref<4x32x8xbf16, #tpu.memory_space<vmem>>, vector<1x32x8xbf16>
    %312 = vector.shape_cast %311 : vector<1x32x8xbf16> to vector<32x8xbf16>
    %cst_186 = arith.constant dense<0.000000e+00> : vector<16x8xf32>
    %313 = tpu.matmul %295, %312, %cst_186 {dimension_numbers = #tpu.dot_dimension_numbers<[1], [0], [0], [1], [0, 0, 1, 1], [], []>} : vector<16x32xbf16>, vector<32x8xbf16>, vector<16x8xf32> -> vector<16x8xf32>
    %c0_187 = arith.constant 0 : index
    %c0_188 = arith.constant 0 : index
    %c0_189 = arith.constant 0 : index
    %314 = vector.load %arg30[%c0_187, %c0_188, %c0_189] : memref<4x1x8xf32, #tpu.memory_space<vmem>>, vector<1x1x8xf32>
    %315 = vector.shape_cast %314 : vector<1x1x8xf32> to vector<1x8xf32>
    %316 = vector.broadcast %315 : vector<1x8xf32> to vector<16x8xf32>
    %317 = arith.addf %313, %316 : vector<16x8xf32>
    %318 = arith.truncf %303 : vector<16x8xf32> to vector<16x8xbf16>
    %319 = arith.truncf %310 : vector<16x8xf32> to vector<16x8xbf16>
    %cst_190 = arith.constant dense<0.000000e+00> : vector<16x16xf32>
    %320 = tpu.matmul %318, %319, %cst_190 {dimension_numbers = #tpu.dot_dimension_numbers<[1], [1], [0], [0], [0, 0, 1, 0], [], []>} : vector<16x8xbf16>, vector<16x8xbf16>, vector<16x16xf32> -> vector<16x16xf32>
    %cst_191 = arith.constant 0.353553385 : f32
    %321 = vector.broadcast %cst_191 : f32 to vector<16x16xf32>
    %322 = arith.mulf %320, %321 : vector<16x16xf32>
    %cst_192 = arith.constant dense<0xFF800000> : vector<16xf32>
    %323 = vector.multi_reduction <maximumf>, %322, %cst_192 [1] : vector<16x16xf32> to vector<16xf32>
    %324 = vector.shape_cast %323 : vector<16xf32> to vector<16x1xf32>
    %325 = vector.broadcast %324 : vector<16x1xf32> to vector<16x16xf32>
    %326 = arith.subf %322, %325 : vector<16x16xf32>
    %327 = math.exp %326 : vector<16x16xf32>
    %cst_193 = arith.constant dense<0.000000e+00> : vector<16xf32>
    %328 = vector.multi_reduction <add>, %327, %cst_193 [1] : vector<16x16xf32> to vector<16xf32>
    %329 = vector.shape_cast %328 : vector<16xf32> to vector<16x1xf32>
    %330 = tpu.reciprocal %329 {approx = true} : vector<16x1xf32> -> vector<16x1xf32>
    %331 = vector.broadcast %330 : vector<16x1xf32> to vector<16x16xf32>
    %332 = arith.mulf %327, %331 : vector<16x16xf32>
    %333 = arith.truncf %332 : vector<16x16xf32> to vector<16x16xbf16>
    %334 = arith.truncf %317 : vector<16x8xf32> to vector<16x8xbf16>
    %cst_194 = arith.constant dense<0.000000e+00> : vector<16x8xf32>
    %335 = tpu.matmul %333, %334, %cst_194 {dimension_numbers = #tpu.dot_dimension_numbers<[1], [0], [0], [1], [0, 0, 1, 1], [], []>} : vector<16x16xbf16>, vector<16x8xbf16>, vector<16x8xf32> -> vector<16x8xf32>
    %336 = arith.truncf %335 : vector<16x8xf32> to vector<16x8xbf16>
    %c0_195 = arith.constant 0 : index
    %c0_196 = arith.constant 0 : index
    %c0_197 = arith.constant 0 : index
    %337 = vector.load %arg31[%c0_195, %c0_196, %c0_197] : memref<4x8x32xbf16, #tpu.memory_space<vmem>>, vector<1x8x32xbf16>
    %338 = vector.shape_cast %337 : vector<1x8x32xbf16> to vector<8x32xbf16>
    %cst_198 = arith.constant dense<0.000000e+00> : vector<16x32xf32>
    %339 = tpu.matmul %336, %338, %cst_198 {dimension_numbers = #tpu.dot_dimension_numbers<[1], [0], [0], [1], [0, 0, 1, 1], [], []>} : vector<16x8xbf16>, vector<8x32xbf16>, vector<16x32xf32> -> vector<16x32xf32>
    %340 = arith.addf %296, %339 : vector<16x32xf32>
    %c1_199 = arith.constant 1 : index
    %c0_200 = arith.constant 0 : index
    %c0_201 = arith.constant 0 : index
    %341 = vector.load %arg25[%c1_199, %c0_200, %c0_201] : memref<4x32x8xbf16, #tpu.memory_space<vmem>>, vector<1x32x8xbf16>
    %342 = vector.shape_cast %341 : vector<1x32x8xbf16> to vector<32x8xbf16>
    %cst_202 = arith.constant dense<0.000000e+00> : vector<16x8xf32>
    %343 = tpu.matmul %295, %342, %cst_202 {dimension_numbers = #tpu.dot_dimension_numbers<[1], [0], [0], [1], [0, 0, 1, 1], [], []>} : vector<16x32xbf16>, vector<32x8xbf16>, vector<16x8xf32> -> vector<16x8xf32>
    %c1_203 = arith.constant 1 : index
    %c0_204 = arith.constant 0 : index
    %c0_205 = arith.constant 0 : index
    %344 = vector.load %arg26[%c1_203, %c0_204, %c0_205] : memref<4x1x8xf32, #tpu.memory_space<vmem>>, vector<1x1x8xf32>
    %345 = vector.shape_cast %344 : vector<1x1x8xf32> to vector<1x8xf32>
    %346 = vector.broadcast %345 : vector<1x8xf32> to vector<16x8xf32>
    %347 = arith.addf %343, %346 : vector<16x8xf32>
    %c1_206 = arith.constant 1 : index
    %c0_207 = arith.constant 0 : index
    %c0_208 = arith.constant 0 : index
    %348 = vector.load %arg27[%c1_206, %c0_207, %c0_208] : memref<4x32x8xbf16, #tpu.memory_space<vmem>>, vector<1x32x8xbf16>
    %349 = vector.shape_cast %348 : vector<1x32x8xbf16> to vector<32x8xbf16>
    %cst_209 = arith.constant dense<0.000000e+00> : vector<16x8xf32>
    %350 = tpu.matmul %295, %349, %cst_209 {dimension_numbers = #tpu.dot_dimension_numbers<[1], [0], [0], [1], [0, 0, 1, 1], [], []>} : vector<16x32xbf16>, vector<32x8xbf16>, vector<16x8xf32> -> vector<16x8xf32>
    %c1_210 = arith.constant 1 : index
    %c0_211 = arith.constant 0 : index
    %c0_212 = arith.constant 0 : index
    %351 = vector.load %arg28[%c1_210, %c0_211, %c0_212] : memref<4x1x8xf32, #tpu.memory_space<vmem>>, vector<1x1x8xf32>
    %352 = vector.shape_cast %351 : vector<1x1x8xf32> to vector<1x8xf32>
    %353 = vector.broadcast %352 : vector<1x8xf32> to vector<16x8xf32>
    %354 = arith.addf %350, %353 : vector<16x8xf32>
    %c1_213 = arith.constant 1 : index
    %c0_214 = arith.constant 0 : index
    %c0_215 = arith.constant 0 : index
    %355 = vector.load %arg29[%c1_213, %c0_214, %c0_215] : memref<4x32x8xbf16, #tpu.memory_space<vmem>>, vector<1x32x8xbf16>
    %356 = vector.shape_cast %355 : vector<1x32x8xbf16> to vector<32x8xbf16>
    %cst_216 = arith.constant dense<0.000000e+00> : vector<16x8xf32>
    %357 = tpu.matmul %295, %356, %cst_216 {dimension_numbers = #tpu.dot_dimension_numbers<[1], [0], [0], [1], [0, 0, 1, 1], [], []>} : vector<16x32xbf16>, vector<32x8xbf16>, vector<16x8xf32> -> vector<16x8xf32>
    %c1_217 = arith.constant 1 : index
    %c0_218 = arith.constant 0 : index
    %c0_219 = arith.constant 0 : index
    %358 = vector.load %arg30[%c1_217, %c0_218, %c0_219] : memref<4x1x8xf32, #tpu.memory_space<vmem>>, vector<1x1x8xf32>
    %359 = vector.shape_cast %358 : vector<1x1x8xf32> to vector<1x8xf32>
    %360 = vector.broadcast %359 : vector<1x8xf32> to vector<16x8xf32>
    %361 = arith.addf %357, %360 : vector<16x8xf32>
    %362 = arith.truncf %347 : vector<16x8xf32> to vector<16x8xbf16>
    %363 = arith.truncf %354 : vector<16x8xf32> to vector<16x8xbf16>
    %cst_220 = arith.constant dense<0.000000e+00> : vector<16x16xf32>
    %364 = tpu.matmul %362, %363, %cst_220 {dimension_numbers = #tpu.dot_dimension_numbers<[1], [1], [0], [0], [0, 0, 1, 0], [], []>} : vector<16x8xbf16>, vector<16x8xbf16>, vector<16x16xf32> -> vector<16x16xf32>
    %cst_221 = arith.constant 0.353553385 : f32
    %365 = vector.broadcast %cst_221 : f32 to vector<16x16xf32>
    %366 = arith.mulf %364, %365 : vector<16x16xf32>
    %cst_222 = arith.constant dense<0xFF800000> : vector<16xf32>
    %367 = vector.multi_reduction <maximumf>, %366, %cst_222 [1] : vector<16x16xf32> to vector<16xf32>
    %368 = vector.shape_cast %367 : vector<16xf32> to vector<16x1xf32>
    %369 = vector.broadcast %368 : vector<16x1xf32> to vector<16x16xf32>
    %370 = arith.subf %366, %369 : vector<16x16xf32>
    %371 = math.exp %370 : vector<16x16xf32>
    %cst_223 = arith.constant dense<0.000000e+00> : vector<16xf32>
    %372 = vector.multi_reduction <add>, %371, %cst_223 [1] : vector<16x16xf32> to vector<16xf32>
    %373 = vector.shape_cast %372 : vector<16xf32> to vector<16x1xf32>
    %374 = tpu.reciprocal %373 {approx = true} : vector<16x1xf32> -> vector<16x1xf32>
    %375 = vector.broadcast %374 : vector<16x1xf32> to vector<16x16xf32>
    %376 = arith.mulf %371, %375 : vector<16x16xf32>
    %377 = arith.truncf %376 : vector<16x16xf32> to vector<16x16xbf16>
    %378 = arith.truncf %361 : vector<16x8xf32> to vector<16x8xbf16>
    %cst_224 = arith.constant dense<0.000000e+00> : vector<16x8xf32>
    %379 = tpu.matmul %377, %378, %cst_224 {dimension_numbers = #tpu.dot_dimension_numbers<[1], [0], [0], [1], [0, 0, 1, 1], [], []>} : vector<16x16xbf16>, vector<16x8xbf16>, vector<16x8xf32> -> vector<16x8xf32>
    %380 = arith.truncf %379 : vector<16x8xf32> to vector<16x8xbf16>
    %c1_225 = arith.constant 1 : index
    %c0_226 = arith.constant 0 : index
    %c0_227 = arith.constant 0 : index
    %381 = vector.load %arg31[%c1_225, %c0_226, %c0_227] : memref<4x8x32xbf16, #tpu.memory_space<vmem>>, vector<1x8x32xbf16>
    %382 = vector.shape_cast %381 : vector<1x8x32xbf16> to vector<8x32xbf16>
    %cst_228 = arith.constant dense<0.000000e+00> : vector<16x32xf32>
    %383 = tpu.matmul %380, %382, %cst_228 {dimension_numbers = #tpu.dot_dimension_numbers<[1], [0], [0], [1], [0, 0, 1, 1], [], []>} : vector<16x8xbf16>, vector<8x32xbf16>, vector<16x32xf32> -> vector<16x32xf32>
    %384 = arith.addf %340, %383 : vector<16x32xf32>
    %c2_229 = arith.constant 2 : index
    %c0_230 = arith.constant 0 : index
    %c0_231 = arith.constant 0 : index
    %385 = vector.load %arg25[%c2_229, %c0_230, %c0_231] : memref<4x32x8xbf16, #tpu.memory_space<vmem>>, vector<1x32x8xbf16>
    %386 = vector.shape_cast %385 : vector<1x32x8xbf16> to vector<32x8xbf16>
    %cst_232 = arith.constant dense<0.000000e+00> : vector<16x8xf32>
    %387 = tpu.matmul %295, %386, %cst_232 {dimension_numbers = #tpu.dot_dimension_numbers<[1], [0], [0], [1], [0, 0, 1, 1], [], []>} : vector<16x32xbf16>, vector<32x8xbf16>, vector<16x8xf32> -> vector<16x8xf32>
    %c2_233 = arith.constant 2 : index
    %c0_234 = arith.constant 0 : index
    %c0_235 = arith.constant 0 : index
    %388 = vector.load %arg26[%c2_233, %c0_234, %c0_235] : memref<4x1x8xf32, #tpu.memory_space<vmem>>, vector<1x1x8xf32>
    %389 = vector.shape_cast %388 : vector<1x1x8xf32> to vector<1x8xf32>
    %390 = vector.broadcast %389 : vector<1x8xf32> to vector<16x8xf32>
    %391 = arith.addf %387, %390 : vector<16x8xf32>
    %c2_236 = arith.constant 2 : index
    %c0_237 = arith.constant 0 : index
    %c0_238 = arith.constant 0 : index
    %392 = vector.load %arg27[%c2_236, %c0_237, %c0_238] : memref<4x32x8xbf16, #tpu.memory_space<vmem>>, vector<1x32x8xbf16>
    %393 = vector.shape_cast %392 : vector<1x32x8xbf16> to vector<32x8xbf16>
    %cst_239 = arith.constant dense<0.000000e+00> : vector<16x8xf32>
    %394 = tpu.matmul %295, %393, %cst_239 {dimension_numbers = #tpu.dot_dimension_numbers<[1], [0], [0], [1], [0, 0, 1, 1], [], []>} : vector<16x32xbf16>, vector<32x8xbf16>, vector<16x8xf32> -> vector<16x8xf32>
    %c2_240 = arith.constant 2 : index
    %c0_241 = arith.constant 0 : index
    %c0_242 = arith.constant 0 : index
    %395 = vector.load %arg28[%c2_240, %c0_241, %c0_242] : memref<4x1x8xf32, #tpu.memory_space<vmem>>, vector<1x1x8xf32>
    %396 = vector.shape_cast %395 : vector<1x1x8xf32> to vector<1x8xf32>
    %397 = vector.broadcast %396 : vector<1x8xf32> to vector<16x8xf32>
    %398 = arith.addf %394, %397 : vector<16x8xf32>
    %c2_243 = arith.constant 2 : index
    %c0_244 = arith.constant 0 : index
    %c0_245 = arith.constant 0 : index
    %399 = vector.load %arg29[%c2_243, %c0_244, %c0_245] : memref<4x32x8xbf16, #tpu.memory_space<vmem>>, vector<1x32x8xbf16>
    %400 = vector.shape_cast %399 : vector<1x32x8xbf16> to vector<32x8xbf16>
    %cst_246 = arith.constant dense<0.000000e+00> : vector<16x8xf32>
    %401 = tpu.matmul %295, %400, %cst_246 {dimension_numbers = #tpu.dot_dimension_numbers<[1], [0], [0], [1], [0, 0, 1, 1], [], []>} : vector<16x32xbf16>, vector<32x8xbf16>, vector<16x8xf32> -> vector<16x8xf32>
    %c2_247 = arith.constant 2 : index
    %c0_248 = arith.constant 0 : index
    %c0_249 = arith.constant 0 : index
    %402 = vector.load %arg30[%c2_247, %c0_248, %c0_249] : memref<4x1x8xf32, #tpu.memory_space<vmem>>, vector<1x1x8xf32>
    %403 = vector.shape_cast %402 : vector<1x1x8xf32> to vector<1x8xf32>
    %404 = vector.broadcast %403 : vector<1x8xf32> to vector<16x8xf32>
    %405 = arith.addf %401, %404 : vector<16x8xf32>
    %406 = arith.truncf %391 : vector<16x8xf32> to vector<16x8xbf16>
    %407 = arith.truncf %398 : vector<16x8xf32> to vector<16x8xbf16>
    %cst_250 = arith.constant dense<0.000000e+00> : vector<16x16xf32>
    %408 = tpu.matmul %406, %407, %cst_250 {dimension_numbers = #tpu.dot_dimension_numbers<[1], [1], [0], [0], [0, 0, 1, 0], [], []>} : vector<16x8xbf16>, vector<16x8xbf16>, vector<16x16xf32> -> vector<16x16xf32>
    %cst_251 = arith.constant 0.353553385 : f32
    %409 = vector.broadcast %cst_251 : f32 to vector<16x16xf32>
    %410 = arith.mulf %408, %409 : vector<16x16xf32>
    %cst_252 = arith.constant dense<0xFF800000> : vector<16xf32>
    %411 = vector.multi_reduction <maximumf>, %410, %cst_252 [1] : vector<16x16xf32> to vector<16xf32>
    %412 = vector.shape_cast %411 : vector<16xf32> to vector<16x1xf32>
    %413 = vector.broadcast %412 : vector<16x1xf32> to vector<16x16xf32>
    %414 = arith.subf %410, %413 : vector<16x16xf32>
    %415 = math.exp %414 : vector<16x16xf32>
    %cst_253 = arith.constant dense<0.000000e+00> : vector<16xf32>
    %416 = vector.multi_reduction <add>, %415, %cst_253 [1] : vector<16x16xf32> to vector<16xf32>
    %417 = vector.shape_cast %416 : vector<16xf32> to vector<16x1xf32>
    %418 = tpu.reciprocal %417 {approx = true} : vector<16x1xf32> -> vector<16x1xf32>
    %419 = vector.broadcast %418 : vector<16x1xf32> to vector<16x16xf32>
    %420 = arith.mulf %415, %419 : vector<16x16xf32>
    %421 = arith.truncf %420 : vector<16x16xf32> to vector<16x16xbf16>
    %422 = arith.truncf %405 : vector<16x8xf32> to vector<16x8xbf16>
    %cst_254 = arith.constant dense<0.000000e+00> : vector<16x8xf32>
    %423 = tpu.matmul %421, %422, %cst_254 {dimension_numbers = #tpu.dot_dimension_numbers<[1], [0], [0], [1], [0, 0, 1, 1], [], []>} : vector<16x16xbf16>, vector<16x8xbf16>, vector<16x8xf32> -> vector<16x8xf32>
    %424 = arith.truncf %423 : vector<16x8xf32> to vector<16x8xbf16>
    %c2_255 = arith.constant 2 : index
    %c0_256 = arith.constant 0 : index
    %c0_257 = arith.constant 0 : index
    %425 = vector.load %arg31[%c2_255, %c0_256, %c0_257] : memref<4x8x32xbf16, #tpu.memory_space<vmem>>, vector<1x8x32xbf16>
    %426 = vector.shape_cast %425 : vector<1x8x32xbf16> to vector<8x32xbf16>
    %cst_258 = arith.constant dense<0.000000e+00> : vector<16x32xf32>
    %427 = tpu.matmul %424, %426, %cst_258 {dimension_numbers = #tpu.dot_dimension_numbers<[1], [0], [0], [1], [0, 0, 1, 1], [], []>} : vector<16x8xbf16>, vector<8x32xbf16>, vector<16x32xf32> -> vector<16x32xf32>
    %428 = arith.addf %384, %427 : vector<16x32xf32>
    %c3_259 = arith.constant 3 : index
    %c0_260 = arith.constant 0 : index
    %c0_261 = arith.constant 0 : index
    %429 = vector.load %arg25[%c3_259, %c0_260, %c0_261] : memref<4x32x8xbf16, #tpu.memory_space<vmem>>, vector<1x32x8xbf16>
    %430 = vector.shape_cast %429 : vector<1x32x8xbf16> to vector<32x8xbf16>
    %cst_262 = arith.constant dense<0.000000e+00> : vector<16x8xf32>
    %431 = tpu.matmul %295, %430, %cst_262 {dimension_numbers = #tpu.dot_dimension_numbers<[1], [0], [0], [1], [0, 0, 1, 1], [], []>} : vector<16x32xbf16>, vector<32x8xbf16>, vector<16x8xf32> -> vector<16x8xf32>
    %c3_263 = arith.constant 3 : index
    %c0_264 = arith.constant 0 : index
    %c0_265 = arith.constant 0 : index
    %432 = vector.load %arg26[%c3_263, %c0_264, %c0_265] : memref<4x1x8xf32, #tpu.memory_space<vmem>>, vector<1x1x8xf32>
    %433 = vector.shape_cast %432 : vector<1x1x8xf32> to vector<1x8xf32>
    %434 = vector.broadcast %433 : vector<1x8xf32> to vector<16x8xf32>
    %435 = arith.addf %431, %434 : vector<16x8xf32>
    %c3_266 = arith.constant 3 : index
    %c0_267 = arith.constant 0 : index
    %c0_268 = arith.constant 0 : index
    %436 = vector.load %arg27[%c3_266, %c0_267, %c0_268] : memref<4x32x8xbf16, #tpu.memory_space<vmem>>, vector<1x32x8xbf16>
    %437 = vector.shape_cast %436 : vector<1x32x8xbf16> to vector<32x8xbf16>
    %cst_269 = arith.constant dense<0.000000e+00> : vector<16x8xf32>
    %438 = tpu.matmul %295, %437, %cst_269 {dimension_numbers = #tpu.dot_dimension_numbers<[1], [0], [0], [1], [0, 0, 1, 1], [], []>} : vector<16x32xbf16>, vector<32x8xbf16>, vector<16x8xf32> -> vector<16x8xf32>
    %c3_270 = arith.constant 3 : index
    %c0_271 = arith.constant 0 : index
    %c0_272 = arith.constant 0 : index
    %439 = vector.load %arg28[%c3_270, %c0_271, %c0_272] : memref<4x1x8xf32, #tpu.memory_space<vmem>>, vector<1x1x8xf32>
    %440 = vector.shape_cast %439 : vector<1x1x8xf32> to vector<1x8xf32>
    %441 = vector.broadcast %440 : vector<1x8xf32> to vector<16x8xf32>
    %442 = arith.addf %438, %441 : vector<16x8xf32>
    %c3_273 = arith.constant 3 : index
    %c0_274 = arith.constant 0 : index
    %c0_275 = arith.constant 0 : index
    %443 = vector.load %arg29[%c3_273, %c0_274, %c0_275] : memref<4x32x8xbf16, #tpu.memory_space<vmem>>, vector<1x32x8xbf16>
    %444 = vector.shape_cast %443 : vector<1x32x8xbf16> to vector<32x8xbf16>
    %cst_276 = arith.constant dense<0.000000e+00> : vector<16x8xf32>
    %445 = tpu.matmul %295, %444, %cst_276 {dimension_numbers = #tpu.dot_dimension_numbers<[1], [0], [0], [1], [0, 0, 1, 1], [], []>} : vector<16x32xbf16>, vector<32x8xbf16>, vector<16x8xf32> -> vector<16x8xf32>
    %c3_277 = arith.constant 3 : index
    %c0_278 = arith.constant 0 : index
    %c0_279 = arith.constant 0 : index
    %446 = vector.load %arg30[%c3_277, %c0_278, %c0_279] : memref<4x1x8xf32, #tpu.memory_space<vmem>>, vector<1x1x8xf32>
    %447 = vector.shape_cast %446 : vector<1x1x8xf32> to vector<1x8xf32>
    %448 = vector.broadcast %447 : vector<1x8xf32> to vector<16x8xf32>
    %449 = arith.addf %445, %448 : vector<16x8xf32>
    %450 = arith.truncf %435 : vector<16x8xf32> to vector<16x8xbf16>
    %451 = arith.truncf %442 : vector<16x8xf32> to vector<16x8xbf16>
    %cst_280 = arith.constant dense<0.000000e+00> : vector<16x16xf32>
    %452 = tpu.matmul %450, %451, %cst_280 {dimension_numbers = #tpu.dot_dimension_numbers<[1], [1], [0], [0], [0, 0, 1, 0], [], []>} : vector<16x8xbf16>, vector<16x8xbf16>, vector<16x16xf32> -> vector<16x16xf32>
    %cst_281 = arith.constant 0.353553385 : f32
    %453 = vector.broadcast %cst_281 : f32 to vector<16x16xf32>
    %454 = arith.mulf %452, %453 : vector<16x16xf32>
    %cst_282 = arith.constant dense<0xFF800000> : vector<16xf32>
    %455 = vector.multi_reduction <maximumf>, %454, %cst_282 [1] : vector<16x16xf32> to vector<16xf32>
    %456 = vector.shape_cast %455 : vector<16xf32> to vector<16x1xf32>
    %457 = vector.broadcast %456 : vector<16x1xf32> to vector<16x16xf32>
    %458 = arith.subf %454, %457 : vector<16x16xf32>
    %459 = math.exp %458 : vector<16x16xf32>
    %cst_283 = arith.constant dense<0.000000e+00> : vector<16xf32>
    %460 = vector.multi_reduction <add>, %459, %cst_283 [1] : vector<16x16xf32> to vector<16xf32>
    %461 = vector.shape_cast %460 : vector<16xf32> to vector<16x1xf32>
    %462 = tpu.reciprocal %461 {approx = true} : vector<16x1xf32> -> vector<16x1xf32>
    %463 = vector.broadcast %462 : vector<16x1xf32> to vector<16x16xf32>
    %464 = arith.mulf %459, %463 : vector<16x16xf32>
    %465 = arith.truncf %464 : vector<16x16xf32> to vector<16x16xbf16>
    %466 = arith.truncf %449 : vector<16x8xf32> to vector<16x8xbf16>
    %cst_284 = arith.constant dense<0.000000e+00> : vector<16x8xf32>
    %467 = tpu.matmul %465, %466, %cst_284 {dimension_numbers = #tpu.dot_dimension_numbers<[1], [0], [0], [1], [0, 0, 1, 1], [], []>} : vector<16x16xbf16>, vector<16x8xbf16>, vector<16x8xf32> -> vector<16x8xf32>
    %468 = arith.truncf %467 : vector<16x8xf32> to vector<16x8xbf16>
    %c3_285 = arith.constant 3 : index
    %c0_286 = arith.constant 0 : index
    %c0_287 = arith.constant 0 : index
    %469 = vector.load %arg31[%c3_285, %c0_286, %c0_287] : memref<4x8x32xbf16, #tpu.memory_space<vmem>>, vector<1x8x32xbf16>
    %470 = vector.shape_cast %469 : vector<1x8x32xbf16> to vector<8x32xbf16>
    %cst_288 = arith.constant dense<0.000000e+00> : vector<16x32xf32>
    %471 = tpu.matmul %468, %470, %cst_288 {dimension_numbers = #tpu.dot_dimension_numbers<[1], [0], [0], [1], [0, 0, 1, 1], [], []>} : vector<16x8xbf16>, vector<8x32xbf16>, vector<16x32xf32> -> vector<16x32xf32>
    %472 = arith.addf %428, %471 : vector<16x32xf32>
    %c0_289 = arith.constant 0 : index
    %c0_290 = arith.constant 0 : index
    %473 = vector.load %arg32[%c0_289, %c0_290] : memref<1x32xf32, #tpu.memory_space<vmem>>, vector<1x32xf32>
    %474 = vector.broadcast %473 : vector<1x32xf32> to vector<16x32xf32>
    %475 = arith.addf %472, %474 : vector<16x32xf32>
    %476 = arith.addf %294, %475 : vector<16x32xf32>
    %c0_291 = arith.constant 0 : index
    %c0_292 = arith.constant 0 : index
    %477 = vector.load %arg37[%c0_291, %c0_292] : memref<1x32xf32, #tpu.memory_space<vmem>>, vector<1x32xf32>
    %c0_293 = arith.constant 0 : index
    %c0_294 = arith.constant 0 : index
    %478 = vector.load %arg38[%c0_293, %c0_294] : memref<1x32xf32, #tpu.memory_space<vmem>>, vector<1x32xf32>
    %cst_295 = arith.constant dense<0.000000e+00> : vector<16xf32>
    %479 = vector.multi_reduction <add>, %476, %cst_295 [1] : vector<16x32xf32> to vector<16xf32>
    %480 = vector.shape_cast %479 : vector<16xf32> to vector<16x1xf32>
    %cst_296 = arith.constant 3.200000e+01 : f32
    %481 = vector.broadcast %cst_296 : f32 to vector<16x1xf32>
    %482 = arith.divf %480, %481 : vector<16x1xf32>
    %483 = vector.broadcast %482 : vector<16x1xf32> to vector<16x32xf32>
    %484 = arith.subf %476, %483 : vector<16x32xf32>
    %485 = arith.mulf %484, %484 : vector<16x32xf32>
    %cst_297 = arith.constant dense<0.000000e+00> : vector<16xf32>
    %486 = vector.multi_reduction <add>, %485, %cst_297 [1] : vector<16x32xf32> to vector<16xf32>
    %487 = vector.shape_cast %486 : vector<16xf32> to vector<16x1xf32>
    %cst_298 = arith.constant 3.200000e+01 : f32
    %488 = vector.broadcast %cst_298 : f32 to vector<16x1xf32>
    %489 = arith.divf %487, %488 : vector<16x1xf32>
    %490 = vector.broadcast %482 : vector<16x1xf32> to vector<16x32xf32>
    %491 = arith.subf %476, %490 : vector<16x32xf32>
    %cst_299 = arith.constant 9.99999974E-6 : f32
    %492 = vector.broadcast %cst_299 : f32 to vector<16x1xf32>
    %493 = arith.addf %489, %492 : vector<16x1xf32>
    %494 = math.rsqrt %493 : vector<16x1xf32>
    %495 = vector.broadcast %494 : vector<16x1xf32> to vector<16x32xf32>
    %496 = arith.mulf %491, %495 : vector<16x32xf32>
    %497 = vector.broadcast %477 : vector<1x32xf32> to vector<16x32xf32>
    %498 = arith.mulf %496, %497 : vector<16x32xf32>
    %499 = vector.broadcast %478 : vector<1x32xf32> to vector<16x32xf32>
    %500 = arith.addf %498, %499 : vector<16x32xf32>
    %501 = arith.truncf %500 : vector<16x32xf32> to vector<16x32xbf16>
    %c0_300 = arith.constant 0 : index
    %c0_301 = arith.constant 0 : index
    %502 = vector.load %arg33[%c0_300, %c0_301] : memref<32x64xbf16, #tpu.memory_space<vmem>>, vector<32x64xbf16>
    %cst_302 = arith.constant dense<0.000000e+00> : vector<16x64xf32>
    %503 = tpu.matmul %501, %502, %cst_302 {dimension_numbers = #tpu.dot_dimension_numbers<[1], [0], [0], [1], [0, 0, 1, 1], [], []>} : vector<16x32xbf16>, vector<32x64xbf16>, vector<16x64xf32> -> vector<16x64xf32>
    %c0_303 = arith.constant 0 : index
    %c0_304 = arith.constant 0 : index
    %504 = vector.load %arg34[%c0_303, %c0_304] : memref<1x64xf32, #tpu.memory_space<vmem>>, vector<1x64xf32>
    %505 = vector.broadcast %504 : vector<1x64xf32> to vector<16x64xf32>
    %506 = arith.addf %503, %505 : vector<16x64xf32>
    %cst_305 = arith.constant 5.000000e-01 : f32
    %507 = vector.broadcast %cst_305 : f32 to vector<16x64xf32>
    %508 = arith.mulf %507, %506 : vector<16x64xf32>
    %cst_306 = arith.constant 4.471500e-02 : f32
    %509 = vector.broadcast %cst_306 : f32 to vector<16x64xf32>
    %510 = arith.mulf %509, %506 : vector<16x64xf32>
    %511 = arith.mulf %510, %506 : vector<16x64xf32>
    %512 = arith.mulf %511, %506 : vector<16x64xf32>
    %513 = arith.addf %506, %512 : vector<16x64xf32>
    %cst_307 = arith.constant 0.797884583 : f32
    %514 = vector.broadcast %cst_307 : f32 to vector<16x64xf32>
    %515 = arith.mulf %514, %513 : vector<16x64xf32>
    %516 = math.tanh %515 : vector<16x64xf32>
    %cst_308 = arith.constant 1.000000e+00 : f32
    %517 = vector.broadcast %cst_308 : f32 to vector<16x64xf32>
    %518 = arith.addf %517, %516 : vector<16x64xf32>
    %519 = arith.mulf %508, %518 : vector<16x64xf32>
    %520 = arith.truncf %519 : vector<16x64xf32> to vector<16x64xbf16>
    %c0_309 = arith.constant 0 : index
    %c0_310 = arith.constant 0 : index
    %521 = vector.load %arg35[%c0_309, %c0_310] : memref<64x32xbf16, #tpu.memory_space<vmem>>, vector<64x32xbf16>
    %cst_311 = arith.constant dense<0.000000e+00> : vector<16x32xf32>
    %522 = tpu.matmul %520, %521, %cst_311 {dimension_numbers = #tpu.dot_dimension_numbers<[1], [0], [0], [1], [0, 0, 1, 1], [], []>} : vector<16x64xbf16>, vector<64x32xbf16>, vector<16x32xf32> -> vector<16x32xf32>
    %c0_312 = arith.constant 0 : index
    %c0_313 = arith.constant 0 : index
    %523 = vector.load %arg36[%c0_312, %c0_313] : memref<1x32xf32, #tpu.memory_space<vmem>>, vector<1x32xf32>
    %524 = vector.broadcast %523 : vector<1x32xf32> to vector<16x32xf32>
    %525 = arith.addf %522, %524 : vector<16x32xf32>
    %526 = arith.addf %500, %525 : vector<16x32xf32>
    %c0_314 = arith.constant 0 : index
    %c0_315 = arith.constant 0 : index
    %527 = vector.load %arg39[%c0_314, %c0_315] : memref<1x32xf32, #tpu.memory_space<vmem>>, vector<1x32xf32>
    %c0_316 = arith.constant 0 : index
    %c0_317 = arith.constant 0 : index
    %528 = vector.load %arg40[%c0_316, %c0_317] : memref<1x32xf32, #tpu.memory_space<vmem>>, vector<1x32xf32>
    %cst_318 = arith.constant dense<0.000000e+00> : vector<16xf32>
    %529 = vector.multi_reduction <add>, %526, %cst_318 [1] : vector<16x32xf32> to vector<16xf32>
    %530 = vector.shape_cast %529 : vector<16xf32> to vector<16x1xf32>
    %cst_319 = arith.constant 3.200000e+01 : f32
    %531 = vector.broadcast %cst_319 : f32 to vector<16x1xf32>
    %532 = arith.divf %530, %531 : vector<16x1xf32>
    %533 = vector.broadcast %532 : vector<16x1xf32> to vector<16x32xf32>
    %534 = arith.subf %526, %533 : vector<16x32xf32>
    %535 = arith.mulf %534, %534 : vector<16x32xf32>
    %cst_320 = arith.constant dense<0.000000e+00> : vector<16xf32>
    %536 = vector.multi_reduction <add>, %535, %cst_320 [1] : vector<16x32xf32> to vector<16xf32>
    %537 = vector.shape_cast %536 : vector<16xf32> to vector<16x1xf32>
    %cst_321 = arith.constant 3.200000e+01 : f32
    %538 = vector.broadcast %cst_321 : f32 to vector<16x1xf32>
    %539 = arith.divf %537, %538 : vector<16x1xf32>
    %540 = vector.broadcast %532 : vector<16x1xf32> to vector<16x32xf32>
    %541 = arith.subf %526, %540 : vector<16x32xf32>
    %cst_322 = arith.constant 9.99999974E-6 : f32
    %542 = vector.broadcast %cst_322 : f32 to vector<16x1xf32>
    %543 = arith.addf %539, %542 : vector<16x1xf32>
    %544 = math.rsqrt %543 : vector<16x1xf32>
    %545 = vector.broadcast %544 : vector<16x1xf32> to vector<16x32xf32>
    %546 = arith.mulf %541, %545 : vector<16x32xf32>
    %547 = vector.broadcast %527 : vector<1x32xf32> to vector<16x32xf32>
    %548 = arith.mulf %546, %547 : vector<16x32xf32>
    %549 = vector.broadcast %528 : vector<1x32xf32> to vector<16x32xf32>
    %550 = arith.addf %548, %549 : vector<16x32xf32>
    %551 = arith.truncf %550 : vector<16x32xf32> to vector<16x32xbf16>
    %cst_323 = arith.constant 0.000000e+00 : f32
    %552 = vector.broadcast %cst_323 : f32 to vector<16x32xf32>
    %c0_324 = arith.constant 0 : index
    %c0_325 = arith.constant 0 : index
    %c0_326 = arith.constant 0 : index
    %553 = vector.load %arg41[%c0_324, %c0_325, %c0_326] : memref<4x32x8xbf16, #tpu.memory_space<vmem>>, vector<1x32x8xbf16>
    %554 = vector.shape_cast %553 : vector<1x32x8xbf16> to vector<32x8xbf16>
    %cst_327 = arith.constant dense<0.000000e+00> : vector<16x8xf32>
    %555 = tpu.matmul %551, %554, %cst_327 {dimension_numbers = #tpu.dot_dimension_numbers<[1], [0], [0], [1], [0, 0, 1, 1], [], []>} : vector<16x32xbf16>, vector<32x8xbf16>, vector<16x8xf32> -> vector<16x8xf32>
    %c0_328 = arith.constant 0 : index
    %c0_329 = arith.constant 0 : index
    %c0_330 = arith.constant 0 : index
    %556 = vector.load %arg42[%c0_328, %c0_329, %c0_330] : memref<4x1x8xf32, #tpu.memory_space<vmem>>, vector<1x1x8xf32>
    %557 = vector.shape_cast %556 : vector<1x1x8xf32> to vector<1x8xf32>
    %558 = vector.broadcast %557 : vector<1x8xf32> to vector<16x8xf32>
    %559 = arith.addf %555, %558 : vector<16x8xf32>
    %c0_331 = arith.constant 0 : index
    %c0_332 = arith.constant 0 : index
    %c0_333 = arith.constant 0 : index
    %560 = vector.load %arg43[%c0_331, %c0_332, %c0_333] : memref<4x32x8xbf16, #tpu.memory_space<vmem>>, vector<1x32x8xbf16>
    %561 = vector.shape_cast %560 : vector<1x32x8xbf16> to vector<32x8xbf16>
    %cst_334 = arith.constant dense<0.000000e+00> : vector<16x8xf32>
    %562 = tpu.matmul %551, %561, %cst_334 {dimension_numbers = #tpu.dot_dimension_numbers<[1], [0], [0], [1], [0, 0, 1, 1], [], []>} : vector<16x32xbf16>, vector<32x8xbf16>, vector<16x8xf32> -> vector<16x8xf32>
    %c0_335 = arith.constant 0 : index
    %c0_336 = arith.constant 0 : index
    %c0_337 = arith.constant 0 : index
    %563 = vector.load %arg44[%c0_335, %c0_336, %c0_337] : memref<4x1x8xf32, #tpu.memory_space<vmem>>, vector<1x1x8xf32>
    %564 = vector.shape_cast %563 : vector<1x1x8xf32> to vector<1x8xf32>
    %565 = vector.broadcast %564 : vector<1x8xf32> to vector<16x8xf32>
    %566 = arith.addf %562, %565 : vector<16x8xf32>
    %c0_338 = arith.constant 0 : index
    %c0_339 = arith.constant 0 : index
    %c0_340 = arith.constant 0 : index
    %567 = vector.load %arg45[%c0_338, %c0_339, %c0_340] : memref<4x32x8xbf16, #tpu.memory_space<vmem>>, vector<1x32x8xbf16>
    %568 = vector.shape_cast %567 : vector<1x32x8xbf16> to vector<32x8xbf16>
    %cst_341 = arith.constant dense<0.000000e+00> : vector<16x8xf32>
    %569 = tpu.matmul %551, %568, %cst_341 {dimension_numbers = #tpu.dot_dimension_numbers<[1], [0], [0], [1], [0, 0, 1, 1], [], []>} : vector<16x32xbf16>, vector<32x8xbf16>, vector<16x8xf32> -> vector<16x8xf32>
    %c0_342 = arith.constant 0 : index
    %c0_343 = arith.constant 0 : index
    %c0_344 = arith.constant 0 : index
    %570 = vector.load %arg46[%c0_342, %c0_343, %c0_344] : memref<4x1x8xf32, #tpu.memory_space<vmem>>, vector<1x1x8xf32>
    %571 = vector.shape_cast %570 : vector<1x1x8xf32> to vector<1x8xf32>
    %572 = vector.broadcast %571 : vector<1x8xf32> to vector<16x8xf32>
    %573 = arith.addf %569, %572 : vector<16x8xf32>
    %574 = arith.truncf %559 : vector<16x8xf32> to vector<16x8xbf16>
    %575 = arith.truncf %566 : vector<16x8xf32> to vector<16x8xbf16>
    %cst_345 = arith.constant dense<0.000000e+00> : vector<16x16xf32>
    %576 = tpu.matmul %574, %575, %cst_345 {dimension_numbers = #tpu.dot_dimension_numbers<[1], [1], [0], [0], [0, 0, 1, 0], [], []>} : vector<16x8xbf16>, vector<16x8xbf16>, vector<16x16xf32> -> vector<16x16xf32>
    %cst_346 = arith.constant 0.353553385 : f32
    %577 = vector.broadcast %cst_346 : f32 to vector<16x16xf32>
    %578 = arith.mulf %576, %577 : vector<16x16xf32>
    %cst_347 = arith.constant dense<0xFF800000> : vector<16xf32>
    %579 = vector.multi_reduction <maximumf>, %578, %cst_347 [1] : vector<16x16xf32> to vector<16xf32>
    %580 = vector.shape_cast %579 : vector<16xf32> to vector<16x1xf32>
    %581 = vector.broadcast %580 : vector<16x1xf32> to vector<16x16xf32>
    %582 = arith.subf %578, %581 : vector<16x16xf32>
    %583 = math.exp %582 : vector<16x16xf32>
    %cst_348 = arith.constant dense<0.000000e+00> : vector<16xf32>
    %584 = vector.multi_reduction <add>, %583, %cst_348 [1] : vector<16x16xf32> to vector<16xf32>
    %585 = vector.shape_cast %584 : vector<16xf32> to vector<16x1xf32>
    %586 = tpu.reciprocal %585 {approx = true} : vector<16x1xf32> -> vector<16x1xf32>
    %587 = vector.broadcast %586 : vector<16x1xf32> to vector<16x16xf32>
    %588 = arith.mulf %583, %587 : vector<16x16xf32>
    %589 = arith.truncf %588 : vector<16x16xf32> to vector<16x16xbf16>
    %590 = arith.truncf %573 : vector<16x8xf32> to vector<16x8xbf16>
    %cst_349 = arith.constant dense<0.000000e+00> : vector<16x8xf32>
    %591 = tpu.matmul %589, %590, %cst_349 {dimension_numbers = #tpu.dot_dimension_numbers<[1], [0], [0], [1], [0, 0, 1, 1], [], []>} : vector<16x16xbf16>, vector<16x8xbf16>, vector<16x8xf32> -> vector<16x8xf32>
    %592 = arith.truncf %591 : vector<16x8xf32> to vector<16x8xbf16>
    %c0_350 = arith.constant 0 : index
    %c0_351 = arith.constant 0 : index
    %c0_352 = arith.constant 0 : index
    %593 = vector.load %arg47[%c0_350, %c0_351, %c0_352] : memref<4x8x32xbf16, #tpu.memory_space<vmem>>, vector<1x8x32xbf16>
    %594 = vector.shape_cast %593 : vector<1x8x32xbf16> to vector<8x32xbf16>
    %cst_353 = arith.constant dense<0.000000e+00> : vector<16x32xf32>
    %595 = tpu.matmul %592, %594, %cst_353 {dimension_numbers = #tpu.dot_dimension_numbers<[1], [0], [0], [1], [0, 0, 1, 1], [], []>} : vector<16x8xbf16>, vector<8x32xbf16>, vector<16x32xf32> -> vector<16x32xf32>
    %596 = arith.addf %552, %595 : vector<16x32xf32>
    %c1_354 = arith.constant 1 : index
    %c0_355 = arith.constant 0 : index
    %c0_356 = arith.constant 0 : index
    %597 = vector.load %arg41[%c1_354, %c0_355, %c0_356] : memref<4x32x8xbf16, #tpu.memory_space<vmem>>, vector<1x32x8xbf16>
    %598 = vector.shape_cast %597 : vector<1x32x8xbf16> to vector<32x8xbf16>
    %cst_357 = arith.constant dense<0.000000e+00> : vector<16x8xf32>
    %599 = tpu.matmul %551, %598, %cst_357 {dimension_numbers = #tpu.dot_dimension_numbers<[1], [0], [0], [1], [0, 0, 1, 1], [], []>} : vector<16x32xbf16>, vector<32x8xbf16>, vector<16x8xf32> -> vector<16x8xf32>
    %c1_358 = arith.constant 1 : index
    %c0_359 = arith.constant 0 : index
    %c0_360 = arith.constant 0 : index
    %600 = vector.load %arg42[%c1_358, %c0_359, %c0_360] : memref<4x1x8xf32, #tpu.memory_space<vmem>>, vector<1x1x8xf32>
    %601 = vector.shape_cast %600 : vector<1x1x8xf32> to vector<1x8xf32>
    %602 = vector.broadcast %601 : vector<1x8xf32> to vector<16x8xf32>
    %603 = arith.addf %599, %602 : vector<16x8xf32>
    %c1_361 = arith.constant 1 : index
    %c0_362 = arith.constant 0 : index
    %c0_363 = arith.constant 0 : index
    %604 = vector.load %arg43[%c1_361, %c0_362, %c0_363] : memref<4x32x8xbf16, #tpu.memory_space<vmem>>, vector<1x32x8xbf16>
    %605 = vector.shape_cast %604 : vector<1x32x8xbf16> to vector<32x8xbf16>
    %cst_364 = arith.constant dense<0.000000e+00> : vector<16x8xf32>
    %606 = tpu.matmul %551, %605, %cst_364 {dimension_numbers = #tpu.dot_dimension_numbers<[1], [0], [0], [1], [0, 0, 1, 1], [], []>} : vector<16x32xbf16>, vector<32x8xbf16>, vector<16x8xf32> -> vector<16x8xf32>
    %c1_365 = arith.constant 1 : index
    %c0_366 = arith.constant 0 : index
    %c0_367 = arith.constant 0 : index
    %607 = vector.load %arg44[%c1_365, %c0_366, %c0_367] : memref<4x1x8xf32, #tpu.memory_space<vmem>>, vector<1x1x8xf32>
    %608 = vector.shape_cast %607 : vector<1x1x8xf32> to vector<1x8xf32>
    %609 = vector.broadcast %608 : vector<1x8xf32> to vector<16x8xf32>
    %610 = arith.addf %606, %609 : vector<16x8xf32>
    %c1_368 = arith.constant 1 : index
    %c0_369 = arith.constant 0 : index
    %c0_370 = arith.constant 0 : index
    %611 = vector.load %arg45[%c1_368, %c0_369, %c0_370] : memref<4x32x8xbf16, #tpu.memory_space<vmem>>, vector<1x32x8xbf16>
    %612 = vector.shape_cast %611 : vector<1x32x8xbf16> to vector<32x8xbf16>
    %cst_371 = arith.constant dense<0.000000e+00> : vector<16x8xf32>
    %613 = tpu.matmul %551, %612, %cst_371 {dimension_numbers = #tpu.dot_dimension_numbers<[1], [0], [0], [1], [0, 0, 1, 1], [], []>} : vector<16x32xbf16>, vector<32x8xbf16>, vector<16x8xf32> -> vector<16x8xf32>
    %c1_372 = arith.constant 1 : index
    %c0_373 = arith.constant 0 : index
    %c0_374 = arith.constant 0 : index
    %614 = vector.load %arg46[%c1_372, %c0_373, %c0_374] : memref<4x1x8xf32, #tpu.memory_space<vmem>>, vector<1x1x8xf32>
    %615 = vector.shape_cast %614 : vector<1x1x8xf32> to vector<1x8xf32>
    %616 = vector.broadcast %615 : vector<1x8xf32> to vector<16x8xf32>
    %617 = arith.addf %613, %616 : vector<16x8xf32>
    %618 = arith.truncf %603 : vector<16x8xf32> to vector<16x8xbf16>
    %619 = arith.truncf %610 : vector<16x8xf32> to vector<16x8xbf16>
    %cst_375 = arith.constant dense<0.000000e+00> : vector<16x16xf32>
    %620 = tpu.matmul %618, %619, %cst_375 {dimension_numbers = #tpu.dot_dimension_numbers<[1], [1], [0], [0], [0, 0, 1, 0], [], []>} : vector<16x8xbf16>, vector<16x8xbf16>, vector<16x16xf32> -> vector<16x16xf32>
    %cst_376 = arith.constant 0.353553385 : f32
    %621 = vector.broadcast %cst_376 : f32 to vector<16x16xf32>
    %622 = arith.mulf %620, %621 : vector<16x16xf32>
    %cst_377 = arith.constant dense<0xFF800000> : vector<16xf32>
    %623 = vector.multi_reduction <maximumf>, %622, %cst_377 [1] : vector<16x16xf32> to vector<16xf32>
    %624 = vector.shape_cast %623 : vector<16xf32> to vector<16x1xf32>
    %625 = vector.broadcast %624 : vector<16x1xf32> to vector<16x16xf32>
    %626 = arith.subf %622, %625 : vector<16x16xf32>
    %627 = math.exp %626 : vector<16x16xf32>
    %cst_378 = arith.constant dense<0.000000e+00> : vector<16xf32>
    %628 = vector.multi_reduction <add>, %627, %cst_378 [1] : vector<16x16xf32> to vector<16xf32>
    %629 = vector.shape_cast %628 : vector<16xf32> to vector<16x1xf32>
    %630 = tpu.reciprocal %629 {approx = true} : vector<16x1xf32> -> vector<16x1xf32>
    %631 = vector.broadcast %630 : vector<16x1xf32> to vector<16x16xf32>
    %632 = arith.mulf %627, %631 : vector<16x16xf32>
    %633 = arith.truncf %632 : vector<16x16xf32> to vector<16x16xbf16>
    %634 = arith.truncf %617 : vector<16x8xf32> to vector<16x8xbf16>
    %cst_379 = arith.constant dense<0.000000e+00> : vector<16x8xf32>
    %635 = tpu.matmul %633, %634, %cst_379 {dimension_numbers = #tpu.dot_dimension_numbers<[1], [0], [0], [1], [0, 0, 1, 1], [], []>} : vector<16x16xbf16>, vector<16x8xbf16>, vector<16x8xf32> -> vector<16x8xf32>
    %636 = arith.truncf %635 : vector<16x8xf32> to vector<16x8xbf16>
    %c1_380 = arith.constant 1 : index
    %c0_381 = arith.constant 0 : index
    %c0_382 = arith.constant 0 : index
    %637 = vector.load %arg47[%c1_380, %c0_381, %c0_382] : memref<4x8x32xbf16, #tpu.memory_space<vmem>>, vector<1x8x32xbf16>
    %638 = vector.shape_cast %637 : vector<1x8x32xbf16> to vector<8x32xbf16>
    %cst_383 = arith.constant dense<0.000000e+00> : vector<16x32xf32>
    %639 = tpu.matmul %636, %638, %cst_383 {dimension_numbers = #tpu.dot_dimension_numbers<[1], [0], [0], [1], [0, 0, 1, 1], [], []>} : vector<16x8xbf16>, vector<8x32xbf16>, vector<16x32xf32> -> vector<16x32xf32>
    %640 = arith.addf %596, %639 : vector<16x32xf32>
    %c2_384 = arith.constant 2 : index
    %c0_385 = arith.constant 0 : index
    %c0_386 = arith.constant 0 : index
    %641 = vector.load %arg41[%c2_384, %c0_385, %c0_386] : memref<4x32x8xbf16, #tpu.memory_space<vmem>>, vector<1x32x8xbf16>
    %642 = vector.shape_cast %641 : vector<1x32x8xbf16> to vector<32x8xbf16>
    %cst_387 = arith.constant dense<0.000000e+00> : vector<16x8xf32>
    %643 = tpu.matmul %551, %642, %cst_387 {dimension_numbers = #tpu.dot_dimension_numbers<[1], [0], [0], [1], [0, 0, 1, 1], [], []>} : vector<16x32xbf16>, vector<32x8xbf16>, vector<16x8xf32> -> vector<16x8xf32>
    %c2_388 = arith.constant 2 : index
    %c0_389 = arith.constant 0 : index
    %c0_390 = arith.constant 0 : index
    %644 = vector.load %arg42[%c2_388, %c0_389, %c0_390] : memref<4x1x8xf32, #tpu.memory_space<vmem>>, vector<1x1x8xf32>
    %645 = vector.shape_cast %644 : vector<1x1x8xf32> to vector<1x8xf32>
    %646 = vector.broadcast %645 : vector<1x8xf32> to vector<16x8xf32>
    %647 = arith.addf %643, %646 : vector<16x8xf32>
    %c2_391 = arith.constant 2 : index
    %c0_392 = arith.constant 0 : index
    %c0_393 = arith.constant 0 : index
    %648 = vector.load %arg43[%c2_391, %c0_392, %c0_393] : memref<4x32x8xbf16, #tpu.memory_space<vmem>>, vector<1x32x8xbf16>
    %649 = vector.shape_cast %648 : vector<1x32x8xbf16> to vector<32x8xbf16>
    %cst_394 = arith.constant dense<0.000000e+00> : vector<16x8xf32>
    %650 = tpu.matmul %551, %649, %cst_394 {dimension_numbers = #tpu.dot_dimension_numbers<[1], [0], [0], [1], [0, 0, 1, 1], [], []>} : vector<16x32xbf16>, vector<32x8xbf16>, vector<16x8xf32> -> vector<16x8xf32>
    %c2_395 = arith.constant 2 : index
    %c0_396 = arith.constant 0 : index
    %c0_397 = arith.constant 0 : index
    %651 = vector.load %arg44[%c2_395, %c0_396, %c0_397] : memref<4x1x8xf32, #tpu.memory_space<vmem>>, vector<1x1x8xf32>
    %652 = vector.shape_cast %651 : vector<1x1x8xf32> to vector<1x8xf32>
    %653 = vector.broadcast %652 : vector<1x8xf32> to vector<16x8xf32>
    %654 = arith.addf %650, %653 : vector<16x8xf32>
    %c2_398 = arith.constant 2 : index
    %c0_399 = arith.constant 0 : index
    %c0_400 = arith.constant 0 : index
    %655 = vector.load %arg45[%c2_398, %c0_399, %c0_400] : memref<4x32x8xbf16, #tpu.memory_space<vmem>>, vector<1x32x8xbf16>
    %656 = vector.shape_cast %655 : vector<1x32x8xbf16> to vector<32x8xbf16>
    %cst_401 = arith.constant dense<0.000000e+00> : vector<16x8xf32>
    %657 = tpu.matmul %551, %656, %cst_401 {dimension_numbers = #tpu.dot_dimension_numbers<[1], [0], [0], [1], [0, 0, 1, 1], [], []>} : vector<16x32xbf16>, vector<32x8xbf16>, vector<16x8xf32> -> vector<16x8xf32>
    %c2_402 = arith.constant 2 : index
    %c0_403 = arith.constant 0 : index
    %c0_404 = arith.constant 0 : index
    %658 = vector.load %arg46[%c2_402, %c0_403, %c0_404] : memref<4x1x8xf32, #tpu.memory_space<vmem>>, vector<1x1x8xf32>
    %659 = vector.shape_cast %658 : vector<1x1x8xf32> to vector<1x8xf32>
    %660 = vector.broadcast %659 : vector<1x8xf32> to vector<16x8xf32>
    %661 = arith.addf %657, %660 : vector<16x8xf32>
    %662 = arith.truncf %647 : vector<16x8xf32> to vector<16x8xbf16>
    %663 = arith.truncf %654 : vector<16x8xf32> to vector<16x8xbf16>
    %cst_405 = arith.constant dense<0.000000e+00> : vector<16x16xf32>
    %664 = tpu.matmul %662, %663, %cst_405 {dimension_numbers = #tpu.dot_dimension_numbers<[1], [1], [0], [0], [0, 0, 1, 0], [], []>} : vector<16x8xbf16>, vector<16x8xbf16>, vector<16x16xf32> -> vector<16x16xf32>
    %cst_406 = arith.constant 0.353553385 : f32
    %665 = vector.broadcast %cst_406 : f32 to vector<16x16xf32>
    %666 = arith.mulf %664, %665 : vector<16x16xf32>
    %cst_407 = arith.constant dense<0xFF800000> : vector<16xf32>
    %667 = vector.multi_reduction <maximumf>, %666, %cst_407 [1] : vector<16x16xf32> to vector<16xf32>
    %668 = vector.shape_cast %667 : vector<16xf32> to vector<16x1xf32>
    %669 = vector.broadcast %668 : vector<16x1xf32> to vector<16x16xf32>
    %670 = arith.subf %666, %669 : vector<16x16xf32>
    %671 = math.exp %670 : vector<16x16xf32>
    %cst_408 = arith.constant dense<0.000000e+00> : vector<16xf32>
    %672 = vector.multi_reduction <add>, %671, %cst_408 [1] : vector<16x16xf32> to vector<16xf32>
    %673 = vector.shape_cast %672 : vector<16xf32> to vector<16x1xf32>
    %674 = tpu.reciprocal %673 {approx = true} : vector<16x1xf32> -> vector<16x1xf32>
    %675 = vector.broadcast %674 : vector<16x1xf32> to vector<16x16xf32>
    %676 = arith.mulf %671, %675 : vector<16x16xf32>
    %677 = arith.truncf %676 : vector<16x16xf32> to vector<16x16xbf16>
    %678 = arith.truncf %661 : vector<16x8xf32> to vector<16x8xbf16>
    %cst_409 = arith.constant dense<0.000000e+00> : vector<16x8xf32>
    %679 = tpu.matmul %677, %678, %cst_409 {dimension_numbers = #tpu.dot_dimension_numbers<[1], [0], [0], [1], [0, 0, 1, 1], [], []>} : vector<16x16xbf16>, vector<16x8xbf16>, vector<16x8xf32> -> vector<16x8xf32>
    %680 = arith.truncf %679 : vector<16x8xf32> to vector<16x8xbf16>
    %c2_410 = arith.constant 2 : index
    %c0_411 = arith.constant 0 : index
    %c0_412 = arith.constant 0 : index
    %681 = vector.load %arg47[%c2_410, %c0_411, %c0_412] : memref<4x8x32xbf16, #tpu.memory_space<vmem>>, vector<1x8x32xbf16>
    %682 = vector.shape_cast %681 : vector<1x8x32xbf16> to vector<8x32xbf16>
    %cst_413 = arith.constant dense<0.000000e+00> : vector<16x32xf32>
    %683 = tpu.matmul %680, %682, %cst_413 {dimension_numbers = #tpu.dot_dimension_numbers<[1], [0], [0], [1], [0, 0, 1, 1], [], []>} : vector<16x8xbf16>, vector<8x32xbf16>, vector<16x32xf32> -> vector<16x32xf32>
    %684 = arith.addf %640, %683 : vector<16x32xf32>
    %c3_414 = arith.constant 3 : index
    %c0_415 = arith.constant 0 : index
    %c0_416 = arith.constant 0 : index
    %685 = vector.load %arg41[%c3_414, %c0_415, %c0_416] : memref<4x32x8xbf16, #tpu.memory_space<vmem>>, vector<1x32x8xbf16>
    %686 = vector.shape_cast %685 : vector<1x32x8xbf16> to vector<32x8xbf16>
    %cst_417 = arith.constant dense<0.000000e+00> : vector<16x8xf32>
    %687 = tpu.matmul %551, %686, %cst_417 {dimension_numbers = #tpu.dot_dimension_numbers<[1], [0], [0], [1], [0, 0, 1, 1], [], []>} : vector<16x32xbf16>, vector<32x8xbf16>, vector<16x8xf32> -> vector<16x8xf32>
    %c3_418 = arith.constant 3 : index
    %c0_419 = arith.constant 0 : index
    %c0_420 = arith.constant 0 : index
    %688 = vector.load %arg42[%c3_418, %c0_419, %c0_420] : memref<4x1x8xf32, #tpu.memory_space<vmem>>, vector<1x1x8xf32>
    %689 = vector.shape_cast %688 : vector<1x1x8xf32> to vector<1x8xf32>
    %690 = vector.broadcast %689 : vector<1x8xf32> to vector<16x8xf32>
    %691 = arith.addf %687, %690 : vector<16x8xf32>
    %c3_421 = arith.constant 3 : index
    %c0_422 = arith.constant 0 : index
    %c0_423 = arith.constant 0 : index
    %692 = vector.load %arg43[%c3_421, %c0_422, %c0_423] : memref<4x32x8xbf16, #tpu.memory_space<vmem>>, vector<1x32x8xbf16>
    %693 = vector.shape_cast %692 : vector<1x32x8xbf16> to vector<32x8xbf16>
    %cst_424 = arith.constant dense<0.000000e+00> : vector<16x8xf32>
    %694 = tpu.matmul %551, %693, %cst_424 {dimension_numbers = #tpu.dot_dimension_numbers<[1], [0], [0], [1], [0, 0, 1, 1], [], []>} : vector<16x32xbf16>, vector<32x8xbf16>, vector<16x8xf32> -> vector<16x8xf32>
    %c3_425 = arith.constant 3 : index
    %c0_426 = arith.constant 0 : index
    %c0_427 = arith.constant 0 : index
    %695 = vector.load %arg44[%c3_425, %c0_426, %c0_427] : memref<4x1x8xf32, #tpu.memory_space<vmem>>, vector<1x1x8xf32>
    %696 = vector.shape_cast %695 : vector<1x1x8xf32> to vector<1x8xf32>
    %697 = vector.broadcast %696 : vector<1x8xf32> to vector<16x8xf32>
    %698 = arith.addf %694, %697 : vector<16x8xf32>
    %c3_428 = arith.constant 3 : index
    %c0_429 = arith.constant 0 : index
    %c0_430 = arith.constant 0 : index
    %699 = vector.load %arg45[%c3_428, %c0_429, %c0_430] : memref<4x32x8xbf16, #tpu.memory_space<vmem>>, vector<1x32x8xbf16>
    %700 = vector.shape_cast %699 : vector<1x32x8xbf16> to vector<32x8xbf16>
    %cst_431 = arith.constant dense<0.000000e+00> : vector<16x8xf32>
    %701 = tpu.matmul %551, %700, %cst_431 {dimension_numbers = #tpu.dot_dimension_numbers<[1], [0], [0], [1], [0, 0, 1, 1], [], []>} : vector<16x32xbf16>, vector<32x8xbf16>, vector<16x8xf32> -> vector<16x8xf32>
    %c3_432 = arith.constant 3 : index
    %c0_433 = arith.constant 0 : index
    %c0_434 = arith.constant 0 : index
    %702 = vector.load %arg46[%c3_432, %c0_433, %c0_434] : memref<4x1x8xf32, #tpu.memory_space<vmem>>, vector<1x1x8xf32>
    %703 = vector.shape_cast %702 : vector<1x1x8xf32> to vector<1x8xf32>
    %704 = vector.broadcast %703 : vector<1x8xf32> to vector<16x8xf32>
    %705 = arith.addf %701, %704 : vector<16x8xf32>
    %706 = arith.truncf %691 : vector<16x8xf32> to vector<16x8xbf16>
    %707 = arith.truncf %698 : vector<16x8xf32> to vector<16x8xbf16>
    %cst_435 = arith.constant dense<0.000000e+00> : vector<16x16xf32>
    %708 = tpu.matmul %706, %707, %cst_435 {dimension_numbers = #tpu.dot_dimension_numbers<[1], [1], [0], [0], [0, 0, 1, 0], [], []>} : vector<16x8xbf16>, vector<16x8xbf16>, vector<16x16xf32> -> vector<16x16xf32>
    %cst_436 = arith.constant 0.353553385 : f32
    %709 = vector.broadcast %cst_436 : f32 to vector<16x16xf32>
    %710 = arith.mulf %708, %709 : vector<16x16xf32>
    %cst_437 = arith.constant dense<0xFF800000> : vector<16xf32>
    %711 = vector.multi_reduction <maximumf>, %710, %cst_437 [1] : vector<16x16xf32> to vector<16xf32>
    %712 = vector.shape_cast %711 : vector<16xf32> to vector<16x1xf32>
    %713 = vector.broadcast %712 : vector<16x1xf32> to vector<16x16xf32>
    %714 = arith.subf %710, %713 : vector<16x16xf32>
    %715 = math.exp %714 : vector<16x16xf32>
    %cst_438 = arith.constant dense<0.000000e+00> : vector<16xf32>
    %716 = vector.multi_reduction <add>, %715, %cst_438 [1] : vector<16x16xf32> to vector<16xf32>
    %717 = vector.shape_cast %716 : vector<16xf32> to vector<16x1xf32>
    %718 = tpu.reciprocal %717 {approx = true} : vector<16x1xf32> -> vector<16x1xf32>
    %719 = vector.broadcast %718 : vector<16x1xf32> to vector<16x16xf32>
    %720 = arith.mulf %715, %719 : vector<16x16xf32>
    %721 = arith.truncf %720 : vector<16x16xf32> to vector<16x16xbf16>
    %722 = arith.truncf %705 : vector<16x8xf32> to vector<16x8xbf16>
    %cst_439 = arith.constant dense<0.000000e+00> : vector<16x8xf32>
    %723 = tpu.matmul %721, %722, %cst_439 {dimension_numbers = #tpu.dot_dimension_numbers<[1], [0], [0], [1], [0, 0, 1, 1], [], []>} : vector<16x16xbf16>, vector<16x8xbf16>, vector<16x8xf32> -> vector<16x8xf32>
    %724 = arith.truncf %723 : vector<16x8xf32> to vector<16x8xbf16>
    %c3_440 = arith.constant 3 : index
    %c0_441 = arith.constant 0 : index
    %c0_442 = arith.constant 0 : index
    %725 = vector.load %arg47[%c3_440, %c0_441, %c0_442] : memref<4x8x32xbf16, #tpu.memory_space<vmem>>, vector<1x8x32xbf16>
    %726 = vector.shape_cast %725 : vector<1x8x32xbf16> to vector<8x32xbf16>
    %cst_443 = arith.constant dense<0.000000e+00> : vector<16x32xf32>
    %727 = tpu.matmul %724, %726, %cst_443 {dimension_numbers = #tpu.dot_dimension_numbers<[1], [0], [0], [1], [0, 0, 1, 1], [], []>} : vector<16x8xbf16>, vector<8x32xbf16>, vector<16x32xf32> -> vector<16x32xf32>
    %728 = arith.addf %684, %727 : vector<16x32xf32>
    %c0_444 = arith.constant 0 : index
    %c0_445 = arith.constant 0 : index
    %729 = vector.load %arg48[%c0_444, %c0_445] : memref<1x32xf32, #tpu.memory_space<vmem>>, vector<1x32xf32>
    %730 = vector.broadcast %729 : vector<1x32xf32> to vector<16x32xf32>
    %731 = arith.addf %728, %730 : vector<16x32xf32>
    %732 = arith.addf %550, %731 : vector<16x32xf32>
    %c0_446 = arith.constant 0 : index
    %c0_447 = arith.constant 0 : index
    %733 = vector.load %arg53[%c0_446, %c0_447] : memref<1x32xf32, #tpu.memory_space<vmem>>, vector<1x32xf32>
    %c0_448 = arith.constant 0 : index
    %c0_449 = arith.constant 0 : index
    %734 = vector.load %arg54[%c0_448, %c0_449] : memref<1x32xf32, #tpu.memory_space<vmem>>, vector<1x32xf32>
    %cst_450 = arith.constant dense<0.000000e+00> : vector<16xf32>
    %735 = vector.multi_reduction <add>, %732, %cst_450 [1] : vector<16x32xf32> to vector<16xf32>
    %736 = vector.shape_cast %735 : vector<16xf32> to vector<16x1xf32>
    %cst_451 = arith.constant 3.200000e+01 : f32
    %737 = vector.broadcast %cst_451 : f32 to vector<16x1xf32>
    %738 = arith.divf %736, %737 : vector<16x1xf32>
    %739 = vector.broadcast %738 : vector<16x1xf32> to vector<16x32xf32>
    %740 = arith.subf %732, %739 : vector<16x32xf32>
    %741 = arith.mulf %740, %740 : vector<16x32xf32>
    %cst_452 = arith.constant dense<0.000000e+00> : vector<16xf32>
    %742 = vector.multi_reduction <add>, %741, %cst_452 [1] : vector<16x32xf32> to vector<16xf32>
    %743 = vector.shape_cast %742 : vector<16xf32> to vector<16x1xf32>
    %cst_453 = arith.constant 3.200000e+01 : f32
    %744 = vector.broadcast %cst_453 : f32 to vector<16x1xf32>
    %745 = arith.divf %743, %744 : vector<16x1xf32>
    %746 = vector.broadcast %738 : vector<16x1xf32> to vector<16x32xf32>
    %747 = arith.subf %732, %746 : vector<16x32xf32>
    %cst_454 = arith.constant 9.99999974E-6 : f32
    %748 = vector.broadcast %cst_454 : f32 to vector<16x1xf32>
    %749 = arith.addf %745, %748 : vector<16x1xf32>
    %750 = math.rsqrt %749 : vector<16x1xf32>
    %751 = vector.broadcast %750 : vector<16x1xf32> to vector<16x32xf32>
    %752 = arith.mulf %747, %751 : vector<16x32xf32>
    %753 = vector.broadcast %733 : vector<1x32xf32> to vector<16x32xf32>
    %754 = arith.mulf %752, %753 : vector<16x32xf32>
    %755 = vector.broadcast %734 : vector<1x32xf32> to vector<16x32xf32>
    %756 = arith.addf %754, %755 : vector<16x32xf32>
    %757 = arith.truncf %756 : vector<16x32xf32> to vector<16x32xbf16>
    %c0_455 = arith.constant 0 : index
    %c0_456 = arith.constant 0 : index
    %758 = vector.load %arg49[%c0_455, %c0_456] : memref<32x64xbf16, #tpu.memory_space<vmem>>, vector<32x64xbf16>
    %cst_457 = arith.constant dense<0.000000e+00> : vector<16x64xf32>
    %759 = tpu.matmul %757, %758, %cst_457 {dimension_numbers = #tpu.dot_dimension_numbers<[1], [0], [0], [1], [0, 0, 1, 1], [], []>} : vector<16x32xbf16>, vector<32x64xbf16>, vector<16x64xf32> -> vector<16x64xf32>
    %c0_458 = arith.constant 0 : index
    %c0_459 = arith.constant 0 : index
    %760 = vector.load %arg50[%c0_458, %c0_459] : memref<1x64xf32, #tpu.memory_space<vmem>>, vector<1x64xf32>
    %761 = vector.broadcast %760 : vector<1x64xf32> to vector<16x64xf32>
    %762 = arith.addf %759, %761 : vector<16x64xf32>
    %cst_460 = arith.constant 5.000000e-01 : f32
    %763 = vector.broadcast %cst_460 : f32 to vector<16x64xf32>
    %764 = arith.mulf %763, %762 : vector<16x64xf32>
    %cst_461 = arith.constant 4.471500e-02 : f32
    %765 = vector.broadcast %cst_461 : f32 to vector<16x64xf32>
    %766 = arith.mulf %765, %762 : vector<16x64xf32>
    %767 = arith.mulf %766, %762 : vector<16x64xf32>
    %768 = arith.mulf %767, %762 : vector<16x64xf32>
    %769 = arith.addf %762, %768 : vector<16x64xf32>
    %cst_462 = arith.constant 0.797884583 : f32
    %770 = vector.broadcast %cst_462 : f32 to vector<16x64xf32>
    %771 = arith.mulf %770, %769 : vector<16x64xf32>
    %772 = math.tanh %771 : vector<16x64xf32>
    %cst_463 = arith.constant 1.000000e+00 : f32
    %773 = vector.broadcast %cst_463 : f32 to vector<16x64xf32>
    %774 = arith.addf %773, %772 : vector<16x64xf32>
    %775 = arith.mulf %764, %774 : vector<16x64xf32>
    %776 = arith.truncf %775 : vector<16x64xf32> to vector<16x64xbf16>
    %c0_464 = arith.constant 0 : index
    %c0_465 = arith.constant 0 : index
    %777 = vector.load %arg51[%c0_464, %c0_465] : memref<64x32xbf16, #tpu.memory_space<vmem>>, vector<64x32xbf16>
    %cst_466 = arith.constant dense<0.000000e+00> : vector<16x32xf32>
    %778 = tpu.matmul %776, %777, %cst_466 {dimension_numbers = #tpu.dot_dimension_numbers<[1], [0], [0], [1], [0, 0, 1, 1], [], []>} : vector<16x64xbf16>, vector<64x32xbf16>, vector<16x32xf32> -> vector<16x32xf32>
    %c0_467 = arith.constant 0 : index
    %c0_468 = arith.constant 0 : index
    %779 = vector.load %arg52[%c0_467, %c0_468] : memref<1x32xf32, #tpu.memory_space<vmem>>, vector<1x32xf32>
    %780 = vector.broadcast %779 : vector<1x32xf32> to vector<16x32xf32>
    %781 = arith.addf %778, %780 : vector<16x32xf32>
    %782 = arith.addf %756, %781 : vector<16x32xf32>
    %c0_469 = arith.constant 0 : index
    %c0_470 = arith.constant 0 : index
    %783 = vector.load %arg55[%c0_469, %c0_470] : memref<1x32xf32, #tpu.memory_space<vmem>>, vector<1x32xf32>
    %c0_471 = arith.constant 0 : index
    %c0_472 = arith.constant 0 : index
    %784 = vector.load %arg56[%c0_471, %c0_472] : memref<1x32xf32, #tpu.memory_space<vmem>>, vector<1x32xf32>
    %cst_473 = arith.constant dense<0.000000e+00> : vector<16xf32>
    %785 = vector.multi_reduction <add>, %782, %cst_473 [1] : vector<16x32xf32> to vector<16xf32>
    %786 = vector.shape_cast %785 : vector<16xf32> to vector<16x1xf32>
    %cst_474 = arith.constant 3.200000e+01 : f32
    %787 = vector.broadcast %cst_474 : f32 to vector<16x1xf32>
    %788 = arith.divf %786, %787 : vector<16x1xf32>
    %789 = vector.broadcast %788 : vector<16x1xf32> to vector<16x32xf32>
    %790 = arith.subf %782, %789 : vector<16x32xf32>
    %791 = arith.mulf %790, %790 : vector<16x32xf32>
    %cst_475 = arith.constant dense<0.000000e+00> : vector<16xf32>
    %792 = vector.multi_reduction <add>, %791, %cst_475 [1] : vector<16x32xf32> to vector<16xf32>
    %793 = vector.shape_cast %792 : vector<16xf32> to vector<16x1xf32>
    %cst_476 = arith.constant 3.200000e+01 : f32
    %794 = vector.broadcast %cst_476 : f32 to vector<16x1xf32>
    %795 = arith.divf %793, %794 : vector<16x1xf32>
    %796 = vector.broadcast %788 : vector<16x1xf32> to vector<16x32xf32>
    %797 = arith.subf %782, %796 : vector<16x32xf32>
    %cst_477 = arith.constant 9.99999974E-6 : f32
    %798 = vector.broadcast %cst_477 : f32 to vector<16x1xf32>
    %799 = arith.addf %795, %798 : vector<16x1xf32>
    %800 = math.rsqrt %799 : vector<16x1xf32>
    %801 = vector.broadcast %800 : vector<16x1xf32> to vector<16x32xf32>
    %802 = arith.mulf %797, %801 : vector<16x32xf32>
    %803 = vector.broadcast %783 : vector<1x32xf32> to vector<16x32xf32>
    %804 = arith.mulf %802, %803 : vector<16x32xf32>
    %805 = vector.broadcast %784 : vector<1x32xf32> to vector<16x32xf32>
    %806 = arith.addf %804, %805 : vector<16x32xf32>
    %807 = arith.truncf %806 : vector<16x32xf32> to vector<16x32xbf16>
    %c0_478 = arith.constant 0 : index
    %c0_479 = arith.constant 0 : index
    %808 = vector.load %arg57[%c0_478, %c0_479] : memref<32x1xbf16, #tpu.memory_space<vmem>>, vector<32x1xbf16>
    %cst_480 = arith.constant dense<0.000000e+00> : vector<16x1xf32>
    %809 = tpu.matmul %807, %808, %cst_480 {dimension_numbers = #tpu.dot_dimension_numbers<[1], [0], [0], [1], [0, 0, 1, 1], [], []>} : vector<16x32xbf16>, vector<32x1xbf16>, vector<16x1xf32> -> vector<16x1xf32>
    %c0_481 = arith.constant 0 : index
    %c0_482 = arith.constant 0 : index
    %810 = vector.load %arg58[%c0_481, %c0_482] : memref<1x1xf32, #tpu.memory_space<vmem>>, vector<1x1xf32>
    %811 = vector.broadcast %810 : vector<1x1xf32> to vector<16x1xf32>
    %812 = arith.addf %809, %811 : vector<16x1xf32>
    %cst_483 = arith.constant dense<0xFF800000> : vector<1xf32>
    %813 = vector.multi_reduction <maximumf>, %812, %cst_483 [0] : vector<16x1xf32> to vector<1xf32>
    %814 = vector.shape_cast %813 : vector<1xf32> to vector<1x1xf32>
    %815 = vector.broadcast %814 : vector<1x1xf32> to vector<16x1xf32>
    %816 = arith.subf %812, %815 : vector<16x1xf32>
    %817 = math.exp %816 : vector<16x1xf32>
    %cst_484 = arith.constant dense<0.000000e+00> : vector<1xf32>
    %818 = vector.multi_reduction <add>, %817, %cst_484 [0] : vector<16x1xf32> to vector<1xf32>
    %819 = vector.shape_cast %818 : vector<1xf32> to vector<1x1xf32>
    %820 = tpu.reciprocal %819 {approx = true} : vector<1x1xf32> -> vector<1x1xf32>
    %821 = vector.broadcast %820 : vector<1x1xf32> to vector<16x1xf32>
    %822 = arith.mulf %817, %821 : vector<16x1xf32>
    %823 = vector.broadcast %822 : vector<16x1xf32> to vector<16x32xf32>
    %824 = arith.mulf %806, %823 : vector<16x32xf32>
    %cst_485 = arith.constant dense<0.000000e+00> : vector<32xf32>
    %825 = vector.multi_reduction <add>, %824, %cst_485 [0] : vector<16x32xf32> to vector<32xf32>
    %826 = vector.shape_cast %825 : vector<32xf32> to vector<1x32xf32>
    %827 = arith.truncf %826 : vector<1x32xf32> to vector<1x32xbf16>
    %c0_486 = arith.constant 0 : index
    %c0_487 = arith.constant 0 : index
    %828 = vector.load %arg59[%c0_486, %c0_487] : memref<32x16xbf16, #tpu.memory_space<vmem>>, vector<32x16xbf16>
    %cst_488 = arith.constant dense<0.000000e+00> : vector<1x16xf32>
    %829 = tpu.matmul %827, %828, %cst_488 {dimension_numbers = #tpu.dot_dimension_numbers<[1], [0], [0], [1], [0, 0, 1, 1], [], []>} : vector<1x32xbf16>, vector<32x16xbf16>, vector<1x16xf32> -> vector<1x16xf32>
    %c0_489 = arith.constant 0 : index
    %c0_490 = arith.constant 0 : index
    %830 = vector.load %arg60[%c0_489, %c0_490] : memref<1x16xf32, #tpu.memory_space<vmem>>, vector<1x16xf32>
    %831 = arith.addf %829, %830 : vector<1x16xf32>
    %cst_491 = arith.constant 5.000000e-01 : f32
    %832 = vector.broadcast %cst_491 : f32 to vector<1x16xf32>
    %833 = arith.mulf %832, %831 : vector<1x16xf32>
    %cst_492 = arith.constant 4.471500e-02 : f32
    %834 = vector.broadcast %cst_492 : f32 to vector<1x16xf32>
    %835 = arith.mulf %834, %831 : vector<1x16xf32>
    %836 = arith.mulf %835, %831 : vector<1x16xf32>
    %837 = arith.mulf %836, %831 : vector<1x16xf32>
    %838 = arith.addf %831, %837 : vector<1x16xf32>
    %cst_493 = arith.constant 0.797884583 : f32
    %839 = vector.broadcast %cst_493 : f32 to vector<1x16xf32>
    %840 = arith.mulf %839, %838 : vector<1x16xf32>
    %841 = math.tanh %840 : vector<1x16xf32>
    %cst_494 = arith.constant 1.000000e+00 : f32
    %842 = vector.broadcast %cst_494 : f32 to vector<1x16xf32>
    %843 = arith.addf %842, %841 : vector<1x16xf32>
    %844 = arith.mulf %833, %843 : vector<1x16xf32>
    %845 = arith.truncf %844 : vector<1x16xf32> to vector<1x16xbf16>
    %c0_495 = arith.constant 0 : index
    %c0_496 = arith.constant 0 : index
    %846 = vector.load %arg61[%c0_495, %c0_496] : memref<16x1xbf16, #tpu.memory_space<vmem>>, vector<16x1xbf16>
    %cst_497 = arith.constant dense<0.000000e+00> : vector<1x1xf32>
    %847 = tpu.matmul %845, %846, %cst_497 {dimension_numbers = #tpu.dot_dimension_numbers<[1], [0], [0], [1], [0, 0, 1, 1], [], []>} : vector<1x16xbf16>, vector<16x1xbf16>, vector<1x1xf32> -> vector<1x1xf32>
    %c0_498 = arith.constant 0 : index
    %c0_499 = arith.constant 0 : index
    %848 = vector.load %arg62[%c0_498, %c0_499] : memref<1x1xf32, #tpu.memory_space<vmem>>, vector<1x1xf32>
    %849 = arith.addf %847, %848 : vector<1x1xf32>
    %850 = vector.shape_cast %849 : vector<1x1xf32> to vector<1x1x1xf32>
    %c0_500 = arith.constant 0 : index
    %c0_501 = arith.constant 0 : index
    %c0_502 = arith.constant 0 : index
    %851 = vector.load %arg67[%c0_500, %c0_501, %c0_502] : memref<1x1x1xf32, #tpu.memory_space<vmem>>, vector<1x1x1xf32>
    tpu.vector_store %arg67[%c0_500, %c0_501, %c0_502], %850 {strides = array<i32>} : memref<1x1x1xf32, #tpu.memory_space<vmem>>, vector<1x1x1xf32>,
    %852 = arith.truncf %826 : vector<1x32xf32> to vector<1x32xbf16>
    %c0_503 = arith.constant 0 : index
    %c0_504 = arith.constant 0 : index
    %853 = vector.load %arg63[%c0_503, %c0_504] : memref<32x16xbf16, #tpu.memory_space<vmem>>, vector<32x16xbf16>
    %cst_505 = arith.constant dense<0.000000e+00> : vector<1x16xf32>
    %854 = tpu.matmul %852, %853, %cst_505 {dimension_numbers = #tpu.dot_dimension_numbers<[1], [0], [0], [1], [0, 0, 1, 1], [], []>} : vector<1x32xbf16>, vector<32x16xbf16>, vector<1x16xf32> -> vector<1x16xf32>
    %c0_506 = arith.constant 0 : index
    %c0_507 = arith.constant 0 : index
    %855 = vector.load %arg64[%c0_506, %c0_507] : memref<1x16xf32, #tpu.memory_space<vmem>>, vector<1x16xf32>
    %856 = arith.addf %854, %855 : vector<1x16xf32>
    %cst_508 = arith.constant 5.000000e-01 : f32
    %857 = vector.broadcast %cst_508 : f32 to vector<1x16xf32>
    %858 = arith.mulf %857, %856 : vector<1x16xf32>
    %cst_509 = arith.constant 4.471500e-02 : f32
    %859 = vector.broadcast %cst_509 : f32 to vector<1x16xf32>
    %860 = arith.mulf %859, %856 : vector<1x16xf32>
    %861 = arith.mulf %860, %856 : vector<1x16xf32>
    %862 = arith.mulf %861, %856 : vector<1x16xf32>
    %863 = arith.addf %856, %862 : vector<1x16xf32>
    %cst_510 = arith.constant 0.797884583 : f32
    %864 = vector.broadcast %cst_510 : f32 to vector<1x16xf32>
    %865 = arith.mulf %864, %863 : vector<1x16xf32>
    %866 = math.tanh %865 : vector<1x16xf32>
    %cst_511 = arith.constant 1.000000e+00 : f32
    %867 = vector.broadcast %cst_511 : f32 to vector<1x16xf32>
    %868 = arith.addf %867, %866 : vector<1x16xf32>
    %869 = arith.mulf %858, %868 : vector<1x16xf32>
    %870 = arith.truncf %869 : vector<1x16xf32> to vector<1x16xbf16>
    %c0_512 = arith.constant 0 : index
    %c0_513 = arith.constant 0 : index
    %871 = vector.load %arg65[%c0_512, %c0_513] : memref<16x1xbf16, #tpu.memory_space<vmem>>, vector<16x1xbf16>
    %cst_514 = arith.constant dense<0.000000e+00> : vector<1x1xf32>
    %872 = tpu.matmul %870, %871, %cst_514 {dimension_numbers = #tpu.dot_dimension_numbers<[1], [0], [0], [1], [0, 0, 1, 1], [], []>} : vector<1x16xbf16>, vector<16x1xbf16>, vector<1x1xf32> -> vector<1x1xf32>
    %c0_515 = arith.constant 0 : index
    %c0_516 = arith.constant 0 : index
    %873 = vector.load %arg66[%c0_515, %c0_516] : memref<1x1xf32, #tpu.memory_space<vmem>>, vector<1x1xf32>
    %874 = arith.addf %872, %873 : vector<1x1xf32>
    %cst_517 = arith.constant 2.000000e+01 : f32
    %875 = vector.broadcast %cst_517 : f32 to vector<1x1xf32>
    %876 = arith.cmpf ogt, %874, %875 : vector<1x1xf32>
    %cst_518 = arith.constant 2.000000e+01 : f32
    %877 = vector.broadcast %cst_518 : f32 to vector<1x1xf32>
    %878 = arith.minimumf %874, %877 : vector<1x1xf32>
    %879 = math.exp %878 : vector<1x1xf32>
    %cst_519 = arith.constant 1.000000e+00 : f32
    %880 = vector.broadcast %cst_519 : f32 to vector<1x1xf32>
    %881 = arith.addf %880, %879 : vector<1x1xf32>
    %882 = math.log %881 : vector<1x1xf32>
    %883 = arith.select %876, %874, %882 : vector<1x1xi1>, vector<1x1xf32>
    %884 = vector.shape_cast %883 : vector<1x1xf32> to vector<1x1x1xf32>
    %c0_520 = arith.constant 0 : index
    %c0_521 = arith.constant 0 : index
    %c0_522 = arith.constant 0 : index
    %885 = vector.load %arg68[%c0_520, %c0_521, %c0_522] : memref<1x1x1xf32, #tpu.memory_space<vmem>>, vector<1x1x1xf32>
    tpu.vector_store %arg68[%c0_520, %c0_521, %c0_522], %884 {strides = array<i32>} : memref<1x1x1xf32, #tpu.memory_space<vmem>>, vector<1x1x1xf32>,
    return
  }
  func.func @transform_0(%arg0: i32) -> (i32, i32, i32) {
    %c0_i32 = arith.constant 0 : i32
    %c0_i32_0 = arith.constant 0 : i32
    %c0_i32_1 = arith.constant 0 : i32
    return %arg0, %c0_i32, %c0_i32_0 : i32, i32, i32
  }
  func.func @transform_1(%arg0: i32) -> (i32, i32) {
    %c0_i32 = arith.constant 0 : i32
    %c0_i32_0 = arith.constant 0 : i32
    %c0_i32_1 = arith.constant 0 : i32
    return %c0_i32, %c0_i32_0 : i32, i32
  }
  func.func @transform_2(%arg0: i32) -> (i32, i32) {
    %c0_i32 = arith.constant 0 : i32
    %c0_i32_0 = arith.constant 0 : i32
    %c0_i32_1 = arith.constant 0 : i32
    return %c0_i32, %c0_i32_0 : i32, i32
  }
  func.func @transform_3(%arg0: i32) -> (i32, i32) {
    %c0_i32 = arith.constant 0 : i32
    %c0_i32_0 = arith.constant 0 : i32
    %c0_i32_1 = arith.constant 0 : i32
    return %c0_i32, %c0_i32_0 : i32, i32
  }
  func.func @transform_4(%arg0: i32) -> (i32, i32, i32) {
    %c0_i32 = arith.constant 0 : i32
    %c0_i32_0 = arith.constant 0 : i32
    %c0_i32_1 = arith.constant 0 : i32
    %c0_i32_2 = arith.constant 0 : i32
    return %c0_i32, %c0_i32_0, %c0_i32_1 : i32, i32, i32
  }
  func.func @transform_5(%arg0: i32) -> (i32, i32) {
    %c0_i32 = arith.constant 0 : i32
    %c0_i32_0 = arith.constant 0 : i32
    %c0_i32_1 = arith.constant 0 : i32
    return %c0_i32, %c0_i32_0 : i32, i32
  }
  func.func @transform_6(%arg0: i32) -> (i32, i32) {
    %c0_i32 = arith.constant 0 : i32
    %c0_i32_0 = arith.constant 0 : i32
    %c0_i32_1 = arith.constant 0 : i32
    return %c0_i32, %c0_i32_0 : i32, i32
  }
  func.func @transform_7(%arg0: i32) -> (i32, i32) {
    %c0_i32 = arith.constant 0 : i32
    %c0_i32_0 = arith.constant 0 : i32
    %c0_i32_1 = arith.constant 0 : i32
    return %c0_i32, %c0_i32_0 : i32, i32
  }
  func.func @transform_8(%arg0: i32) -> (i32, i32) {
    %c0_i32 = arith.constant 0 : i32
    %c0_i32_0 = arith.constant 0 : i32
    %c0_i32_1 = arith.constant 0 : i32
    return %c0_i32, %c0_i32_0 : i32, i32
  }
  func.func @transform_9(%arg0: i32) -> (i32, i32) {
    %c0_i32 = arith.constant 0 : i32
    %c0_i32_0 = arith.constant 0 : i32
    %c0_i32_1 = arith.constant 0 : i32
    return %c0_i32, %c0_i32_0 : i32, i32
  }
  func.func @transform_10(%arg0: i32) -> (i32, i32, i32) {
    %c0_i32 = arith.constant 0 : i32
    %c0_i32_0 = arith.constant 0 : i32
    %c0_i32_1 = arith.constant 0 : i32
    %c0_i32_2 = arith.constant 0 : i32
    return %c0_i32, %c0_i32_0, %c0_i32_1 : i32, i32, i32
  }
  func.func @transform_11(%arg0: i32) -> (i32, i32) {
    %c0_i32 = arith.constant 0 : i32
    %c0_i32_0 = arith.constant 0 : i32
    %c0_i32_1 = arith.constant 0 : i32
    return %c0_i32, %c0_i32_0 : i32, i32
  }
  func.func @transform_12(%arg0: i32) -> (i32, i32) {
    %c0_i32 = arith.constant 0 : i32
    %c0_i32_0 = arith.constant 0 : i32
    %c0_i32_1 = arith.constant 0 : i32
    return %c0_i32, %c0_i32_0 : i32, i32
  }
  func.func @transform_13(%arg0: i32) -> (i32, i32) {
    %c0_i32 = arith.constant 0 : i32
    %c0_i32_0 = arith.constant 0 : i32
    %c0_i32_1 = arith.constant 0 : i32
    return %c0_i32, %c0_i32_0 : i32, i32
  }
  func.func @transform_14(%arg0: i32) -> (i32, i32) {
    %c0_i32 = arith.constant 0 : i32
    %c0_i32_0 = arith.constant 0 : i32
    %c0_i32_1 = arith.constant 0 : i32
    return %c0_i32, %c0_i32_0 : i32, i32
  }
  func.func @transform_15(%arg0: i32) -> (i32, i32) {
    %c0_i32 = arith.constant 0 : i32
    %c0_i32_0 = arith.constant 0 : i32
    %c0_i32_1 = arith.constant 0 : i32
    return %c0_i32, %c0_i32_0 : i32, i32
  }
  func.func @transform_16(%arg0: i32) -> (i32, i32, i32) {
    %c0_i32 = arith.constant 0 : i32
    %c0_i32_0 = arith.constant 0 : i32
    %c0_i32_1 = arith.constant 0 : i32
    %c0_i32_2 = arith.constant 0 : i32
    return %c0_i32, %c0_i32_0, %c0_i32_1 : i32, i32, i32
  }
  func.func @transform_17(%arg0: i32) -> (i32, i32) {
    %c0_i32 = arith.constant 0 : i32
    %c0_i32_0 = arith.constant 0 : i32
    %c0_i32_1 = arith.constant 0 : i32
    return %c0_i32, %c0_i32_0 : i32, i32
  }
  func.func @transform_18(%arg0: i32) -> (i32, i32) {
    %c0_i32 = arith.constant 0 : i32
    %c0_i32_0 = arith.constant 0 : i32
    %c0_i32_1 = arith.constant 0 : i32
    return %c0_i32, %c0_i32_0 : i32, i32
  }
  func.func @transform_19(%arg0: i32) -> (i32, i32) {
    %c0_i32 = arith.constant 0 : i32
    %c0_i32_0 = arith.constant 0 : i32
    %c0_i32_1 = arith.constant 0 : i32
    return %c0_i32, %c0_i32_0 : i32, i32
  }
  func.func @transform_20(%arg0: i32) -> (i32, i32) {
    %c0_i32 = arith.constant 0 : i32
    %c0_i32_0 = arith.constant 0 : i32
    %c0_i32_1 = arith.constant 0 : i32
    return %c0_i32, %c0_i32_0 : i32, i32
  }
  func.func @transform_21(%arg0: i32) -> (i32, i32) {
    %c0_i32 = arith.constant 0 : i32
    %c0_i32_0 = arith.constant 0 : i32
    %c0_i32_1 = arith.constant 0 : i32
    return %c0_i32, %c0_i32_0 : i32, i32
  }
  func.func @transform_22(%arg0: i32) -> (i32, i32) {
    %c0_i32 = arith.constant 0 : i32
    %c0_i32_0 = arith.constant 0 : i32
    %c0_i32_1 = arith.constant 0 : i32
    return %c0_i32, %c0_i32_0 : i32, i32
  }
  func.func @transform_23(%arg0: i32) -> (i32, i32) {
    %c0_i32 = arith.constant 0 : i32
    %c0_i32_0 = arith.constant 0 : i32
    %c0_i32_1 = arith.constant 0 : i32
    return %c0_i32, %c0_i32_0 : i32, i32
  }
  func.func @transform_24(%arg0: i32) -> (i32, i32, i32) {
    %c0_i32 = arith.constant 0 : i32
    %c0_i32_0 = arith.constant 0 : i32
    %c0_i32_1 = arith.constant 0 : i32
    %c0_i32_2 = arith.constant 0 : i32
    return %c0_i32, %c0_i32_0, %c0_i32_1 : i32, i32, i32
  }
  func.func @transform_25(%arg0: i32) -> (i32, i32, i32) {
    %c0_i32 = arith.constant 0 : i32
    %c0_i32_0 = arith.constant 0 : i32
    %c0_i32_1 = arith.constant 0 : i32
    %c0_i32_2 = arith.constant 0 : i32
    return %c0_i32, %c0_i32_0, %c0_i32_1 : i32, i32, i32
  }
  func.func @transform_26(%arg0: i32) -> (i32, i32, i32) {
    %c0_i32 = arith.constant 0 : i32
    %c0_i32_0 = arith.constant 0 : i32
    %c0_i32_1 = arith.constant 0 : i32
    %c0_i32_2 = arith.constant 0 : i32
    return %c0_i32, %c0_i32_0, %c0_i32_1 : i32, i32, i32
  }
  func.func @transform_27(%arg0: i32) -> (i32, i32, i32) {
    %c0_i32 = arith.constant 0 : i32
    %c0_i32_0 = arith.constant 0 : i32
    %c0_i32_1 = arith.constant 0 : i32
    %c0_i32_2 = arith.constant 0 : i32
    return %c0_i32, %c0_i32_0, %c0_i32_1 : i32, i32, i32
  }
  func.func @transform_28(%arg0: i32) -> (i32, i32, i32) {
    %c0_i32 = arith.constant 0 : i32
    %c0_i32_0 = arith.constant 0 : i32
    %c0_i32_1 = arith.constant 0 : i32
    %c0_i32_2 = arith.constant 0 : i32
    return %c0_i32, %c0_i32_0, %c0_i32_1 : i32, i32, i32
  }
  func.func @transform_29(%arg0: i32) -> (i32, i32, i32) {
    %c0_i32 = arith.constant 0 : i32
    %c0_i32_0 = arith.constant 0 : i32
    %c0_i32_1 = arith.constant 0 : i32
    %c0_i32_2 = arith.constant 0 : i32
    return %c0_i32, %c0_i32_0, %c0_i32_1 : i32, i32, i32
  }
  func.func @transform_30(%arg0: i32) -> (i32, i32, i32) {
    %c0_i32 = arith.constant 0 : i32
    %c0_i32_0 = arith.constant 0 : i32
    %c0_i32_1 = arith.constant 0 : i32
    %c0_i32_2 = arith.constant 0 : i32
    return %c0_i32, %c0_i32_0, %c0_i32_1 : i32, i32, i32
  }
  func.func @transform_31(%arg0: i32) -> (i32, i32) {
    %c0_i32 = arith.constant 0 : i32
    %c0_i32_0 = arith.constant 0 : i32
    %c0_i32_1 = arith.constant 0 : i32
    return %c0_i32, %c0_i32_0 : i32, i32
  }
  func.func @transform_32(%arg0: i32) -> (i32, i32) {
    %c0_i32 = arith.constant 0 : i32
    %c0_i32_0 = arith.constant 0 : i32
    %c0_i32_1 = arith.constant 0 : i32
    return %c0_i32, %c0_i32_0 : i32, i32
  }
  func.func @transform_33(%arg0: i32) -> (i32, i32) {
    %c0_i32 = arith.constant 0 : i32
    %c0_i32_0 = arith.constant 0 : i32
    %c0_i32_1 = arith.constant 0 : i32
    return %c0_i32, %c0_i32_0 : i32, i32
  }
  func.func @transform_34(%arg0: i32) -> (i32, i32) {
    %c0_i32 = arith.constant 0 : i32
    %c0_i32_0 = arith.constant 0 : i32
    %c0_i32_1 = arith.constant 0 : i32
    return %c0_i32, %c0_i32_0 : i32, i32
  }
  func.func @transform_35(%arg0: i32) -> (i32, i32) {
    %c0_i32 = arith.constant 0 : i32
    %c0_i32_0 = arith.constant 0 : i32
    %c0_i32_1 = arith.constant 0 : i32
    return %c0_i32, %c0_i32_0 : i32, i32
  }
  func.func @transform_36(%arg0: i32) -> (i32, i32) {
    %c0_i32 = arith.constant 0 : i32
    %c0_i32_0 = arith.constant 0 : i32
    %c0_i32_1 = arith.constant 0 : i32
    return %c0_i32, %c0_i32_0 : i32, i32
  }
  func.func @transform_37(%arg0: i32) -> (i32, i32) {
    %c0_i32 = arith.constant 0 : i32
    %c0_i32_0 = arith.constant 0 : i32
    %c0_i32_1 = arith.constant 0 : i32
    return %c0_i32, %c0_i32_0 : i32, i32
  }
  func.func @transform_38(%arg0: i32) -> (i32, i32) {
    %c0_i32 = arith.constant 0 : i32
    %c0_i32_0 = arith.constant 0 : i32
    %c0_i32_1 = arith.constant 0 : i32
    return %c0_i32, %c0_i32_0 : i32, i32
  }
  func.func @transform_39(%arg0: i32) -> (i32, i32) {
    %c0_i32 = arith.constant 0 : i32
    %c0_i32_0 = arith.constant 0 : i32
    %c0_i32_1 = arith.constant 0 : i32
    return %c0_i32, %c0_i32_0 : i32, i32
  }
  func.func @transform_40(%arg0: i32) -> (i32, i32, i32) {
    %c0_i32 = arith.constant 0 : i32
    %c0_i32_0 = arith.constant 0 : i32
    %c0_i32_1 = arith.constant 0 : i32
    %c0_i32_2 = arith.constant 0 : i32
    return %c0_i32, %c0_i32_0, %c0_i32_1 : i32, i32, i32
  }
  func.func @transform_41(%arg0: i32) -> (i32, i32, i32) {
    %c0_i32 = arith.constant 0 : i32
    %c0_i32_0 = arith.constant 0 : i32
    %c0_i32_1 = arith.constant 0 : i32
    %c0_i32_2 = arith.constant 0 : i32
    return %c0_i32, %c0_i32_0, %c0_i32_1 : i32, i32, i32
  }
  func.func @transform_42(%arg0: i32) -> (i32, i32, i32) {
    %c0_i32 = arith.constant 0 : i32
    %c0_i32_0 = arith.constant 0 : i32
    %c0_i32_1 = arith.constant 0 : i32
    %c0_i32_2 = arith.constant 0 : i32
    return %c0_i32, %c0_i32_0, %c0_i32_1 : i32, i32, i32
  }
  func.func @transform_43(%arg0: i32) -> (i32, i32, i32) {
    %c0_i32 = arith.constant 0 : i32
    %c0_i32_0 = arith.constant 0 : i32
    %c0_i32_1 = arith.constant 0 : i32
    %c0_i32_2 = arith.constant 0 : i32
    return %c0_i32, %c0_i32_0, %c0_i32_1 : i32, i32, i32
  }
  func.func @transform_44(%arg0: i32) -> (i32, i32, i32) {
    %c0_i32 = arith.constant 0 : i32
    %c0_i32_0 = arith.constant 0 : i32
    %c0_i32_1 = arith.constant 0 : i32
    %c0_i32_2 = arith.constant 0 : i32
    return %c0_i32, %c0_i32_0, %c0_i32_1 : i32, i32, i32
  }
  func.func @transform_45(%arg0: i32) -> (i32, i32, i32) {
    %c0_i32 = arith.constant 0 : i32
    %c0_i32_0 = arith.constant 0 : i32
    %c0_i32_1 = arith.constant 0 : i32
    %c0_i32_2 = arith.constant 0 : i32
    return %c0_i32, %c0_i32_0, %c0_i32_1 : i32, i32, i32
  }
  func.func @transform_46(%arg0: i32) -> (i32, i32, i32) {
    %c0_i32 = arith.constant 0 : i32
    %c0_i32_0 = arith.constant 0 : i32
    %c0_i32_1 = arith.constant 0 : i32
    %c0_i32_2 = arith.constant 0 : i32
    return %c0_i32, %c0_i32_0, %c0_i32_1 : i32, i32, i32
  }
  func.func @transform_47(%arg0: i32) -> (i32, i32) {
    %c0_i32 = arith.constant 0 : i32
    %c0_i32_0 = arith.constant 0 : i32
    %c0_i32_1 = arith.constant 0 : i32
    return %c0_i32, %c0_i32_0 : i32, i32
  }
  func.func @transform_48(%arg0: i32) -> (i32, i32) {
    %c0_i32 = arith.constant 0 : i32
    %c0_i32_0 = arith.constant 0 : i32
    %c0_i32_1 = arith.constant 0 : i32
    return %c0_i32, %c0_i32_0 : i32, i32
  }
  func.func @transform_49(%arg0: i32) -> (i32, i32) {
    %c0_i32 = arith.constant 0 : i32
    %c0_i32_0 = arith.constant 0 : i32
    %c0_i32_1 = arith.constant 0 : i32
    return %c0_i32, %c0_i32_0 : i32, i32
  }
  func.func @transform_50(%arg0: i32) -> (i32, i32) {
    %c0_i32 = arith.constant 0 : i32
    %c0_i32_0 = arith.constant 0 : i32
    %c0_i32_1 = arith.constant 0 : i32
    return %c0_i32, %c0_i32_0 : i32, i32
  }
  func.func @transform_51(%arg0: i32) -> (i32, i32) {
    %c0_i32 = arith.constant 0 : i32
    %c0_i32_0 = arith.constant 0 : i32
    %c0_i32_1 = arith.constant 0 : i32
    return %c0_i32, %c0_i32_0 : i32, i32
  }
  func.func @transform_52(%arg0: i32) -> (i32, i32) {
    %c0_i32 = arith.constant 0 : i32
    %c0_i32_0 = arith.constant 0 : i32
    %c0_i32_1 = arith.constant 0 : i32
    return %c0_i32, %c0_i32_0 : i32, i32
  }
  func.func @transform_53(%arg0: i32) -> (i32, i32) {
    %c0_i32 = arith.constant 0 : i32
    %c0_i32_0 = arith.constant 0 : i32
    %c0_i32_1 = arith.constant 0 : i32
    return %c0_i32, %c0_i32_0 : i32, i32
  }
  func.func @transform_54(%arg0: i32) -> (i32, i32) {
    %c0_i32 = arith.constant 0 : i32
    %c0_i32_0 = arith.constant 0 : i32
    %c0_i32_1 = arith.constant 0 : i32
    return %c0_i32, %c0_i32_0 : i32, i32
  }
  func.func @transform_55(%arg0: i32) -> (i32, i32) {
    %c0_i32 = arith.constant 0 : i32
    %c0_i32_0 = arith.constant 0 : i32
    %c0_i32_1 = arith.constant 0 : i32
    return %c0_i32, %c0_i32_0 : i32, i32
  }
  func.func @transform_56(%arg0: i32) -> (i32, i32) {
    %c0_i32 = arith.constant 0 : i32
    %c0_i32_0 = arith.constant 0 : i32
    %c0_i32_1 = arith.constant 0 : i32
    return %c0_i32, %c0_i32_0 : i32, i32
  }
  func.func @transform_57(%arg0: i32) -> (i32, i32) {
    %c0_i32 = arith.constant 0 : i32
    %c0_i32_0 = arith.constant 0 : i32
    %c0_i32_1 = arith.constant 0 : i32
    return %c0_i32, %c0_i32_0 : i32, i32
  }
  func.func @transform_58(%arg0: i32) -> (i32, i32) {
    %c0_i32 = arith.constant 0 : i32
    %c0_i32_0 = arith.constant 0 : i32
    %c0_i32_1 = arith.constant 0 : i32
    return %c0_i32, %c0_i32_0 : i32, i32
  }
  func.func @transform_59(%arg0: i32) -> (i32, i32) {
    %c0_i32 = arith.constant 0 : i32
    %c0_i32_0 = arith.constant 0 : i32
    %c0_i32_1 = arith.constant 0 : i32
    return %c0_i32, %c0_i32_0 : i32, i32
  }
  func.func @transform_60(%arg0: i32) -> (i32, i32) {
    %c0_i32 = arith.constant 0 : i32
    %c0_i32_0 = arith.constant 0 : i32
    %c0_i32_1 = arith.constant 0 : i32
    return %c0_i32, %c0_i32_0 : i32, i32
  }
  func.func @transform_61(%arg0: i32) -> (i32, i32) {
    %c0_i32 = arith.constant 0 : i32
    %c0_i32_0 = arith.constant 0 : i32
    %c0_i32_1 = arith.constant 0 : i32
    return %c0_i32, %c0_i32_0 : i32, i32
  }
  func.func @transform_62(%arg0: i32) -> (i32, i32) {
    %c0_i32 = arith.constant 0 : i32
    %c0_i32_0 = arith.constant 0 : i32
    %c0_i32_1 = arith.constant 0 : i32
    return %c0_i32, %c0_i32_0 : i32, i32
  }
  func.func @transform_63(%arg0: i32) -> (i32, i32) {
    %c0_i32 = arith.constant 0 : i32
    %c0_i32_0 = arith.constant 0 : i32
    %c0_i32_1 = arith.constant 0 : i32
    return %c0_i32, %c0_i32_0 : i32, i32
  }
  func.func @transform_64(%arg0: i32) -> (i32, i32) {
    %c0_i32 = arith.constant 0 : i32
    %c0_i32_0 = arith.constant 0 : i32
    %c0_i32_1 = arith.constant 0 : i32
    return %c0_i32, %c0_i32_0 : i32, i32
  }
  func.func @transform_65(%arg0: i32) -> (i32, i32) {
    %c0_i32 = arith.constant 0 : i32
    %c0_i32_0 = arith.constant 0 : i32
    %c0_i32_1 = arith.constant 0 : i32
    return %c0_i32, %c0_i32_0 : i32, i32
  }
  func.func @transform_66(%arg0: i32) -> (i32, i32, i32) {
    %c0_i32 = arith.constant 0 : i32
    %c0_i32_0 = arith.constant 0 : i32
    %c0_i32_1 = arith.constant 0 : i32
    return %arg0, %c0_i32, %c0_i32_0 : i32, i32, i32
  }
  func.func @transform_67(%arg0: i32) -> (i32, i32, i32) {
    %c0_i32 = arith.constant 0 : i32
    %c0_i32_0 = arith.constant 0 : i32
    %c0_i32_1 = arith.constant 0 : i32
    return %arg0, %c0_i32, %c0_i32_0 : i32, i32, i32
  }
}

</mosaic_0001>

<llo_original>
// kernel: forward.1
$region0: #{forward.1}
  #allocation0 [shape = 'u32[]', space=smem, size = 0x4, offset = 0x4, fixed_abs, tag = 'smem constant byte address 0x4 - core index']
  #allocation1 [shape = 'u32[144,128]{1,0:T(1,128)}', space=vmem, size = 0x12000, scoped, tag = 'internal scratch']
  #allocation2 [shape = 'f32[1,1]{1,0:T(1,128)S(1)}', space=vmem, size = 0x200, scoped, tag = 'scoped memory for forward.1']
  #allocation3 [shape = 'f32[1,1]{1,0:T(1,128)S(1)}', space=vmem, size = 0x200, scoped, tag = 'scoped memory for forward.1']
  #allocation4 [shape = 'f32[1,1]{1,0:T(1,128)S(1)}', space=vmem, size = 0x200, scoped, tag = 'scoped memory for forward.1']
  %s0 = inlined_call_operand.smem [shape: u32[68], index: -1, kind: input, shape index: {}]
  %s1 = sld [smem:[%s0]]
  %s2 = scalar_lea.smem %s0, 1
  %s3 = sld [smem:[%s2]]
  %s4 = scalar_lea.smem %s0, 2
  %s5 = sld [smem:[%s4]]
  %s6 = scalar_lea.smem %s0, 3
  %s7 = sld [smem:[%s6]]
  %s8 = scalar_lea.smem %s0, 4
  %s9 = sld [smem:[%s8]]
  %s10 = scalar_lea.smem %s0, 5
  %s11 = sld [smem:[%s10]]
  %s12 = scalar_lea.smem %s0, 6
  %s13 = sld [smem:[%s12]]
  %s14 = scalar_lea.smem %s0, 7
  %s15 = sld [smem:[%s14]]
  %s16 = scalar_lea.smem %s0, 8
  %s17 = sld [smem:[%s16]]
  %s18 = scalar_lea.smem %s0, 9
  %s19 = sld [smem:[%s18]]
  %s20 = scalar_lea.smem %s0, 10
  %s21 = sld [smem:[%s20]]
  %s22 = scalar_lea.smem %s0, 11
  %s23 = sld [smem:[%s22]]
  %s24 = scalar_lea.smem %s0, 12
  %s25 = sld [smem:[%s24]]
  %s26 = scalar_lea.smem %s0, 13
  %s27 = sld [smem:[%s26]]
  %s28 = scalar_lea.smem %s0, 14
  %s29 = sld [smem:[%s28]]
  %s30 = scalar_lea.smem %s0, 15
  %s31 = sld [smem:[%s30]]
  %s32 = scalar_lea.smem %s0, 16
  %s33 = sld [smem:[%s32]]
  %s34 = scalar_lea.smem %s0, 17
  %s35 = sld [smem:[%s34]]
  %s36 = scalar_lea.smem %s0, 18
  %s37 = sld [smem:[%s36]]
  %s38 = scalar_lea.smem %s0, 19
  %s39 = sld [smem:[%s38]]
  %s40 = scalar_lea.smem %s0, 20
  %s41 = sld [smem:[%s40]]
  %s42 = scalar_lea.smem %s0, 21
  %s43 = sld [smem:[%s42]]
  %s44 = scalar_lea.smem %s0, 22
  %s45 = sld [smem:[%s44]]
  %s46 = scalar_lea.smem %s0, 23
  %s47 = sld [smem:[%s46]]
  %s48 = scalar_lea.smem %s0, 24
  %s49 = sld [smem:[%s48]]
  %s50 = scalar_lea.smem %s0, 25
  %s51 = sld [smem:[%s50]]
  %s52 = scalar_lea.smem %s0, 26
  %s53 = sld [smem:[%s52]]
  %s54 = scalar_lea.smem %s0, 27
  %s55 = sld [smem:[%s54]]
  %s56 = scalar_lea.smem %s0, 28
  %s57 = sld [smem:[%s56]]
  %s58 = scalar_lea.smem %s0, 29
  %s59 = sld [smem:[%s58]]
  %s60 = scalar_lea.smem %s0, 30
  %s61 = sld [smem:[%s60]]
  %s62 = scalar_lea.smem %s0, 31
  %s63 = sld [smem:[%s62]]
  %s64 = scalar_lea.smem %s0, 32
  %s65 = sld [smem:[%s64]]
  %s66 = scalar_lea.smem %s0, 33
  %s67 = sld [smem:[%s66]]
  %s68 = scalar_lea.smem %s0, 34
  %s69 = sld [smem:[%s68]]
  %s70 = scalar_lea.smem %s0, 35
  %s71 = sld [smem:[%s70]]
  %s72 = scalar_lea.smem %s0, 36
  %s73 = sld [smem:[%s72]]
  %s74 = scalar_lea.smem %s0, 37
  %s75 = sld [smem:[%s74]]
  %s76 = scalar_lea.smem %s0, 38
  %s77 = sld [smem:[%s76]]
  %s78 = scalar_lea.smem %s0, 39
  %s79 = sld [smem:[%s78]]
  %s80 = scalar_lea.smem %s0, 40
  %s81 = sld [smem:[%s80]]
  %s82 = scalar_lea.smem %s0, 41
  %s83 = sld [smem:[%s82]]
  %s84 = scalar_lea.smem %s0, 42
  %s85 = sld [smem:[%s84]]
  %s86 = scalar_lea.smem %s0, 43
  %s87 = sld [smem:[%s86]]
  %s88 = scalar_lea.smem %s0, 44
  %s89 = sld [smem:[%s88]]
  %s90 = scalar_lea.smem %s0, 45
  %s91 = sld [smem:[%s90]]
  %s92 = scalar_lea.smem %s0, 46
  %s93 = sld [smem:[%s92]]
  %s94 = scalar_lea.smem %s0, 47
  %s95 = sld [smem:[%s94]]
  %s96 = scalar_lea.smem %s0, 48
  %s97 = sld [smem:[%s96]]
  %s98 = scalar_lea.smem %s0, 49
  %s99 = sld [smem:[%s98]]
  %s100 = scalar_lea.smem %s0, 50
  %s101 = sld [smem:[%s100]]
  %s102 = scalar_lea.smem %s0, 51
  %s103 = sld [smem:[%s102]]
  %s104 = scalar_lea.smem %s0, 52
  %s105 = sld [smem:[%s104]]
  %s106 = scalar_lea.smem %s0, 53
  %s107 = sld [smem:[%s106]]
  %s108 = scalar_lea.smem %s0, 54
  %s109 = sld [smem:[%s108]]
  %s110 = scalar_lea.smem %s0, 55
  %s111 = sld [smem:[%s110]]
  %s112 = scalar_lea.smem %s0, 56
  %s113 = sld [smem:[%s112]]
  %s114 = scalar_lea.smem %s0, 57
  %s115 = sld [smem:[%s114]]
  %s116 = scalar_lea.smem %s0, 58
  %s117 = sld [smem:[%s116]]
  %s118 = scalar_lea.smem %s0, 59
  %s119 = sld [smem:[%s118]]
  %s120 = scalar_lea.smem %s0, 60
  %s121 = sld [smem:[%s120]]
  %s122 = scalar_lea.smem %s0, 61
  %s123 = sld [smem:[%s122]]
  %s124 = scalar_lea.smem %s0, 62
  %s125 = sld [smem:[%s124]]
  %s126 = scalar_lea.smem %s0, 63
  %s127 = sld [smem:[%s126]]
  %s128 = scalar_lea.smem %s0, 64
  %s129 = sld [smem:[%s128]]
  %s130 = scalar_lea.smem %s0, 65
  %s131 = sld [smem:[%s130]]
  %s132 = scalar_lea.smem %s0, 66
  %s133 = sld [smem:[%s132]]
  %s134 = scalar_lea.smem %s0, 67
  %s135 = sld [smem:[%s134]]
  %136 = xla_tuple %s133, %s135
  %s137 = sld [smem:[#allocation0]]
  $region353: #{forward.1} parent=0
    _
  %s139 = ssub.s32 1, %s137
  %s140 = scalar_select 0, %s139, %s137
  %v141 = vstv %s115
  %142 = vst [vmem:[#allocation2] sm:$0x1] %v141
  %v143 = vstv %s123
  %144 = vst [vmem:[#allocation3] sm:$0x1] %v143
  %v145 = vstv %s131
  %146 = vst [vmem:[#allocation4] sm:$0x1] %v145
  $region1: #{forward.1} parent=0
    #allocation5 [shape = 'u8[512]{0}', space=vmem, size = 0x400, scoped, tag = 'input window, operand 37, single buffered']
    #allocation6 [shape = 's32[2]{0}', space=sflag, size = 0x8, scoped, tag = 'scoped memory for forward.1']
    #allocation7 [shape = 'u8[512]{0}', space=vmem, size = 0x400, scoped, tag = 'input window, operand 38, single buffered']
    #allocation8 [shape = 's32[1]{0}', space=sflag, size = 0x4, scoped, tag = 'scoped memory for forward.1']
    #allocation9 [shape = 'u8[512]{0}', space=vmem, size = 0x400, scoped, tag = 'input window, operand 39, single buffered']
    #allocation10 [shape = 'u8[512]{0}', space=vmem, size = 0x400, scoped, tag = 'input window, operand 47, single buffered']
    #allocation11 [shape = 's32[1]{0}', space=sflag, size = 0x4, scoped, tag = 'scoped memory for forward.1']
    #allocation12 [shape = 'u8[512]{0}', space=vmem, size = 0x400, scoped, tag = 'input window, operand 49, single buffered']
    #allocation13 [shape = 'u8[512]{0}', space=vmem, size = 0x400, scoped, tag = 'input window, operand 51, single buffered']
    #allocation14 [shape = 's32[1]{0}', space=sflag, size = 0x4, scoped, tag = 'scoped memory for forward.1']
    #allocation15 [shape = 'u8[512]{0}', space=vmem, size = 0x400, scoped, tag = 'input window, operand 52, single buffered']
    #allocation16 [shape = 'u8[512]{0}', space=vmem, size = 0x400, scoped, tag = 'input window, operand 53, single buffered']
    #allocation17 [shape = 's32[1]{0}', space=sflag, size = 0x4, scoped, tag = 'scoped memory for forward.1']
    #allocation18 [shape = 'u8[512]{0}', space=vmem, size = 0x400, scoped, tag = 'input window, operand 54, single buffered']
    #allocation19 [shape = 'u8[512]{0}', space=vmem, size = 0x400, scoped, tag = 'input window, operand 55, single buffered']
    #allocation20 [shape = 's32[1]{0}', space=sflag, size = 0x4, scoped, tag = 'scoped memory for forward.1']
    #allocation21 [shape = 'u8[512]{0}', space=vmem, size = 0x400, scoped, tag = 'input window, operand 59, single buffered']
    #allocation22 [shape = 'u8[512]{0}', space=vmem, size = 0x400, scoped, tag = 'input window, operand 63, single buffered']
    #allocation23 [shape = 's32[1]{0}', space=sflag, size = 0x4, scoped, tag = 'scoped memory for forward.1']
    %147 = vsyncpa [#allocation6], 0
    %148 = vsyncpa [#allocation8], 0
    %149 = vsyncpa [#allocation11], 0
    %150 = vsyncpa [#allocation14], 0
    %151 = vsyncpa [#allocation17], 0
    %152 = vsyncpa [#allocation20], 0
    %153 = vsyncpa [#allocation23], 0
    loop: start=0, step=1, limit=4
    $region2: #{forward.1} parent=1 // loop_pre_header
      _
    $region3: #{forward.1} parent=1 // loop_header
      %s155 = sphi 0, %s159
      %p156 = scmp.ge.s32.totalorder %s155, 4
      %s165 = sphi 0, %s167
      %s168 = sphi 0, %s165
      %s169 = sphi 0, %s168
      %s185 = sphi 0, %s169
      %s189 = sphi 0, %s189
      %s191 = sphi 0, %s189
      %s192 = sphi 0, %s191
      %s206 = sphi 0, %s192
      %s210 = sphi 0, %s210
      %s212 = sphi 0, %s210
      %s213 = sphi 0, %s212
      %s227 = sphi 0, %s213
      %s231 = sphi 0, %s231
      %s233 = sphi 0, %s231
      %s234 = sphi 0, %s233
      %s248 = sphi 0, %s234
      %s252 = sphi 0, %s252
      %s254 = sphi 0, %s252
      %s255 = sphi 0, %s254
      %s269 = sphi 0, %s255
      %s273 = sphi 0, %s273
      %s275 = sphi 0, %s273
      %s276 = sphi 0, %s275
      %s290 = sphi 0, %s276
      %s294 = sphi 0, %s294
      %s296 = sphi 0, %s294
      %s297 = sphi 0, %s296
      %s311 = sphi 0, %s297
      %s315 = sphi 0, %s315
      %s317 = sphi 0, %s315
      %s318 = sphi 0, %s317
      %s332 = sphi 0, %s318
      %s336 = sphi 0, %s336
      %s338 = sphi 0, %s336
      %s339 = sphi 0, %s338
      %s353 = sphi 0, %s339
      %s357 = sphi 0, %s357
      %s359 = sphi 0, %s357
      %s360 = sphi 0, %s359
      %s374 = sphi 0, %s360
      %s378 = sphi 0, %s378
      %s380 = sphi 0, %s378
      %s381 = sphi 0, %s380
      %s395 = sphi 0, %s381
      %s399 = sphi 0, %s399
      %s401 = sphi 0, %s399
      %s402 = sphi 0, %s401
      %s416 = sphi 0, %s402
      %s420 = sphi 0, %s420
      %s422 = sphi 0, %s420
      %s423 = sphi 0, %s422
      %s437 = sphi 0, %s423
      %s441 = sphi 0, %s441
      %s443 = sphi 0, %s441
      %s444 = sphi 0, %s443
      %s458 = sphi 0, %s444
      %s462 = sphi 0, %s462
      %s464 = sphi 0, %s462
      %s465 = sphi 0, %s464
      %s479 = sphi 0, %s465
      %s483 = sphi 0, %s483
      %s485 = sphi 0, %s483
      %s486 = sphi 0, %s485
      %s500 = sphi 0, %s486
      %s504 = sphi 0, %s504
      %s506 = sphi 0, %s504
      %s507 = sphi 0, %s506
      %s521 = sphi 0, %s507
      %s525 = sphi 0, %s525
      %s527 = sphi 0, %s525
      %s528 = sphi 0, %s527
      %s542 = sphi 0, %s528
      %s546 = sphi 0, %s546
      %s548 = sphi 0, %s546
      %s549 = sphi 0, %s548
      %s563 = sphi 0, %s549
      %s567 = sphi 0, %s567
      %s569 = sphi 0, %s567
      %s570 = sphi 0, %s569
      %s584 = sphi 0, %s570
      %s588 = sphi 0, %s588
      %s590 = sphi 0, %s588
      %s591 = sphi 0, %s590
      %s605 = sphi 0, %s591
      %s609 = sphi 0, %s609
      %s611 = sphi 0, %s609
      %s612 = sphi 0, %s611
      %s626 = sphi 0, %s612
      %s630 = sphi 0, %s630
      %s632 = sphi 0, %s630
      %s633 = sphi 0, %s632
      %s647 = sphi 0, %s633
      %s651 = sphi 0, %s651
      %s653 = sphi 0, %s651
      %s654 = sphi 0, %s653
      %s668 = sphi 0, %s654
      %s672 = sphi 0, %s672
      %s674 = sphi 0, %s672
      %s675 = sphi 0, %s674
      %s689 = sphi 0, %s675
      %s693 = sphi 0, %s693
      %s695 = sphi 0, %s693
      %s696 = sphi 0, %s695
      %s710 = sphi 0, %s696
      %s714 = sphi 0, %s714
      %s716 = sphi 0, %s714
      %s717 = sphi 0, %s716
      %s731 = sphi 0, %s717
      %s735 = sphi 0, %s735
      %s737 = sphi 0, %s735
      %s738 = sphi 0, %s737
      %s752 = sphi 0, %s738
      %s756 = sphi 0, %s756
      %s758 = sphi 0, %s756
      %s759 = sphi 0, %s758
      %s773 = sphi 0, %s759
      %s777 = sphi 0, %s777
      %s779 = sphi 0, %s777
      %s780 = sphi 0, %s779
      %s794 = sphi 0, %s780
      %s798 = sphi 0, %s798
      %s800 = sphi 0, %s798
      %s801 = sphi 0, %s800
      %s815 = sphi 0, %s801
      %s819 = sphi 0, %s819
      %s821 = sphi 0, %s819
      %s822 = sphi 0, %s821
      %s836 = sphi 0, %s822
      %s840 = sphi 0, %s840
      %s842 = sphi 0, %s840
      %s843 = sphi 0, %s842
      %s857 = sphi 0, %s843
      %s861 = sphi 0, %s861
      %s863 = sphi 0, %s861
      %s864 = sphi 0, %s863
      %s878 = sphi 0, %s864
      %s882 = sphi 0, %s882
      %s884 = sphi 0, %s882
      %s885 = sphi 0, %s884
      %s899 = sphi 0, %s885
      %s903 = sphi 0, %s903
      %s905 = sphi 0, %s903
      %s906 = sphi 0, %s905
      %s920 = sphi 0, %s906
      %s924 = sphi 0, %s924
      %s926 = sphi 0, %s924
      %s927 = sphi 0, %s926
      %s941 = sphi 0, %s927
      %s945 = sphi 0, %s945
      %s947 = sphi 0, %s945
      %s948 = sphi 0, %s947
      %s962 = sphi 0, %s948
      %s966 = sphi 0, %s966
      %s968 = sphi 0, %s966
      %s969 = sphi 0, %s968
      %s983 = sphi 0, %s969
      %s987 = sphi 0, %s987
      %s989 = sphi 0, %s987
      %s990 = sphi 0, %s989
      %s1004 = sphi 0, %s990
      %s1008 = sphi 0, %s1008
      %s1010 = sphi 0, %s1008
      %s1011 = sphi 0, %s1010
      %s1025 = sphi 0, %s1011
      %s1029 = sphi 0, %s1029
      %s1031 = sphi 0, %s1029
      %s1032 = sphi 0, %s1031
      %s1046 = sphi 0, %s1032
      %s1050 = sphi 0, %s1050
      %s1052 = sphi 0, %s1050
      %s1053 = sphi 0, %s1052
      %s1067 = sphi 0, %s1053
      %s1071 = sphi 0, %s1071
      %s1073 = sphi 0, %s1071
      %s1074 = sphi 0, %s1073
      %s1088 = sphi 0, %s1074
      %s1092 = sphi 0, %s1092
      %s1094 = sphi 0, %s1092
      %s1095 = sphi 0, %s1094
      %s1109 = sphi 0, %s1095
      %s1113 = sphi 0, %s1113
      %s1115 = sphi 0, %s1113
      %s1116 = sphi 0, %s1115
      %s1130 = sphi 0, %s1116
      %s1134 = sphi 0, %s1134
      %s1136 = sphi 0, %s1134
      %s1137 = sphi 0, %s1136
      %s1151 = sphi 0, %s1137
      %s1155 = sphi 0, %s1155
      %s1157 = sphi 0, %s1155
      %s1158 = sphi 0, %s1157
      %s1172 = sphi 0, %s1158
      %s1176 = sphi 0, %s1176
      %s1178 = sphi 0, %s1176
      %s1179 = sphi 0, %s1178
      %s1193 = sphi 0, %s1179
      %s1197 = sphi 0, %s1197
      %s1199 = sphi 0, %s1197
      %s1200 = sphi 0, %s1199
      %s1214 = sphi 0, %s1200
      %s1218 = sphi 0, %s1218
      %s1220 = sphi 0, %s1218
      %s1221 = sphi 0, %s1220
      %s1235 = sphi 0, %s1221
      %s1239 = sphi 0, %s1239
      %s1241 = sphi 0, %s1239
      %s1242 = sphi 0, %s1241
      %s1256 = sphi 0, %s1242
      %s1260 = sphi 0, %s1260
      %s1262 = sphi 0, %s1260
      %s1263 = sphi 0, %s1262
      %s1277 = sphi 0, %s1263
      %s1281 = sphi 0, %s1281
      %s1283 = sphi 0, %s1281
      %s1284 = sphi 0, %s1283
      %s1298 = sphi 0, %s1284
      %s1302 = sphi 0, %s1302
      %s1304 = sphi 0, %s1302
      %s1305 = sphi 0, %s1304
      %s1319 = sphi 0, %s1305
      %s1323 = sphi 0, %s1323
      %s1325 = sphi 0, %s1323
      %s1326 = sphi 0, %s1325
      %s1340 = sphi 0, %s1326
      %s1344 = sphi 0, %s1344
      %s1346 = sphi 0, %s1344
      %s1347 = sphi 0, %s1346
      %s1361 = sphi 0, %s1347
      %s1365 = sphi 0, %s1365
      %s1367 = sphi 0, %s1365
      %s1368 = sphi 0, %s1367
      %s1382 = sphi 0, %s1368
      %s1386 = sphi 0, %s1386
      %s1388 = sphi 0, %s1386
      %s1389 = sphi 0, %s1388
      %s1403 = sphi 0, %s1389
      %s1407 = sphi 0, %s1407
      %s1409 = sphi 0, %s1407
      %s1410 = sphi 0, %s1409
      %s1424 = sphi 0, %s1410
      %s1428 = sphi 0, %s1428
      %s1430 = sphi 0, %s1428
      %s1431 = sphi 0, %s1430
      %s1445 = sphi 0, %s1431
      %s1449 = sphi 0, %s1449
      %s1451 = sphi 0, %s1449
      %s1452 = sphi 0, %s1451
      %s1466 = sphi 0, %s1452
      %s1470 = sphi 0, %s1470
      %s1472 = sphi 0, %s1470
      %s1473 = sphi 0, %s1472
      %s1487 = sphi 0, %s1473
      %s1491 = sphi 0, %s1491
      %s1493 = sphi 0, %s1491
      %s1494 = sphi 0, %s1493
      %s1508 = sphi 0, %s1494
      %s1512 = sphi 0, %s1512
      %s1514 = sphi 0, %s1512
      %s1515 = sphi 0, %s1514
      %s1529 = sphi 0, %s1515
      %s1533 = sphi 0, %s1533
      %s1535 = sphi 0, %s1533
      %s1536 = sphi 0, %s1535
      %s1550 = sphi 0, %s1536
      %s1556 = sphi 0, %s1558
      %s1559 = sphi 0, %s1556
      %s1560 = sphi 0, %s1559
      %s1576 = sphi 0, %s1560
      %s1582 = sphi 0, %s1584
      %s1585 = sphi 0, %s1582
      %s1586 = sphi 0, %s1585
      %s1602 = sphi 0, %s1586
    $region4: #{forward.1} parent=1 // loop_header_branch
      %158 = sbr.rel (%p156) target = $region8
    $region5: #{forward.1} parent=1 // loop_body
      %s160 = ssub.s32 %s155, 1
      %s161 = ssub.s32 %s155, 2
      %s162 = sadd.s32 %s155, 1
      %s163 = ssub.s32 %s155, %s162
      %p164 = scmp.eq.s32.totalorder %s163, 0
      %s166 = sadd.s32 %s165, 1
      %s167 = scalar_select %p164, %s165, %s166
      %p170 = pneg %p164
      %p171 = scmp.eq.s32.totalorder %s155, 1
      %p172 = por %p170, %p171
      %p173 = scmp.ne.s32.totalorder %s165, %s168
      %p174 = scmp.eq.s32.totalorder %s155, 0
      %p175 = por %p173, %p174
      %p176 = scmp.ne.s32.totalorder %s165, %s168
      %p177 = scmp.eq.s32.totalorder %s160, 1
      %p178 = por %p176, %p177
      %p179 = scmp.ne.s32.totalorder %s168, %s169
      %p180 = scmp.eq.s32.totalorder %s160, 0
      %p181 = por %p179, %p180
      %p182 = scmp.ne.s32.totalorder %s168, %s169
      %p183 = scmp.eq.s32.totalorder %s161, 1
      %p184 = por %p182, %p183
      %p186 = scmp.ne.s32.totalorder %s169, %s185
      %p187 = scmp.eq.s32.totalorder %s161, 0
      %p188 = por %p186, %p187
      %s190 = sadd.s32 %s189, 1
      %p193 = scmp.eq.s32.totalorder %s155, 1
      %p194 = scmp.ne.s32.totalorder %s189, %s191
      %p195 = scmp.eq.s32.totalorder %s155, 0
      %p196 = por %p194, %p195
      %p197 = scmp.ne.s32.totalorder %s189, %s191
      %p198 = scmp.eq.s32.totalorder %s160, 1
      %p199 = por %p197, %p198
      %p200 = scmp.ne.s32.totalorder %s191, %s192
      %p201 = scmp.eq.s32.totalorder %s160, 0
      %p202 = por %p200, %p201
      %p203 = scmp.ne.s32.totalorder %s191, %s192
      %p204 = scmp.eq.s32.totalorder %s161, 1
      %p205 = por %p203, %p204
      %p207 = scmp.ne.s32.totalorder %s192, %s206
      %p208 = scmp.eq.s32.totalorder %s161, 0
      %p209 = por %p207, %p208
      %s211 = sadd.s32 %s210, 1
      %p214 = scmp.eq.s32.totalorder %s155, 1
      %p215 = scmp.ne.s32.totalorder %s210, %s212
      %p216 = scmp.eq.s32.totalorder %s155, 0
      %p217 = por %p215, %p216
      %p218 = scmp.ne.s32.totalorder %s210, %s212
      %p219 = scmp.eq.s32.totalorder %s160, 1
      %p220 = por %p218, %p219
      %p221 = scmp.ne.s32.totalorder %s212, %s213
      %p222 = scmp.eq.s32.totalorder %s160, 0
      %p223 = por %p221, %p222
      %p224 = scmp.ne.s32.totalorder %s212, %s213
      %p225 = scmp.eq.s32.totalorder %s161, 1
      %p226 = por %p224, %p225
      %p228 = scmp.ne.s32.totalorder %s213, %s227
      %p229 = scmp.eq.s32.totalorder %s161, 0
      %p230 = por %p228, %p229
      %s232 = sadd.s32 %s231, 1
      %p235 = scmp.eq.s32.totalorder %s155, 1
      %p236 = scmp.ne.s32.totalorder %s231, %s233
      %p237 = scmp.eq.s32.totalorder %s155, 0
      %p238 = por %p236, %p237
      %p239 = scmp.ne.s32.totalorder %s231, %s233
      %p240 = scmp.eq.s32.totalorder %s160, 1
      %p241 = por %p239, %p240
      %p242 = scmp.ne.s32.totalorder %s233, %s234
      %p243 = scmp.eq.s32.totalorder %s160, 0
      %p244 = por %p242, %p243
      %p245 = scmp.ne.s32.totalorder %s233, %s234
      %p246 = scmp.eq.s32.totalorder %s161, 1
      %p247 = por %p245, %p246
      %p249 = scmp.ne.s32.totalorder %s234, %s248
      %p250 = scmp.eq.s32.totalorder %s161, 0
      %p251 = por %p249, %p250
      %s253 = sadd.s32 %s252, 1
      %p256 = scmp.eq.s32.totalorder %s155, 1
      %p257 = scmp.ne.s32.totalorder %s252, %s254
      %p258 = scmp.eq.s32.totalorder %s155, 0
      %p259 = por %p257, %p258
      %p260 = scmp.ne.s32.totalorder %s252, %s254
      %p261 = scmp.eq.s32.totalorder %s160, 1
      %p262 = por %p260, %p261
      %p263 = scmp.ne.s32.totalorder %s254, %s255
      %p264 = scmp.eq.s32.totalorder %s160, 0
      %p265 = por %p263, %p264
      %p266 = scmp.ne.s32.totalorder %s254, %s255
      %p267 = scmp.eq.s32.totalorder %s161, 1
      %p268 = por %p266, %p267
      %p270 = scmp.ne.s32.totalorder %s255, %s269
      %p271 = scmp.eq.s32.totalorder %s161, 0
      %p272 = por %p270, %p271
      %s274 = sadd.s32 %s273, 1
      %p277 = scmp.eq.s32.totalorder %s155, 1
      %p278 = scmp.ne.s32.totalorder %s273, %s275
      %p279 = scmp.eq.s32.totalorder %s155, 0
      %p280 = por %p278, %p279
      %p281 = scmp.ne.s32.totalorder %s273, %s275
      %p282 = scmp.eq.s32.totalorder %s160, 1
      %p283 = por %p281, %p282
      %p284 = scmp.ne.s32.totalorder %s275, %s276
      %p285 = scmp.eq.s32.totalorder %s160, 0
      %p286 = por %p284, %p285
      %p287 = scmp.ne.s32.totalorder %s275, %s276
      %p288 = scmp.eq.s32.totalorder %s161, 1
      %p289 = por %p287, %p288
      %p291 = scmp.ne.s32.totalorder %s276, %s290
      %p292 = scmp.eq.s32.totalorder %s161, 0
      %p293 = por %p291, %p292
      %s295 = sadd.s32 %s294, 1
      %p298 = scmp.eq.s32.totalorder %s155, 1
      %p299 = scmp.ne.s32.totalorder %s294, %s296
      %p300 = scmp.eq.s32.totalorder %s155, 0
      %p301 = por %p299, %p300
      %p302 = scmp.ne.s32.totalorder %s294, %s296
      %p303 = scmp.eq.s32.totalorder %s160, 1
      %p304 = por %p302, %p303
      %p305 = scmp.ne.s32.totalorder %s296, %s297
      %p306 = scmp.eq.s32.totalorder %s160, 0
      %p307 = por %p305, %p306
      %p308 = scmp.ne.s32.totalorder %s296, %s297
      %p309 = scmp.eq.s32.totalorder %s161, 1
      %p310 = por %p308, %p309
      %p312 = scmp.ne.s32.totalorder %s297, %s311
      %p313 = scmp.eq.s32.totalorder %s161, 0
      %p314 = por %p312, %p313
      %s316 = sadd.s32 %s315, 1
      %p319 = scmp.eq.s32.totalorder %s155, 1
      %p320 = scmp.ne.s32.totalorder %s315, %s317
      %p321 = scmp.eq.s32.totalorder %s155, 0
      %p322 = por %p320, %p321
      %p323 = scmp.ne.s32.totalorder %s315, %s317
      %p324 = scmp.eq.s32.totalorder %s160, 1
      %p325 = por %p323, %p324
      %p326 = scmp.ne.s32.totalorder %s317, %s318
      %p327 = scmp.eq.s32.totalorder %s160, 0
      %p328 = por %p326, %p327
      %p329 = scmp.ne.s32.totalorder %s317, %s318
      %p330 = scmp.eq.s32.totalorder %s161, 1
      %p331 = por %p329, %p330
      %p333 = scmp.ne.s32.totalorder %s318, %s332
      %p334 = scmp.eq.s32.totalorder %s161, 0
      %p335 = por %p333, %p334
      %s337 = sadd.s32 %s336, 1
      %p340 = scmp.eq.s32.totalorder %s155, 1
      %p341 = scmp.ne.s32.totalorder %s336, %s338
      %p342 = scmp.eq.s32.totalorder %s155, 0
      %p343 = por %p341, %p342
      %p344 = scmp.ne.s32.totalorder %s336, %s338
      %p345 = scmp.eq.s32.totalorder %s160, 1
      %p346 = por %p344, %p345
      %p347 = scmp.ne.s32.totalorder %s338, %s339
      %p348 = scmp.eq.s32.totalorder %s160, 0
      %p349 = por %p347, %p348
      %p350 = scmp.ne.s32.totalorder %s338, %s339
      %p351 = scmp.eq.s32.totalorder %s161, 1
      %p352 = por %p350, %p351
      %p354 = scmp.ne.s32.totalorder %s339, %s353
      %p355 = scmp.eq.s32.totalorder %s161, 0
      %p356 = por %p354, %p355
      %s358 = sadd.s32 %s357, 1
      %p361 = scmp.eq.s32.totalorder %s155, 1
      %p362 = scmp.ne.s32.totalorder %s357, %s359
      %p363 = scmp.eq.s32.totalorder %s155, 0
      %p364 = por %p362, %p363
      %p365 = scmp.ne.s32.totalorder %s357, %s359
      %p366 = scmp.eq.s32.totalorder %s160, 1
      %p367 = por %p365, %p366
      %p368 = scmp.ne.s32.totalorder %s359, %s360
      %p369 = scmp.eq.s32.totalorder %s160, 0
      %p370 = por %p368, %p369
      %p371 = scmp.ne.s32.totalorder %s359, %s360
      %p372 = scmp.eq.s32.totalorder %s161, 1
      %p373 = por %p371, %p372
      %p375 = scmp.ne.s32.totalorder %s360, %s374
      %p376 = scmp.eq.s32.totalorder %s161, 0
      %p377 = por %p375, %p376
      %s379 = sadd.s32 %s378, 1
      %p382 = scmp.eq.s32.totalorder %s155, 1
      %p383 = scmp.ne.s32.totalorder %s378, %s380
      %p384 = scmp.eq.s32.totalorder %s155, 0
      %p385 = por %p383, %p384
      %p386 = scmp.ne.s32.totalorder %s378, %s380
      %p387 = scmp.eq.s32.totalorder %s160, 1
      %p388 = por %p386, %p387
      %p389 = scmp.ne.s32.totalorder %s380, %s381
      %p390 = scmp.eq.s32.totalorder %s160, 0
      %p391 = por %p389, %p390
      %p392 = scmp.ne.s32.totalorder %s380, %s381
      %p393 = scmp.eq.s32.totalorder %s161, 1
      %p394 = por %p392, %p393
      %p396 = scmp.ne.s32.totalorder %s381, %s395
      %p397 = scmp.eq.s32.totalorder %s161, 0
      %p398 = por %p396, %p397
      %s400 = sadd.s32 %s399, 1
      %p403 = scmp.eq.s32.totalorder %s155, 1
      %p404 = scmp.ne.s32.totalorder %s399, %s401
      %p405 = scmp.eq.s32.totalorder %s155, 0
      %p406 = por %p404, %p405
      %p407 = scmp.ne.s32.totalorder %s399, %s401
      %p408 = scmp.eq.s32.totalorder %s160, 1
      %p409 = por %p407, %p408
      %p410 = scmp.ne.s32.totalorder %s401, %s402
      %p411 = scmp.eq.s32.totalorder %s160, 0
      %p412 = por %p410, %p411
      %p413 = scmp.ne.s32.totalorder %s401, %s402
      %p414 = scmp.eq.s32.totalorder %s161, 1
      %p415 = por %p413, %p414
      %p417 = scmp.ne.s32.totalorder %s402, %s416
      %p418 = scmp.eq.s32.totalorder %s161, 0
      %p419 = por %p417, %p418
      %s421 = sadd.s32 %s420, 1
      %p424 = scmp.eq.s32.totalorder %s155, 1
      %p425 = scmp.ne.s32.totalorder %s420, %s422
      %p426 = scmp.eq.s32.totalorder %s155, 0
      %p427 = por %p425, %p426
      %p428 = scmp.ne.s32.totalorder %s420, %s422
      %p429 = scmp.eq.s32.totalorder %s160, 1
      %p430 = por %p428, %p429
      %p431 = scmp.ne.s32.totalorder %s422, %s423
      %p432 = scmp.eq.s32.totalorder %s160, 0
      %p433 = por %p431, %p432
      %p434 = scmp.ne.s32.totalorder %s422, %s423
      %p435 = scmp.eq.s32.totalorder %s161, 1
      %p436 = por %p434, %p435
      %p438 = scmp.ne.s32.totalorder %s423, %s437
      %p439 = scmp.eq.s32.totalorder %s161, 0
      %p440 = por %p438, %p439
      %s442 = sadd.s32 %s441, 1
      %p445 = scmp.eq.s32.totalorder %s155, 1
      %p446 = scmp.ne.s32.totalorder %s441, %s443
      %p447 = scmp.eq.s32.totalorder %s155, 0
      %p448 = por %p446, %p447
      %p449 = scmp.ne.s32.totalorder %s441, %s443
      %p450 = scmp.eq.s32.totalorder %s160, 1
      %p451 = por %p449, %p450
      %p452 = scmp.ne.s32.totalorder %s443, %s444
      %p453 = scmp.eq.s32.totalorder %s160, 0
      %p454 = por %p452, %p453
      %p455 = scmp.ne.s32.totalorder %s443, %s444
      %p456 = scmp.eq.s32.totalorder %s161, 1
      %p457 = por %p455, %p456
      %p459 = scmp.ne.s32.totalorder %s444, %s458
      %p460 = scmp.eq.s32.totalorder %s161, 0
      %p461 = por %p459, %p460
      %s463 = sadd.s32 %s462, 1
      %p466 = scmp.eq.s32.totalorder %s155, 1
      %p467 = scmp.ne.s32.totalorder %s462, %s464
      %p468 = scmp.eq.s32.totalorder %s155, 0
      %p469 = por %p467, %p468
      %p470 = scmp.ne.s32.totalorder %s462, %s464
      %p471 = scmp.eq.s32.totalorder %s160, 1
      %p472 = por %p470, %p471
      %p473 = scmp.ne.s32.totalorder %s464, %s465
      %p474 = scmp.eq.s32.totalorder %s160, 0
      %p475 = por %p473, %p474
      %p476 = scmp.ne.s32.totalorder %s464, %s465
      %p477 = scmp.eq.s32.totalorder %s161, 1
      %p478 = por %p476, %p477
      %p480 = scmp.ne.s32.totalorder %s465, %s479
      %p481 = scmp.eq.s32.totalorder %s161, 0
      %p482 = por %p480, %p481
      %s484 = sadd.s32 %s483, 1
      %p487 = scmp.eq.s32.totalorder %s155, 1
      %p488 = scmp.ne.s32.totalorder %s483, %s485
      %p489 = scmp.eq.s32.totalorder %s155, 0
      %p490 = por %p488, %p489
      %p491 = scmp.ne.s32.totalorder %s483, %s485
      %p492 = scmp.eq.s32.totalorder %s160, 1
      %p493 = por %p491, %p492
      %p494 = scmp.ne.s32.totalorder %s485, %s486
      %p495 = scmp.eq.s32.totalorder %s160, 0
      %p496 = por %p494, %p495
      %p497 = scmp.ne.s32.totalorder %s485, %s486
      %p498 = scmp.eq.s32.totalorder %s161, 1
      %p499 = por %p497, %p498
      %p501 = scmp.ne.s32.totalorder %s486, %s500
      %p502 = scmp.eq.s32.totalorder %s161, 0
      %p503 = por %p501, %p502
      %s505 = sadd.s32 %s504, 1
      %p508 = scmp.eq.s32.totalorder %s155, 1
      %p509 = scmp.ne.s32.totalorder %s504, %s506
      %p510 = scmp.eq.s32.totalorder %s155, 0
      %p511 = por %p509, %p510
      %p512 = scmp.ne.s32.totalorder %s504, %s506
      %p513 = scmp.eq.s32.totalorder %s160, 1
      %p514 = por %p512, %p513
      %p515 = scmp.ne.s32.totalorder %s506, %s507
      %p516 = scmp.eq.s32.totalorder %s160, 0
      %p517 = por %p515, %p516
      %p518 = scmp.ne.s32.totalorder %s506, %s507
      %p519 = scmp.eq.s32.totalorder %s161, 1
      %p520 = por %p518, %p519
      %p522 = scmp.ne.s32.totalorder %s507, %s521
      %p523 = scmp.eq.s32.totalorder %s161, 0
      %p524 = por %p522, %p523
      %s526 = sadd.s32 %s525, 1
      %p529 = scmp.eq.s32.totalorder %s155, 1
      %p530 = scmp.ne.s32.totalorder %s525, %s527
      %p531 = scmp.eq.s32.totalorder %s155, 0
      %p532 = por %p530, %p531
      %p533 = scmp.ne.s32.totalorder %s525, %s527
      %p534 = scmp.eq.s32.totalorder %s160, 1
      %p535 = por %p533, %p534
      %p536 = scmp.ne.s32.totalorder %s527, %s528
      %p537 = scmp.eq.s32.totalorder %s160, 0
      %p538 = por %p536, %p537
      %p539 = scmp.ne.s32.totalorder %s527, %s528
      %p540 = scmp.eq.s32.totalorder %s161, 1
      %p541 = por %p539, %p540
      %p543 = scmp.ne.s32.totalorder %s528, %s542
      %p544 = scmp.eq.s32.totalorder %s161, 0
      %p545 = por %p543, %p544
      %s547 = sadd.s32 %s546, 1
      %p550 = scmp.eq.s32.totalorder %s155, 1
      %p551 = scmp.ne.s32.totalorder %s546, %s548
      %p552 = scmp.eq.s32.totalorder %s155, 0
      %p553 = por %p551, %p552
      %p554 = scmp.ne.s32.totalorder %s546, %s548
      %p555 = scmp.eq.s32.totalorder %s160, 1
      %p556 = por %p554, %p555
      %p557 = scmp.ne.s32.totalorder %s548, %s549
      %p558 = scmp.eq.s32.totalorder %s160, 0
      %p559 = por %p557, %p558
      %p560 = scmp.ne.s32.totalorder %s548, %s549
      %p561 = scmp.eq.s32.totalorder %s161, 1
      %p562 = por %p560, %p561
      %p564 = scmp.ne.s32.totalorder %s549, %s563
      %p565 = scmp.eq.s32.totalorder %s161, 0
      %p566 = por %p564, %p565
      %s568 = sadd.s32 %s567, 1
      %p571 = scmp.eq.s32.totalorder %s155, 1
      %p572 = scmp.ne.s32.totalorder %s567, %s569
      %p573 = scmp.eq.s32.totalorder %s155, 0
      %p574 = por %p572, %p573
      %p575 = scmp.ne.s32.totalorder %s567, %s569
      %p576 = scmp.eq.s32.totalorder %s160, 1
      %p577 = por %p575, %p576
      %p578 = scmp.ne.s32.totalorder %s569, %s570
      %p579 = scmp.eq.s32.totalorder %s160, 0
      %p580 = por %p578, %p579
      %p581 = scmp.ne.s32.totalorder %s569, %s570
      %p582 = scmp.eq.s32.totalorder %s161, 1
      %p583 = por %p581, %p582
      %p585 = scmp.ne.s32.totalorder %s570, %s584
      %p586 = scmp.eq.s32.totalorder %s161, 0
      %p587 = por %p585, %p586
      %s589 = sadd.s32 %s588, 1
      %p592 = scmp.eq.s32.totalorder %s155, 1
      %p593 = scmp.ne.s32.totalorder %s588, %s590
      %p594 = scmp.eq.s32.totalorder %s155, 0
      %p595 = por %p593, %p594
      %p596 = scmp.ne.s32.totalorder %s588, %s590
      %p597 = scmp.eq.s32.totalorder %s160, 1
      %p598 = por %p596, %p597
      %p599 = scmp.ne.s32.totalorder %s590, %s591
      %p600 = scmp.eq.s32.totalorder %s160, 0
      %p601 = por %p599, %p600
      %p602 = scmp.ne.s32.totalorder %s590, %s591
      %p603 = scmp.eq.s32.totalorder %s161, 1
      %p604 = por %p602, %p603
      %p606 = scmp.ne.s32.totalorder %s591, %s605
      %p607 = scmp.eq.s32.totalorder %s161, 0
      %p608 = por %p606, %p607
      %s610 = sadd.s32 %s609, 1
      %p613 = scmp.eq.s32.totalorder %s155, 1
      %p614 = scmp.ne.s32.totalorder %s609, %s611
      %p615 = scmp.eq.s32.totalorder %s155, 0
      %p616 = por %p614, %p615
      %p617 = scmp.ne.s32.totalorder %s609, %s611
      %p618 = scmp.eq.s32.totalorder %s160, 1
      %p619 = por %p617, %p618
      %p620 = scmp.ne.s32.totalorder %s611, %s612
      %p621 = scmp.eq.s32.totalorder %s160, 0
      %p622 = por %p620, %p621
      %p623 = scmp.ne.s32.totalorder %s611, %s612
      %p624 = scmp.eq.s32.totalorder %s161, 1
      %p625 = por %p623, %p624
      %p627 = scmp.ne.s32.totalorder %s612, %s626
      %p628 = scmp.eq.s32.totalorder %s161, 0
      %p629 = por %p627, %p628
      %s631 = sadd.s32 %s630, 1
      %p634 = scmp.eq.s32.totalorder %s155, 1
      %p635 = scmp.ne.s32.totalorder %s630, %s632
      %p636 = scmp.eq.s32.totalorder %s155, 0
      %p637 = por %p635, %p636
      %p638 = scmp.ne.s32.totalorder %s630, %s632
      %p639 = scmp.eq.s32.totalorder %s160, 1
      %p640 = por %p638, %p639
      %p641 = scmp.ne.s32.totalorder %s632, %s633
      %p642 = scmp.eq.s32.totalorder %s160, 0
      %p643 = por %p641, %p642
      %p644 = scmp.ne.s32.totalorder %s632, %s633
      %p645 = scmp.eq.s32.totalorder %s161, 1
      %p646 = por %p644, %p645
      %p648 = scmp.ne.s32.totalorder %s633, %s647
      %p649 = scmp.eq.s32.totalorder %s161, 0
      %p650 = por %p648, %p649
      %s652 = sadd.s32 %s651, 1
      %p655 = scmp.eq.s32.totalorder %s155, 1
      %p656 = scmp.ne.s32.totalorder %s651, %s653
      %p657 = scmp.eq.s32.totalorder %s155, 0
      %p658 = por %p656, %p657
      %p659 = scmp.ne.s32.totalorder %s651, %s653
      %p660 = scmp.eq.s32.totalorder %s160, 1
      %p661 = por %p659, %p660
      %p662 = scmp.ne.s32.totalorder %s653, %s654
      %p663 = scmp.eq.s32.totalorder %s160, 0
      %p664 = por %p662, %p663
      %p665 = scmp.ne.s32.totalorder %s653, %s654
      %p666 = scmp.eq.s32.totalorder %s161, 1
      %p667 = por %p665, %p666
      %p669 = scmp.ne.s32.totalorder %s654, %s668
      %p670 = scmp.eq.s32.totalorder %s161, 0
      %p671 = por %p669, %p670
      %s673 = sadd.s32 %s672, 1
      %p676 = scmp.eq.s32.totalorder %s155, 1
      %p677 = scmp.ne.s32.totalorder %s672, %s674
      %p678 = scmp.eq.s32.totalorder %s155, 0
      %p679 = por %p677, %p678
      %p680 = scmp.ne.s32.totalorder %s672, %s674
      %p681 = scmp.eq.s32.totalorder %s160, 1
      %p682 = por %p680, %p681
      %p683 = scmp.ne.s32.totalorder %s674, %s675
      %p684 = scmp.eq.s32.totalorder %s160, 0
      %p685 = por %p683, %p684
      %p686 = scmp.ne.s32.totalorder %s674, %s675
      %p687 = scmp.eq.s32.totalorder %s161, 1
      %p688 = por %p686, %p687
      %p690 = scmp.ne.s32.totalorder %s675, %s689
      %p691 = scmp.eq.s32.totalorder %s161, 0
      %p692 = por %p690, %p691
      %s694 = sadd.s32 %s693, 1
      %p697 = scmp.eq.s32.totalorder %s155, 1
      %p698 = scmp.ne.s32.totalorder %s693, %s695
      %p699 = scmp.eq.s32.totalorder %s155, 0
      %p700 = por %p698, %p699
      %p701 = scmp.ne.s32.totalorder %s693, %s695
      %p702 = scmp.eq.s32.totalorder %s160, 1
      %p703 = por %p701, %p702
      %p704 = scmp.ne.s32.totalorder %s695, %s696
      %p705 = scmp.eq.s32.totalorder %s160, 0
      %p706 = por %p704, %p705
      %p707 = scmp.ne.s32.totalorder %s695, %s696
      %p708 = scmp.eq.s32.totalorder %s161, 1
      %p709 = por %p707, %p708
      %p711 = scmp.ne.s32.totalorder %s696, %s710
      %p712 = scmp.eq.s32.totalorder %s161, 0
      %p713 = por %p711, %p712
      %s715 = sadd.s32 %s714, 1
      %p718 = scmp.eq.s32.totalorder %s155, 1
      %p719 = scmp.ne.s32.totalorder %s714, %s716
      %p720 = scmp.eq.s32.totalorder %s155, 0
      %p721 = por %p719, %p720
      %p722 = scmp.ne.s32.totalorder %s714, %s716
      %p723 = scmp.eq.s32.totalorder %s160, 1
      %p724 = por %p722, %p723
      %p725 = scmp.ne.s32.totalorder %s716, %s717
      %p726 = scmp.eq.s32.totalorder %s160, 0
      %p727 = por %p725, %p726
      %p728 = scmp.ne.s32.totalorder %s716, %s717
      %p729 = scmp.eq.s32.totalorder %s161, 1
      %p730 = por %p728, %p729
      %p732 = scmp.ne.s32.totalorder %s717, %s731
      %p733 = scmp.eq.s32.totalorder %s161, 0
      %p734 = por %p732, %p733
      %s736 = sadd.s32 %s735, 1
      %p739 = scmp.eq.s32.totalorder %s155, 1
      %p740 = scmp.ne.s32.totalorder %s735, %s737
      %p741 = scmp.eq.s32.totalorder %s155, 0
      %p742 = por %p740, %p741
      %p743 = scmp.ne.s32.totalorder %s735, %s737
      %p744 = scmp.eq.s32.totalorder %s160, 1
      %p745 = por %p743, %p744
      %p746 = scmp.ne.s32.totalorder %s737, %s738
      %p747 = scmp.eq.s32.totalorder %s160, 0
      %p748 = por %p746, %p747
      %p749 = scmp.ne.s32.totalorder %s737, %s738
      %p750 = scmp.eq.s32.totalorder %s161, 1
      %p751 = por %p749, %p750
      %p753 = scmp.ne.s32.totalorder %s738, %s752
      %p754 = scmp.eq.s32.totalorder %s161, 0
      %p755 = por %p753, %p754
      %s757 = sadd.s32 %s756, 1
      %p760 = scmp.eq.s32.totalorder %s155, 1
      %p761 = scmp.ne.s32.totalorder %s756, %s758
      %p762 = scmp.eq.s32.totalorder %s155, 0
      %p763 = por %p761, %p762
      %p764 = scmp.ne.s32.totalorder %s756, %s758
      %p765 = scmp.eq.s32.totalorder %s160, 1
      %p766 = por %p764, %p765
      %p767 = scmp.ne.s32.totalorder %s758, %s759
      %p768 = scmp.eq.s32.totalorder %s160, 0
      %p769 = por %p767, %p768
      %p770 = scmp.ne.s32.totalorder %s758, %s759
      %p771 = scmp.eq.s32.totalorder %s161, 1
      %p772 = por %p770, %p771
      %p774 = scmp.ne.s32.totalorder %s759, %s773
      %p775 = scmp.eq.s32.totalorder %s161, 0
      %p776 = por %p774, %p775
      %s778 = sadd.s32 %s777, 1
      %p781 = scmp.eq.s32.totalorder %s155, 1
      %p782 = scmp.ne.s32.totalorder %s777, %s779
      %p783 = scmp.eq.s32.totalorder %s155, 0
      %p784 = por %p782, %p783
      %p785 = scmp.ne.s32.totalorder %s777, %s779
      %p786 = scmp.eq.s32.totalorder %s160, 1
      %p787 = por %p785, %p786
      %p788 = scmp.ne.s32.totalorder %s779, %s780
      %p789 = scmp.eq.s32.totalorder %s160, 0
      %p790 = por %p788, %p789
      %p791 = scmp.ne.s32.totalorder %s779, %s780
      %p792 = scmp.eq.s32.totalorder %s161, 1
      %p793 = por %p791, %p792
      %p795 = scmp.ne.s32.totalorder %s780, %s794
      %p796 = scmp.eq.s32.totalorder %s161, 0
      %p797 = por %p795, %p796
      %s799 = sadd.s32 %s798, 1
      %p802 = scmp.eq.s32.totalorder %s155, 1
      %p803 = scmp.ne.s32.totalorder %s798, %s800
      %p804 = scmp.eq.s32.totalorder %s155, 0
      %p805 = por %p803, %p804
      %p806 = scmp.ne.s32.totalorder %s798, %s800
      %p807 = scmp.eq.s32.totalorder %s160, 1
      %p808 = por %p806, %p807
      %p809 = scmp.ne.s32.totalorder %s800, %s801
      %p810 = scmp.eq.s32.totalorder %s160, 0
      %p811 = por %p809, %p810
      %p812 = scmp.ne.s32.totalorder %s800, %s801
      %p813 = scmp.eq.s32.totalorder %s161, 1
      %p814 = por %p812, %p813
      %p816 = scmp.ne.s32.totalorder %s801, %s815
      %p817 = scmp.eq.s32.totalorder %s161, 0
      %p818 = por %p816, %p817
      %s820 = sadd.s32 %s819, 1
      %p823 = scmp.eq.s32.totalorder %s155, 1
      %p824 = scmp.ne.s32.totalorder %s819, %s821
      %p825 = scmp.eq.s32.totalorder %s155, 0
      %p826 = por %p824, %p825
      %p827 = scmp.ne.s32.totalorder %s819, %s821
      %p828 = scmp.eq.s32.totalorder %s160, 1
      %p829 = por %p827, %p828
      %p830 = scmp.ne.s32.totalorder %s821, %s822
      %p831 = scmp.eq.s32.totalorder %s160, 0
      %p832 = por %p830, %p831
      %p833 = scmp.ne.s32.totalorder %s821, %s822
      %p834 = scmp.eq.s32.totalorder %s161, 1
      %p835 = por %p833, %p834
      %p837 = scmp.ne.s32.totalorder %s822, %s836
      %p838 = scmp.eq.s32.totalorder %s161, 0
      %p839 = por %p837, %p838
      %s841 = sadd.s32 %s840, 1
      %p844 = scmp.eq.s32.totalorder %s155, 1
      %p845 = scmp.ne.s32.totalorder %s840, %s842
      %p846 = scmp.eq.s32.totalorder %s155, 0
      %p847 = por %p845, %p846
      %p848 = scmp.ne.s32.totalorder %s840, %s842
      %p849 = scmp.eq.s32.totalorder %s160, 1
      %p850 = por %p848, %p849
      %p851 = scmp.ne.s32.totalorder %s842, %s843
      %p852 = scmp.eq.s32.totalorder %s160, 0
      %p853 = por %p851, %p852
      %p854 = scmp.ne.s32.totalorder %s842, %s843
      %p855 = scmp.eq.s32.totalorder %s161, 1
      %p856 = por %p854, %p855
      %p858 = scmp.ne.s32.totalorder %s843, %s857
      %p859 = scmp.eq.s32.totalorder %s161, 0
      %p860 = por %p858, %p859
      %s862 = sadd.s32 %s861, 1
      %p865 = scmp.eq.s32.totalorder %s155, 1
      %p866 = scmp.ne.s32.totalorder %s861, %s863
      %p867 = scmp.eq.s32.totalorder %s155, 0
      %p868 = por %p866, %p867
      %p869 = scmp.ne.s32.totalorder %s861, %s863
      %p870 = scmp.eq.s32.totalorder %s160, 1
      %p871 = por %p869, %p870
      %p872 = scmp.ne.s32.totalorder %s863, %s864
      %p873 = scmp.eq.s32.totalorder %s160, 0
      %p874 = por %p872, %p873
      %p875 = scmp.ne.s32.totalorder %s863, %s864
      %p876 = scmp.eq.s32.totalorder %s161, 1
      %p877 = por %p875, %p876
      %p879 = scmp.ne.s32.totalorder %s864, %s878
      %p880 = scmp.eq.s32.totalorder %s161, 0
      %p881 = por %p879, %p880
      %s883 = sadd.s32 %s882, 1
      %p886 = scmp.eq.s32.totalorder %s155, 1
      %p887 = scmp.ne.s32.totalorder %s882, %s884
      %p888 = scmp.eq.s32.totalorder %s155, 0
      %p889 = por %p887, %p888
      %p890 = scmp.ne.s32.totalorder %s882, %s884
      %p891 = scmp.eq.s32.totalorder %s160, 1
      %p892 = por %p890, %p891
      %p893 = scmp.ne.s32.totalorder %s884, %s885
      %p894 = scmp.eq.s32.totalorder %s160, 0
      %p895 = por %p893, %p894
      %p896 = scmp.ne.s32.totalorder %s884, %s885
      %p897 = scmp.eq.s32.totalorder %s161, 1
      %p898 = por %p896, %p897
      %p900 = scmp.ne.s32.totalorder %s885, %s899
      %p901 = scmp.eq.s32.totalorder %s161, 0
      %p902 = por %p900, %p901
      %s904 = sadd.s32 %s903, 1
      %p907 = scmp.eq.s32.totalorder %s155, 1
      %p908 = scmp.ne.s32.totalorder %s903, %s905
      %p909 = scmp.eq.s32.totalorder %s155, 0
      %p910 = por %p908, %p909
      %p911 = scmp.ne.s32.totalorder %s903, %s905
      %p912 = scmp.eq.s32.totalorder %s160, 1
      %p913 = por %p911, %p912
      %p914 = scmp.ne.s32.totalorder %s905, %s906
      %p915 = scmp.eq.s32.totalorder %s160, 0
      %p916 = por %p914, %p915
      %p917 = scmp.ne.s32.totalorder %s905, %s906
      %p918 = scmp.eq.s32.totalorder %s161, 1
      %p919 = por %p917, %p918
      %p921 = scmp.ne.s32.totalorder %s906, %s920
      %p922 = scmp.eq.s32.totalorder %s161, 0
      %p923 = por %p921, %p922
      %s925 = sadd.s32 %s924, 1
      %p928 = scmp.eq.s32.totalorder %s155, 1
      %p929 = scmp.ne.s32.totalorder %s924, %s926
      %p930 = scmp.eq.s32.totalorder %s155, 0
      %p931 = por %p929, %p930
      %p932 = scmp.ne.s32.totalorder %s924, %s926
      %p933 = scmp.eq.s32.totalorder %s160, 1
      %p934 = por %p932, %p933
      %p935 = scmp.ne.s32.totalorder %s926, %s927
      %p936 = scmp.eq.s32.totalorder %s160, 0
      %p937 = por %p935, %p936
      %p938 = scmp.ne.s32.totalorder %s926, %s927
      %p939 = scmp.eq.s32.totalorder %s161, 1
      %p940 = por %p938, %p939
      %p942 = scmp.ne.s32.totalorder %s927, %s941
      %p943 = scmp.eq.s32.totalorder %s161, 0
      %p944 = por %p942, %p943
      %s946 = sadd.s32 %s945, 1
      %p949 = scmp.eq.s32.totalorder %s155, 1
      %p950 = scmp.ne.s32.totalorder %s945, %s947
      %p951 = scmp.eq.s32.totalorder %s155, 0
      %p952 = por %p950, %p951
      %p953 = scmp.ne.s32.totalorder %s945, %s947
      %p954 = scmp.eq.s32.totalorder %s160, 1
      %p955 = por %p953, %p954
      %p956 = scmp.ne.s32.totalorder %s947, %s948
      %p957 = scmp.eq.s32.totalorder %s160, 0
      %p958 = por %p956, %p957
      %p959 = scmp.ne.s32.totalorder %s947, %s948
      %p960 = scmp.eq.s32.totalorder %s161, 1
      %p961 = por %p959, %p960
      %p963 = scmp.ne.s32.totalorder %s948, %s962
      %p964 = scmp.eq.s32.totalorder %s161, 0
      %p965 = por %p963, %p964
      %s967 = sadd.s32 %s966, 1
      %p970 = scmp.eq.s32.totalorder %s155, 1
      %p971 = scmp.ne.s32.totalorder %s966, %s968
      %p972 = scmp.eq.s32.totalorder %s155, 0
      %p973 = por %p971, %p972
      %p974 = scmp.ne.s32.totalorder %s966, %s968
      %p975 = scmp.eq.s32.totalorder %s160, 1
      %p976 = por %p974, %p975
      %p977 = scmp.ne.s32.totalorder %s968, %s969
      %p978 = scmp.eq.s32.totalorder %s160, 0
      %p979 = por %p977, %p978
      %p980 = scmp.ne.s32.totalorder %s968, %s969
      %p981 = scmp.eq.s32.totalorder %s161, 1
      %p982 = por %p980, %p981
      %p984 = scmp.ne.s32.totalorder %s969, %s983
      %p985 = scmp.eq.s32.totalorder %s161, 0
      %p986 = por %p984, %p985
      %s988 = sadd.s32 %s987, 1
      %p991 = scmp.eq.s32.totalorder %s155, 1
      %p992 = scmp.ne.s32.totalorder %s987, %s989
      %p993 = scmp.eq.s32.totalorder %s155, 0
      %p994 = por %p992, %p993
      %p995 = scmp.ne.s32.totalorder %s987, %s989
      %p996 = scmp.eq.s32.totalorder %s160, 1
      %p997 = por %p995, %p996
      %p998 = scmp.ne.s32.totalorder %s989, %s990
      %p999 = scmp.eq.s32.totalorder %s160, 0
      %p1000 = por %p998, %p999
      %p1001 = scmp.ne.s32.totalorder %s989, %s990
      %p1002 = scmp.eq.s32.totalorder %s161, 1
      %p1003 = por %p1001, %p1002
      %p1005 = scmp.ne.s32.totalorder %s990, %s1004
      %p1006 = scmp.eq.s32.totalorder %s161, 0
      %p1007 = por %p1005, %p1006
      %s1009 = sadd.s32 %s1008, 1
      %p1012 = scmp.eq.s32.totalorder %s155, 1
      %p1013 = scmp.ne.s32.totalorder %s1008, %s1010
      %p1014 = scmp.eq.s32.totalorder %s155, 0
      %p1015 = por %p1013, %p1014
      %p1016 = scmp.ne.s32.totalorder %s1008, %s1010
      %p1017 = scmp.eq.s32.totalorder %s160, 1
      %p1018 = por %p1016, %p1017
      %p1019 = scmp.ne.s32.totalorder %s1010, %s1011
      %p1020 = scmp.eq.s32.totalorder %s160, 0
      %p1021 = por %p1019, %p1020
      %p1022 = scmp.ne.s32.totalorder %s1010, %s1011
      %p1023 = scmp.eq.s32.totalorder %s161, 1
      %p1024 = por %p1022, %p1023
      %p1026 = scmp.ne.s32.totalorder %s1011, %s1025
      %p1027 = scmp.eq.s32.totalorder %s161, 0
      %p1028 = por %p1026, %p1027
      %s1030 = sadd.s32 %s1029, 1
      %p1033 = scmp.eq.s32.totalorder %s155, 1
      %p1034 = scmp.ne.s32.totalorder %s1029, %s1031
      %p1035 = scmp.eq.s32.totalorder %s155, 0
      %p1036 = por %p1034, %p1035
      %p1037 = scmp.ne.s32.totalorder %s1029, %s1031
      %p1038 = scmp.eq.s32.totalorder %s160, 1
      %p1039 = por %p1037, %p1038
      %p1040 = scmp.ne.s32.totalorder %s1031, %s1032
      %p1041 = scmp.eq.s32.totalorder %s160, 0
      %p1042 = por %p1040, %p1041
      %p1043 = scmp.ne.s32.totalorder %s1031, %s1032
      %p1044 = scmp.eq.s32.totalorder %s161, 1
      %p1045 = por %p1043, %p1044
      %p1047 = scmp.ne.s32.totalorder %s1032, %s1046
      %p1048 = scmp.eq.s32.totalorder %s161, 0
      %p1049 = por %p1047, %p1048
      %s1051 = sadd.s32 %s1050, 1
      %p1054 = scmp.eq.s32.totalorder %s155, 1
      %p1055 = scmp.ne.s32.totalorder %s1050, %s1052
      %p1056 = scmp.eq.s32.totalorder %s155, 0
      %p1057 = por %p1055, %p1056
      %p1058 = scmp.ne.s32.totalorder %s1050, %s1052
      %p1059 = scmp.eq.s32.totalorder %s160, 1
      %p1060 = por %p1058, %p1059
      %p1061 = scmp.ne.s32.totalorder %s1052, %s1053
      %p1062 = scmp.eq.s32.totalorder %s160, 0
      %p1063 = por %p1061, %p1062
      %p1064 = scmp.ne.s32.totalorder %s1052, %s1053
      %p1065 = scmp.eq.s32.totalorder %s161, 1
      %p1066 = por %p1064, %p1065
      %p1068 = scmp.ne.s32.totalorder %s1053, %s1067
      %p1069 = scmp.eq.s32.totalorder %s161, 0
      %p1070 = por %p1068, %p1069
      %s1072 = sadd.s32 %s1071, 1
      %p1075 = scmp.eq.s32.totalorder %s155, 1
      %p1076 = scmp.ne.s32.totalorder %s1071, %s1073
      %p1077 = scmp.eq.s32.totalorder %s155, 0
      %p1078 = por %p1076, %p1077
      %p1079 = scmp.ne.s32.totalorder %s1071, %s1073
      %p1080 = scmp.eq.s32.totalorder %s160, 1
      %p1081 = por %p1079, %p1080
      %p1082 = scmp.ne.s32.totalorder %s1073, %s1074
      %p1083 = scmp.eq.s32.totalorder %s160, 0
      %p1084 = por %p1082, %p1083
      %p1085 = scmp.ne.s32.totalorder %s1073, %s1074
      %p1086 = scmp.eq.s32.totalorder %s161, 1
      %p1087 = por %p1085, %p1086
      %p1089 = scmp.ne.s32.totalorder %s1074, %s1088
      %p1090 = scmp.eq.s32.totalorder %s161, 0
      %p1091 = por %p1089, %p1090
      %s1093 = sadd.s32 %s1092, 1
      %p1096 = scmp.eq.s32.totalorder %s155, 1
      %p1097 = scmp.ne.s32.totalorder %s1092, %s1094
      %p1098 = scmp.eq.s32.totalorder %s155, 0
      %p1099 = por %p1097, %p1098
      %p1100 = scmp.ne.s32.totalorder %s1092, %s1094
      %p1101 = scmp.eq.s32.totalorder %s160, 1
      %p1102 = por %p1100, %p1101
      %p1103 = scmp.ne.s32.totalorder %s1094, %s1095
      %p1104 = scmp.eq.s32.totalorder %s160, 0
      %p1105 = por %p1103, %p1104
      %p1106 = scmp.ne.s32.totalorder %s1094, %s1095
      %p1107 = scmp.eq.s32.totalorder %s161, 1
      %p1108 = por %p1106, %p1107
      %p1110 = scmp.ne.s32.totalorder %s1095, %s1109
      %p1111 = scmp.eq.s32.totalorder %s161, 0
      %p1112 = por %p1110, %p1111
      %s1114 = sadd.s32 %s1113, 1
      %p1117 = scmp.eq.s32.totalorder %s155, 1
      %p1118 = scmp.ne.s32.totalorder %s1113, %s1115
      %p1119 = scmp.eq.s32.totalorder %s155, 0
      %p1120 = por %p1118, %p1119
      %p1121 = scmp.ne.s32.totalorder %s1113, %s1115
      %p1122 = scmp.eq.s32.totalorder %s160, 1
      %p1123 = por %p1121, %p1122
      %p1124 = scmp.ne.s32.totalorder %s1115, %s1116
      %p1125 = scmp.eq.s32.totalorder %s160, 0
      %p1126 = por %p1124, %p1125
      %p1127 = scmp.ne.s32.totalorder %s1115, %s1116
      %p1128 = scmp.eq.s32.totalorder %s161, 1
      %p1129 = por %p1127, %p1128
      %p1131 = scmp.ne.s32.totalorder %s1116, %s1130
      %p1132 = scmp.eq.s32.totalorder %s161, 0
      %p1133 = por %p1131, %p1132
      %s1135 = sadd.s32 %s1134, 1
      %p1138 = scmp.eq.s32.totalorder %s155, 1
      %p1139 = scmp.ne.s32.totalorder %s1134, %s1136
      %p1140 = scmp.eq.s32.totalorder %s155, 0
      %p1141 = por %p1139, %p1140
      %p1142 = scmp.ne.s32.totalorder %s1134, %s1136
      %p1143 = scmp.eq.s32.totalorder %s160, 1
      %p1144 = por %p1142, %p1143
      %p1145 = scmp.ne.s32.totalorder %s1136, %s1137
      %p1146 = scmp.eq.s32.totalorder %s160, 0
      %p1147 = por %p1145, %p1146
      %p1148 = scmp.ne.s32.totalorder %s1136, %s1137
      %p1149 = scmp.eq.s32.totalorder %s161, 1
      %p1150 = por %p1148, %p1149
      %p1152 = scmp.ne.s32.totalorder %s1137, %s1151
      %p1153 = scmp.eq.s32.totalorder %s161, 0
      %p1154 = por %p1152, %p1153
      %s1156 = sadd.s32 %s1155, 1
      %p1159 = scmp.eq.s32.totalorder %s155, 1
      %p1160 = scmp.ne.s32.totalorder %s1155, %s1157
      %p1161 = scmp.eq.s32.totalorder %s155, 0
      %p1162 = por %p1160, %p1161
      %p1163 = scmp.ne.s32.totalorder %s1155, %s1157
      %p1164 = scmp.eq.s32.totalorder %s160, 1
      %p1165 = por %p1163, %p1164
      %p1166 = scmp.ne.s32.totalorder %s1157, %s1158
      %p1167 = scmp.eq.s32.totalorder %s160, 0
      %p1168 = por %p1166, %p1167
      %p1169 = scmp.ne.s32.totalorder %s1157, %s1158
      %p1170 = scmp.eq.s32.totalorder %s161, 1
      %p1171 = por %p1169, %p1170
      %p1173 = scmp.ne.s32.totalorder %s1158, %s1172
      %p1174 = scmp.eq.s32.totalorder %s161, 0
      %p1175 = por %p1173, %p1174
      %s1177 = sadd.s32 %s1176, 1
      %p1180 = scmp.eq.s32.totalorder %s155, 1
      %p1181 = scmp.ne.s32.totalorder %s1176, %s1178
      %p1182 = scmp.eq.s32.totalorder %s155, 0
      %p1183 = por %p1181, %p1182
      %p1184 = scmp.ne.s32.totalorder %s1176, %s1178
      %p1185 = scmp.eq.s32.totalorder %s160, 1
      %p1186 = por %p1184, %p1185
      %p1187 = scmp.ne.s32.totalorder %s1178, %s1179
      %p1188 = scmp.eq.s32.totalorder %s160, 0
      %p1189 = por %p1187, %p1188
      %p1190 = scmp.ne.s32.totalorder %s1178, %s1179
      %p1191 = scmp.eq.s32.totalorder %s161, 1
      %p1192 = por %p1190, %p1191
      %p1194 = scmp.ne.s32.totalorder %s1179, %s1193
      %p1195 = scmp.eq.s32.totalorder %s161, 0
      %p1196 = por %p1194, %p1195
      %s1198 = sadd.s32 %s1197, 1
      %p1201 = scmp.eq.s32.totalorder %s155, 1
      %p1202 = scmp.ne.s32.totalorder %s1197, %s1199
      %p1203 = scmp.eq.s32.totalorder %s155, 0
      %p1204 = por %p1202, %p1203
      %p1205 = scmp.ne.s32.totalorder %s1197, %s1199
      %p1206 = scmp.eq.s32.totalorder %s160, 1
      %p1207 = por %p1205, %p1206
      %p1208 = scmp.ne.s32.totalorder %s1199, %s1200
      %p1209 = scmp.eq.s32.totalorder %s160, 0
      %p1210 = por %p1208, %p1209
      %p1211 = scmp.ne.s32.totalorder %s1199, %s1200
      %p1212 = scmp.eq.s32.totalorder %s161, 1
      %p1213 = por %p1211, %p1212
      %p1215 = scmp.ne.s32.totalorder %s1200, %s1214
      %p1216 = scmp.eq.s32.totalorder %s161, 0
      %p1217 = por %p1215, %p1216
      %s1219 = sadd.s32 %s1218, 1
      %p1222 = scmp.eq.s32.totalorder %s155, 1
      %p1223 = scmp.ne.s32.totalorder %s1218, %s1220
      %p1224 = scmp.eq.s32.totalorder %s155, 0
      %p1225 = por %p1223, %p1224
      %p1226 = scmp.ne.s32.totalorder %s1218, %s1220
      %p1227 = scmp.eq.s32.totalorder %s160, 1
      %p1228 = por %p1226, %p1227
      %p1229 = scmp.ne.s32.totalorder %s1220, %s1221
      %p1230 = scmp.eq.s32.totalorder %s160, 0
      %p1231 = por %p1229, %p1230
      %p1232 = scmp.ne.s32.totalorder %s1220, %s1221
      %p1233 = scmp.eq.s32.totalorder %s161, 1
      %p1234 = por %p1232, %p1233
      %p1236 = scmp.ne.s32.totalorder %s1221, %s1235
      %p1237 = scmp.eq.s32.totalorder %s161, 0
      %p1238 = por %p1236, %p1237
      %s1240 = sadd.s32 %s1239, 1
      %p1243 = scmp.eq.s32.totalorder %s155, 1
      %p1244 = scmp.ne.s32.totalorder %s1239, %s1241
      %p1245 = scmp.eq.s32.totalorder %s155, 0
      %p1246 = por %p1244, %p1245
      %p1247 = scmp.ne.s32.totalorder %s1239, %s1241
      %p1248 = scmp.eq.s32.totalorder %s160, 1
      %p1249 = por %p1247, %p1248
      %p1250 = scmp.ne.s32.totalorder %s1241, %s1242
      %p1251 = scmp.eq.s32.totalorder %s160, 0
      %p1252 = por %p1250, %p1251
      %p1253 = scmp.ne.s32.totalorder %s1241, %s1242
      %p1254 = scmp.eq.s32.totalorder %s161, 1
      %p1255 = por %p1253, %p1254
      %p1257 = scmp.ne.s32.totalorder %s1242, %s1256
      %p1258 = scmp.eq.s32.totalorder %s161, 0
      %p1259 = por %p1257, %p1258
      %s1261 = sadd.s32 %s1260, 1
      %p1264 = scmp.eq.s32.totalorder %s155, 1
      %p1265 = scmp.ne.s32.totalorder %s1260, %s1262
      %p1266 = scmp.eq.s32.totalorder %s155, 0
      %p1267 = por %p1265, %p1266
      %p1268 = scmp.ne.s32.totalorder %s1260, %s1262
      %p1269 = scmp.eq.s32.totalorder %s160, 1
      %p1270 = por %p1268, %p1269
      %p1271 = scmp.ne.s32.totalorder %s1262, %s1263
      %p1272 = scmp.eq.s32.totalorder %s160, 0
      %p1273 = por %p1271, %p1272
      %p1274 = scmp.ne.s32.totalorder %s1262, %s1263
      %p1275 = scmp.eq.s32.totalorder %s161, 1
      %p1276 = por %p1274, %p1275
      %p1278 = scmp.ne.s32.totalorder %s1263, %s1277
      %p1279 = scmp.eq.s32.totalorder %s161, 0
      %p1280 = por %p1278, %p1279
      %s1282 = sadd.s32 %s1281, 1
      %p1285 = scmp.eq.s32.totalorder %s155, 1
      %p1286 = scmp.ne.s32.totalorder %s1281, %s1283
      %p1287 = scmp.eq.s32.totalorder %s155, 0
      %p1288 = por %p1286, %p1287
      %p1289 = scmp.ne.s32.totalorder %s1281, %s1283
      %p1290 = scmp.eq.s32.totalorder %s160, 1
      %p1291 = por %p1289, %p1290
      %p1292 = scmp.ne.s32.totalorder %s1283, %s1284
      %p1293 = scmp.eq.s32.totalorder %s160, 0
      %p1294 = por %p1292, %p1293
      %p1295 = scmp.ne.s32.totalorder %s1283, %s1284
      %p1296 = scmp.eq.s32.totalorder %s161, 1
      %p1297 = por %p1295, %p1296
      %p1299 = scmp.ne.s32.totalorder %s1284, %s1298
      %p1300 = scmp.eq.s32.totalorder %s161, 0
      %p1301 = por %p1299, %p1300
      %s1303 = sadd.s32 %s1302, 1
      %p1306 = scmp.eq.s32.totalorder %s155, 1
      %p1307 = scmp.ne.s32.totalorder %s1302, %s1304
      %p1308 = scmp.eq.s32.totalorder %s155, 0
      %p1309 = por %p1307, %p1308
      %p1310 = scmp.ne.s32.totalorder %s1302, %s1304
      %p1311 = scmp.eq.s32.totalorder %s160, 1
      %p1312 = por %p1310, %p1311
      %p1313 = scmp.ne.s32.totalorder %s1304, %s1305
      %p1314 = scmp.eq.s32.totalorder %s160, 0
      %p1315 = por %p1313, %p1314
      %p1316 = scmp.ne.s32.totalorder %s1304, %s1305
      %p1317 = scmp.eq.s32.totalorder %s161, 1
      %p1318 = por %p1316, %p1317
      %p1320 = scmp.ne.s32.totalorder %s1305, %s1319
      %p1321 = scmp.eq.s32.totalorder %s161, 0
      %p1322 = por %p1320, %p1321
      %s1324 = sadd.s32 %s1323, 1
      %p1327 = scmp.eq.s32.totalorder %s155, 1
      %p1328 = scmp.ne.s32.totalorder %s1323, %s1325
      %p1329 = scmp.eq.s32.totalorder %s155, 0
      %p1330 = por %p1328, %p1329
      %p1331 = scmp.ne.s32.totalorder %s1323, %s1325
      %p1332 = scmp.eq.s32.totalorder %s160, 1
      %p1333 = por %p1331, %p1332
      %p1334 = scmp.ne.s32.totalorder %s1325, %s1326
      %p1335 = scmp.eq.s32.totalorder %s160, 0
      %p1336 = por %p1334, %p1335
      %p1337 = scmp.ne.s32.totalorder %s1325, %s1326
      %p1338 = scmp.eq.s32.totalorder %s161, 1
      %p1339 = por %p1337, %p1338
      %p1341 = scmp.ne.s32.totalorder %s1326, %s1340
      %p1342 = scmp.eq.s32.totalorder %s161, 0
      %p1343 = por %p1341, %p1342
      %s1345 = sadd.s32 %s1344, 1
      %p1348 = scmp.eq.s32.totalorder %s155, 1
      %p1349 = scmp.ne.s32.totalorder %s1344, %s1346
      %p1350 = scmp.eq.s32.totalorder %s155, 0
      %p1351 = por %p1349, %p1350
      %p1352 = scmp.ne.s32.totalorder %s1344, %s1346
      %p1353 = scmp.eq.s32.totalorder %s160, 1
      %p1354 = por %p1352, %p1353
      %p1355 = scmp.ne.s32.totalorder %s1346, %s1347
      %p1356 = scmp.eq.s32.totalorder %s160, 0
      %p1357 = por %p1355, %p1356
      %p1358 = scmp.ne.s32.totalorder %s1346, %s1347
      %p1359 = scmp.eq.s32.totalorder %s161, 1
      %p1360 = por %p1358, %p1359
      %p1362 = scmp.ne.s32.totalorder %s1347, %s1361
      %p1363 = scmp.eq.s32.totalorder %s161, 0
      %p1364 = por %p1362, %p1363
      %s1366 = sadd.s32 %s1365, 1
      %p1369 = scmp.eq.s32.totalorder %s155, 1
      %p1370 = scmp.ne.s32.totalorder %s1365, %s1367
      %p1371 = scmp.eq.s32.totalorder %s155, 0
      %p1372 = por %p1370, %p1371
      %p1373 = scmp.ne.s32.totalorder %s1365, %s1367
      %p1374 = scmp.eq.s32.totalorder %s160, 1
      %p1375 = por %p1373, %p1374
      %p1376 = scmp.ne.s32.totalorder %s1367, %s1368
      %p1377 = scmp.eq.s32.totalorder %s160, 0
      %p1378 = por %p1376, %p1377
      %p1379 = scmp.ne.s32.totalorder %s1367, %s1368
      %p1380 = scmp.eq.s32.totalorder %s161, 1
      %p1381 = por %p1379, %p1380
      %p1383 = scmp.ne.s32.totalorder %s1368, %s1382
      %p1384 = scmp.eq.s32.totalorder %s161, 0
      %p1385 = por %p1383, %p1384
      %s1387 = sadd.s32 %s1386, 1
      %p1390 = scmp.eq.s32.totalorder %s155, 1
      %p1391 = scmp.ne.s32.totalorder %s1386, %s1388
      %p1392 = scmp.eq.s32.totalorder %s155, 0
      %p1393 = por %p1391, %p1392
      %p1394 = scmp.ne.s32.totalorder %s1386, %s1388
      %p1395 = scmp.eq.s32.totalorder %s160, 1
      %p1396 = por %p1394, %p1395
      %p1397 = scmp.ne.s32.totalorder %s1388, %s1389
      %p1398 = scmp.eq.s32.totalorder %s160, 0
      %p1399 = por %p1397, %p1398
      %p1400 = scmp.ne.s32.totalorder %s1388, %s1389
      %p1401 = scmp.eq.s32.totalorder %s161, 1
      %p1402 = por %p1400, %p1401
      %p1404 = scmp.ne.s32.totalorder %s1389, %s1403
      %p1405 = scmp.eq.s32.totalorder %s161, 0
      %p1406 = por %p1404, %p1405
      %s1408 = sadd.s32 %s1407, 1
      %p1411 = scmp.eq.s32.totalorder %s155, 1
      %p1412 = scmp.ne.s32.totalorder %s1407, %s1409
      %p1413 = scmp.eq.s32.totalorder %s155, 0
      %p1414 = por %p1412, %p1413
      %p1415 = scmp.ne.s32.totalorder %s1407, %s1409
      %p1416 = scmp.eq.s32.totalorder %s160, 1
      %p1417 = por %p1415, %p1416
      %p1418 = scmp.ne.s32.totalorder %s1409, %s1410
      %p1419 = scmp.eq.s32.totalorder %s160, 0
      %p1420 = por %p1418, %p1419
      %p1421 = scmp.ne.s32.totalorder %s1409, %s1410
      %p1422 = scmp.eq.s32.totalorder %s161, 1
      %p1423 = por %p1421, %p1422
      %p1425 = scmp.ne.s32.totalorder %s1410, %s1424
      %p1426 = scmp.eq.s32.totalorder %s161, 0
      %p1427 = por %p1425, %p1426
      %s1429 = sadd.s32 %s1428, 1
      %p1432 = scmp.eq.s32.totalorder %s155, 1
      %p1433 = scmp.ne.s32.totalorder %s1428, %s1430
      %p1434 = scmp.eq.s32.totalorder %s155, 0
      %p1435 = por %p1433, %p1434
      %p1436 = scmp.ne.s32.totalorder %s1428, %s1430
      %p1437 = scmp.eq.s32.totalorder %s160, 1
      %p1438 = por %p1436, %p1437
      %p1439 = scmp.ne.s32.totalorder %s1430, %s1431
      %p1440 = scmp.eq.s32.totalorder %s160, 0
      %p1441 = por %p1439, %p1440
      %p1442 = scmp.ne.s32.totalorder %s1430, %s1431
      %p1443 = scmp.eq.s32.totalorder %s161, 1
      %p1444 = por %p1442, %p1443
      %p1446 = scmp.ne.s32.totalorder %s1431, %s1445
      %p1447 = scmp.eq.s32.totalorder %s161, 0
      %p1448 = por %p1446, %p1447
      %s1450 = sadd.s32 %s1449, 1
      %p1453 = scmp.eq.s32.totalorder %s155, 1
      %p1454 = scmp.ne.s32.totalorder %s1449, %s1451
      %p1455 = scmp.eq.s32.totalorder %s155, 0
      %p1456 = por %p1454, %p1455
      %p1457 = scmp.ne.s32.totalorder %s1449, %s1451
      %p1458 = scmp.eq.s32.totalorder %s160, 1
      %p1459 = por %p1457, %p1458
      %p1460 = scmp.ne.s32.totalorder %s1451, %s1452
      %p1461 = scmp.eq.s32.totalorder %s160, 0
      %p1462 = por %p1460, %p1461
      %p1463 = scmp.ne.s32.totalorder %s1451, %s1452
      %p1464 = scmp.eq.s32.totalorder %s161, 1
      %p1465 = por %p1463, %p1464
      %p1467 = scmp.ne.s32.totalorder %s1452, %s1466
      %p1468 = scmp.eq.s32.totalorder %s161, 0
      %p1469 = por %p1467, %p1468
      %s1471 = sadd.s32 %s1470, 1
      %p1474 = scmp.eq.s32.totalorder %s155, 1
      %p1475 = scmp.ne.s32.totalorder %s1470, %s1472
      %p1476 = scmp.eq.s32.totalorder %s155, 0
      %p1477 = por %p1475, %p1476
      %p1478 = scmp.ne.s32.totalorder %s1470, %s1472
      %p1479 = scmp.eq.s32.totalorder %s160, 1
      %p1480 = por %p1478, %p1479
      %p1481 = scmp.ne.s32.totalorder %s1472, %s1473
      %p1482 = scmp.eq.s32.totalorder %s160, 0
      %p1483 = por %p1481, %p1482
      %p1484 = scmp.ne.s32.totalorder %s1472, %s1473
      %p1485 = scmp.eq.s32.totalorder %s161, 1
      %p1486 = por %p1484, %p1485
      %p1488 = scmp.ne.s32.totalorder %s1473, %s1487
      %p1489 = scmp.eq.s32.totalorder %s161, 0
      %p1490 = por %p1488, %p1489
      %s1492 = sadd.s32 %s1491, 1
      %p1495 = scmp.eq.s32.totalorder %s155, 1
      %p1496 = scmp.ne.s32.totalorder %s1491, %s1493
      %p1497 = scmp.eq.s32.totalorder %s155, 0
      %p1498 = por %p1496, %p1497
      %p1499 = scmp.ne.s32.totalorder %s1491, %s1493
      %p1500 = scmp.eq.s32.totalorder %s160, 1
      %p1501 = por %p1499, %p1500
      %p1502 = scmp.ne.s32.totalorder %s1493, %s1494
      %p1503 = scmp.eq.s32.totalorder %s160, 0
      %p1504 = por %p1502, %p1503
      %p1505 = scmp.ne.s32.totalorder %s1493, %s1494
      %p1506 = scmp.eq.s32.totalorder %s161, 1
      %p1507 = por %p1505, %p1506
      %p1509 = scmp.ne.s32.totalorder %s1494, %s1508
      %p1510 = scmp.eq.s32.totalorder %s161, 0
      %p1511 = por %p1509, %p1510
      %s1513 = sadd.s32 %s1512, 1
      %p1516 = scmp.eq.s32.totalorder %s155, 1
      %p1517 = scmp.ne.s32.totalorder %s1512, %s1514
      %p1518 = scmp.eq.s32.totalorder %s155, 0
      %p1519 = por %p1517, %p1518
      %p1520 = scmp.ne.s32.totalorder %s1512, %s1514
      %p1521 = scmp.eq.s32.totalorder %s160, 1
      %p1522 = por %p1520, %p1521
      %p1523 = scmp.ne.s32.totalorder %s1514, %s1515
      %p1524 = scmp.eq.s32.totalorder %s160, 0
      %p1525 = por %p1523, %p1524
      %p1526 = scmp.ne.s32.totalorder %s1514, %s1515
      %p1527 = scmp.eq.s32.totalorder %s161, 1
      %p1528 = por %p1526, %p1527
      %p1530 = scmp.ne.s32.totalorder %s1515, %s1529
      %p1531 = scmp.eq.s32.totalorder %s161, 0
      %p1532 = por %p1530, %p1531
      %s1534 = sadd.s32 %s1533, 1
      %p1537 = scmp.eq.s32.totalorder %s155, 1
      %p1538 = scmp.ne.s32.totalorder %s1533, %s1535
      %p1539 = scmp.eq.s32.totalorder %s155, 0
      %p1540 = por %p1538, %p1539
      %p1541 = scmp.ne.s32.totalorder %s1533, %s1535
      %p1542 = scmp.eq.s32.totalorder %s160, 1
      %p1543 = por %p1541, %p1542
      %p1544 = scmp.ne.s32.totalorder %s1535, %s1536
      %p1545 = scmp.eq.s32.totalorder %s160, 0
      %p1546 = por %p1544, %p1545
      %p1547 = scmp.ne.s32.totalorder %s1535, %s1536
      %p1548 = scmp.eq.s32.totalorder %s161, 1
      %p1549 = por %p1547, %p1548
      %p1551 = scmp.ne.s32.totalorder %s1536, %s1550
      %p1552 = scmp.eq.s32.totalorder %s161, 0
      %p1553 = por %p1551, %p1552
      %s1554 = ssub.s32 %s155, %s162
      %p1555 = scmp.eq.s32.totalorder %s1554, 0
      %s1557 = sadd.s32 %s1556, 1
      %s1558 = scalar_select %p1555, %s1556, %s1557
      %p1561 = pneg %p1555
      %p1562 = scmp.eq.s32.totalorder %s155, 1
      %p1563 = por %p1561, %p1562
      %p1564 = scmp.ne.s32.totalorder %s1556, %s1559
      %p1565 = scmp.eq.s32.totalorder %s155, 0
      %p1566 = por %p1564, %p1565
      %p1567 = scmp.ne.s32.totalorder %s1556, %s1559
      %p1568 = scmp.eq.s32.totalorder %s160, 1
      %p1569 = por %p1567, %p1568
      %p1570 = scmp.ne.s32.totalorder %s1559, %s1560
      %p1571 = scmp.eq.s32.totalorder %s160, 0
      %p1572 = por %p1570, %p1571
      %p1573 = scmp.ne.s32.totalorder %s1559, %s1560
      %p1574 = scmp.eq.s32.totalorder %s161, 1
      %p1575 = por %p1573, %p1574
      %p1577 = scmp.ne.s32.totalorder %s1560, %s1576
      %p1578 = scmp.eq.s32.totalorder %s161, 0
      %p1579 = por %p1577, %p1578
      %s1580 = ssub.s32 %s155, %s162
      %p1581 = scmp.eq.s32.totalorder %s1580, 0
      %s1583 = sadd.s32 %s1582, 1
      %s1584 = scalar_select %p1581, %s1582, %s1583
      %p1587 = pneg %p1581
      %p1588 = scmp.eq.s32.totalorder %s155, 1
      %p1589 = por %p1587, %p1588
      %p1590 = scmp.ne.s32.totalorder %s1582, %s1585
      %p1591 = scmp.eq.s32.totalorder %s155, 0
      %p1592 = por %p1590, %p1591
      %p1593 = scmp.ne.s32.totalorder %s1582, %s1585
      %p1594 = scmp.eq.s32.totalorder %s160, 1
      %p1595 = por %p1593, %p1594
      %p1596 = scmp.ne.s32.totalorder %s1585, %s1586
      %p1597 = scmp.eq.s32.totalorder %s160, 0
      %p1598 = por %p1596, %p1597
      %p1599 = scmp.ne.s32.totalorder %s1585, %s1586
      %p1600 = scmp.eq.s32.totalorder %s161, 1
      %p1601 = por %p1599, %p1600
      %p1603 = scmp.ne.s32.totalorder %s1586, %s1602
      %p1604 = scmp.eq.s32.totalorder %s161, 0
      %p1605 = por %p1603, %p1604
      %p1606 = scmp.le.s32.totalorder 1, %s155
      %p1607 = scmp.lt.s32.totalorder %s155, 3
      %p1608 = pnand %p1606, %p1607
      %p1609 = pneg %p1608
      // Predicated region
      $region9: #{forward.1} parent=5 // pred_check
        _
      $region10: #{forward.1} parent=5 // pred_check_branch
        %1611 = sbr.rel (%p1608) target = $region12
      $region11: #{forward.1} parent=5 // pred_region
        %s1612 = ssub.s32 %s155, 1
        // Predicated region
        $region13: #{forward.1} parent=11 // pred_check
          %p1613 = pneg %p202
        $region14: #{forward.1} parent=11 // pred_check_branch
          %1615 = sbr.rel (%p1613) target = $region16
        $region15: #{forward.1} parent=11 // pred_region
          _
        $region16: #{forward.1} parent=11 // pred_fallthru
          _
        // Predicated region
        $region17: #{forward.1} parent=11 // pred_check
          %p1616 = pneg %p223
        $region18: #{forward.1} parent=11 // pred_check_branch
          %1618 = sbr.rel (%p1616) target = $region20
        $region19: #{forward.1} parent=11 // pred_region
          _
        $region20: #{forward.1} parent=11 // pred_fallthru
          _
        // Predicated region
        $region21: #{forward.1} parent=11 // pred_check
          %p1619 = pneg %p244
        $region22: #{forward.1} parent=11 // pred_check_branch
          %1621 = sbr.rel (%p1619) target = $region24
        $region23: #{forward.1} parent=11 // pred_region
          _
        $region24: #{forward.1} parent=11 // pred_fallthru
          _
        // Predicated region
        $region25: #{forward.1} parent=11 // pred_check
          %p1622 = pneg %p265
        $region26: #{forward.1} parent=11 // pred_check_branch
          %1624 = sbr.rel (%p1622) target = $region28
        $region27: #{forward.1} parent=11 // pred_region
          _
        $region28: #{forward.1} parent=11 // pred_fallthru
          _
        // Predicated region
        $region29: #{forward.1} parent=11 // pred_check
          %p1625 = pneg %p286
        $region30: #{forward.1} parent=11 // pred_check_branch
          %1627 = sbr.rel (%p1625) target = $region32
        $region31: #{forward.1} parent=11 // pred_region
          _
        $region32: #{forward.1} parent=11 // pred_fallthru
          _
        // Predicated region
        $region33: #{forward.1} parent=11 // pred_check
          %p1628 = pneg %p307
        $region34: #{forward.1} parent=11 // pred_check_branch
          %1630 = sbr.rel (%p1628) target = $region36
        $region35: #{forward.1} parent=11 // pred_region
          _
        $region36: #{forward.1} parent=11 // pred_fallthru
          _
        // Predicated region
        $region37: #{forward.1} parent=11 // pred_check
          %p1631 = pneg %p328
        $region38: #{forward.1} parent=11 // pred_check_branch
          %1633 = sbr.rel (%p1631) target = $region40
        $region39: #{forward.1} parent=11 // pred_region
          _
        $region40: #{forward.1} parent=11 // pred_fallthru
          _
        // Predicated region
        $region41: #{forward.1} parent=11 // pred_check
          %p1634 = pneg %p349
        $region42: #{forward.1} parent=11 // pred_check_branch
          %1636 = sbr.rel (%p1634) target = $region44
        $region43: #{forward.1} parent=11 // pred_region
          _
        $region44: #{forward.1} parent=11 // pred_fallthru
          _
        // Predicated region
        $region45: #{forward.1} parent=11 // pred_check
          %p1637 = pneg %p370
        $region46: #{forward.1} parent=11 // pred_check_branch
          %1639 = sbr.rel (%p1637) target = $region48
        $region47: #{forward.1} parent=11 // pred_region
          _
        $region48: #{forward.1} parent=11 // pred_fallthru
          _
        // Predicated region
        $region49: #{forward.1} parent=11 // pred_check
          %p1640 = pneg %p391
        $region50: #{forward.1} parent=11 // pred_check_branch
          %1642 = sbr.rel (%p1640) target = $region52
        $region51: #{forward.1} parent=11 // pred_region
          _
        $region52: #{forward.1} parent=11 // pred_fallthru
          _
        // Predicated region
        $region53: #{forward.1} parent=11 // pred_check
          %p1643 = pneg %p412
        $region54: #{forward.1} parent=11 // pred_check_branch
          %1645 = sbr.rel (%p1643) target = $region56
        $region55: #{forward.1} parent=11 // pred_region
          _
        $region56: #{forward.1} parent=11 // pred_fallthru
          _
        // Predicated region
        $region57: #{forward.1} parent=11 // pred_check
          %p1646 = pneg %p433
        $region58: #{forward.1} parent=11 // pred_check_branch
          %1648 = sbr.rel (%p1646) target = $region60
        $region59: #{forward.1} parent=11 // pred_region
          _
        $region60: #{forward.1} parent=11 // pred_fallthru
          _
        // Predicated region
        $region61: #{forward.1} parent=11 // pred_check
          %p1649 = pneg %p454
        $region62: #{forward.1} parent=11 // pred_check_branch
          %1651 = sbr.rel (%p1649) target = $region64
        $region63: #{forward.1} parent=11 // pred_region
          _
        $region64: #{forward.1} parent=11 // pred_fallthru
          _
        // Predicated region
        $region65: #{forward.1} parent=11 // pred_check
          %p1652 = pneg %p475
        $region66: #{forward.1} parent=11 // pred_check_branch
          %1654 = sbr.rel (%p1652) target = $region68
        $region67: #{forward.1} parent=11 // pred_region
          _
        $region68: #{forward.1} parent=11 // pred_fallthru
          _
        // Predicated region
        $region69: #{forward.1} parent=11 // pred_check
          %p1655 = pneg %p496
        $region70: #{forward.1} parent=11 // pred_check_branch
          %1657 = sbr.rel (%p1655) target = $region72
        $region71: #{forward.1} parent=11 // pred_region
          _
        $region72: #{forward.1} parent=11 // pred_fallthru
          _
        // Predicated region
        $region73: #{forward.1} parent=11 // pred_check
          %p1658 = pneg %p517
        $region74: #{forward.1} parent=11 // pred_check_branch
          %1660 = sbr.rel (%p1658) target = $region76
        $region75: #{forward.1} parent=11 // pred_region
          _
        $region76: #{forward.1} parent=11 // pred_fallthru
          _
        // Predicated region
        $region77: #{forward.1} parent=11 // pred_check
          %p1661 = pneg %p538
        $region78: #{forward.1} parent=11 // pred_check_branch
          %1663 = sbr.rel (%p1661) target = $region80
        $region79: #{forward.1} parent=11 // pred_region
          _
        $region80: #{forward.1} parent=11 // pred_fallthru
          _
        // Predicated region
        $region81: #{forward.1} parent=11 // pred_check
          %p1664 = pneg %p559
        $region82: #{forward.1} parent=11 // pred_check_branch
          %1666 = sbr.rel (%p1664) target = $region84
        $region83: #{forward.1} parent=11 // pred_region
          _
        $region84: #{forward.1} parent=11 // pred_fallthru
          _
        // Predicated region
        $region85: #{forward.1} parent=11 // pred_check
          %p1667 = pneg %p580
        $region86: #{forward.1} parent=11 // pred_check_branch
          %1669 = sbr.rel (%p1667) target = $region88
        $region87: #{forward.1} parent=11 // pred_region
          _
        $region88: #{forward.1} parent=11 // pred_fallthru
          _
        // Predicated region
        $region89: #{forward.1} parent=11 // pred_check
          %p1670 = pneg %p601
        $region90: #{forward.1} parent=11 // pred_check_branch
          %1672 = sbr.rel (%p1670) target = $region92
        $region91: #{forward.1} parent=11 // pred_region
          _
        $region92: #{forward.1} parent=11 // pred_fallthru
          _
        // Predicated region
        $region93: #{forward.1} parent=11 // pred_check
          %p1673 = pneg %p622
        $region94: #{forward.1} parent=11 // pred_check_branch
          %1675 = sbr.rel (%p1673) target = $region96
        $region95: #{forward.1} parent=11 // pred_region
          _
        $region96: #{forward.1} parent=11 // pred_fallthru
          _
        // Predicated region
        $region97: #{forward.1} parent=11 // pred_check
          %p1676 = pneg %p643
        $region98: #{forward.1} parent=11 // pred_check_branch
          %1678 = sbr.rel (%p1676) target = $region100
        $region99: #{forward.1} parent=11 // pred_region
          _
        $region100: #{forward.1} parent=11 // pred_fallthru
          _
        // Predicated region
        $region101: #{forward.1} parent=11 // pred_check
          %p1679 = pneg %p664
        $region102: #{forward.1} parent=11 // pred_check_branch
          %1681 = sbr.rel (%p1679) target = $region104
        $region103: #{forward.1} parent=11 // pred_region
          _
        $region104: #{forward.1} parent=11 // pred_fallthru
          _
        // Predicated region
        $region105: #{forward.1} parent=11 // pred_check
          %p1682 = pneg %p685
        $region106: #{forward.1} parent=11 // pred_check_branch
          %1684 = sbr.rel (%p1682) target = $region108
        $region107: #{forward.1} parent=11 // pred_region
          _
        $region108: #{forward.1} parent=11 // pred_fallthru
          _
        // Predicated region
        $region109: #{forward.1} parent=11 // pred_check
          %p1685 = pneg %p706
        $region110: #{forward.1} parent=11 // pred_check_branch
          %1687 = sbr.rel (%p1685) target = $region112
        $region111: #{forward.1} parent=11 // pred_region
          _
        $region112: #{forward.1} parent=11 // pred_fallthru
          _
        // Predicated region
        $region113: #{forward.1} parent=11 // pred_check
          %p1688 = pneg %p727
        $region114: #{forward.1} parent=11 // pred_check_branch
          %1690 = sbr.rel (%p1688) target = $region116
        $region115: #{forward.1} parent=11 // pred_region
          _
        $region116: #{forward.1} parent=11 // pred_fallthru
          _
        // Predicated region
        $region117: #{forward.1} parent=11 // pred_check
          %p1691 = pneg %p748
        $region118: #{forward.1} parent=11 // pred_check_branch
          %1693 = sbr.rel (%p1691) target = $region120
        $region119: #{forward.1} parent=11 // pred_region
          _
        $region120: #{forward.1} parent=11 // pred_fallthru
          _
        // Predicated region
        $region121: #{forward.1} parent=11 // pred_check
          %p1694 = pneg %p769
        $region122: #{forward.1} parent=11 // pred_check_branch
          %1696 = sbr.rel (%p1694) target = $region124
        $region123: #{forward.1} parent=11 // pred_region
          _
        $region124: #{forward.1} parent=11 // pred_fallthru
          _
        // Predicated region
        $region125: #{forward.1} parent=11 // pred_check
          %p1697 = pneg %p790
        $region126: #{forward.1} parent=11 // pred_check_branch
          %1699 = sbr.rel (%p1697) target = $region128
        $region127: #{forward.1} parent=11 // pred_region
          _
        $region128: #{forward.1} parent=11 // pred_fallthru
          _
        // Predicated region
        $region129: #{forward.1} parent=11 // pred_check
          %p1700 = pneg %p811
        $region130: #{forward.1} parent=11 // pred_check_branch
          %1702 = sbr.rel (%p1700) target = $region132
        $region131: #{forward.1} parent=11 // pred_region
          _
        $region132: #{forward.1} parent=11 // pred_fallthru
          _
        // Predicated region
        $region133: #{forward.1} parent=11 // pred_check
          %p1703 = pneg %p832
        $region134: #{forward.1} parent=11 // pred_check_branch
          %1705 = sbr.rel (%p1703) target = $region136
        $region135: #{forward.1} parent=11 // pred_region
          _
        $region136: #{forward.1} parent=11 // pred_fallthru
          _
        // Predicated region
        $region137: #{forward.1} parent=11 // pred_check
          %p1706 = pneg %p853
        $region138: #{forward.1} parent=11 // pred_check_branch
          %1708 = sbr.rel (%p1706) target = $region140
        $region139: #{forward.1} parent=11 // pred_region
          _
        $region140: #{forward.1} parent=11 // pred_fallthru
          _
        // Predicated region
        $region141: #{forward.1} parent=11 // pred_check
          %p1709 = pneg %p874
        $region142: #{forward.1} parent=11 // pred_check_branch
          %1711 = sbr.rel (%p1709) target = $region144
        $region143: #{forward.1} parent=11 // pred_region
          _
        $region144: #{forward.1} parent=11 // pred_fallthru
          _
        // Predicated region
        $region145: #{forward.1} parent=11 // pred_check
          %p1712 = pneg %p895
        $region146: #{forward.1} parent=11 // pred_check_branch
          %1714 = sbr.rel (%p1712) target = $region148
        $region147: #{forward.1} parent=11 // pred_region
          _
        $region148: #{forward.1} parent=11 // pred_fallthru
          _
        // Predicated region
        $region149: #{forward.1} parent=11 // pred_check
          %p1715 = pneg %p916
        $region150: #{forward.1} parent=11 // pred_check_branch
          %1717 = sbr.rel (%p1715) target = $region152
        $region151: #{forward.1} parent=11 // pred_region
          _
        $region152: #{forward.1} parent=11 // pred_fallthru
          _
        // Predicated region
        $region153: #{forward.1} parent=11 // pred_check
          %p1718 = pneg %p937
        $region154: #{forward.1} parent=11 // pred_check_branch
          %1720 = sbr.rel (%p1718) target = $region156
        $region155: #{forward.1} parent=11 // pred_region
          _
        $region156: #{forward.1} parent=11 // pred_fallthru
          _
        // Predicated region
        $region157: #{forward.1} parent=11 // pred_check
          %p1721 = pneg %p958
        $region158: #{forward.1} parent=11 // pred_check_branch
          %1723 = sbr.rel (%p1721) target = $region160
        $region159: #{forward.1} parent=11 // pred_region
          %s1725 = ssub.s32 16, 16
          %1726 = vsyncadd [#allocation6], %s1725
          %s1728 = sshll.u32 [#allocation5], 4
          %s1729 = int_to_ptr.vmem [resolvable:$true] %s1728
          %1731 = dma.hbm_to_vmem [thread:$0]  %s75, 16, %s1729, [#allocation6]
        $region160: #{forward.1} parent=11 // pred_fallthru
          _
        // Predicated region
        $region161: #{forward.1} parent=11 // pred_check
          %p1732 = pneg %p979
        $region162: #{forward.1} parent=11 // pred_check_branch
          %1734 = sbr.rel (%p1732) target = $region164
        $region163: #{forward.1} parent=11 // pred_region
          %s1736 = ssub.s32 16, 16
          %1737 = vsyncadd [#allocation8], %s1736
          %s1739 = sshll.u32 [#allocation7], 4
          %s1740 = int_to_ptr.vmem [resolvable:$true] %s1739
          %1742 = dma.hbm_to_vmem [thread:$0]  %s77, 16, %s1740, [#allocation8]
        $region164: #{forward.1} parent=11 // pred_fallthru
          _
        // Predicated region
        $region165: #{forward.1} parent=11 // pred_check
          %p1743 = pneg %p1000
        $region166: #{forward.1} parent=11 // pred_check_branch
          %1745 = sbr.rel (%p1743) target = $region168
        $region167: #{forward.1} parent=11 // pred_region
          %s1747 = ssub.s32 16, 16
          %1748 = vsyncadd [#allocation8], %s1747
          %s1750 = sshll.u32 [#allocation9], 4
          %s1751 = int_to_ptr.vmem [resolvable:$true] %s1750
          %1753 = dma.hbm_to_vmem [thread:$0]  %s79, 16, %s1751, [#allocation8]
        $region168: #{forward.1} parent=11 // pred_fallthru
          _
        // Predicated region
        $region169: #{forward.1} parent=11 // pred_check
          %p1754 = pneg %p1021
        $region170: #{forward.1} parent=11 // pred_check_branch
          %1756 = sbr.rel (%p1754) target = $region172
        $region171: #{forward.1} parent=11 // pred_region
          _
        $region172: #{forward.1} parent=11 // pred_fallthru
          _
        // Predicated region
        $region173: #{forward.1} parent=11 // pred_check
          %p1757 = pneg %p1042
        $region174: #{forward.1} parent=11 // pred_check_branch
          %1759 = sbr.rel (%p1757) target = $region176
        $region175: #{forward.1} parent=11 // pred_region
          _
        $region176: #{forward.1} parent=11 // pred_fallthru
          _
        // Predicated region
        $region177: #{forward.1} parent=11 // pred_check
          %p1760 = pneg %p1063
        $region178: #{forward.1} parent=11 // pred_check_branch
          %1762 = sbr.rel (%p1760) target = $region180
        $region179: #{forward.1} parent=11 // pred_region
          _
        $region180: #{forward.1} parent=11 // pred_fallthru
          _
        // Predicated region
        $region181: #{forward.1} parent=11 // pred_check
          %p1763 = pneg %p1084
        $region182: #{forward.1} parent=11 // pred_check_branch
          %1765 = sbr.rel (%p1763) target = $region184
        $region183: #{forward.1} parent=11 // pred_region
          _
        $region184: #{forward.1} parent=11 // pred_fallthru
          _
        // Predicated region
        $region185: #{forward.1} parent=11 // pred_check
          %p1766 = pneg %p1105
        $region186: #{forward.1} parent=11 // pred_check_branch
          %1768 = sbr.rel (%p1766) target = $region188
        $region187: #{forward.1} parent=11 // pred_region
          _
        $region188: #{forward.1} parent=11 // pred_fallthru
          _
        // Predicated region
        $region189: #{forward.1} parent=11 // pred_check
          %p1769 = pneg %p1126
        $region190: #{forward.1} parent=11 // pred_check_branch
          %1771 = sbr.rel (%p1769) target = $region192
        $region191: #{forward.1} parent=11 // pred_region
          _
        $region192: #{forward.1} parent=11 // pred_fallthru
          _
        // Predicated region
        $region193: #{forward.1} parent=11 // pred_check
          %p1772 = pneg %p1147
        $region194: #{forward.1} parent=11 // pred_check_branch
          %1774 = sbr.rel (%p1772) target = $region196
        $region195: #{forward.1} parent=11 // pred_region
          _
        $region196: #{forward.1} parent=11 // pred_fallthru
          _
        // Predicated region
        $region197: #{forward.1} parent=11 // pred_check
          %p1775 = pneg %p1168
        $region198: #{forward.1} parent=11 // pred_check_branch
          %1777 = sbr.rel (%p1775) target = $region200
        $region199: #{forward.1} parent=11 // pred_region
          %s1779 = ssub.s32 16, 16
          %1780 = vsyncadd [#allocation11], %s1779
          %s1782 = sshll.u32 [#allocation10], 4
          %s1783 = int_to_ptr.vmem [resolvable:$true] %s1782
          %1785 = dma.hbm_to_vmem [thread:$0]  %s95, 16, %s1783, [#allocation11]
        $region200: #{forward.1} parent=11 // pred_fallthru
          _
        // Predicated region
        $region201: #{forward.1} parent=11 // pred_check
          %p1786 = pneg %p1189
        $region202: #{forward.1} parent=11 // pred_check_branch
          %1788 = sbr.rel (%p1786) target = $region204
        $region203: #{forward.1} parent=11 // pred_region
          _
        $region204: #{forward.1} parent=11 // pred_fallthru
          _
        // Predicated region
        $region205: #{forward.1} parent=11 // pred_check
          %p1789 = pneg %p1210
        $region206: #{forward.1} parent=11 // pred_check_branch
          %1791 = sbr.rel (%p1789) target = $region208
        $region207: #{forward.1} parent=11 // pred_region
          %s1793 = ssub.s32 16, 16
          %1794 = vsyncadd [#allocation11], %s1793
          %s1796 = sshll.u32 [#allocation12], 4
          %s1797 = int_to_ptr.vmem [resolvable:$true] %s1796
          %1799 = dma.hbm_to_vmem [thread:$0]  %s99, 16, %s1797, [#allocation11]
        $region208: #{forward.1} parent=11 // pred_fallthru
          _
        // Predicated region
        $region209: #{forward.1} parent=11 // pred_check
          %p1800 = pneg %p1231
        $region210: #{forward.1} parent=11 // pred_check_branch
          %1802 = sbr.rel (%p1800) target = $region212
        $region211: #{forward.1} parent=11 // pred_region
          _
        $region212: #{forward.1} parent=11 // pred_fallthru
          _
        // Predicated region
        $region213: #{forward.1} parent=11 // pred_check
          %p1803 = pneg %p1252
        $region214: #{forward.1} parent=11 // pred_check_branch
          %1805 = sbr.rel (%p1803) target = $region216
        $region215: #{forward.1} parent=11 // pred_region
          %s1807 = ssub.s32 16, 16
          %1808 = vsyncadd [#allocation14], %s1807
          %s1810 = sshll.u32 [#allocation13], 4
          %s1811 = int_to_ptr.vmem [resolvable:$true] %s1810
          %1813 = dma.hbm_to_vmem [thread:$0]  %s103, 16, %s1811, [#allocation14]
        $region216: #{forward.1} parent=11 // pred_fallthru
          _
        // Predicated region
        $region217: #{forward.1} parent=11 // pred_check
          %p1814 = pneg %p1273
        $region218: #{forward.1} parent=11 // pred_check_branch
          %1816 = sbr.rel (%p1814) target = $region220
        $region219: #{forward.1} parent=11 // pred_region
          %s1818 = ssub.s32 16, 16
          %1819 = vsyncadd [#allocation14], %s1818
          %s1821 = sshll.u32 [#allocation15], 4
          %s1822 = int_to_ptr.vmem [resolvable:$true] %s1821
          %1824 = dma.hbm_to_vmem [thread:$0]  %s105, 16, %s1822, [#allocation14]
        $region220: #{forward.1} parent=11 // pred_fallthru
          _
        // Predicated region
        $region221: #{forward.1} parent=11 // pred_check
          %p1825 = pneg %p1294
        $region222: #{forward.1} parent=11 // pred_check_branch
          %1827 = sbr.rel (%p1825) target = $region224
        $region223: #{forward.1} parent=11 // pred_region
          %s1829 = ssub.s32 16, 16
          %1830 = vsyncadd [#allocation17], %s1829
          %s1832 = sshll.u32 [#allocation16], 4
          %s1833 = int_to_ptr.vmem [resolvable:$true] %s1832
          %1835 = dma.hbm_to_vmem [thread:$0]  %s107, 16, %s1833, [#allocation17]
        $region224: #{forward.1} parent=11 // pred_fallthru
          _
        // Predicated region
        $region225: #{forward.1} parent=11 // pred_check
          %p1836 = pneg %p1315
        $region226: #{forward.1} parent=11 // pred_check_branch
          %1838 = sbr.rel (%p1836) target = $region228
        $region227: #{forward.1} parent=11 // pred_region
          %s1840 = ssub.s32 16, 16
          %1841 = vsyncadd [#allocation17], %s1840
          %s1843 = sshll.u32 [#allocation18], 4
          %s1844 = int_to_ptr.vmem [resolvable:$true] %s1843
          %1846 = dma.hbm_to_vmem [thread:$0]  %s109, 16, %s1844, [#allocation17]
        $region228: #{forward.1} parent=11 // pred_fallthru
          _
        // Predicated region
        $region229: #{forward.1} parent=11 // pred_check
          %p1847 = pneg %p1336
        $region230: #{forward.1} parent=11 // pred_check_branch
          %1849 = sbr.rel (%p1847) target = $region232
        $region231: #{forward.1} parent=11 // pred_region
          %s1851 = ssub.s32 16, 16
          %1852 = vsyncadd [#allocation20], %s1851
          %s1854 = sshll.u32 [#allocation19], 4
          %s1855 = int_to_ptr.vmem [resolvable:$true] %s1854
          %1857 = dma.hbm_to_vmem [thread:$0]  %s111, 16, %s1855, [#allocation20]
        $region232: #{forward.1} parent=11 // pred_fallthru
          _
        // Predicated region
        $region233: #{forward.1} parent=11 // pred_check
          %p1858 = pneg %p1357
        $region234: #{forward.1} parent=11 // pred_check_branch
          %1860 = sbr.rel (%p1858) target = $region236
        $region235: #{forward.1} parent=11 // pred_region
          _
        $region236: #{forward.1} parent=11 // pred_fallthru
          _
        // Predicated region
        $region237: #{forward.1} parent=11 // pred_check
          %p1861 = pneg %p1378
        $region238: #{forward.1} parent=11 // pred_check_branch
          %1863 = sbr.rel (%p1861) target = $region240
        $region239: #{forward.1} parent=11 // pred_region
          _
        $region240: #{forward.1} parent=11 // pred_fallthru
          _
        // Predicated region
        $region241: #{forward.1} parent=11 // pred_check
          %p1864 = pneg %p1399
        $region242: #{forward.1} parent=11 // pred_check_branch
          %1866 = sbr.rel (%p1864) target = $region244
        $region243: #{forward.1} parent=11 // pred_region
          _
        $region244: #{forward.1} parent=11 // pred_fallthru
          _
        // Predicated region
        $region245: #{forward.1} parent=11 // pred_check
          %p1867 = pneg %p1420
        $region246: #{forward.1} parent=11 // pred_check_branch
          %1869 = sbr.rel (%p1867) target = $region248
        $region247: #{forward.1} parent=11 // pred_region
          %s1871 = ssub.s32 16, 16
          %1872 = vsyncadd [#allocation20], %s1871
          %s1874 = sshll.u32 [#allocation21], 4
          %s1875 = int_to_ptr.vmem [resolvable:$true] %s1874
          %1877 = dma.hbm_to_vmem [thread:$0]  %s119, 16, %s1875, [#allocation20]
        $region248: #{forward.1} parent=11 // pred_fallthru
          _
        // Predicated region
        $region249: #{forward.1} parent=11 // pred_check
          %p1878 = pneg %p1441
        $region250: #{forward.1} parent=11 // pred_check_branch
          %1880 = sbr.rel (%p1878) target = $region252
        $region251: #{forward.1} parent=11 // pred_region
          _
        $region252: #{forward.1} parent=11 // pred_fallthru
          _
        // Predicated region
        $region253: #{forward.1} parent=11 // pred_check
          %p1881 = pneg %p1462
        $region254: #{forward.1} parent=11 // pred_check_branch
          %1883 = sbr.rel (%p1881) target = $region256
        $region255: #{forward.1} parent=11 // pred_region
          _
        $region256: #{forward.1} parent=11 // pred_fallthru
          _
        // Predicated region
        $region257: #{forward.1} parent=11 // pred_check
          %p1884 = pneg %p1483
        $region258: #{forward.1} parent=11 // pred_check_branch
          %1886 = sbr.rel (%p1884) target = $region260
        $region259: #{forward.1} parent=11 // pred_region
          _
        $region260: #{forward.1} parent=11 // pred_fallthru
          _
        // Predicated region
        $region261: #{forward.1} parent=11 // pred_check
          %p1887 = pneg %p1504
        $region262: #{forward.1} parent=11 // pred_check_branch
          %1889 = sbr.rel (%p1887) target = $region264
        $region263: #{forward.1} parent=11 // pred_region
          %s1891 = ssub.s32 16, 16
          %1892 = vsyncadd [#allocation23], %s1891
          %s1894 = sshll.u32 [#allocation22], 4
          %s1895 = int_to_ptr.vmem [resolvable:$true] %s1894
          %1897 = dma.hbm_to_vmem [thread:$0]  %s127, 16, %s1895, [#allocation23]
        $region264: #{forward.1} parent=11 // pred_fallthru
          _
        // Predicated region
        $region265: #{forward.1} parent=11 // pred_check
          %p1898 = pneg %p1525
        $region266: #{forward.1} parent=11 // pred_check_branch
          %1900 = sbr.rel (%p1898) target = $region268
        $region267: #{forward.1} parent=11 // pred_region
          _
        $region268: #{forward.1} parent=11 // pred_fallthru
          _
        // Predicated region
        $region269: #{forward.1} parent=11 // pred_check
          %p1901 = pneg %p1546
        $region270: #{forward.1} parent=11 // pred_check_branch
          %1903 = sbr.rel (%p1901) target = $region272
        $region271: #{forward.1} parent=11 // pred_region
          _
        $region272: #{forward.1} parent=11 // pred_fallthru
          _
      $region12: #{forward.1} parent=5 // pred_fallthru
        _
      %p1904 = scmp.lt.s32.totalorder %s155, 2
      // Predicated region
      $region273: #{forward.1} parent=5 // pred_check
        %p1905 = pneg %p1904
      $region274: #{forward.1} parent=5 // pred_check_branch
        %1907 = sbr.rel (%p1905) target = $region276
      $region275: #{forward.1} parent=5 // pred_region
        // Predicated region
        $region277: #{forward.1} parent=275 // pred_check
          %p1908 = pneg %p175
        $region278: #{forward.1} parent=275 // pred_check_branch
          %1910 = sbr.rel (%p1908) target = $region280
        $region279: #{forward.1} parent=275 // pred_region
          %p1911 = scmp.lt.s32.totalorder %s155, 1
          %s1912 = scalar_select %p1911, %s155, 1
          %s1913 = smul.addr %s1912, 2
          %s1914 = smul.addr %s1913, 8
          %s1915 = scalar_lea.vmem %s1, %s1914
        $region280: #{forward.1} parent=275 // pred_fallthru
          _
      $region276: #{forward.1} parent=5 // pred_fallthru
        _
      %p1916 = scmp.le.s32.totalorder 1, %s155
      %p1917 = scmp.lt.s32.totalorder %s155, 3
      %p1918 = pnand %p1916, %p1917
      %p1919 = pneg %p1918
      // Predicated region
      $region281: #{forward.1} parent=5 // pred_check
        _
      $region282: #{forward.1} parent=5 // pred_check_branch
        %1921 = sbr.rel (%p1918) target = $region284
      $region283: #{forward.1} parent=5 // pred_region
        %s1922 = ssub.s32 %s155, 1
        // Predicated region
        $region285: #{forward.1} parent=283 // pred_check
          %p1923 = pneg %p958
        $region286: #{forward.1} parent=283 // pred_check_branch
          %1925 = sbr.rel (%p1923) target = $region288
        $region287: #{forward.1} parent=283 // pred_region
          %1926 = dma.done [#allocation6], 16
        $region288: #{forward.1} parent=283 // pred_fallthru
          _
        // Predicated region
        $region289: #{forward.1} parent=283 // pred_check
          %p1927 = pneg %p979
        $region290: #{forward.1} parent=283 // pred_check_branch
          %1929 = sbr.rel (%p1927) target = $region292
        $region291: #{forward.1} parent=283 // pred_region
          %1930 = dma.done [#allocation8], 16
        $region292: #{forward.1} parent=283 // pred_fallthru
          _
        // Predicated region
        $region293: #{forward.1} parent=283 // pred_check
          %p1931 = pneg %p1000
        $region294: #{forward.1} parent=283 // pred_check_branch
          %1933 = sbr.rel (%p1931) target = $region296
        $region295: #{forward.1} parent=283 // pred_region
          %1934 = dma.done [#allocation8], 16
        $region296: #{forward.1} parent=283 // pred_fallthru
          _
        // Predicated region
        $region297: #{forward.1} parent=283 // pred_check
          %p1935 = pneg %p1168
        $region298: #{forward.1} parent=283 // pred_check_branch
          %1937 = sbr.rel (%p1935) target = $region300
        $region299: #{forward.1} parent=283 // pred_region
          %1938 = dma.done [#allocation11], 16
        $region300: #{forward.1} parent=283 // pred_fallthru
          _
        // Predicated region
        $region301: #{forward.1} parent=283 // pred_check
          %p1939 = pneg %p1210
        $region302: #{forward.1} parent=283 // pred_check_branch
          %1941 = sbr.rel (%p1939) target = $region304
        $region303: #{forward.1} parent=283 // pred_region
          %1942 = dma.done [#allocation11], 16
        $region304: #{forward.1} parent=283 // pred_fallthru
          _
        // Predicated region
        $region305: #{forward.1} parent=283 // pred_check
          %p1943 = pneg %p1252
        $region306: #{forward.1} parent=283 // pred_check_branch
          %1945 = sbr.rel (%p1943) target = $region308
        $region307: #{forward.1} parent=283 // pred_region
          %1946 = dma.done [#allocation14], 16
        $region308: #{forward.1} parent=283 // pred_fallthru
          _
        // Predicated region
        $region309: #{forward.1} parent=283 // pred_check
          %p1947 = pneg %p1273
        $region310: #{forward.1} parent=283 // pred_check_branch
          %1949 = sbr.rel (%p1947) target = $region312
        $region311: #{forward.1} parent=283 // pred_region
          %1950 = dma.done [#allocation14], 16
        $region312: #{forward.1} parent=283 // pred_fallthru
          _
        // Predicated region
        $region313: #{forward.1} parent=283 // pred_check
          %p1951 = pneg %p1294
        $region314: #{forward.1} parent=283 // pred_check_branch
          %1953 = sbr.rel (%p1951) target = $region316
        $region315: #{forward.1} parent=283 // pred_region
          %1954 = dma.done [#allocation17], 16
        $region316: #{forward.1} parent=283 // pred_fallthru
          _
        // Predicated region
        $region317: #{forward.1} parent=283 // pred_check
          %p1955 = pneg %p1315
        $region318: #{forward.1} parent=283 // pred_check_branch
          %1957 = sbr.rel (%p1955) target = $region320
        $region319: #{forward.1} parent=283 // pred_region
          %1958 = dma.done [#allocation17], 16
        $region320: #{forward.1} parent=283 // pred_fallthru
          _
        // Predicated region
        $region321: #{forward.1} parent=283 // pred_check
          %p1959 = pneg %p1336
        $region322: #{forward.1} parent=283 // pred_check_branch
          %1961 = sbr.rel (%p1959) target = $region324
        $region323: #{forward.1} parent=283 // pred_region
          %1962 = dma.done [#allocation20], 16
        $region324: #{forward.1} parent=283 // pred_fallthru
          _
        // Predicated region
        $region325: #{forward.1} parent=283 // pred_check
          %p1963 = pneg %p1420
        $region326: #{forward.1} parent=283 // pred_check_branch
          %1965 = sbr.rel (%p1963) target = $region328
        $region327: #{forward.1} parent=283 // pred_region
          %1966 = dma.done [#allocation20], 16
        $region328: #{forward.1} parent=283 // pred_fallthru
          _
        // Predicated region
        $region329: #{forward.1} parent=283 // pred_check
          %p1967 = pneg %p1504
        $region330: #{forward.1} parent=283 // pred_check_branch
          %1969 = sbr.rel (%p1967) target = $region332
        $region331: #{forward.1} parent=283 // pred_region
          %1970 = dma.done [#allocation23], 16
        $region332: #{forward.1} parent=283 // pred_fallthru
          _
        %p1971 = scmp.lt.s32.totalorder %s160, 1
        %s1972 = scalar_select %p1971, %s160, 1
        %s1973 = smul.addr %s1972, 2
        %s1974 = smul.addr %s1973, 8
        %s1975 = scalar_lea.vmem %s1, %s1974
        %p1976 = pneg %p181
        %p1977 = pneg %p178
        %p1978 = pneg %p202
        %p1979 = pneg %p199
        %p1980 = pneg %p223
        %p1981 = pneg %p220
        %p1982 = pneg %p244
        %p1983 = pneg %p241
        %p1984 = pneg %p265
        %p1985 = pneg %p262
        %p1986 = pneg %p286
        %p1987 = pneg %p283
        %p1988 = pneg %p307
        %p1989 = pneg %p304
        %p1990 = pneg %p328
        %p1991 = pneg %p325
        %p1992 = pneg %p349
        %p1993 = pneg %p346
        %p1994 = pneg %p370
        %p1995 = pneg %p367
        %p1996 = pneg %p391
        %p1997 = pneg %p388
        %p1998 = pneg %p412
        %p1999 = pneg %p409
        %p2000 = pneg %p433
        %p2001 = pneg %p430
        %p2002 = pneg %p454
        %p2003 = pneg %p451
        %p2004 = pneg %p475
        %p2005 = pneg %p472
        %p2006 = pneg %p496
        %p2007 = pneg %p493
        %p2008 = pneg %p517
        %p2009 = pneg %p514
        %p2010 = pneg %p538
        %p2011 = pneg %p535
        %p2012 = pneg %p559
        %p2013 = pneg %p556
        %p2014 = pneg %p580
        %p2015 = pneg %p577
        %p2016 = pneg %p601
        %p2017 = pneg %p598
        %p2018 = pneg %p622
        %p2019 = pneg %p619
        %p2020 = pneg %p643
        %p2021 = pneg %p640
        %p2022 = pneg %p664
        %p2023 = pneg %p661
        %p2024 = pneg %p685
        %p2025 = pneg %p682
        %p2026 = pneg %p706
        %p2027 = pneg %p703
        %p2028 = pneg %p727
        %p2029 = pneg %p724
        %p2030 = pneg %p748
        %p2031 = pneg %p745
        %p2032 = pneg %p769
        %p2033 = pneg %p766
        %p2034 = pneg %p790
        %p2035 = pneg %p787
        %p2036 = pneg %p811
        %p2037 = pneg %p808
        %p2038 = pneg %p832
        %p2039 = pneg %p829
        %p2040 = pneg %p853
        %p2041 = pneg %p850
        %p2042 = pneg %p874
        %p2043 = pneg %p871
        %p2044 = pneg %p895
        %p2045 = pneg %p892
        %p2046 = pneg %p916
        %p2047 = pneg %p913
        %p2048 = pneg %p937
        %p2049 = pneg %p934
        %p2050 = pneg %p958
        %p2051 = pneg %p955
        %p2052 = pneg %p979
        %p2053 = pneg %p976
        %p2054 = pneg %p1000
        %p2055 = pneg %p997
        %p2056 = pneg %p1021
        %p2057 = pneg %p1018
        %p2058 = pneg %p1042
        %p2059 = pneg %p1039
        %p2060 = pneg %p1063
        %p2061 = pneg %p1060
        %p2062 = pneg %p1084
        %p2063 = pneg %p1081
        %p2064 = pneg %p1105
        %p2065 = pneg %p1102
        %p2066 = pneg %p1126
        %p2067 = pneg %p1123
        %p2068 = pneg %p1147
        %p2069 = pneg %p1144
        %p2070 = pneg %p1168
        %p2071 = pneg %p1165
        %p2072 = pneg %p1189
        %p2073 = pneg %p1186
        %p2074 = pneg %p1210
        %p2075 = pneg %p1207
        %p2076 = pneg %p1231
        %p2077 = pneg %p1228
        %p2078 = pneg %p1252
        %p2079 = pneg %p1249
        %p2080 = pneg %p1273
        %p2081 = pneg %p1270
        %p2082 = pneg %p1294
        %p2083 = pneg %p1291
        %p2084 = pneg %p1315
        %p2085 = pneg %p1312
        %p2086 = pneg %p1336
        %p2087 = pneg %p1333
        %p2088 = pneg %p1357
        %p2089 = pneg %p1354
        %p2090 = pneg %p1378
        %p2091 = pneg %p1375
        %p2092 = pneg %p1399
        %p2093 = pneg %p1396
        %p2094 = pneg %p1420
        %p2095 = pneg %p1417
        %p2096 = pneg %p1441
        %p2097 = pneg %p1438
        %p2098 = pneg %p1462
        %p2099 = pneg %p1459
        %p2100 = pneg %p1483
        %p2101 = pneg %p1480
        %p2102 = pneg %p1504
        %p2103 = pneg %p1501
        %p2104 = pneg %p1525
        %p2105 = pneg %p1522
        %p2106 = pneg %p1546
        %p2107 = pneg %p1543
        %p2108 = pneg %p1572
        %p2109 = pneg %p1569
        %p2110 = scmp.lt.s32.totalorder %s160, 1
        %s2111 = scalar_select %p2110, %s160, 1
        %s2112 = scalar_lea.vmem %s133, %s2111
        %p2113 = pneg %p1598
        %p2114 = pneg %p1595
        %p2115 = scmp.lt.s32.totalorder %s160, 1
        %s2116 = scalar_select %p2115, %s160, 1
        %s2117 = scalar_lea.vmem %s135, %s2116
        %p2118 = scmp.lt.s32.totalorder %s160, 1
        %s2119 = scalar_select %p2118, %s160, 1
        %s2120 = smul.addr %s2119, 2
        %s2121 = smul.addr %s2120, 8
        %s2122 = scalar_lea.vmem %s1, %s2121
        %p2123 = scmp.lt.s32.totalorder %s160, 1
        %s2124 = scalar_select %p2123, %s160, 1
        %s2125 = scalar_lea.vmem %s133, %s2124
        %p2126 = scmp.lt.s32.totalorder %s160, 1
        %s2127 = scalar_select %p2126, %s160, 1
        %s2128 = scalar_lea.vmem %s135, %s2127
        %v2130 = vld [vmem:[%s2122] sm:$0xff]
        %v2131 = vld [vmem:[%s2122 + $0x8] sm:$0xff]
        %v2132 = vpack.c.bf16 %v2131, %v2130
        %v2133 = vld [vmem:[%s5] sm:$0xf]
        %v2134 = vld [vmem:[%s7] sm:$0x1]
        %v2136 = vlaneseq
        %v2137 = vshrl.u32 %v2136, 7
        %v2138 = vsub.s32 0, %v2137
        %v2139 = vrot.slane %v2134, %v2138
        %vm2141 = vcmask 64512
        %v2143 = vsel %vm2141, %v2132, 0
        %vm2145 = vcmask 1043456
        %v2147 = vsel %vm2145, %v2133, 0
        %2149 = vmatprep.subr.bf16.mxu0 0
        %2150 = vmatpush1.bf16.msra.mxu0 %v2147
        %2151 = vmatprep.subr.bf16.mxu0 0
        %2152 = vmatpush1.bf16.msra.mxu0 0
        %2153 = vmatprep.subr.bf16.mxu0 0
        %2154 = vmatpush1.bf16.msra.mxu0 0
        %2155 = vmatprep.subr.bf16.mxu0 0
        %2156 = vmatpush1.bf16.msra.mxu0 0
        %2157 = vmatprep.subr.bf16.mxu0 0
        %2158 = vmatpush1.bf16.msra.mxu0 0
        %2159 = vmatprep.subr.bf16.mxu0 0
        %2160 = vmatpush1.bf16.msra.mxu0 0
        %2161 = vmatprep.subr.bf16.mxu0 0
        %2162 = vmatpush1.bf16.msra.mxu0 0
        %2163 = vmatprep.subr.bf16.mxu0 0
        %2164 = vmatpush1.bf16.msra.mxu0 0
        %2165 = vmatprep.subr.bf16.mxu0 0
        %2166 = vmatpush1.bf16.msra.mxu0 0
        %2167 = vmatprep.subr.bf16.mxu0 0
        %2168 = vmatpush1.bf16.msra.mxu0 0
        %2169 = vmatprep.subr.bf16.mxu0 0
        %2170 = vmatpush1.bf16.msra.mxu0 0
        %2171 = vmatprep.subr.bf16.mxu0 0
        %2172 = vmatpush1.bf16.msra.mxu0 0
        %2173 = vmatprep.subr.bf16.mxu0 0
        %2174 = vmatpush1.bf16.msra.mxu0 0
        %2175 = vmatprep.subr.bf16.mxu0 0
        %2176 = vmatpush1.bf16.msra.mxu0 0
        %2177 = vmatprep.subr.bf16.mxu0 0
        %2178 = vmatpush1.bf16.msra.mxu0 0
        %2179 = vmatprep.subr.bf16.mxu0 0
        %2180 = vmatpush1.bf16.msra.mxu0 0
        %2181 = vmatprep.mubr.bf16.mxu0 0
        %2182 = vmatmul.mubr.bf16.gmra.mrb[0].mxu0 %v2143
        %v2183 = vpop.f32.mrb[0].mxu0
        %v2184 = vadd.f32 %v2139, %v2183
        %v2185 = vpop.f32.mrb[0].mxu0
        %v2186 = vpop.f32.mrb[0].mxu0
        %v2187 = vadd.f32 %v2139, %v2186
        %v2188 = vpop.f32.mrb[0].mxu0
        %2189 = vdwg.mxu0
        %v2190 = vlaneseq
        %v2191 = vshrl.u32 %v2190, 7
        %v2192 = vadd.s32 %v2191, 8
        %v2193 = vlaneseq
        %v2194 = vand.u32 %v2193, 127
        %v2195 = vsub.s32 %v2194, %v2191
        %v2196 = vsub.s32 %v2194, %v2192
        %vm2197 = vcmp.eq.s32.totalorder %v2195, 4294967295
        %vm2198 = vcmp.eq.s32.totalorder %v2196, 4294967295
        %v2199 = vsel %vm2197, 1.0, 0.0
        %v2200 = vsel %vm2198, 1.0, 0.0
        %vm2201 = vcmask 130048
        %v2203 = vsel %vm2201, %v2199, 0
        %v2206 = vsel %vm2201, %v2200, 0
        %2208 = vmatprep.subr.mxu0 0.0
        %2209 = vmatpush1.msra.mxu0 %v2184
        %2210 = vmatprep.subr.mxu0 0.0
        %2211 = vmatpush1.msra.mxu0 %v2187
        %2212 = vmatprep.subr.mxu0 0.0
        %2213 = vmatpush1.msra.mxu0 0.0
        %2214 = vmatprep.subr.mxu0 0.0
        %2215 = vmatpush1.msra.mxu0 0.0
        %2216 = vmatprep.subr.mxu0 0.0
        %2217 = vmatpush1.msra.mxu0 0.0
        %2218 = vmatprep.subr.mxu0 0.0
        %2219 = vmatpush1.msra.mxu0 0.0
        %2220 = vmatprep.subr.mxu0 0.0
        %2221 = vmatpush1.msra.mxu0 0.0
        %2222 = vmatprep.subr.mxu0 0.0
        %2223 = vmatpush1.msra.mxu0 0.0
        %2224 = vmatprep.subr.mxu0 0.0
        %2225 = vmatpush1.msra.mxu0 0.0
        %2226 = vmatprep.subr.mxu0 0.0
        %2227 = vmatpush1.msra.mxu0 0.0
        %2228 = vmatprep.subr.mxu0 0.0
        %2229 = vmatpush1.msra.mxu0 0.0
        %2230 = vmatprep.subr.mxu0 0.0
        %2231 = vmatpush1.msra.mxu0 0.0
        %2232 = vmatprep.subr.mxu0 0.0
        %2233 = vmatpush1.msra.mxu0 0.0
        %2234 = vmatprep.subr.mxu0 0.0
        %2235 = vmatpush1.msra.mxu0 0.0
        %2236 = vmatprep.subr.mxu0 0.0
        %2237 = vmatpush1.msra.mxu0 0.0
        %2238 = vmatprep.subr.mxu0 0.0
        %2239 = vmatpush1.msra.mxu0 0.0
        %2240 = vmatprep.subr.mxu0 0.0
        %2241 = vmatpush1.msra.mxu0 0.0
        %2242 = vmatprep.subr.mxu0 0.0
        %2243 = vmatpush1.msra.mxu0 0.0
        %2244 = vmatprep.subr.mxu0 0.0
        %2245 = vmatpush1.msra.mxu0 0.0
        %2246 = vmatprep.subr.mxu0 0.0
        %2247 = vmatpush1.msra.mxu0 0.0
        %2248 = vmatprep.subr.mxu0 0.0
        %2249 = vmatpush1.msra.mxu0 0.0
        %2250 = vmatprep.subr.mxu0 0.0
        %2251 = vmatpush1.msra.mxu0 0.0
        %2252 = vmatprep.subr.mxu0 0.0
        %2253 = vmatpush1.msra.mxu0 0.0
        %2254 = vmatprep.subr.mxu0 0.0
        %2255 = vmatpush1.msra.mxu0 0.0
        %2256 = vmatprep.subr.mxu0 0.0
        %2257 = vmatpush1.msra.mxu0 0.0
        %2258 = vmatprep.subr.mxu0 0.0
        %2259 = vmatpush1.msra.mxu0 0.0
        %2260 = vmatprep.subr.mxu0 0.0
        %2261 = vmatpush1.msra.mxu0 0.0
        %2262 = vmatprep.subr.mxu0 0.0
        %2263 = vmatpush1.msra.mxu0 0.0
        %2264 = vmatprep.subr.mxu0 0.0
        %2265 = vmatpush1.msra.mxu0 0.0
        %2266 = vmatprep.subr.mxu0 0.0
        %2267 = vmatpush1.msra.mxu0 0.0
        %2268 = vmatprep.subr.mxu0 0.0
        %2269 = vmatpush1.msra.mxu0 0.0
        %2270 = vmatprep.subr.mxu0 0.0
        %2271 = vmatpush1.msra.mxu0 0.0
        %2272 = vmatprep.mubr.f32.mxu0 0.0
        %2273 = vmatmul.mubr.f32.gmra.mrb[0].mxu0 %v2203
        %v2274 = vpop.f32.mrb[0].mxu0
        %v2275 = vadd.f32 0.0, %v2274
        %v2276 = vpop.f32.mrb[0].mxu0
        %2277 = vmatprep.mubr.f32.mxu0 0.0
        %2278 = vmatmul.mubr.f32.gmra.mrb[0].mxu0 %v2206
        %v2279 = vpop.f32.mrb[0].mxu0
        %v2280 = vadd.f32 0.0, %v2279
        %v2281 = vpop.f32.mrb[0].mxu0
        %2282 = vdwg.mxu0
        %v2283 = vpack.c.bf16 %v2280, %v2275
        %v2284 = vld [vmem:[%s9] sm:$0xf]
        %v2285 = vld [vmem:[%s9 + $0x4] sm:$0xf]
        %v2286 = vld [vmem:[%s9 + $0x8] sm:$0xf]
        %v2287 = vld [vmem:[%s9 + $0xc] sm:$0xf]
        %vm2288 = vcmp.eq.s32.totalorder %v2195, 0
        %vm2289 = vcmp.eq.s32.totalorder %v2196, 0
        %v2290 = vsel %vm2288, 1.0, 0.0
        %v2291 = vsel %vm2289, 1.0, 0.0
        %v2293 = vsel %vm2201, %v2290, 0
        %v2296 = vsel %vm2201, %v2291, 0
        %2298 = vmatprep.subr.mxu0 0.0
        %2299 = vmatpush1.msra.mxu0 %v2184
        %2300 = vmatprep.subr.mxu0 0.0
        %2301 = vmatpush1.msra.mxu0 %v2187
        %2302 = vmatprep.subr.mxu0 0.0
        %2303 = vmatpush1.msra.mxu0 0.0
        %2304 = vmatprep.subr.mxu0 0.0
        %2305 = vmatpush1.msra.mxu0 0.0
        %2306 = vmatprep.subr.mxu0 0.0
        %2307 = vmatpush1.msra.mxu0 0.0
        %2308 = vmatprep.subr.mxu0 0.0
        %2309 = vmatpush1.msra.mxu0 0.0
        %2310 = vmatprep.subr.mxu0 0.0
        %2311 = vmatpush1.msra.mxu0 0.0
        %2312 = vmatprep.subr.mxu0 0.0
        %2313 = vmatpush1.msra.mxu0 0.0
        %2314 = vmatprep.subr.mxu0 0.0
        %2315 = vmatpush1.msra.mxu0 0.0
        %2316 = vmatprep.subr.mxu0 0.0
        %2317 = vmatpush1.msra.mxu0 0.0
        %2318 = vmatprep.subr.mxu0 0.0
        %2319 = vmatpush1.msra.mxu0 0.0
        %2320 = vmatprep.subr.mxu0 0.0
        %2321 = vmatpush1.msra.mxu0 0.0
        %2322 = vmatprep.subr.mxu0 0.0
        %2323 = vmatpush1.msra.mxu0 0.0
        %2324 = vmatprep.subr.mxu0 0.0
        %2325 = vmatpush1.msra.mxu0 0.0
        %2326 = vmatprep.subr.mxu0 0.0
        %2327 = vmatpush1.msra.mxu0 0.0
        %2328 = vmatprep.subr.mxu0 0.0
        %2329 = vmatpush1.msra.mxu0 0.0
        %2330 = vmatprep.subr.mxu0 0.0
        %2331 = vmatpush1.msra.mxu0 0.0
        %2332 = vmatprep.subr.mxu0 0.0
        %2333 = vmatpush1.msra.mxu0 0.0
        %2334 = vmatprep.subr.mxu0 0.0
        %2335 = vmatpush1.msra.mxu0 0.0
        %2336 = vmatprep.subr.mxu0 0.0
        %2337 = vmatpush1.msra.mxu0 0.0
        %2338 = vmatprep.subr.mxu0 0.0
        %2339 = vmatpush1.msra.mxu0 0.0
        %2340 = vmatprep.subr.mxu0 0.0
        %2341 = vmatpush1.msra.mxu0 0.0
        %2342 = vmatprep.subr.mxu0 0.0
        %2343 = vmatpush1.msra.mxu0 0.0
        %2344 = vmatprep.subr.mxu0 0.0
        %2345 = vmatpush1.msra.mxu0 0.0
        %2346 = vmatprep.subr.mxu0 0.0
        %2347 = vmatpush1.msra.mxu0 0.0
        %2348 = vmatprep.subr.mxu0 0.0
        %2349 = vmatpush1.msra.mxu0 0.0
        %2350 = vmatprep.subr.mxu0 0.0
        %2351 = vmatpush1.msra.mxu0 0.0
        %2352 = vmatprep.subr.mxu0 0.0
        %2353 = vmatpush1.msra.mxu0 0.0
        %2354 = vmatprep.subr.mxu0 0.0
        %2355 = vmatpush1.msra.mxu0 0.0
        %2356 = vmatprep.subr.mxu0 0.0
        %2357 = vmatpush1.msra.mxu0 0.0
        %2358 = vmatprep.subr.mxu0 0.0
        %2359 = vmatpush1.msra.mxu0 0.0
        %2360 = vmatprep.subr.mxu0 0.0
        %2361 = vmatpush1.msra.mxu0 0.0
        %2362 = vmatprep.mubr.f32.mxu0 0.0
        %2363 = vmatmul.mubr.f32.gmra.mrb[0].mxu0 %v2293
        %v2364 = vpop.f32.mrb[0].mxu0
        %v2365 = vadd.f32 0.0, %v2364
        %v2366 = vpop.f32.mrb[0].mxu0
        %2367 = vmatprep.mubr.f32.mxu0 0.0
        %2368 = vmatmul.mubr.f32.gmra.mrb[0].mxu0 %v2296
        %v2369 = vpop.f32.mrb[0].mxu0
        %v2370 = vadd.f32 0.0, %v2369
        %v2371 = vpop.f32.mrb[0].mxu0
        %2372 = vdwg.mxu0
        %v2373 = vpack.c.bf16 %v2370, %v2365
        %s2374 = scalar_lea.vmem %s9, 16
        %v2375 = vld [vmem:[%s2374] sm:$0xf]
        %v2376 = vld [vmem:[%s2374 + $0x4] sm:$0xf]
        %v2377 = vld [vmem:[%s2374 + $0x8] sm:$0xf]
        %v2378 = vld [vmem:[%s2374 + $0xc] sm:$0xf]
        %v2383 = vunpack.c.l.b16 %v2375
        %v2384 = vunpack.c.l.b16 %v2376
        %v2385 = vunpack.c.l.b16 %v2377
        %v2386 = vunpack.c.l.b16 %v2378
        %v2387 = vpack.c.b16 %v2384, %v2383
        %v2388 = vpack.c.b16 %v2386, %v2385
        %vm2391 = vcmask 261120
        %v2393 = vsel %vm2391, %v2373, 0
        %2395 = vmatprep.subr.bf16.mxu0 0
        %2396 = vmatpush1.bf16.msra.mxu0 %v2387
        %2397 = vmatprep.subr.bf16.mxu0 0
        %2398 = vmatpush1.bf16.msra.mxu0 %v2388
        %2399 = vmatprep.subr.bf16.mxu0 0
        %2400 = vmatpush1.bf16.msra.mxu0 0
        %2401 = vmatprep.subr.bf16.mxu0 0
        %2402 = vmatpush1.bf16.msra.mxu0 0
        %2403 = vmatprep.subr.bf16.mxu0 0
        %2404 = vmatpush1.bf16.msra.mxu0 0
        %2405 = vmatprep.subr.bf16.mxu0 0
        %2406 = vmatpush1.bf16.msra.mxu0 0
        %2407 = vmatprep.subr.bf16.mxu0 0
        %2408 = vmatpush1.bf16.msra.mxu0 0
        %2409 = vmatprep.subr.bf16.mxu0 0
        %2410 = vmatpush1.bf16.msra.mxu0 0
        %2411 = vmatprep.subr.bf16.mxu0 0
        %2412 = vmatpush1.bf16.msra.mxu0 0
        %2413 = vmatprep.subr.bf16.mxu0 0
        %2414 = vmatpush1.bf16.msra.mxu0 0
        %2415 = vmatprep.subr.bf16.mxu0 0
        %2416 = vmatpush1.bf16.msra.mxu0 0
        %2417 = vmatprep.subr.bf16.mxu0 0
        %2418 = vmatpush1.bf16.msra.mxu0 0
        %2419 = vmatprep.subr.bf16.mxu0 0
        %2420 = vmatpush1.bf16.msra.mxu0 0
        %2421 = vmatprep.subr.bf16.mxu0 0
        %2422 = vmatpush1.bf16.msra.mxu0 0
        %2423 = vmatprep.subr.bf16.mxu0 0
        %2424 = vmatpush1.bf16.msra.mxu0 0
        %2425 = vmatprep.subr.bf16.mxu0 0
        %2426 = vmatpush1.bf16.msra.mxu0 0
        %2427 = vmatprep.mubr.bf16.mxu0 0
        %2428 = vmatmul.mubr.bf16.gmra.mrb[0].mxu0 %v2393
        %v2429 = vpop.f32.mrb[0].mxu0
        %v2430 = vadd.f32 0.0, %v2429
        %v2431 = vpop.f32.mrb[0].mxu0
        %v2432 = vpop.f32.mrb[0].mxu0
        %v2433 = vadd.f32 0.0, %v2432
        %v2434 = vpop.f32.mrb[0].mxu0
        %2435 = vdwg.mxu0
        %v2440 = vunpack.c.l.b16 %v2284
        %v2441 = vunpack.c.l.b16 %v2285
        %v2442 = vunpack.c.l.b16 %v2286
        %v2443 = vunpack.c.l.b16 %v2287
        %v2444 = vpack.c.b16 %v2441, %v2440
        %v2445 = vpack.c.b16 %v2443, %v2442
        %v2449 = vsel %vm2391, %v2283, 0
        %2451 = vmatprep.subr.bf16.mxu0 0
        %2452 = vmatpush1.bf16.msra.mxu0 %v2444
        %2453 = vmatprep.subr.bf16.mxu0 0
        %2454 = vmatpush1.bf16.msra.mxu0 %v2445
        %2455 = vmatprep.subr.bf16.mxu0 0
        %2456 = vmatpush1.bf16.msra.mxu0 0
        %2457 = vmatprep.subr.bf16.mxu0 0
        %2458 = vmatpush1.bf16.msra.mxu0 0
        %2459 = vmatprep.subr.bf16.mxu0 0
        %2460 = vmatpush1.bf16.msra.mxu0 0
        %2461 = vmatprep.subr.bf16.mxu0 0
        %2462 = vmatpush1.bf16.msra.mxu0 0
        %2463 = vmatprep.subr.bf16.mxu0 0
        %2464 = vmatpush1.bf16.msra.mxu0 0
        %2465 = vmatprep.subr.bf16.mxu0 0
        %2466 = vmatpush1.bf16.msra.mxu0 0
        %2467 = vmatprep.subr.bf16.mxu0 0
        %2468 = vmatpush1.bf16.msra.mxu0 0
        %2469 = vmatprep.subr.bf16.mxu0 0
        %2470 = vmatpush1.bf16.msra.mxu0 0
        %2471 = vmatprep.subr.bf16.mxu0 0
        %2472 = vmatpush1.bf16.msra.mxu0 0
        %2473 = vmatprep.subr.bf16.mxu0 0
        %2474 = vmatpush1.bf16.msra.mxu0 0
        %2475 = vmatprep.subr.bf16.mxu0 0
        %2476 = vmatpush1.bf16.msra.mxu0 0
        %2477 = vmatprep.subr.bf16.mxu0 0
        %2478 = vmatpush1.bf16.msra.mxu0 0
        %2479 = vmatprep.subr.bf16.mxu0 0
        %2480 = vmatpush1.bf16.msra.mxu0 0
        %2481 = vmatprep.subr.bf16.mxu0 0
        %2482 = vmatpush1.bf16.msra.mxu0 0
        %2483 = vmatprep.mubr.bf16.mxu0 0
        %2484 = vmatmul.mubr.bf16.gmra.mrb[0].mxu0 %v2449
        %v2485 = vpop.f32.mrb[0].mxu0
        %v2486 = vadd.f32 %v2430, %v2485
        %v2487 = vpop.f32.mrb[0].mxu0
        %v2488 = vpop.f32.mrb[0].mxu0
        %v2489 = vadd.f32 %v2433, %v2488
        %v2490 = vpop.f32.mrb[0].mxu0
        %2491 = vdwg.mxu0
        %vm2492 = vcmp.eq.s32.totalorder %v2195, 1
        %vm2493 = vcmp.eq.s32.totalorder %v2196, 1
        %v2494 = vsel %vm2492, 1.0, 0.0
        %v2495 = vsel %vm2493, 1.0, 0.0
        %v2497 = vsel %vm2201, %v2494, 0
        %v2500 = vsel %vm2201, %v2495, 0
        %2502 = vmatprep.subr.mxu0 0.0
        %2503 = vmatpush1.msra.mxu0 %v2184
        %2504 = vmatprep.subr.mxu0 0.0
        %2505 = vmatpush1.msra.mxu0 %v2187
        %2506 = vmatprep.subr.mxu0 0.0
        %2507 = vmatpush1.msra.mxu0 0.0
        %2508 = vmatprep.subr.mxu0 0.0
        %2509 = vmatpush1.msra.mxu0 0.0
        %2510 = vmatprep.subr.mxu0 0.0
        %2511 = vmatpush1.msra.mxu0 0.0
        %2512 = vmatprep.subr.mxu0 0.0
        %2513 = vmatpush1.msra.mxu0 0.0
        %2514 = vmatprep.subr.mxu0 0.0
        %2515 = vmatpush1.msra.mxu0 0.0
        %2516 = vmatprep.subr.mxu0 0.0
        %2517 = vmatpush1.msra.mxu0 0.0
        %2518 = vmatprep.subr.mxu0 0.0
        %2519 = vmatpush1.msra.mxu0 0.0
        %2520 = vmatprep.subr.mxu0 0.0
        %2521 = vmatpush1.msra.mxu0 0.0
        %2522 = vmatprep.subr.mxu0 0.0
        %2523 = vmatpush1.msra.mxu0 0.0
        %2524 = vmatprep.subr.mxu0 0.0
        %2525 = vmatpush1.msra.mxu0 0.0
        %2526 = vmatprep.subr.mxu0 0.0
        %2527 = vmatpush1.msra.mxu0 0.0
        %2528 = vmatprep.subr.mxu0 0.0
        %2529 = vmatpush1.msra.mxu0 0.0
        %2530 = vmatprep.subr.mxu0 0.0
        %2531 = vmatpush1.msra.mxu0 0.0
        %2532 = vmatprep.subr.mxu0 0.0
        %2533 = vmatpush1.msra.mxu0 0.0
        %2534 = vmatprep.subr.mxu0 0.0
        %2535 = vmatpush1.msra.mxu0 0.0
        %2536 = vmatprep.subr.mxu0 0.0
        %2537 = vmatpush1.msra.mxu0 0.0
        %2538 = vmatprep.subr.mxu0 0.0
        %2539 = vmatpush1.msra.mxu0 0.0
        %2540 = vmatprep.subr.mxu0 0.0
        %2541 = vmatpush1.msra.mxu0 0.0
        %2542 = vmatprep.subr.mxu0 0.0
        %2543 = vmatpush1.msra.mxu0 0.0
        %2544 = vmatprep.subr.mxu0 0.0
        %2545 = vmatpush1.msra.mxu0 0.0
        %2546 = vmatprep.subr.mxu0 0.0
        %2547 = vmatpush1.msra.mxu0 0.0
        %2548 = vmatprep.subr.mxu0 0.0
        %2549 = vmatpush1.msra.mxu0 0.0
        %2550 = vmatprep.subr.mxu0 0.0
        %2551 = vmatpush1.msra.mxu0 0.0
        %2552 = vmatprep.subr.mxu0 0.0
        %2553 = vmatpush1.msra.mxu0 0.0
        %2554 = vmatprep.subr.mxu0 0.0
        %2555 = vmatpush1.msra.mxu0 0.0
        %2556 = vmatprep.subr.mxu0 0.0
        %2557 = vmatpush1.msra.mxu0 0.0
        %2558 = vmatprep.subr.mxu0 0.0
        %2559 = vmatpush1.msra.mxu0 0.0
        %2560 = vmatprep.subr.mxu0 0.0
        %2561 = vmatpush1.msra.mxu0 0.0
        %2562 = vmatprep.subr.mxu0 0.0
        %2563 = vmatpush1.msra.mxu0 0.0
        %2564 = vmatprep.subr.mxu0 0.0
        %2565 = vmatpush1.msra.mxu0 0.0
        %2566 = vmatprep.mubr.f32.mxu0 0.0
        %2567 = vmatmul.mubr.f32.gmra.mrb[0].mxu0 %v2497
        %v2568 = vpop.f32.mrb[0].mxu0
        %v2569 = vadd.f32 0.0, %v2568
        %v2570 = vpop.f32.mrb[0].mxu0
        %2571 = vmatprep.mubr.f32.mxu0 0.0
        %2572 = vmatmul.mubr.f32.gmra.mrb[0].mxu0 %v2500
        %v2573 = vpop.f32.mrb[0].mxu0
        %v2574 = vadd.f32 0.0, %v2573
        %v2575 = vpop.f32.mrb[0].mxu0
        %2576 = vdwg.mxu0
        %v2577 = vpack.c.bf16 %v2574, %v2569
        %s2578 = scalar_lea.vmem %s9, 32
        %v2579 = vld [vmem:[%s2578] sm:$0xf]
        %v2580 = vld [vmem:[%s2578 + $0x4] sm:$0xf]
        %v2581 = vld [vmem:[%s2578 + $0x8] sm:$0xf]
        %v2582 = vld [vmem:[%s2578 + $0xc] sm:$0xf]
        %v2587 = vunpack.c.l.b16 %v2579
        %v2588 = vunpack.c.l.b16 %v2580
        %v2589 = vunpack.c.l.b16 %v2581
        %v2590 = vunpack.c.l.b16 %v2582
        %v2591 = vpack.c.b16 %v2588, %v2587
        %v2592 = vpack.c.b16 %v2590, %v2589
        %v2596 = vsel %vm2391, %v2577, 0
        %2598 = vmatprep.subr.bf16.mxu0 0
        %2599 = vmatpush1.bf16.msra.mxu0 %v2591
        %2600 = vmatprep.subr.bf16.mxu0 0
        %2601 = vmatpush1.bf16.msra.mxu0 %v2592
        %2602 = vmatprep.subr.bf16.mxu0 0
        %2603 = vmatpush1.bf16.msra.mxu0 0
        %2604 = vmatprep.subr.bf16.mxu0 0
        %2605 = vmatpush1.bf16.msra.mxu0 0
        %2606 = vmatprep.subr.bf16.mxu0 0
        %2607 = vmatpush1.bf16.msra.mxu0 0
        %2608 = vmatprep.subr.bf16.mxu0 0
        %2609 = vmatpush1.bf16.msra.mxu0 0
        %2610 = vmatprep.subr.bf16.mxu0 0
        %2611 = vmatpush1.bf16.msra.mxu0 0
        %2612 = vmatprep.subr.bf16.mxu0 0
        %2613 = vmatpush1.bf16.msra.mxu0 0
        %2614 = vmatprep.subr.bf16.mxu0 0
        %2615 = vmatpush1.bf16.msra.mxu0 0
        %2616 = vmatprep.subr.bf16.mxu0 0
        %2617 = vmatpush1.bf16.msra.mxu0 0
        %2618 = vmatprep.subr.bf16.mxu0 0
        %2619 = vmatpush1.bf16.msra.mxu0 0
        %2620 = vmatprep.subr.bf16.mxu0 0
        %2621 = vmatpush1.bf16.msra.mxu0 0
        %2622 = vmatprep.subr.bf16.mxu0 0
        %2623 = vmatpush1.bf16.msra.mxu0 0
        %2624 = vmatprep.subr.bf16.mxu0 0
        %2625 = vmatpush1.bf16.msra.mxu0 0
        %2626 = vmatprep.subr.bf16.mxu0 0
        %2627 = vmatpush1.bf16.msra.mxu0 0
        %2628 = vmatprep.subr.bf16.mxu0 0
        %2629 = vmatpush1.bf16.msra.mxu0 0
        %2630 = vmatprep.mubr.bf16.mxu0 0
        %2631 = vmatmul.mubr.bf16.gmra.mrb[0].mxu0 %v2596
        %v2632 = vpop.f32.mrb[0].mxu0
        %v2633 = vadd.f32 0.0, %v2632
        %v2634 = vpop.f32.mrb[0].mxu0
        %v2635 = vpop.f32.mrb[0].mxu0
        %v2636 = vadd.f32 0.0, %v2635
        %v2637 = vpop.f32.mrb[0].mxu0
        %2638 = vdwg.mxu0
        %v2639 = vadd.f32 %v2486, %v2633
        %v2640 = vadd.f32 %v2489, %v2636
        %v2641 = vld [vmem:[%s11] sm:$0x1]
        %v2643 = vlaneseq
        %v2644 = vshrl.u32 %v2643, 7
        %v2645 = vsub.s32 0, %v2644
        %v2646 = vrot.slane %v2641, %v2645
        %v2648 = vadd.f32 %v2639, %v2646
        %v2649 = vadd.f32 %v2640, %v2646
        %v2650 = vld [vmem:[%s17] sm:$0x1]
        %v2652 = vlaneseq
        %v2653 = vshrl.u32 %v2652, 7
        %v2654 = vsub.s32 0, %v2653
        %v2655 = vrot.slane %v2650, %v2654
        %v2657 = vsub.f32 %v2648, %v2655
        %v2658 = vsub.f32 %v2649, %v2655
        %v2659 = vld [vmem:[%s19] sm:$0x1]
        %v2660 = vadd.f32 %v2659, 1e-05
        %v2661 = vrsqrt.pop %v2660
        %v2663 = vlaneseq
        %v2664 = vshrl.u32 %v2663, 7
        %v2665 = vsub.s32 0, %v2664
        %v2666 = vrot.slane %v2661, %v2665
        %v2668 = vmul.f32 %v2657, %v2666
        %v2669 = vmul.f32 %v2658, %v2666
        %v2670 = vld [vmem:[%s13] sm:$0x1]
        %v2672 = vlaneseq
        %v2673 = vshrl.u32 %v2672, 7
        %v2674 = vsub.s32 0, %v2673
        %v2675 = vrot.slane %v2670, %v2674
        %v2677 = vmul.f32 %v2668, %v2675
        %v2678 = vmul.f32 %v2669, %v2675
        %v2679 = vld [vmem:[%s15] sm:$0x1]
        %v2681 = vlaneseq
        %v2682 = vshrl.u32 %v2681, 7
        %v2683 = vsub.s32 0, %v2682
        %v2684 = vrot.slane %v2679, %v2683
        %v2686 = vadd.f32 %v2677, %v2684
        %v2687 = vadd.f32 %v2678, %v2684
        %v2688 = vmul.f32 %v2686, 0.5
        %v2689 = vmul.f32 %v2687, 0.5
        %v2690 = vmul.f32 %v2686, 0.044715
        %v2691 = vmul.f32 %v2687, 0.044715
        %v2692 = vmul.f32 %v2690, %v2686
        %v2693 = vmul.f32 %v2691, %v2687
        %v2694 = vmul.f32 %v2692, %v2686
        %v2695 = vmul.f32 %v2693, %v2687
        %v2696 = vadd.f32 %v2686, %v2694
        %v2697 = vadd.f32 %v2687, %v2695
        %v2698 = vmul.f32 %v2696, 0.7978846
        %v2699 = vmul.f32 %v2697, 0.7978846
        %v2700 = vtanh.pop %v2698
        %v2701 = vtanh.pop %v2699
        %v2702 = vadd.f32 %v2700, 1.0
        %v2703 = vadd.f32 %v2701, 1.0
        %v2704 = vmul.f32 %v2688, %v2702
        %v2705 = vmul.f32 %v2689, %v2703
        %vm2706 = vcmp.eq.s32.totalorder %v2195, 4294967294
        %vm2707 = vcmp.eq.s32.totalorder %v2196, 4294967294
        %v2708 = vsel %vm2706, 1.0, 0.0
        %v2709 = vsel %vm2707, 1.0, 0.0
        %v2711 = vsel %vm2201, %v2708, 0
        %v2714 = vsel %vm2201, %v2709, 0
        %2716 = vmatprep.subr.mxu0 0.0
        %2717 = vmatpush1.msra.mxu0 %v2704
        %2718 = vmatprep.subr.mxu0 0.0
        %2719 = vmatpush1.msra.mxu0 %v2705
        %2720 = vmatprep.subr.mxu0 0.0
        %2721 = vmatpush1.msra.mxu0 0.0
        %2722 = vmatprep.subr.mxu0 0.0
        %2723 = vmatpush1.msra.mxu0 0.0
        %2724 = vmatprep.subr.mxu0 0.0
        %2725 = vmatpush1.msra.mxu0 0.0
        %2726 = vmatprep.subr.mxu0 0.0
        %2727 = vmatpush1.msra.mxu0 0.0
        %2728 = vmatprep.subr.mxu0 0.0
        %2729 = vmatpush1.msra.mxu0 0.0
        %2730 = vmatprep.subr.mxu0 0.0
        %2731 = vmatpush1.msra.mxu0 0.0
        %2732 = vmatprep.subr.mxu0 0.0
        %2733 = vmatpush1.msra.mxu0 0.0
        %2734 = vmatprep.subr.mxu0 0.0
        %2735 = vmatpush1.msra.mxu0 0.0
        %2736 = vmatprep.subr.mxu0 0.0
        %2737 = vmatpush1.msra.mxu0 0.0
        %2738 = vmatprep.subr.mxu0 0.0
        %2739 = vmatpush1.msra.mxu0 0.0
        %2740 = vmatprep.subr.mxu0 0.0
        %2741 = vmatpush1.msra.mxu0 0.0
        %2742 = vmatprep.subr.mxu0 0.0
        %2743 = vmatpush1.msra.mxu0 0.0
        %2744 = vmatprep.subr.mxu0 0.0
        %2745 = vmatpush1.msra.mxu0 0.0
        %2746 = vmatprep.subr.mxu0 0.0
        %2747 = vmatpush1.msra.mxu0 0.0
        %2748 = vmatprep.subr.mxu0 0.0
        %2749 = vmatpush1.msra.mxu0 0.0
        %2750 = vmatprep.subr.mxu0 0.0
        %2751 = vmatpush1.msra.mxu0 0.0
        %2752 = vmatprep.subr.mxu0 0.0
        %2753 = vmatpush1.msra.mxu0 0.0
        %2754 = vmatprep.subr.mxu0 0.0
        %2755 = vmatpush1.msra.mxu0 0.0
        %2756 = vmatprep.subr.mxu0 0.0
        %2757 = vmatpush1.msra.mxu0 0.0
        %2758 = vmatprep.subr.mxu0 0.0
        %2759 = vmatpush1.msra.mxu0 0.0
        %2760 = vmatprep.subr.mxu0 0.0
        %2761 = vmatpush1.msra.mxu0 0.0
        %2762 = vmatprep.subr.mxu0 0.0
        %2763 = vmatpush1.msra.mxu0 0.0
        %2764 = vmatprep.subr.mxu0 0.0
        %2765 = vmatpush1.msra.mxu0 0.0
        %2766 = vmatprep.subr.mxu0 0.0
        %2767 = vmatpush1.msra.mxu0 0.0
        %2768 = vmatprep.subr.mxu0 0.0
        %2769 = vmatpush1.msra.mxu0 0.0
        %2770 = vmatprep.subr.mxu0 0.0
        %2771 = vmatpush1.msra.mxu0 0.0
        %2772 = vmatprep.subr.mxu0 0.0
        %2773 = vmatpush1.msra.mxu0 0.0
        %2774 = vmatprep.subr.mxu0 0.0
        %2775 = vmatpush1.msra.mxu0 0.0
        %2776 = vmatprep.subr.mxu0 0.0
        %2777 = vmatpush1.msra.mxu0 0.0
        %2778 = vmatprep.subr.mxu0 0.0
        %2779 = vmatpush1.msra.mxu0 0.0
        %2780 = vmatprep.mubr.f32.mxu0 0.0
        %2781 = vmatmul.mubr.f32.gmra.mrb[0].mxu0 %v2711
        %v2782 = vpop.f32.mrb[0].mxu0
        %v2783 = vadd.f32 0.0, %v2782
        %v2784 = vpop.f32.mrb[0].mxu0
        %2785 = vmatprep.mubr.f32.mxu0 0.0
        %2786 = vmatmul.mubr.f32.gmra.mrb[0].mxu0 %v2714
        %v2787 = vpop.f32.mrb[0].mxu0
        %v2788 = vadd.f32 0.0, %v2787
        %v2789 = vpop.f32.mrb[0].mxu0
        %2790 = vdwg.mxu0
        %v2791 = vpack.c.bf16 %v2788, %v2783
        %v2792 = vld [vmem:[%s21] sm:$0xf]
        %v2793 = vld [vmem:[%s21 + $0x4] sm:$0xf]
        %2794 = vmatprep.subr.mxu0 0.0
        %2795 = vmatpush1.msra.mxu0 %v2704
        %2796 = vmatprep.subr.mxu0 0.0
        %2797 = vmatpush1.msra.mxu0 %v2705
        %2798 = vmatprep.subr.mxu0 0.0
        %2799 = vmatpush1.msra.mxu0 0.0
        %2800 = vmatprep.subr.mxu0 0.0
        %2801 = vmatpush1.msra.mxu0 0.0
        %2802 = vmatprep.subr.mxu0 0.0
        %2803 = vmatpush1.msra.mxu0 0.0
        %2804 = vmatprep.subr.mxu0 0.0
        %2805 = vmatpush1.msra.mxu0 0.0
        %2806 = vmatprep.subr.mxu0 0.0
        %2807 = vmatpush1.msra.mxu0 0.0
        %2808 = vmatprep.subr.mxu0 0.0
        %2809 = vmatpush1.msra.mxu0 0.0
        %2810 = vmatprep.subr.mxu0 0.0
        %2811 = vmatpush1.msra.mxu0 0.0
        %2812 = vmatprep.subr.mxu0 0.0
        %2813 = vmatpush1.msra.mxu0 0.0
        %2814 = vmatprep.subr.mxu0 0.0
        %2815 = vmatpush1.msra.mxu0 0.0
        %2816 = vmatprep.subr.mxu0 0.0
        %2817 = vmatpush1.msra.mxu0 0.0
        %2818 = vmatprep.subr.mxu0 0.0
        %2819 = vmatpush1.msra.mxu0 0.0
        %2820 = vmatprep.subr.mxu0 0.0
        %2821 = vmatpush1.msra.mxu0 0.0
        %2822 = vmatprep.subr.mxu0 0.0
        %2823 = vmatpush1.msra.mxu0 0.0
        %2824 = vmatprep.subr.mxu0 0.0
        %2825 = vmatpush1.msra.mxu0 0.0
        %2826 = vmatprep.subr.mxu0 0.0
        %2827 = vmatpush1.msra.mxu0 0.0
        %2828 = vmatprep.subr.mxu0 0.0
        %2829 = vmatpush1.msra.mxu0 0.0
        %2830 = vmatprep.subr.mxu0 0.0
        %2831 = vmatpush1.msra.mxu0 0.0
        %2832 = vmatprep.subr.mxu0 0.0
        %2833 = vmatpush1.msra.mxu0 0.0
        %2834 = vmatprep.subr.mxu0 0.0
        %2835 = vmatpush1.msra.mxu0 0.0
        %2836 = vmatprep.subr.mxu0 0.0
        %2837 = vmatpush1.msra.mxu0 0.0
        %2838 = vmatprep.subr.mxu0 0.0
        %2839 = vmatpush1.msra.mxu0 0.0
        %2840 = vmatprep.subr.mxu0 0.0
        %2841 = vmatpush1.msra.mxu0 0.0
        %2842 = vmatprep.subr.mxu0 0.0
        %2843 = vmatpush1.msra.mxu0 0.0
        %2844 = vmatprep.subr.mxu0 0.0
        %2845 = vmatpush1.msra.mxu0 0.0
        %2846 = vmatprep.subr.mxu0 0.0
        %2847 = vmatpush1.msra.mxu0 0.0
        %2848 = vmatprep.subr.mxu0 0.0
        %2849 = vmatpush1.msra.mxu0 0.0
        %2850 = vmatprep.subr.mxu0 0.0
        %2851 = vmatpush1.msra.mxu0 0.0
        %2852 = vmatprep.subr.mxu0 0.0
        %2853 = vmatpush1.msra.mxu0 0.0
        %2854 = vmatprep.subr.mxu0 0.0
        %2855 = vmatpush1.msra.mxu0 0.0
        %2856 = vmatprep.subr.mxu0 0.0
        %2857 = vmatpush1.msra.mxu0 0.0
        %2858 = vmatprep.mubr.f32.mxu0 0.0
        %2859 = vmatmul.mubr.f32.gmra.mrb[0].mxu0 %v2203
        %v2860 = vpop.f32.mrb[0].mxu0
        %v2861 = vadd.f32 0.0, %v2860
        %v2862 = vpop.f32.mrb[0].mxu0
        %2863 = vmatprep.mubr.f32.mxu0 0.0
        %2864 = vmatmul.mubr.f32.gmra.mrb[0].mxu0 %v2206
        %v2865 = vpop.f32.mrb[0].mxu0
        %v2866 = vadd.f32 0.0, %v2865
        %v2867 = vpop.f32.mrb[0].mxu0
        %2868 = vdwg.mxu0
        %v2869 = vpack.c.bf16 %v2866, %v2861
        %s2870 = scalar_lea.vmem %s21, 8
        %v2871 = vld [vmem:[%s2870] sm:$0xf]
        %v2872 = vld [vmem:[%s2870 + $0x4] sm:$0xf]
        %v2875 = vunpack.c.l.b16 %v2871
        %v2876 = vunpack.c.l.b16 %v2872
        %v2877 = vpack.c.b16 %v2876, %v2875
        %v2880 = vsel %vm2201, %v2869, 0
        %2882 = vmatprep.subr.bf16.mxu0 0
        %2883 = vmatpush1.bf16.msra.mxu0 %v2877
        %2884 = vmatprep.subr.bf16.mxu0 0
        %2885 = vmatpush1.bf16.msra.mxu0 0
        %2886 = vmatprep.subr.bf16.mxu0 0
        %2887 = vmatpush1.bf16.msra.mxu0 0
        %2888 = vmatprep.subr.bf16.mxu0 0
        %2889 = vmatpush1.bf16.msra.mxu0 0
        %2890 = vmatprep.subr.bf16.mxu0 0
        %2891 = vmatpush1.bf16.msra.mxu0 0
        %2892 = vmatprep.subr.bf16.mxu0 0
        %2893 = vmatpush1.bf16.msra.mxu0 0
        %2894 = vmatprep.subr.bf16.mxu0 0
        %2895 = vmatpush1.bf16.msra.mxu0 0
        %2896 = vmatprep.subr.bf16.mxu0 0
        %2897 = vmatpush1.bf16.msra.mxu0 0
        %2898 = vmatprep.subr.bf16.mxu0 0
        %2899 = vmatpush1.bf16.msra.mxu0 0
        %2900 = vmatprep.subr.bf16.mxu0 0
        %2901 = vmatpush1.bf16.msra.mxu0 0
        %2902 = vmatprep.subr.bf16.mxu0 0
        %2903 = vmatpush1.bf16.msra.mxu0 0
        %2904 = vmatprep.subr.bf16.mxu0 0
        %2905 = vmatpush1.bf16.msra.mxu0 0
        %2906 = vmatprep.subr.bf16.mxu0 0
        %2907 = vmatpush1.bf16.msra.mxu0 0
        %2908 = vmatprep.subr.bf16.mxu0 0
        %2909 = vmatpush1.bf16.msra.mxu0 0
        %2910 = vmatprep.subr.bf16.mxu0 0
        %2911 = vmatpush1.bf16.msra.mxu0 0
        %2912 = vmatprep.subr.bf16.mxu0 0
        %2913 = vmatpush1.bf16.msra.mxu0 0
        %2914 = vmatprep.mubr.bf16.mxu0 0
        %2915 = vmatmul.mubr.bf16.gmra.mrb[0].mxu0 %v2880
        %v2916 = vpop.f32.mrb[0].mxu0
        %v2917 = vadd.f32 0.0, %v2916
        %v2918 = vpop.f32.mrb[0].mxu0
        %v2919 = vpop.f32.mrb[0].mxu0
        %v2920 = vadd.f32 0.0, %v2919
        %v2921 = vpop.f32.mrb[0].mxu0
        %2922 = vdwg.mxu0
        %v2925 = vunpack.c.l.b16 %v2792
        %v2926 = vunpack.c.l.b16 %v2793
        %v2927 = vpack.c.b16 %v2926, %v2925
        %v2930 = vsel %vm2201, %v2791, 0
        %2932 = vmatprep.subr.bf16.mxu0 0
        %2933 = vmatpush1.bf16.msra.mxu0 %v2927
        %2934 = vmatprep.subr.bf16.mxu0 0
        %2935 = vmatpush1.bf16.msra.mxu0 0
        %2936 = vmatprep.subr.bf16.mxu0 0
        %2937 = vmatpush1.bf16.msra.mxu0 0
        %2938 = vmatprep.subr.bf16.mxu0 0
        %2939 = vmatpush1.bf16.msra.mxu0 0
        %2940 = vmatprep.subr.bf16.mxu0 0
        %2941 = vmatpush1.bf16.msra.mxu0 0
        %2942 = vmatprep.subr.bf16.mxu0 0
        %2943 = vmatpush1.bf16.msra.mxu0 0
        %2944 = vmatprep.subr.bf16.mxu0 0
        %2945 = vmatpush1.bf16.msra.mxu0 0
        %2946 = vmatprep.subr.bf16.mxu0 0
        %2947 = vmatpush1.bf16.msra.mxu0 0
        %2948 = vmatprep.subr.bf16.mxu0 0
        %2949 = vmatpush1.bf16.msra.mxu0 0
        %2950 = vmatprep.subr.bf16.mxu0 0
        %2951 = vmatpush1.bf16.msra.mxu0 0
        %2952 = vmatprep.subr.bf16.mxu0 0
        %2953 = vmatpush1.bf16.msra.mxu0 0
        %2954 = vmatprep.subr.bf16.mxu0 0
        %2955 = vmatpush1.bf16.msra.mxu0 0
        %2956 = vmatprep.subr.bf16.mxu0 0
        %2957 = vmatpush1.bf16.msra.mxu0 0
        %2958 = vmatprep.subr.bf16.mxu0 0
        %2959 = vmatpush1.bf16.msra.mxu0 0
        %2960 = vmatprep.subr.bf16.mxu0 0
        %2961 = vmatpush1.bf16.msra.mxu0 0
        %2962 = vmatprep.subr.bf16.mxu0 0
        %2963 = vmatpush1.bf16.msra.mxu0 0
        %2964 = vmatprep.mubr.bf16.mxu0 0
        %2965 = vmatmul.mubr.bf16.gmra.mrb[0].mxu0 %v2930
        %v2966 = vpop.f32.mrb[0].mxu0
        %v2967 = vadd.f32 %v2917, %v2966
        %v2968 = vpop.f32.mrb[0].mxu0
        %v2969 = vpop.f32.mrb[0].mxu0
        %v2970 = vadd.f32 %v2920, %v2969
        %v2971 = vpop.f32.mrb[0].mxu0
        %2972 = vdwg.mxu0
        %2973 = vmatprep.subr.mxu0 0.0
        %2974 = vmatpush1.msra.mxu0 %v2704
        %2975 = vmatprep.subr.mxu0 0.0
        %2976 = vmatpush1.msra.mxu0 %v2705
        %2977 = vmatprep.subr.mxu0 0.0
        %2978 = vmatpush1.msra.mxu0 0.0
        %2979 = vmatprep.subr.mxu0 0.0
        %2980 = vmatpush1.msra.mxu0 0.0
        %2981 = vmatprep.subr.mxu0 0.0
        %2982 = vmatpush1.msra.mxu0 0.0
        %2983 = vmatprep.subr.mxu0 0.0
        %2984 = vmatpush1.msra.mxu0 0.0
        %2985 = vmatprep.subr.mxu0 0.0
        %2986 = vmatpush1.msra.mxu0 0.0
        %2987 = vmatprep.subr.mxu0 0.0
        %2988 = vmatpush1.msra.mxu0 0.0
        %2989 = vmatprep.subr.mxu0 0.0
        %2990 = vmatpush1.msra.mxu0 0.0
        %2991 = vmatprep.subr.mxu0 0.0
        %2992 = vmatpush1.msra.mxu0 0.0
        %2993 = vmatprep.subr.mxu0 0.0
        %2994 = vmatpush1.msra.mxu0 0.0
        %2995 = vmatprep.subr.mxu0 0.0
        %2996 = vmatpush1.msra.mxu0 0.0
        %2997 = vmatprep.subr.mxu0 0.0
        %2998 = vmatpush1.msra.mxu0 0.0
        %2999 = vmatprep.subr.mxu0 0.0
        %3000 = vmatpush1.msra.mxu0 0.0
        %3001 = vmatprep.subr.mxu0 0.0
        %3002 = vmatpush1.msra.mxu0 0.0
        %3003 = vmatprep.subr.mxu0 0.0
        %3004 = vmatpush1.msra.mxu0 0.0
        %3005 = vmatprep.subr.mxu0 0.0
        %3006 = vmatpush1.msra.mxu0 0.0
        %3007 = vmatprep.subr.mxu0 0.0
        %3008 = vmatpush1.msra.mxu0 0.0
        %3009 = vmatprep.subr.mxu0 0.0
        %3010 = vmatpush1.msra.mxu0 0.0
        %3011 = vmatprep.subr.mxu0 0.0
        %3012 = vmatpush1.msra.mxu0 0.0
        %3013 = vmatprep.subr.mxu0 0.0
        %3014 = vmatpush1.msra.mxu0 0.0
        %3015 = vmatprep.subr.mxu0 0.0
        %3016 = vmatpush1.msra.mxu0 0.0
        %3017 = vmatprep.subr.mxu0 0.0
        %3018 = vmatpush1.msra.mxu0 0.0
        %3019 = vmatprep.subr.mxu0 0.0
        %3020 = vmatpush1.msra.mxu0 0.0
        %3021 = vmatprep.subr.mxu0 0.0
        %3022 = vmatpush1.msra.mxu0 0.0
        %3023 = vmatprep.subr.mxu0 0.0
        %3024 = vmatpush1.msra.mxu0 0.0
        %3025 = vmatprep.subr.mxu0 0.0
        %3026 = vmatpush1.msra.mxu0 0.0
        %3027 = vmatprep.subr.mxu0 0.0
        %3028 = vmatpush1.msra.mxu0 0.0
        %3029 = vmatprep.subr.mxu0 0.0
        %3030 = vmatpush1.msra.mxu0 0.0
        %3031 = vmatprep.subr.mxu0 0.0
        %3032 = vmatpush1.msra.mxu0 0.0
        %3033 = vmatprep.subr.mxu0 0.0
        %3034 = vmatpush1.msra.mxu0 0.0
        %3035 = vmatprep.subr.mxu0 0.0
        %3036 = vmatpush1.msra.mxu0 0.0
        %3037 = vmatprep.mubr.f32.mxu0 0.0
        %3038 = vmatmul.mubr.f32.gmra.mrb[0].mxu0 %v2293
        %v3039 = vpop.f32.mrb[0].mxu0
        %v3040 = vadd.f32 0.0, %v3039
        %v3041 = vpop.f32.mrb[0].mxu0
        %3042 = vmatprep.mubr.f32.mxu0 0.0
        %3043 = vmatmul.mubr.f32.gmra.mrb[0].mxu0 %v2296
        %v3044 = vpop.f32.mrb[0].mxu0
        %v3045 = vadd.f32 0.0, %v3044
        %v3046 = vpop.f32.mrb[0].mxu0
        %3047 = vdwg.mxu0
        %v3048 = vpack.c.bf16 %v3045, %v3040
        %s3049 = scalar_lea.vmem %s21, 16
        %v3050 = vld [vmem:[%s3049] sm:$0xf]
        %v3051 = vld [vmem:[%s3049 + $0x4] sm:$0xf]
        %v3054 = vunpack.c.l.b16 %v3050
        %v3055 = vunpack.c.l.b16 %v3051
        %v3056 = vpack.c.b16 %v3055, %v3054
        %v3059 = vsel %vm2201, %v3048, 0
        %3061 = vmatprep.subr.bf16.mxu0 0
        %3062 = vmatpush1.bf16.msra.mxu0 %v3056
        %3063 = vmatprep.subr.bf16.mxu0 0
        %3064 = vmatpush1.bf16.msra.mxu0 0
        %3065 = vmatprep.subr.bf16.mxu0 0
        %3066 = vmatpush1.bf16.msra.mxu0 0
        %3067 = vmatprep.subr.bf16.mxu0 0
        %3068 = vmatpush1.bf16.msra.mxu0 0
        %3069 = vmatprep.subr.bf16.mxu0 0
        %3070 = vmatpush1.bf16.msra.mxu0 0
        %3071 = vmatprep.subr.bf16.mxu0 0
        %3072 = vmatpush1.bf16.msra.mxu0 0
        %3073 = vmatprep.subr.bf16.mxu0 0
        %3074 = vmatpush1.bf16.msra.mxu0 0
        %3075 = vmatprep.subr.bf16.mxu0 0
        %3076 = vmatpush1.bf16.msra.mxu0 0
        %3077 = vmatprep.subr.bf16.mxu0 0
        %3078 = vmatpush1.bf16.msra.mxu0 0
        %3079 = vmatprep.subr.bf16.mxu0 0
        %3080 = vmatpush1.bf16.msra.mxu0 0
        %3081 = vmatprep.subr.bf16.mxu0 0
        %3082 = vmatpush1.bf16.msra.mxu0 0
        %3083 = vmatprep.subr.bf16.mxu0 0
        %3084 = vmatpush1.bf16.msra.mxu0 0
        %3085 = vmatprep.subr.bf16.mxu0 0
        %3086 = vmatpush1.bf16.msra.mxu0 0
        %3087 = vmatprep.subr.bf16.mxu0 0
        %3088 = vmatpush1.bf16.msra.mxu0 0
        %3089 = vmatprep.subr.bf16.mxu0 0
        %3090 = vmatpush1.bf16.msra.mxu0 0
        %3091 = vmatprep.subr.bf16.mxu0 0
        %3092 = vmatpush1.bf16.msra.mxu0 0
        %3093 = vmatprep.mubr.bf16.mxu0 0
        %3094 = vmatmul.mubr.bf16.gmra.mrb[0].mxu0 %v3059
        %v3095 = vpop.f32.mrb[0].mxu0
        %v3096 = vadd.f32 0.0, %v3095
        %v3097 = vpop.f32.mrb[0].mxu0
        %v3098 = vpop.f32.mrb[0].mxu0
        %v3099 = vadd.f32 0.0, %v3098
        %v3100 = vpop.f32.mrb[0].mxu0
        %3101 = vdwg.mxu0
        %v3102 = vadd.f32 %v2967, %v3096
        %v3103 = vadd.f32 %v2970, %v3099
        %3104 = vmatprep.subr.mxu0 0.0
        %3105 = vmatpush1.msra.mxu0 %v2704
        %3106 = vmatprep.subr.mxu0 0.0
        %3107 = vmatpush1.msra.mxu0 %v2705
        %3108 = vmatprep.subr.mxu0 0.0
        %3109 = vmatpush1.msra.mxu0 0.0
        %3110 = vmatprep.subr.mxu0 0.0
        %3111 = vmatpush1.msra.mxu0 0.0
        %3112 = vmatprep.subr.mxu0 0.0
        %3113 = vmatpush1.msra.mxu0 0.0
        %3114 = vmatprep.subr.mxu0 0.0
        %3115 = vmatpush1.msra.mxu0 0.0
        %3116 = vmatprep.subr.mxu0 0.0
        %3117 = vmatpush1.msra.mxu0 0.0
        %3118 = vmatprep.subr.mxu0 0.0
        %3119 = vmatpush1.msra.mxu0 0.0
        %3120 = vmatprep.subr.mxu0 0.0
        %3121 = vmatpush1.msra.mxu0 0.0
        %3122 = vmatprep.subr.mxu0 0.0
        %3123 = vmatpush1.msra.mxu0 0.0
        %3124 = vmatprep.subr.mxu0 0.0
        %3125 = vmatpush1.msra.mxu0 0.0
        %3126 = vmatprep.subr.mxu0 0.0
        %3127 = vmatpush1.msra.mxu0 0.0
        %3128 = vmatprep.subr.mxu0 0.0
        %3129 = vmatpush1.msra.mxu0 0.0
        %3130 = vmatprep.subr.mxu0 0.0
        %3131 = vmatpush1.msra.mxu0 0.0
        %3132 = vmatprep.subr.mxu0 0.0
        %3133 = vmatpush1.msra.mxu0 0.0
        %3134 = vmatprep.subr.mxu0 0.0
        %3135 = vmatpush1.msra.mxu0 0.0
        %3136 = vmatprep.subr.mxu0 0.0
        %3137 = vmatpush1.msra.mxu0 0.0
        %3138 = vmatprep.subr.mxu0 0.0
        %3139 = vmatpush1.msra.mxu0 0.0
        %3140 = vmatprep.subr.mxu0 0.0
        %3141 = vmatpush1.msra.mxu0 0.0
        %3142 = vmatprep.subr.mxu0 0.0
        %3143 = vmatpush1.msra.mxu0 0.0
        %3144 = vmatprep.subr.mxu0 0.0
        %3145 = vmatpush1.msra.mxu0 0.0
        %3146 = vmatprep.subr.mxu0 0.0
        %3147 = vmatpush1.msra.mxu0 0.0
        %3148 = vmatprep.subr.mxu0 0.0
        %3149 = vmatpush1.msra.mxu0 0.0
        %3150 = vmatprep.subr.mxu0 0.0
        %3151 = vmatpush1.msra.mxu0 0.0
        %3152 = vmatprep.subr.mxu0 0.0
        %3153 = vmatpush1.msra.mxu0 0.0
        %3154 = vmatprep.subr.mxu0 0.0
        %3155 = vmatpush1.msra.mxu0 0.0
        %3156 = vmatprep.subr.mxu0 0.0
        %3157 = vmatpush1.msra.mxu0 0.0
        %3158 = vmatprep.subr.mxu0 0.0
        %3159 = vmatpush1.msra.mxu0 0.0
        %3160 = vmatprep.subr.mxu0 0.0
        %3161 = vmatpush1.msra.mxu0 0.0
        %3162 = vmatprep.subr.mxu0 0.0
        %3163 = vmatpush1.msra.mxu0 0.0
        %3164 = vmatprep.subr.mxu0 0.0
        %3165 = vmatpush1.msra.mxu0 0.0
        %3166 = vmatprep.subr.mxu0 0.0
        %3167 = vmatpush1.msra.mxu0 0.0
        %3168 = vmatprep.mubr.f32.mxu0 0.0
        %3169 = vmatmul.mubr.f32.gmra.mrb[0].mxu0 %v2497
        %v3170 = vpop.f32.mrb[0].mxu0
        %v3171 = vadd.f32 0.0, %v3170
        %v3172 = vpop.f32.mrb[0].mxu0
        %3173 = vmatprep.mubr.f32.mxu0 0.0
        %3174 = vmatmul.mubr.f32.gmra.mrb[0].mxu0 %v2500
        %v3175 = vpop.f32.mrb[0].mxu0
        %v3176 = vadd.f32 0.0, %v3175
        %v3177 = vpop.f32.mrb[0].mxu0
        %3178 = vdwg.mxu0
        %v3179 = vpack.c.bf16 %v3176, %v3171
        %s3180 = scalar_lea.vmem %s21, 24
        %v3181 = vld [vmem:[%s3180] sm:$0xf]
        %v3182 = vld [vmem:[%s3180 + $0x4] sm:$0xf]
        %v3185 = vunpack.c.l.b16 %v3181
        %v3186 = vunpack.c.l.b16 %v3182
        %v3187 = vpack.c.b16 %v3186, %v3185
        %v3190 = vsel %vm2201, %v3179, 0
        %3192 = vmatprep.subr.bf16.mxu0 0
        %3193 = vmatpush1.bf16.msra.mxu0 %v3187
        %3194 = vmatprep.subr.bf16.mxu0 0
        %3195 = vmatpush1.bf16.msra.mxu0 0
        %3196 = vmatprep.subr.bf16.mxu0 0
        %3197 = vmatpush1.bf16.msra.mxu0 0
        %3198 = vmatprep.subr.bf16.mxu0 0
        %3199 = vmatpush1.bf16.msra.mxu0 0
        %3200 = vmatprep.subr.bf16.mxu0 0
        %3201 = vmatpush1.bf16.msra.mxu0 0
        %3202 = vmatprep.subr.bf16.mxu0 0
        %3203 = vmatpush1.bf16.msra.mxu0 0
        %3204 = vmatprep.subr.bf16.mxu0 0
        %3205 = vmatpush1.bf16.msra.mxu0 0
        %3206 = vmatprep.subr.bf16.mxu0 0
        %3207 = vmatpush1.bf16.msra.mxu0 0
        %3208 = vmatprep.subr.bf16.mxu0 0
        %3209 = vmatpush1.bf16.msra.mxu0 0
        %3210 = vmatprep.subr.bf16.mxu0 0
        %3211 = vmatpush1.bf16.msra.mxu0 0
        %3212 = vmatprep.subr.bf16.mxu0 0
        %3213 = vmatpush1.bf16.msra.mxu0 0
        %3214 = vmatprep.subr.bf16.mxu0 0
        %3215 = vmatpush1.bf16.msra.mxu0 0
        %3216 = vmatprep.subr.bf16.mxu0 0
        %3217 = vmatpush1.bf16.msra.mxu0 0
        %3218 = vmatprep.subr.bf16.mxu0 0
        %3219 = vmatpush1.bf16.msra.mxu0 0
        %3220 = vmatprep.subr.bf16.mxu0 0
        %3221 = vmatpush1.bf16.msra.mxu0 0
        %3222 = vmatprep.subr.bf16.mxu0 0
        %3223 = vmatpush1.bf16.msra.mxu0 0
        %3224 = vmatprep.mubr.bf16.mxu0 0
        %3225 = vmatmul.mubr.bf16.gmra.mrb[0].mxu0 %v3190
        %v3226 = vpop.f32.mrb[0].mxu0
        %v3227 = vadd.f32 0.0, %v3226
        %v3228 = vpop.f32.mrb[0].mxu0
        %v3229 = vpop.f32.mrb[0].mxu0
        %v3230 = vadd.f32 0.0, %v3229
        %v3231 = vpop.f32.mrb[0].mxu0
        %3232 = vdwg.mxu0
        %v3233 = vadd.f32 %v3102, %v3227
        %v3234 = vadd.f32 %v3103, %v3230
        %vm3235 = vcmp.eq.s32.totalorder %v2195, 2
        %vm3236 = vcmp.eq.s32.totalorder %v2196, 2
        %v3237 = vsel %vm3235, 1.0, 0.0
        %v3238 = vsel %vm3236, 1.0, 0.0
        %v3240 = vsel %vm2201, %v3237, 0
        %v3243 = vsel %vm2201, %v3238, 0
        %3245 = vmatprep.subr.mxu0 0.0
        %3246 = vmatpush1.msra.mxu0 %v2704
        %3247 = vmatprep.subr.mxu0 0.0
        %3248 = vmatpush1.msra.mxu0 %v2705
        %3249 = vmatprep.subr.mxu0 0.0
        %3250 = vmatpush1.msra.mxu0 0.0
        %3251 = vmatprep.subr.mxu0 0.0
        %3252 = vmatpush1.msra.mxu0 0.0
        %3253 = vmatprep.subr.mxu0 0.0
        %3254 = vmatpush1.msra.mxu0 0.0
        %3255 = vmatprep.subr.mxu0 0.0
        %3256 = vmatpush1.msra.mxu0 0.0
        %3257 = vmatprep.subr.mxu0 0.0
        %3258 = vmatpush1.msra.mxu0 0.0
        %3259 = vmatprep.subr.mxu0 0.0
        %3260 = vmatpush1.msra.mxu0 0.0
        %3261 = vmatprep.subr.mxu0 0.0
        %3262 = vmatpush1.msra.mxu0 0.0
        %3263 = vmatprep.subr.mxu0 0.0
        %3264 = vmatpush1.msra.mxu0 0.0
        %3265 = vmatprep.subr.mxu0 0.0
        %3266 = vmatpush1.msra.mxu0 0.0
        %3267 = vmatprep.subr.mxu0 0.0
        %3268 = vmatpush1.msra.mxu0 0.0
        %3269 = vmatprep.subr.mxu0 0.0
        %3270 = vmatpush1.msra.mxu0 0.0
        %3271 = vmatprep.subr.mxu0 0.0
        %3272 = vmatpush1.msra.mxu0 0.0
        %3273 = vmatprep.subr.mxu0 0.0
        %3274 = vmatpush1.msra.mxu0 0.0
        %3275 = vmatprep.subr.mxu0 0.0
        %3276 = vmatpush1.msra.mxu0 0.0
        %3277 = vmatprep.subr.mxu0 0.0
        %3278 = vmatpush1.msra.mxu0 0.0
        %3279 = vmatprep.subr.mxu0 0.0
        %3280 = vmatpush1.msra.mxu0 0.0
        %3281 = vmatprep.subr.mxu0 0.0
        %3282 = vmatpush1.msra.mxu0 0.0
        %3283 = vmatprep.subr.mxu0 0.0
        %3284 = vmatpush1.msra.mxu0 0.0
        %3285 = vmatprep.subr.mxu0 0.0
        %3286 = vmatpush1.msra.mxu0 0.0
        %3287 = vmatprep.subr.mxu0 0.0
        %3288 = vmatpush1.msra.mxu0 0.0
        %3289 = vmatprep.subr.mxu0 0.0
        %3290 = vmatpush1.msra.mxu0 0.0
        %3291 = vmatprep.subr.mxu0 0.0
        %3292 = vmatpush1.msra.mxu0 0.0
        %3293 = vmatprep.subr.mxu0 0.0
        %3294 = vmatpush1.msra.mxu0 0.0
        %3295 = vmatprep.subr.mxu0 0.0
        %3296 = vmatpush1.msra.mxu0 0.0
        %3297 = vmatprep.subr.mxu0 0.0
        %3298 = vmatpush1.msra.mxu0 0.0
        %3299 = vmatprep.subr.mxu0 0.0
        %3300 = vmatpush1.msra.mxu0 0.0
        %3301 = vmatprep.subr.mxu0 0.0
        %3302 = vmatpush1.msra.mxu0 0.0
        %3303 = vmatprep.subr.mxu0 0.0
        %3304 = vmatpush1.msra.mxu0 0.0
        %3305 = vmatprep.subr.mxu0 0.0
        %3306 = vmatpush1.msra.mxu0 0.0
        %3307 = vmatprep.subr.mxu0 0.0
        %3308 = vmatpush1.msra.mxu0 0.0
        %3309 = vmatprep.mubr.f32.mxu0 0.0
        %3310 = vmatmul.mubr.f32.gmra.mrb[0].mxu0 %v3240
        %v3311 = vpop.f32.mrb[0].mxu0
        %v3312 = vadd.f32 0.0, %v3311
        %v3313 = vpop.f32.mrb[0].mxu0
        %3314 = vmatprep.mubr.f32.mxu0 0.0
        %3315 = vmatmul.mubr.f32.gmra.mrb[0].mxu0 %v3243
        %v3316 = vpop.f32.mrb[0].mxu0
        %v3317 = vadd.f32 0.0, %v3316
        %v3318 = vpop.f32.mrb[0].mxu0
        %3319 = vdwg.mxu0
        %v3320 = vpack.c.bf16 %v3317, %v3312
        %s3321 = scalar_lea.vmem %s21, 32
        %v3322 = vld [vmem:[%s3321] sm:$0xf]
        %v3323 = vld [vmem:[%s3321 + $0x4] sm:$0xf]
        %v3326 = vunpack.c.l.b16 %v3322
        %v3327 = vunpack.c.l.b16 %v3323
        %v3328 = vpack.c.b16 %v3327, %v3326
        %v3331 = vsel %vm2201, %v3320, 0
        %3333 = vmatprep.subr.bf16.mxu0 0
        %3334 = vmatpush1.bf16.msra.mxu0 %v3328
        %3335 = vmatprep.subr.bf16.mxu0 0
        %3336 = vmatpush1.bf16.msra.mxu0 0
        %3337 = vmatprep.subr.bf16.mxu0 0
        %3338 = vmatpush1.bf16.msra.mxu0 0
        %3339 = vmatprep.subr.bf16.mxu0 0
        %3340 = vmatpush1.bf16.msra.mxu0 0
        %3341 = vmatprep.subr.bf16.mxu0 0
        %3342 = vmatpush1.bf16.msra.mxu0 0
        %3343 = vmatprep.subr.bf16.mxu0 0
        %3344 = vmatpush1.bf16.msra.mxu0 0
        %3345 = vmatprep.subr.bf16.mxu0 0
        %3346 = vmatpush1.bf16.msra.mxu0 0
        %3347 = vmatprep.subr.bf16.mxu0 0
        %3348 = vmatpush1.bf16.msra.mxu0 0
        %3349 = vmatprep.subr.bf16.mxu0 0
        %3350 = vmatpush1.bf16.msra.mxu0 0
        %3351 = vmatprep.subr.bf16.mxu0 0
        %3352 = vmatpush1.bf16.msra.mxu0 0
        %3353 = vmatprep.subr.bf16.mxu0 0
        %3354 = vmatpush1.bf16.msra.mxu0 0
        %3355 = vmatprep.subr.bf16.mxu0 0
        %3356 = vmatpush1.bf16.msra.mxu0 0
        %3357 = vmatprep.subr.bf16.mxu0 0
        %3358 = vmatpush1.bf16.msra.mxu0 0
        %3359 = vmatprep.subr.bf16.mxu0 0
        %3360 = vmatpush1.bf16.msra.mxu0 0
        %3361 = vmatprep.subr.bf16.mxu0 0
        %3362 = vmatpush1.bf16.msra.mxu0 0
        %3363 = vmatprep.subr.bf16.mxu0 0
        %3364 = vmatpush1.bf16.msra.mxu0 0
        %3365 = vmatprep.mubr.bf16.mxu0 0
        %3366 = vmatmul.mubr.bf16.gmra.mrb[0].mxu0 %v3331
        %v3367 = vpop.f32.mrb[0].mxu0
        %v3368 = vadd.f32 0.0, %v3367
        %v3369 = vpop.f32.mrb[0].mxu0
        %v3370 = vpop.f32.mrb[0].mxu0
        %v3371 = vadd.f32 0.0, %v3370
        %v3372 = vpop.f32.mrb[0].mxu0
        %3373 = vdwg.mxu0
        %v3374 = vadd.f32 %v3233, %v3368
        %v3375 = vadd.f32 %v3234, %v3371
        %v3376 = vld [vmem:[%s23] sm:$0x1]
        %v3378 = vlaneseq
        %v3379 = vshrl.u32 %v3378, 7
        %v3380 = vsub.s32 0, %v3379
        %v3381 = vrot.slane %v3376, %v3380
        %v3383 = vadd.f32 %v3374, %v3381
        %v3384 = vadd.f32 %v3375, %v3381
        %v3385 = vld [vmem:[%s29] sm:$0x1]
        %v3387 = vlaneseq
        %v3388 = vshrl.u32 %v3387, 7
        %v3389 = vsub.s32 0, %v3388
        %v3390 = vrot.slane %v3385, %v3389
        %v3392 = vsub.f32 %v3383, %v3390
        %v3393 = vsub.f32 %v3384, %v3390
        %v3394 = vld [vmem:[%s31] sm:$0x1]
        %v3395 = vadd.f32 %v3394, 1e-05
        %v3396 = vrsqrt.pop %v3395
        %v3398 = vlaneseq
        %v3399 = vshrl.u32 %v3398, 7
        %v3400 = vsub.s32 0, %v3399
        %v3401 = vrot.slane %v3396, %v3400
        %v3403 = vmul.f32 %v3392, %v3401
        %v3404 = vmul.f32 %v3393, %v3401
        %v3405 = vld [vmem:[%s25] sm:$0x1]
        %v3407 = vlaneseq
        %v3408 = vshrl.u32 %v3407, 7
        %v3409 = vsub.s32 0, %v3408
        %v3410 = vrot.slane %v3405, %v3409
        %v3412 = vmul.f32 %v3403, %v3410
        %v3413 = vmul.f32 %v3404, %v3410
        %v3414 = vld [vmem:[%s27] sm:$0x1]
        %v3416 = vlaneseq
        %v3417 = vshrl.u32 %v3416, 7
        %v3418 = vsub.s32 0, %v3417
        %v3419 = vrot.slane %v3414, %v3418
        %v3421 = vadd.f32 %v3412, %v3419
        %v3422 = vadd.f32 %v3413, %v3419
        %v3423 = vmul.f32 %v3421, 0.5
        %v3424 = vmul.f32 %v3422, 0.5
        %v3425 = vmul.f32 %v3421, 0.044715
        %v3426 = vmul.f32 %v3422, 0.044715
        %v3427 = vmul.f32 %v3425, %v3421
        %v3428 = vmul.f32 %v3426, %v3422
        %v3429 = vmul.f32 %v3427, %v3421
        %v3430 = vmul.f32 %v3428, %v3422
        %v3431 = vadd.f32 %v3421, %v3429
        %v3432 = vadd.f32 %v3422, %v3430
        %v3433 = vmul.f32 %v3431, 0.7978846
        %v3434 = vmul.f32 %v3432, 0.7978846
        %v3435 = vtanh.pop %v3433
        %v3436 = vtanh.pop %v3434
        %v3437 = vadd.f32 %v3435, 1.0
        %v3438 = vadd.f32 %v3436, 1.0
        %v3439 = vmul.f32 %v3423, %v3437
        %v3440 = vmul.f32 %v3424, %v3438
        %vm3441 = vcmp.eq.s32.totalorder %v2195, 4294967293
        %vm3442 = vcmp.eq.s32.totalorder %v2196, 4294967293
        %v3443 = vsel %vm3441, 1.0, 0.0
        %v3444 = vsel %vm3442, 1.0, 0.0
        %v3446 = vsel %vm2201, %v3443, 0
        %v3449 = vsel %vm2201, %v3444, 0
        %3451 = vmatprep.subr.mxu0 0.0
        %3452 = vmatpush1.msra.mxu0 %v3439
        %3453 = vmatprep.subr.mxu0 0.0
        %3454 = vmatpush1.msra.mxu0 %v3440
        %3455 = vmatprep.subr.mxu0 0.0
        %3456 = vmatpush1.msra.mxu0 0.0
        %3457 = vmatprep.subr.mxu0 0.0
        %3458 = vmatpush1.msra.mxu0 0.0
        %3459 = vmatprep.subr.mxu0 0.0
        %3460 = vmatpush1.msra.mxu0 0.0
        %3461 = vmatprep.subr.mxu0 0.0
        %3462 = vmatpush1.msra.mxu0 0.0
        %3463 = vmatprep.subr.mxu0 0.0
        %3464 = vmatpush1.msra.mxu0 0.0
        %3465 = vmatprep.subr.mxu0 0.0
        %3466 = vmatpush1.msra.mxu0 0.0
        %3467 = vmatprep.subr.mxu0 0.0
        %3468 = vmatpush1.msra.mxu0 0.0
        %3469 = vmatprep.subr.mxu0 0.0
        %3470 = vmatpush1.msra.mxu0 0.0
        %3471 = vmatprep.subr.mxu0 0.0
        %3472 = vmatpush1.msra.mxu0 0.0
        %3473 = vmatprep.subr.mxu0 0.0
        %3474 = vmatpush1.msra.mxu0 0.0
        %3475 = vmatprep.subr.mxu0 0.0
        %3476 = vmatpush1.msra.mxu0 0.0
        %3477 = vmatprep.subr.mxu0 0.0
        %3478 = vmatpush1.msra.mxu0 0.0
        %3479 = vmatprep.subr.mxu0 0.0
        %3480 = vmatpush1.msra.mxu0 0.0
        %3481 = vmatprep.subr.mxu0 0.0
        %3482 = vmatpush1.msra.mxu0 0.0
        %3483 = vmatprep.subr.mxu0 0.0
        %3484 = vmatpush1.msra.mxu0 0.0
        %3485 = vmatprep.subr.mxu0 0.0
        %3486 = vmatpush1.msra.mxu0 0.0
        %3487 = vmatprep.subr.mxu0 0.0
        %3488 = vmatpush1.msra.mxu0 0.0
        %3489 = vmatprep.subr.mxu0 0.0
        %3490 = vmatpush1.msra.mxu0 0.0
        %3491 = vmatprep.subr.mxu0 0.0
        %3492 = vmatpush1.msra.mxu0 0.0
        %3493 = vmatprep.subr.mxu0 0.0
        %3494 = vmatpush1.msra.mxu0 0.0
        %3495 = vmatprep.subr.mxu0 0.0
        %3496 = vmatpush1.msra.mxu0 0.0
        %3497 = vmatprep.subr.mxu0 0.0
        %3498 = vmatpush1.msra.mxu0 0.0
        %3499 = vmatprep.subr.mxu0 0.0
        %3500 = vmatpush1.msra.mxu0 0.0
        %3501 = vmatprep.subr.mxu0 0.0
        %3502 = vmatpush1.msra.mxu0 0.0
        %3503 = vmatprep.subr.mxu0 0.0
        %3504 = vmatpush1.msra.mxu0 0.0
        %3505 = vmatprep.subr.mxu0 0.0
        %3506 = vmatpush1.msra.mxu0 0.0
        %3507 = vmatprep.subr.mxu0 0.0
        %3508 = vmatpush1.msra.mxu0 0.0
        %3509 = vmatprep.subr.mxu0 0.0
        %3510 = vmatpush1.msra.mxu0 0.0
        %3511 = vmatprep.subr.mxu0 0.0
        %3512 = vmatpush1.msra.mxu0 0.0
        %3513 = vmatprep.subr.mxu0 0.0
        %3514 = vmatpush1.msra.mxu0 0.0
        %3515 = vmatprep.mubr.f32.mxu0 0.0
        %3516 = vmatmul.mubr.f32.gmra.mrb[0].mxu0 %v3446
        %v3517 = vpop.f32.mrb[0].mxu0
        %v3518 = vadd.f32 0.0, %v3517
        %v3519 = vpop.f32.mrb[0].mxu0
        %3520 = vmatprep.mubr.f32.mxu0 0.0
        %3521 = vmatmul.mubr.f32.gmra.mrb[0].mxu0 %v3449
        %v3522 = vpop.f32.mrb[0].mxu0
        %v3523 = vadd.f32 0.0, %v3522
        %v3524 = vpop.f32.mrb[0].mxu0
        %3525 = vdwg.mxu0
        %v3526 = vpack.c.bf16 %v3523, %v3518
        %v3527 = vld [vmem:[%s33] sm:$0xf]
        %v3528 = vld [vmem:[%s33 + $0x4] sm:$0xf]
        %v3529 = vld [vmem:[%s33 + $0x8] sm:$0xf]
        %3530 = vmatprep.subr.mxu0 0.0
        %3531 = vmatpush1.msra.mxu0 %v3439
        %3532 = vmatprep.subr.mxu0 0.0
        %3533 = vmatpush1.msra.mxu0 %v3440
        %3534 = vmatprep.subr.mxu0 0.0
        %3535 = vmatpush1.msra.mxu0 0.0
        %3536 = vmatprep.subr.mxu0 0.0
        %3537 = vmatpush1.msra.mxu0 0.0
        %3538 = vmatprep.subr.mxu0 0.0
        %3539 = vmatpush1.msra.mxu0 0.0
        %3540 = vmatprep.subr.mxu0 0.0
        %3541 = vmatpush1.msra.mxu0 0.0
        %3542 = vmatprep.subr.mxu0 0.0
        %3543 = vmatpush1.msra.mxu0 0.0
        %3544 = vmatprep.subr.mxu0 0.0
        %3545 = vmatpush1.msra.mxu0 0.0
        %3546 = vmatprep.subr.mxu0 0.0
        %3547 = vmatpush1.msra.mxu0 0.0
        %3548 = vmatprep.subr.mxu0 0.0
        %3549 = vmatpush1.msra.mxu0 0.0
        %3550 = vmatprep.subr.mxu0 0.0
        %3551 = vmatpush1.msra.mxu0 0.0
        %3552 = vmatprep.subr.mxu0 0.0
        %3553 = vmatpush1.msra.mxu0 0.0
        %3554 = vmatprep.subr.mxu0 0.0
        %3555 = vmatpush1.msra.mxu0 0.0
        %3556 = vmatprep.subr.mxu0 0.0
        %3557 = vmatpush1.msra.mxu0 0.0
        %3558 = vmatprep.subr.mxu0 0.0
        %3559 = vmatpush1.msra.mxu0 0.0
        %3560 = vmatprep.subr.mxu0 0.0
        %3561 = vmatpush1.msra.mxu0 0.0
        %3562 = vmatprep.subr.mxu0 0.0
        %3563 = vmatpush1.msra.mxu0 0.0
        %3564 = vmatprep.subr.mxu0 0.0
        %3565 = vmatpush1.msra.mxu0 0.0
        %3566 = vmatprep.subr.mxu0 0.0
        %3567 = vmatpush1.msra.mxu0 0.0
        %3568 = vmatprep.subr.mxu0 0.0
        %3569 = vmatpush1.msra.mxu0 0.0
        %3570 = vmatprep.subr.mxu0 0.0
        %3571 = vmatpush1.msra.mxu0 0.0
        %3572 = vmatprep.subr.mxu0 0.0
        %3573 = vmatpush1.msra.mxu0 0.0
        %3574 = vmatprep.subr.mxu0 0.0
        %3575 = vmatpush1.msra.mxu0 0.0
        %3576 = vmatprep.subr.mxu0 0.0
        %3577 = vmatpush1.msra.mxu0 0.0
        %3578 = vmatprep.subr.mxu0 0.0
        %3579 = vmatpush1.msra.mxu0 0.0
        %3580 = vmatprep.subr.mxu0 0.0
        %3581 = vmatpush1.msra.mxu0 0.0
        %3582 = vmatprep.subr.mxu0 0.0
        %3583 = vmatpush1.msra.mxu0 0.0
        %3584 = vmatprep.subr.mxu0 0.0
        %3585 = vmatpush1.msra.mxu0 0.0
        %3586 = vmatprep.subr.mxu0 0.0
        %3587 = vmatpush1.msra.mxu0 0.0
        %3588 = vmatprep.subr.mxu0 0.0
        %3589 = vmatpush1.msra.mxu0 0.0
        %3590 = vmatprep.subr.mxu0 0.0
        %3591 = vmatpush1.msra.mxu0 0.0
        %3592 = vmatprep.subr.mxu0 0.0
        %3593 = vmatpush1.msra.mxu0 0.0
        %3594 = vmatprep.mubr.f32.mxu0 0.0
        %3595 = vmatmul.mubr.f32.gmra.mrb[0].mxu0 %v2711
        %v3596 = vpop.f32.mrb[0].mxu0
        %v3597 = vadd.f32 0.0, %v3596
        %v3598 = vpop.f32.mrb[0].mxu0
        %3599 = vmatprep.mubr.f32.mxu0 0.0
        %3600 = vmatmul.mubr.f32.gmra.mrb[0].mxu0 %v2714
        %v3601 = vpop.f32.mrb[0].mxu0
        %v3602 = vadd.f32 0.0, %v3601
        %v3603 = vpop.f32.mrb[0].mxu0
        %3604 = vdwg.mxu0
        %v3605 = vpack.c.bf16 %v3602, %v3597
        %s3606 = scalar_lea.vmem %s33, 12
        %v3607 = vld [vmem:[%s3606] sm:$0xf]
        %v3608 = vld [vmem:[%s3606 + $0x4] sm:$0xf]
        %v3609 = vld [vmem:[%s3606 + $0x8] sm:$0xf]
        %v3613 = vunpack.c.l.b16 %v3607
        %v3614 = vunpack.c.l.b16 %v3608
        %v3615 = vunpack.c.l.b16 %v3609
        %v3616 = vpack.c.b16 %v3614, %v3613
        %v3617 = vpack.c.b16 %v3615, %v3615
        %vm3619 = vcmask 195584
        %v3621 = vsel %vm3619, %v3605, 0
        %v3624 = vsel %vm2145, %v3617, 0
        %3626 = vmatprep.subr.bf16.mxu0 0
        %3627 = vmatpush1.bf16.msra.mxu0 %v3616
        %3628 = vmatprep.subr.bf16.mxu0 0
        %3629 = vmatpush1.bf16.msra.mxu0 %v3624
        %3630 = vmatprep.subr.bf16.mxu0 0
        %3631 = vmatpush1.bf16.msra.mxu0 0
        %3632 = vmatprep.subr.bf16.mxu0 0
        %3633 = vmatpush1.bf16.msra.mxu0 0
        %3634 = vmatprep.subr.bf16.mxu0 0
        %3635 = vmatpush1.bf16.msra.mxu0 0
        %3636 = vmatprep.subr.bf16.mxu0 0
        %3637 = vmatpush1.bf16.msra.mxu0 0
        %3638 = vmatprep.subr.bf16.mxu0 0
        %3639 = vmatpush1.bf16.msra.mxu0 0
        %3640 = vmatprep.subr.bf16.mxu0 0
        %3641 = vmatpush1.bf16.msra.mxu0 0
        %3642 = vmatprep.subr.bf16.mxu0 0
        %3643 = vmatpush1.bf16.msra.mxu0 0
        %3644 = vmatprep.subr.bf16.mxu0 0
        %3645 = vmatpush1.bf16.msra.mxu0 0
        %3646 = vmatprep.subr.bf16.mxu0 0
        %3647 = vmatpush1.bf16.msra.mxu0 0
        %3648 = vmatprep.subr.bf16.mxu0 0
        %3649 = vmatpush1.bf16.msra.mxu0 0
        %3650 = vmatprep.subr.bf16.mxu0 0
        %3651 = vmatpush1.bf16.msra.mxu0 0
        %3652 = vmatprep.subr.bf16.mxu0 0
        %3653 = vmatpush1.bf16.msra.mxu0 0
        %3654 = vmatprep.subr.bf16.mxu0 0
        %3655 = vmatpush1.bf16.msra.mxu0 0
        %3656 = vmatprep.subr.bf16.mxu0 0
        %3657 = vmatpush1.bf16.msra.mxu0 0
        %3658 = vmatprep.mubr.bf16.mxu0 0
        %3659 = vmatmul.mubr.bf16.gmra.mrb[0].mxu0 %v3621
        %v3660 = vpop.f32.mrb[0].mxu0
        %v3661 = vadd.f32 0.0, %v3660
        %v3662 = vpop.f32.mrb[0].mxu0
        %v3663 = vpop.f32.mrb[0].mxu0
        %v3664 = vadd.f32 0.0, %v3663
        %v3665 = vpop.f32.mrb[0].mxu0
        %3666 = vdwg.mxu0
        %v3670 = vunpack.c.l.b16 %v3527
        %v3671 = vunpack.c.l.b16 %v3528
        %v3672 = vunpack.c.l.b16 %v3529
        %v3673 = vpack.c.b16 %v3671, %v3670
        %v3674 = vpack.c.b16 %v3672, %v3672
        %v3677 = vsel %vm3619, %v3526, 0
        %v3680 = vsel %vm2145, %v3674, 0
        %3682 = vmatprep.subr.bf16.mxu0 0
        %3683 = vmatpush1.bf16.msra.mxu0 %v3673
        %3684 = vmatprep.subr.bf16.mxu0 0
        %3685 = vmatpush1.bf16.msra.mxu0 %v3680
        %3686 = vmatprep.subr.bf16.mxu0 0
        %3687 = vmatpush1.bf16.msra.mxu0 0
        %3688 = vmatprep.subr.bf16.mxu0 0
        %3689 = vmatpush1.bf16.msra.mxu0 0
        %3690 = vmatprep.subr.bf16.mxu0 0
        %3691 = vmatpush1.bf16.msra.mxu0 0
        %3692 = vmatprep.subr.bf16.mxu0 0
        %3693 = vmatpush1.bf16.msra.mxu0 0
        %3694 = vmatprep.subr.bf16.mxu0 0
        %3695 = vmatpush1.bf16.msra.mxu0 0
        %3696 = vmatprep.subr.bf16.mxu0 0
        %3697 = vmatpush1.bf16.msra.mxu0 0
        %3698 = vmatprep.subr.bf16.mxu0 0
        %3699 = vmatpush1.bf16.msra.mxu0 0
        %3700 = vmatprep.subr.bf16.mxu0 0
        %3701 = vmatpush1.bf16.msra.mxu0 0
        %3702 = vmatprep.subr.bf16.mxu0 0
        %3703 = vmatpush1.bf16.msra.mxu0 0
        %3704 = vmatprep.subr.bf16.mxu0 0
        %3705 = vmatpush1.bf16.msra.mxu0 0
        %3706 = vmatprep.subr.bf16.mxu0 0
        %3707 = vmatpush1.bf16.msra.mxu0 0
        %3708 = vmatprep.subr.bf16.mxu0 0
        %3709 = vmatpush1.bf16.msra.mxu0 0
        %3710 = vmatprep.subr.bf16.mxu0 0
        %3711 = vmatpush1.bf16.msra.mxu0 0
        %3712 = vmatprep.subr.bf16.mxu0 0
        %3713 = vmatpush1.bf16.msra.mxu0 0
        %3714 = vmatprep.mubr.bf16.mxu0 0
        %3715 = vmatmul.mubr.bf16.gmra.mrb[0].mxu0 %v3677
        %v3716 = vpop.f32.mrb[0].mxu0
        %v3717 = vadd.f32 %v3661, %v3716
        %v3718 = vpop.f32.mrb[0].mxu0
        %v3719 = vpop.f32.mrb[0].mxu0
        %v3720 = vadd.f32 %v3664, %v3719
        %v3721 = vpop.f32.mrb[0].mxu0
        %3722 = vdwg.mxu0
        %3723 = vmatprep.subr.mxu0 0.0
        %3724 = vmatpush1.msra.mxu0 %v3439
        %3725 = vmatprep.subr.mxu0 0.0
        %3726 = vmatpush1.msra.mxu0 %v3440
        %3727 = vmatprep.subr.mxu0 0.0
        %3728 = vmatpush1.msra.mxu0 0.0
        %3729 = vmatprep.subr.mxu0 0.0
        %3730 = vmatpush1.msra.mxu0 0.0
        %3731 = vmatprep.subr.mxu0 0.0
        %3732 = vmatpush1.msra.mxu0 0.0
        %3733 = vmatprep.subr.mxu0 0.0
        %3734 = vmatpush1.msra.mxu0 0.0
        %3735 = vmatprep.subr.mxu0 0.0
        %3736 = vmatpush1.msra.mxu0 0.0
        %3737 = vmatprep.subr.mxu0 0.0
        %3738 = vmatpush1.msra.mxu0 0.0
        %3739 = vmatprep.subr.mxu0 0.0
        %3740 = vmatpush1.msra.mxu0 0.0
        %3741 = vmatprep.subr.mxu0 0.0
        %3742 = vmatpush1.msra.mxu0 0.0
        %3743 = vmatprep.subr.mxu0 0.0
        %3744 = vmatpush1.msra.mxu0 0.0
        %3745 = vmatprep.subr.mxu0 0.0
        %3746 = vmatpush1.msra.mxu0 0.0
        %3747 = vmatprep.subr.mxu0 0.0
        %3748 = vmatpush1.msra.mxu0 0.0
        %3749 = vmatprep.subr.mxu0 0.0
        %3750 = vmatpush1.msra.mxu0 0.0
        %3751 = vmatprep.subr.mxu0 0.0
        %3752 = vmatpush1.msra.mxu0 0.0
        %3753 = vmatprep.subr.mxu0 0.0
        %3754 = vmatpush1.msra.mxu0 0.0
        %3755 = vmatprep.subr.mxu0 0.0
        %3756 = vmatpush1.msra.mxu0 0.0
        %3757 = vmatprep.subr.mxu0 0.0
        %3758 = vmatpush1.msra.mxu0 0.0
        %3759 = vmatprep.subr.mxu0 0.0
        %3760 = vmatpush1.msra.mxu0 0.0
        %3761 = vmatprep.subr.mxu0 0.0
        %3762 = vmatpush1.msra.mxu0 0.0
        %3763 = vmatprep.subr.mxu0 0.0
        %3764 = vmatpush1.msra.mxu0 0.0
        %3765 = vmatprep.subr.mxu0 0.0
        %3766 = vmatpush1.msra.mxu0 0.0
        %3767 = vmatprep.subr.mxu0 0.0
        %3768 = vmatpush1.msra.mxu0 0.0
        %3769 = vmatprep.subr.mxu0 0.0
        %3770 = vmatpush1.msra.mxu0 0.0
        %3771 = vmatprep.subr.mxu0 0.0
        %3772 = vmatpush1.msra.mxu0 0.0
        %3773 = vmatprep.subr.mxu0 0.0
        %3774 = vmatpush1.msra.mxu0 0.0
        %3775 = vmatprep.subr.mxu0 0.0
        %3776 = vmatpush1.msra.mxu0 0.0
        %3777 = vmatprep.subr.mxu0 0.0
        %3778 = vmatpush1.msra.mxu0 0.0
        %3779 = vmatprep.subr.mxu0 0.0
        %3780 = vmatpush1.msra.mxu0 0.0
        %3781 = vmatprep.subr.mxu0 0.0
        %3782 = vmatpush1.msra.mxu0 0.0
        %3783 = vmatprep.subr.mxu0 0.0
        %3784 = vmatpush1.msra.mxu0 0.0
        %3785 = vmatprep.subr.mxu0 0.0
        %3786 = vmatpush1.msra.mxu0 0.0
        %3787 = vmatprep.mubr.f32.mxu0 0.0
        %3788 = vmatmul.mubr.f32.gmra.mrb[0].mxu0 %v2203
        %v3789 = vpop.f32.mrb[0].mxu0
        %v3790 = vadd.f32 0.0, %v3789
        %v3791 = vpop.f32.mrb[0].mxu0
        %3792 = vmatprep.mubr.f32.mxu0 0.0
        %3793 = vmatmul.mubr.f32.gmra.mrb[0].mxu0 %v2206
        %v3794 = vpop.f32.mrb[0].mxu0
        %v3795 = vadd.f32 0.0, %v3794
        %v3796 = vpop.f32.mrb[0].mxu0
        %3797 = vdwg.mxu0
        %v3798 = vpack.c.bf16 %v3795, %v3790
        %s3799 = scalar_lea.vmem %s33, 24
        %v3800 = vld [vmem:[%s3799] sm:$0xf]
        %v3801 = vld [vmem:[%s3799 + $0x4] sm:$0xf]
        %v3802 = vld [vmem:[%s3799 + $0x8] sm:$0xf]
        %v3806 = vunpack.c.l.b16 %v3800
        %v3807 = vunpack.c.l.b16 %v3801
        %v3808 = vunpack.c.l.b16 %v3802
        %v3809 = vpack.c.b16 %v3807, %v3806
        %v3810 = vpack.c.b16 %v3808, %v3808
        %v3813 = vsel %vm3619, %v3798, 0
        %v3816 = vsel %vm2145, %v3810, 0
        %3818 = vmatprep.subr.bf16.mxu0 0
        %3819 = vmatpush1.bf16.msra.mxu0 %v3809
        %3820 = vmatprep.subr.bf16.mxu0 0
        %3821 = vmatpush1.bf16.msra.mxu0 %v3816
        %3822 = vmatprep.subr.bf16.mxu0 0
        %3823 = vmatpush1.bf16.msra.mxu0 0
        %3824 = vmatprep.subr.bf16.mxu0 0
        %3825 = vmatpush1.bf16.msra.mxu0 0
        %3826 = vmatprep.subr.bf16.mxu0 0
        %3827 = vmatpush1.bf16.msra.mxu0 0
        %3828 = vmatprep.subr.bf16.mxu0 0
        %3829 = vmatpush1.bf16.msra.mxu0 0
        %3830 = vmatprep.subr.bf16.mxu0 0
        %3831 = vmatpush1.bf16.msra.mxu0 0
        %3832 = vmatprep.subr.bf16.mxu0 0
        %3833 = vmatpush1.bf16.msra.mxu0 0
        %3834 = vmatprep.subr.bf16.mxu0 0
        %3835 = vmatpush1.bf16.msra.mxu0 0
        %3836 = vmatprep.subr.bf16.mxu0 0
        %3837 = vmatpush1.bf16.msra.mxu0 0
        %3838 = vmatprep.subr.bf16.mxu0 0
        %3839 = vmatpush1.bf16.msra.mxu0 0
        %3840 = vmatprep.subr.bf16.mxu0 0
        %3841 = vmatpush1.bf16.msra.mxu0 0
        %3842 = vmatprep.subr.bf16.mxu0 0
        %3843 = vmatpush1.bf16.msra.mxu0 0
        %3844 = vmatprep.subr.bf16.mxu0 0
        %3845 = vmatpush1.bf16.msra.mxu0 0
        %3846 = vmatprep.subr.bf16.mxu0 0
        %3847 = vmatpush1.bf16.msra.mxu0 0
        %3848 = vmatprep.subr.bf16.mxu0 0
        %3849 = vmatpush1.bf16.msra.mxu0 0
        %3850 = vmatprep.mubr.bf16.mxu0 0
        %3851 = vmatmul.mubr.bf16.gmra.mrb[0].mxu0 %v3813
        %v3852 = vpop.f32.mrb[0].mxu0
        %v3853 = vadd.f32 0.0, %v3852
        %v3854 = vpop.f32.mrb[0].mxu0
        %v3855 = vpop.f32.mrb[0].mxu0
        %v3856 = vadd.f32 0.0, %v3855
        %v3857 = vpop.f32.mrb[0].mxu0
        %3858 = vdwg.mxu0
        %v3859 = vadd.f32 %v3717, %v3853
        %v3860 = vadd.f32 %v3720, %v3856
        %3861 = vmatprep.subr.mxu0 0.0
        %3862 = vmatpush1.msra.mxu0 %v3439
        %3863 = vmatprep.subr.mxu0 0.0
        %3864 = vmatpush1.msra.mxu0 %v3440
        %3865 = vmatprep.subr.mxu0 0.0
        %3866 = vmatpush1.msra.mxu0 0.0
        %3867 = vmatprep.subr.mxu0 0.0
        %3868 = vmatpush1.msra.mxu0 0.0
        %3869 = vmatprep.subr.mxu0 0.0
        %3870 = vmatpush1.msra.mxu0 0.0
        %3871 = vmatprep.subr.mxu0 0.0
        %3872 = vmatpush1.msra.mxu0 0.0
        %3873 = vmatprep.subr.mxu0 0.0
        %3874 = vmatpush1.msra.mxu0 0.0
        %3875 = vmatprep.subr.mxu0 0.0
        %3876 = vmatpush1.msra.mxu0 0.0
        %3877 = vmatprep.subr.mxu0 0.0
        %3878 = vmatpush1.msra.mxu0 0.0
        %3879 = vmatprep.subr.mxu0 0.0
        %3880 = vmatpush1.msra.mxu0 0.0
        %3881 = vmatprep.subr.mxu0 0.0
        %3882 = vmatpush1.msra.mxu0 0.0
        %3883 = vmatprep.subr.mxu0 0.0
        %3884 = vmatpush1.msra.mxu0 0.0
        %3885 = vmatprep.subr.mxu0 0.0
        %3886 = vmatpush1.msra.mxu0 0.0
        %3887 = vmatprep.subr.mxu0 0.0
        %3888 = vmatpush1.msra.mxu0 0.0
        %3889 = vmatprep.subr.mxu0 0.0
        %3890 = vmatpush1.msra.mxu0 0.0
        %3891 = vmatprep.subr.mxu0 0.0
        %3892 = vmatpush1.msra.mxu0 0.0
        %3893 = vmatprep.subr.mxu0 0.0
        %3894 = vmatpush1.msra.mxu0 0.0
        %3895 = vmatprep.subr.mxu0 0.0
        %3896 = vmatpush1.msra.mxu0 0.0
        %3897 = vmatprep.subr.mxu0 0.0
        %3898 = vmatpush1.msra.mxu0 0.0
        %3899 = vmatprep.subr.mxu0 0.0
        %3900 = vmatpush1.msra.mxu0 0.0
        %3901 = vmatprep.subr.mxu0 0.0
        %3902 = vmatpush1.msra.mxu0 0.0
        %3903 = vmatprep.subr.mxu0 0.0
        %3904 = vmatpush1.msra.mxu0 0.0
        %3905 = vmatprep.subr.mxu0 0.0
        %3906 = vmatpush1.msra.mxu0 0.0
        %3907 = vmatprep.subr.mxu0 0.0
        %3908 = vmatpush1.msra.mxu0 0.0
        %3909 = vmatprep.subr.mxu0 0.0
        %3910 = vmatpush1.msra.mxu0 0.0
        %3911 = vmatprep.subr.mxu0 0.0
        %3912 = vmatpush1.msra.mxu0 0.0
        %3913 = vmatprep.subr.mxu0 0.0
        %3914 = vmatpush1.msra.mxu0 0.0
        %3915 = vmatprep.subr.mxu0 0.0
        %3916 = vmatpush1.msra.mxu0 0.0
        %3917 = vmatprep.subr.mxu0 0.0
        %3918 = vmatpush1.msra.mxu0 0.0
        %3919 = vmatprep.subr.mxu0 0.0
        %3920 = vmatpush1.msra.mxu0 0.0
        %3921 = vmatprep.subr.mxu0 0.0
        %3922 = vmatpush1.msra.mxu0 0.0
        %3923 = vmatprep.subr.mxu0 0.0
        %3924 = vmatpush1.msra.mxu0 0.0
        %3925 = vmatprep.mubr.f32.mxu0 0.0
        %3926 = vmatmul.mubr.f32.gmra.mrb[0].mxu0 %v2293
        %v3927 = vpop.f32.mrb[0].mxu0
        %v3928 = vadd.f32 0.0, %v3927
        %v3929 = vpop.f32.mrb[0].mxu0
        %3930 = vmatprep.mubr.f32.mxu0 0.0
        %3931 = vmatmul.mubr.f32.gmra.mrb[0].mxu0 %v2296
        %v3932 = vpop.f32.mrb[0].mxu0
        %v3933 = vadd.f32 0.0, %v3932
        %v3934 = vpop.f32.mrb[0].mxu0
        %3935 = vdwg.mxu0
        %v3936 = vpack.c.bf16 %v3933, %v3928
        %s3937 = scalar_lea.vmem %s33, 36
        %v3938 = vld [vmem:[%s3937] sm:$0xf]
        %v3939 = vld [vmem:[%s3937 + $0x4] sm:$0xf]
        %v3940 = vld [vmem:[%s3937 + $0x8] sm:$0xf]
        %v3944 = vunpack.c.l.b16 %v3938
        %v3945 = vunpack.c.l.b16 %v3939
        %v3946 = vunpack.c.l.b16 %v3940
        %v3947 = vpack.c.b16 %v3945, %v3944
        %v3948 = vpack.c.b16 %v3946, %v3946
        %v3951 = vsel %vm3619, %v3936, 0
        %v3954 = vsel %vm2145, %v3948, 0
        %3956 = vmatprep.subr.bf16.mxu0 0
        %3957 = vmatpush1.bf16.msra.mxu0 %v3947
        %3958 = vmatprep.subr.bf16.mxu0 0
        %3959 = vmatpush1.bf16.msra.mxu0 %v3954
        %3960 = vmatprep.subr.bf16.mxu0 0
        %3961 = vmatpush1.bf16.msra.mxu0 0
        %3962 = vmatprep.subr.bf16.mxu0 0
        %3963 = vmatpush1.bf16.msra.mxu0 0
        %3964 = vmatprep.subr.bf16.mxu0 0
        %3965 = vmatpush1.bf16.msra.mxu0 0
        %3966 = vmatprep.subr.bf16.mxu0 0
        %3967 = vmatpush1.bf16.msra.mxu0 0
        %3968 = vmatprep.subr.bf16.mxu0 0
        %3969 = vmatpush1.bf16.msra.mxu0 0
        %3970 = vmatprep.subr.bf16.mxu0 0
        %3971 = vmatpush1.bf16.msra.mxu0 0
        %3972 = vmatprep.subr.bf16.mxu0 0
        %3973 = vmatpush1.bf16.msra.mxu0 0
        %3974 = vmatprep.subr.bf16.mxu0 0
        %3975 = vmatpush1.bf16.msra.mxu0 0
        %3976 = vmatprep.subr.bf16.mxu0 0
        %3977 = vmatpush1.bf16.msra.mxu0 0
        %3978 = vmatprep.subr.bf16.mxu0 0
        %3979 = vmatpush1.bf16.msra.mxu0 0
        %3980 = vmatprep.subr.bf16.mxu0 0
        %3981 = vmatpush1.bf16.msra.mxu0 0
        %3982 = vmatprep.subr.bf16.mxu0 0
        %3983 = vmatpush1.bf16.msra.mxu0 0
        %3984 = vmatprep.subr.bf16.mxu0 0
        %3985 = vmatpush1.bf16.msra.mxu0 0
        %3986 = vmatprep.subr.bf16.mxu0 0
        %3987 = vmatpush1.bf16.msra.mxu0 0
        %3988 = vmatprep.mubr.bf16.mxu0 0
        %3989 = vmatmul.mubr.bf16.gmra.mrb[0].mxu0 %v3951
        %v3990 = vpop.f32.mrb[0].mxu0
        %v3991 = vadd.f32 0.0, %v3990
        %v3992 = vpop.f32.mrb[0].mxu0
        %v3993 = vpop.f32.mrb[0].mxu0
        %v3994 = vadd.f32 0.0, %v3993
        %v3995 = vpop.f32.mrb[0].mxu0
        %3996 = vdwg.mxu0
        %v3997 = vadd.f32 %v3859, %v3991
        %v3998 = vadd.f32 %v3860, %v3994
        %3999 = vmatprep.subr.mxu0 0.0
        %4000 = vmatpush1.msra.mxu0 %v3439
        %4001 = vmatprep.subr.mxu0 0.0
        %4002 = vmatpush1.msra.mxu0 %v3440
        %4003 = vmatprep.subr.mxu0 0.0
        %4004 = vmatpush1.msra.mxu0 0.0
        %4005 = vmatprep.subr.mxu0 0.0
        %4006 = vmatpush1.msra.mxu0 0.0
        %4007 = vmatprep.subr.mxu0 0.0
        %4008 = vmatpush1.msra.mxu0 0.0
        %4009 = vmatprep.subr.mxu0 0.0
        %4010 = vmatpush1.msra.mxu0 0.0
        %4011 = vmatprep.subr.mxu0 0.0
        %4012 = vmatpush1.msra.mxu0 0.0
        %4013 = vmatprep.subr.mxu0 0.0
        %4014 = vmatpush1.msra.mxu0 0.0
        %4015 = vmatprep.subr.mxu0 0.0
        %4016 = vmatpush1.msra.mxu0 0.0
        %4017 = vmatprep.subr.mxu0 0.0
        %4018 = vmatpush1.msra.mxu0 0.0
        %4019 = vmatprep.subr.mxu0 0.0
        %4020 = vmatpush1.msra.mxu0 0.0
        %4021 = vmatprep.subr.mxu0 0.0
        %4022 = vmatpush1.msra.mxu0 0.0
        %4023 = vmatprep.subr.mxu0 0.0
        %4024 = vmatpush1.msra.mxu0 0.0
        %4025 = vmatprep.subr.mxu0 0.0
        %4026 = vmatpush1.msra.mxu0 0.0
        %4027 = vmatprep.subr.mxu0 0.0
        %4028 = vmatpush1.msra.mxu0 0.0
        %4029 = vmatprep.subr.mxu0 0.0
        %4030 = vmatpush1.msra.mxu0 0.0
        %4031 = vmatprep.subr.mxu0 0.0
        %4032 = vmatpush1.msra.mxu0 0.0
        %4033 = vmatprep.subr.mxu0 0.0
        %4034 = vmatpush1.msra.mxu0 0.0
        %4035 = vmatprep.subr.mxu0 0.0
        %4036 = vmatpush1.msra.mxu0 0.0
        %4037 = vmatprep.subr.mxu0 0.0
        %4038 = vmatpush1.msra.mxu0 0.0
        %4039 = vmatprep.subr.mxu0 0.0
        %4040 = vmatpush1.msra.mxu0 0.0
        %4041 = vmatprep.subr.mxu0 0.0
        %4042 = vmatpush1.msra.mxu0 0.0
        %4043 = vmatprep.subr.mxu0 0.0
        %4044 = vmatpush1.msra.mxu0 0.0
        %4045 = vmatprep.subr.mxu0 0.0
        %4046 = vmatpush1.msra.mxu0 0.0
        %4047 = vmatprep.subr.mxu0 0.0
        %4048 = vmatpush1.msra.mxu0 0.0
        %4049 = vmatprep.subr.mxu0 0.0
        %4050 = vmatpush1.msra.mxu0 0.0
        %4051 = vmatprep.subr.mxu0 0.0
        %4052 = vmatpush1.msra.mxu0 0.0
        %4053 = vmatprep.subr.mxu0 0.0
        %4054 = vmatpush1.msra.mxu0 0.0
        %4055 = vmatprep.subr.mxu0 0.0
        %4056 = vmatpush1.msra.mxu0 0.0
        %4057 = vmatprep.subr.mxu0 0.0
        %4058 = vmatpush1.msra.mxu0 0.0
        %4059 = vmatprep.subr.mxu0 0.0
        %4060 = vmatpush1.msra.mxu0 0.0
        %4061 = vmatprep.subr.mxu0 0.0
        %4062 = vmatpush1.msra.mxu0 0.0
        %4063 = vmatprep.mubr.f32.mxu0 0.0
        %4064 = vmatmul.mubr.f32.gmra.mrb[0].mxu0 %v2497
        %v4065 = vpop.f32.mrb[0].mxu0
        %v4066 = vadd.f32 0.0, %v4065
        %v4067 = vpop.f32.mrb[0].mxu0
        %4068 = vmatprep.mubr.f32.mxu0 0.0
        %4069 = vmatmul.mubr.f32.gmra.mrb[0].mxu0 %v2500
        %v4070 = vpop.f32.mrb[0].mxu0
        %v4071 = vadd.f32 0.0, %v4070
        %v4072 = vpop.f32.mrb[0].mxu0
        %4073 = vdwg.mxu0
        %v4074 = vpack.c.bf16 %v4071, %v4066
        %s4075 = scalar_lea.vmem %s33, 48
        %v4076 = vld [vmem:[%s4075] sm:$0xf]
        %v4077 = vld [vmem:[%s4075 + $0x4] sm:$0xf]
        %v4078 = vld [vmem:[%s4075 + $0x8] sm:$0xf]
        %v4082 = vunpack.c.l.b16 %v4076
        %v4083 = vunpack.c.l.b16 %v4077
        %v4084 = vunpack.c.l.b16 %v4078
        %v4085 = vpack.c.b16 %v4083, %v4082
        %v4086 = vpack.c.b16 %v4084, %v4084
        %v4089 = vsel %vm3619, %v4074, 0
        %v4092 = vsel %vm2145, %v4086, 0
        %4094 = vmatprep.subr.bf16.mxu0 0
        %4095 = vmatpush1.bf16.msra.mxu0 %v4085
        %4096 = vmatprep.subr.bf16.mxu0 0
        %4097 = vmatpush1.bf16.msra.mxu0 %v4092
        %4098 = vmatprep.subr.bf16.mxu0 0
        %4099 = vmatpush1.bf16.msra.mxu0 0
        %4100 = vmatprep.subr.bf16.mxu0 0
        %4101 = vmatpush1.bf16.msra.mxu0 0
        %4102 = vmatprep.subr.bf16.mxu0 0
        %4103 = vmatpush1.bf16.msra.mxu0 0
        %4104 = vmatprep.subr.bf16.mxu0 0
        %4105 = vmatpush1.bf16.msra.mxu0 0
        %4106 = vmatprep.subr.bf16.mxu0 0
        %4107 = vmatpush1.bf16.msra.mxu0 0
        %4108 = vmatprep.subr.bf16.mxu0 0
        %4109 = vmatpush1.bf16.msra.mxu0 0
        %4110 = vmatprep.subr.bf16.mxu0 0
        %4111 = vmatpush1.bf16.msra.mxu0 0
        %4112 = vmatprep.subr.bf16.mxu0 0
        %4113 = vmatpush1.bf16.msra.mxu0 0
        %4114 = vmatprep.subr.bf16.mxu0 0
        %4115 = vmatpush1.bf16.msra.mxu0 0
        %4116 = vmatprep.subr.bf16.mxu0 0
        %4117 = vmatpush1.bf16.msra.mxu0 0
        %4118 = vmatprep.subr.bf16.mxu0 0
        %4119 = vmatpush1.bf16.msra.mxu0 0
        %4120 = vmatprep.subr.bf16.mxu0 0
        %4121 = vmatpush1.bf16.msra.mxu0 0
        %4122 = vmatprep.subr.bf16.mxu0 0
        %4123 = vmatpush1.bf16.msra.mxu0 0
        %4124 = vmatprep.subr.bf16.mxu0 0
        %4125 = vmatpush1.bf16.msra.mxu0 0
        %4126 = vmatprep.mubr.bf16.mxu0 0
        %4127 = vmatmul.mubr.bf16.gmra.mrb[0].mxu0 %v4089
        %v4128 = vpop.f32.mrb[0].mxu0
        %v4129 = vadd.f32 0.0, %v4128
        %v4130 = vpop.f32.mrb[0].mxu0
        %v4131 = vpop.f32.mrb[0].mxu0
        %v4132 = vadd.f32 0.0, %v4131
        %v4133 = vpop.f32.mrb[0].mxu0
        %4134 = vdwg.mxu0
        %v4135 = vadd.f32 %v3997, %v4129
        %v4136 = vadd.f32 %v3998, %v4132
        %4137 = vmatprep.subr.mxu0 0.0
        %4138 = vmatpush1.msra.mxu0 %v3439
        %4139 = vmatprep.subr.mxu0 0.0
        %4140 = vmatpush1.msra.mxu0 %v3440
        %4141 = vmatprep.subr.mxu0 0.0
        %4142 = vmatpush1.msra.mxu0 0.0
        %4143 = vmatprep.subr.mxu0 0.0
        %4144 = vmatpush1.msra.mxu0 0.0
        %4145 = vmatprep.subr.mxu0 0.0
        %4146 = vmatpush1.msra.mxu0 0.0
        %4147 = vmatprep.subr.mxu0 0.0
        %4148 = vmatpush1.msra.mxu0 0.0
        %4149 = vmatprep.subr.mxu0 0.0
        %4150 = vmatpush1.msra.mxu0 0.0
        %4151 = vmatprep.subr.mxu0 0.0
        %4152 = vmatpush1.msra.mxu0 0.0
        %4153 = vmatprep.subr.mxu0 0.0
        %4154 = vmatpush1.msra.mxu0 0.0
        %4155 = vmatprep.subr.mxu0 0.0
        %4156 = vmatpush1.msra.mxu0 0.0
        %4157 = vmatprep.subr.mxu0 0.0
        %4158 = vmatpush1.msra.mxu0 0.0
        %4159 = vmatprep.subr.mxu0 0.0
        %4160 = vmatpush1.msra.mxu0 0.0
        %4161 = vmatprep.subr.mxu0 0.0
        %4162 = vmatpush1.msra.mxu0 0.0
        %4163 = vmatprep.subr.mxu0 0.0
        %4164 = vmatpush1.msra.mxu0 0.0
        %4165 = vmatprep.subr.mxu0 0.0
        %4166 = vmatpush1.msra.mxu0 0.0
        %4167 = vmatprep.subr.mxu0 0.0
        %4168 = vmatpush1.msra.mxu0 0.0
        %4169 = vmatprep.subr.mxu0 0.0
        %4170 = vmatpush1.msra.mxu0 0.0
        %4171 = vmatprep.subr.mxu0 0.0
        %4172 = vmatpush1.msra.mxu0 0.0
        %4173 = vmatprep.subr.mxu0 0.0
        %4174 = vmatpush1.msra.mxu0 0.0
        %4175 = vmatprep.subr.mxu0 0.0
        %4176 = vmatpush1.msra.mxu0 0.0
        %4177 = vmatprep.subr.mxu0 0.0
        %4178 = vmatpush1.msra.mxu0 0.0
        %4179 = vmatprep.subr.mxu0 0.0
        %4180 = vmatpush1.msra.mxu0 0.0
        %4181 = vmatprep.subr.mxu0 0.0
        %4182 = vmatpush1.msra.mxu0 0.0
        %4183 = vmatprep.subr.mxu0 0.0
        %4184 = vmatpush1.msra.mxu0 0.0
        %4185 = vmatprep.subr.mxu0 0.0
        %4186 = vmatpush1.msra.mxu0 0.0
        %4187 = vmatprep.subr.mxu0 0.0
        %4188 = vmatpush1.msra.mxu0 0.0
        %4189 = vmatprep.subr.mxu0 0.0
        %4190 = vmatpush1.msra.mxu0 0.0
        %4191 = vmatprep.subr.mxu0 0.0
        %4192 = vmatpush1.msra.mxu0 0.0
        %4193 = vmatprep.subr.mxu0 0.0
        %4194 = vmatpush1.msra.mxu0 0.0
        %4195 = vmatprep.subr.mxu0 0.0
        %4196 = vmatpush1.msra.mxu0 0.0
        %4197 = vmatprep.subr.mxu0 0.0
        %4198 = vmatpush1.msra.mxu0 0.0
        %4199 = vmatprep.subr.mxu0 0.0
        %4200 = vmatpush1.msra.mxu0 0.0
        %4201 = vmatprep.mubr.f32.mxu0 0.0
        %4202 = vmatmul.mubr.f32.gmra.mrb[0].mxu0 %v3240
        %v4203 = vpop.f32.mrb[0].mxu0
        %v4204 = vadd.f32 0.0, %v4203
        %v4205 = vpop.f32.mrb[0].mxu0
        %4206 = vmatprep.mubr.f32.mxu0 0.0
        %4207 = vmatmul.mubr.f32.gmra.mrb[0].mxu0 %v3243
        %v4208 = vpop.f32.mrb[0].mxu0
        %v4209 = vadd.f32 0.0, %v4208
        %v4210 = vpop.f32.mrb[0].mxu0
        %4211 = vdwg.mxu0
        %v4212 = vpack.c.bf16 %v4209, %v4204
        %s4213 = scalar_lea.vmem %s33, 60
        %v4214 = vld [vmem:[%s4213] sm:$0xf]
        %v4215 = vld [vmem:[%s4213 + $0x4] sm:$0xf]
        %v4216 = vld [vmem:[%s4213 + $0x8] sm:$0xf]
        %v4220 = vunpack.c.l.b16 %v4214
        %v4221 = vunpack.c.l.b16 %v4215
        %v4222 = vunpack.c.l.b16 %v4216
        %v4223 = vpack.c.b16 %v4221, %v4220
        %v4224 = vpack.c.b16 %v4222, %v4222
        %v4227 = vsel %vm3619, %v4212, 0
        %v4230 = vsel %vm2145, %v4224, 0
        %4232 = vmatprep.subr.bf16.mxu0 0
        %4233 = vmatpush1.bf16.msra.mxu0 %v4223
        %4234 = vmatprep.subr.bf16.mxu0 0
        %4235 = vmatpush1.bf16.msra.mxu0 %v4230
        %4236 = vmatprep.subr.bf16.mxu0 0
        %4237 = vmatpush1.bf16.msra.mxu0 0
        %4238 = vmatprep.subr.bf16.mxu0 0
        %4239 = vmatpush1.bf16.msra.mxu0 0
        %4240 = vmatprep.subr.bf16.mxu0 0
        %4241 = vmatpush1.bf16.msra.mxu0 0
        %4242 = vmatprep.subr.bf16.mxu0 0
        %4243 = vmatpush1.bf16.msra.mxu0 0
        %4244 = vmatprep.subr.bf16.mxu0 0
        %4245 = vmatpush1.bf16.msra.mxu0 0
        %4246 = vmatprep.subr.bf16.mxu0 0
        %4247 = vmatpush1.bf16.msra.mxu0 0
        %4248 = vmatprep.subr.bf16.mxu0 0
        %4249 = vmatpush1.bf16.msra.mxu0 0
        %4250 = vmatprep.subr.bf16.mxu0 0
        %4251 = vmatpush1.bf16.msra.mxu0 0
        %4252 = vmatprep.subr.bf16.mxu0 0
        %4253 = vmatpush1.bf16.msra.mxu0 0
        %4254 = vmatprep.subr.bf16.mxu0 0
        %4255 = vmatpush1.bf16.msra.mxu0 0
        %4256 = vmatprep.subr.bf16.mxu0 0
        %4257 = vmatpush1.bf16.msra.mxu0 0
        %4258 = vmatprep.subr.bf16.mxu0 0
        %4259 = vmatpush1.bf16.msra.mxu0 0
        %4260 = vmatprep.subr.bf16.mxu0 0
        %4261 = vmatpush1.bf16.msra.mxu0 0
        %4262 = vmatprep.subr.bf16.mxu0 0
        %4263 = vmatpush1.bf16.msra.mxu0 0
        %4264 = vmatprep.mubr.bf16.mxu0 0
        %4265 = vmatmul.mubr.bf16.gmra.mrb[0].mxu0 %v4227
        %v4266 = vpop.f32.mrb[0].mxu0
        %v4267 = vadd.f32 0.0, %v4266
        %v4268 = vpop.f32.mrb[0].mxu0
        %v4269 = vpop.f32.mrb[0].mxu0
        %v4270 = vadd.f32 0.0, %v4269
        %v4271 = vpop.f32.mrb[0].mxu0
        %4272 = vdwg.mxu0
        %v4273 = vadd.f32 %v4135, %v4267
        %v4274 = vadd.f32 %v4136, %v4270
        %vm4275 = vcmp.eq.s32.totalorder %v2195, 3
        %vm4276 = vcmp.eq.s32.totalorder %v2196, 3
        %v4277 = vsel %vm4275, 1.0, 0.0
        %v4278 = vsel %vm4276, 1.0, 0.0
        %v4280 = vsel %vm2201, %v4277, 0
        %v4283 = vsel %vm2201, %v4278, 0
        %4285 = vmatprep.subr.mxu0 0.0
        %4286 = vmatpush1.msra.mxu0 %v3439
        %4287 = vmatprep.subr.mxu0 0.0
        %4288 = vmatpush1.msra.mxu0 %v3440
        %4289 = vmatprep.subr.mxu0 0.0
        %4290 = vmatpush1.msra.mxu0 0.0
        %4291 = vmatprep.subr.mxu0 0.0
        %4292 = vmatpush1.msra.mxu0 0.0
        %4293 = vmatprep.subr.mxu0 0.0
        %4294 = vmatpush1.msra.mxu0 0.0
        %4295 = vmatprep.subr.mxu0 0.0
        %4296 = vmatpush1.msra.mxu0 0.0
        %4297 = vmatprep.subr.mxu0 0.0
        %4298 = vmatpush1.msra.mxu0 0.0
        %4299 = vmatprep.subr.mxu0 0.0
        %4300 = vmatpush1.msra.mxu0 0.0
        %4301 = vmatprep.subr.mxu0 0.0
        %4302 = vmatpush1.msra.mxu0 0.0
        %4303 = vmatprep.subr.mxu0 0.0
        %4304 = vmatpush1.msra.mxu0 0.0
        %4305 = vmatprep.subr.mxu0 0.0
        %4306 = vmatpush1.msra.mxu0 0.0
        %4307 = vmatprep.subr.mxu0 0.0
        %4308 = vmatpush1.msra.mxu0 0.0
        %4309 = vmatprep.subr.mxu0 0.0
        %4310 = vmatpush1.msra.mxu0 0.0
        %4311 = vmatprep.subr.mxu0 0.0
        %4312 = vmatpush1.msra.mxu0 0.0
        %4313 = vmatprep.subr.mxu0 0.0
        %4314 = vmatpush1.msra.mxu0 0.0
        %4315 = vmatprep.subr.mxu0 0.0
        %4316 = vmatpush1.msra.mxu0 0.0
        %4317 = vmatprep.subr.mxu0 0.0
        %4318 = vmatpush1.msra.mxu0 0.0
        %4319 = vmatprep.subr.mxu0 0.0
        %4320 = vmatpush1.msra.mxu0 0.0
        %4321 = vmatprep.subr.mxu0 0.0
        %4322 = vmatpush1.msra.mxu0 0.0
        %4323 = vmatprep.subr.mxu0 0.0
        %4324 = vmatpush1.msra.mxu0 0.0
        %4325 = vmatprep.subr.mxu0 0.0
        %4326 = vmatpush1.msra.mxu0 0.0
        %4327 = vmatprep.subr.mxu0 0.0
        %4328 = vmatpush1.msra.mxu0 0.0
        %4329 = vmatprep.subr.mxu0 0.0
        %4330 = vmatpush1.msra.mxu0 0.0
        %4331 = vmatprep.subr.mxu0 0.0
        %4332 = vmatpush1.msra.mxu0 0.0
        %4333 = vmatprep.subr.mxu0 0.0
        %4334 = vmatpush1.msra.mxu0 0.0
        %4335 = vmatprep.subr.mxu0 0.0
        %4336 = vmatpush1.msra.mxu0 0.0
        %4337 = vmatprep.subr.mxu0 0.0
        %4338 = vmatpush1.msra.mxu0 0.0
        %4339 = vmatprep.subr.mxu0 0.0
        %4340 = vmatpush1.msra.mxu0 0.0
        %4341 = vmatprep.subr.mxu0 0.0
        %4342 = vmatpush1.msra.mxu0 0.0
        %4343 = vmatprep.subr.mxu0 0.0
        %4344 = vmatpush1.msra.mxu0 0.0
        %4345 = vmatprep.subr.mxu0 0.0
        %4346 = vmatpush1.msra.mxu0 0.0
        %4347 = vmatprep.subr.mxu0 0.0
        %4348 = vmatpush1.msra.mxu0 0.0
        %4349 = vmatprep.mubr.f32.mxu0 0.0
        %4350 = vmatmul.mubr.f32.gmra.mrb[0].mxu0 %v4280
        %v4351 = vpop.f32.mrb[0].mxu0
        %v4352 = vadd.f32 0.0, %v4351
        %v4353 = vpop.f32.mrb[0].mxu0
        %4354 = vmatprep.mubr.f32.mxu0 0.0
        %4355 = vmatmul.mubr.f32.gmra.mrb[0].mxu0 %v4283
        %v4356 = vpop.f32.mrb[0].mxu0
        %v4357 = vadd.f32 0.0, %v4356
        %v4358 = vpop.f32.mrb[0].mxu0
        %4359 = vdwg.mxu0
        %v4360 = vpack.c.bf16 %v4357, %v4352
        %s4361 = scalar_lea.vmem %s33, 72
        %v4362 = vld [vmem:[%s4361] sm:$0xf]
        %v4363 = vld [vmem:[%s4361 + $0x4] sm:$0xf]
        %v4364 = vld [vmem:[%s4361 + $0x8] sm:$0xf]
        %v4368 = vunpack.c.l.b16 %v4362
        %v4369 = vunpack.c.l.b16 %v4363
        %v4370 = vunpack.c.l.b16 %v4364
        %v4371 = vpack.c.b16 %v4369, %v4368
        %v4372 = vpack.c.b16 %v4370, %v4370
        %v4375 = vsel %vm3619, %v4360, 0
        %v4378 = vsel %vm2145, %v4372, 0
        %4380 = vmatprep.subr.bf16.mxu0 0
        %4381 = vmatpush1.bf16.msra.mxu0 %v4371
        %4382 = vmatprep.subr.bf16.mxu0 0
        %4383 = vmatpush1.bf16.msra.mxu0 %v4378
        %4384 = vmatprep.subr.bf16.mxu0 0
        %4385 = vmatpush1.bf16.msra.mxu0 0
        %4386 = vmatprep.subr.bf16.mxu0 0
        %4387 = vmatpush1.bf16.msra.mxu0 0
        %4388 = vmatprep.subr.bf16.mxu0 0
        %4389 = vmatpush1.bf16.msra.mxu0 0
        %4390 = vmatprep.subr.bf16.mxu0 0
        %4391 = vmatpush1.bf16.msra.mxu0 0
        %4392 = vmatprep.subr.bf16.mxu0 0
        %4393 = vmatpush1.bf16.msra.mxu0 0
        %4394 = vmatprep.subr.bf16.mxu0 0
        %4395 = vmatpush1.bf16.msra.mxu0 0
        %4396 = vmatprep.subr.bf16.mxu0 0
        %4397 = vmatpush1.bf16.msra.mxu0 0
        %4398 = vmatprep.subr.bf16.mxu0 0
        %4399 = vmatpush1.bf16.msra.mxu0 0
        %4400 = vmatprep.subr.bf16.mxu0 0
        %4401 = vmatpush1.bf16.msra.mxu0 0
        %4402 = vmatprep.subr.bf16.mxu0 0
        %4403 = vmatpush1.bf16.msra.mxu0 0
        %4404 = vmatprep.subr.bf16.mxu0 0
        %4405 = vmatpush1.bf16.msra.mxu0 0
        %4406 = vmatprep.subr.bf16.mxu0 0
        %4407 = vmatpush1.bf16.msra.mxu0 0
        %4408 = vmatprep.subr.bf16.mxu0 0
        %4409 = vmatpush1.bf16.msra.mxu0 0
        %4410 = vmatprep.subr.bf16.mxu0 0
        %4411 = vmatpush1.bf16.msra.mxu0 0
        %4412 = vmatprep.mubr.bf16.mxu0 0
        %4413 = vmatmul.mubr.bf16.gmra.mrb[0].mxu0 %v4375
        %v4414 = vpop.f32.mrb[0].mxu0
        %v4415 = vadd.f32 0.0, %v4414
        %v4416 = vpop.f32.mrb[0].mxu0
        %v4417 = vpop.f32.mrb[0].mxu0
        %v4418 = vadd.f32 0.0, %v4417
        %v4419 = vpop.f32.mrb[0].mxu0
        %4420 = vdwg.mxu0
        %v4421 = vadd.f32 %v4273, %v4415
        %v4422 = vadd.f32 %v4274, %v4418
        %v4423 = vld [vmem:[%s35] sm:$0x1]
        %v4425 = vlaneseq
        %v4426 = vshrl.u32 %v4425, 7
        %v4427 = vsub.s32 0, %v4426
        %v4428 = vrot.slane %v4423, %v4427
        %v4430 = vadd.f32 %v4421, %v4428
        %v4431 = vadd.f32 %v4422, %v4428
        %v4432 = vld [vmem:[%s41] sm:$0x1]
        %v4434 = vlaneseq
        %v4435 = vshrl.u32 %v4434, 7
        %v4436 = vsub.s32 0, %v4435
        %v4437 = vrot.slane %v4432, %v4436
        %v4439 = vsub.f32 %v4430, %v4437
        %v4440 = vsub.f32 %v4431, %v4437
        %v4441 = vld [vmem:[%s43] sm:$0x1]
        %v4442 = vadd.f32 %v4441, 1e-05
        %v4443 = vrsqrt.pop %v4442
        %v4445 = vlaneseq
        %v4446 = vshrl.u32 %v4445, 7
        %v4447 = vsub.s32 0, %v4446
        %v4448 = vrot.slane %v4443, %v4447
        %v4450 = vmul.f32 %v4439, %v4448
        %v4451 = vmul.f32 %v4440, %v4448
        %v4452 = vld [vmem:[%s37] sm:$0x1]
        %v4454 = vlaneseq
        %v4455 = vshrl.u32 %v4454, 7
        %v4456 = vsub.s32 0, %v4455
        %v4457 = vrot.slane %v4452, %v4456
        %v4459 = vmul.f32 %v4450, %v4457
        %v4460 = vmul.f32 %v4451, %v4457
        %v4461 = vld [vmem:[%s39] sm:$0x1]
        %v4463 = vlaneseq
        %v4464 = vshrl.u32 %v4463, 7
        %v4465 = vsub.s32 0, %v4464
        %v4466 = vrot.slane %v4461, %v4465
        %v4468 = vadd.f32 %v4459, %v4466
        %v4469 = vadd.f32 %v4460, %v4466
        %v4470 = vmul.f32 %v4468, 0.5
        %v4471 = vmul.f32 %v4469, 0.5
        %v4472 = vmul.f32 %v4468, 0.044715
        %v4473 = vmul.f32 %v4469, 0.044715
        %v4474 = vmul.f32 %v4472, %v4468
        %v4475 = vmul.f32 %v4473, %v4469
        %v4476 = vmul.f32 %v4474, %v4468
        %v4477 = vmul.f32 %v4475, %v4469
        %v4478 = vadd.f32 %v4468, %v4476
        %v4479 = vadd.f32 %v4469, %v4477
        %v4480 = vmul.f32 %v4478, 0.7978846
        %v4481 = vmul.f32 %v4479, 0.7978846
        %v4482 = vtanh.pop %v4480
        %v4483 = vtanh.pop %v4481
        %v4484 = vadd.f32 %v4482, 1.0
        %v4485 = vadd.f32 %v4483, 1.0
        %v4486 = vmul.f32 %v4470, %v4484
        %v4487 = vmul.f32 %v4471, %v4485
        %v4488 = vpack.c.bf16 %v4487, %v4486
        %v4489 = vld [vmem:[%s45] sm:$0xf]
        %v4490 = vld [vmem:[%s45 + $0x4] sm:$0xf]
        %v4491 = vld [vmem:[%s45 + $0x8] sm:$0xf]
        %v4492 = vld [vmem:[%s45 + $0xc] sm:$0xf]
        %v4493 = vld [vmem:[%s47] sm:$0x1]
        %v4495 = vlaneseq
        %v4496 = vshrl.u32 %v4495, 7
        %v4497 = vsub.s32 0, %v4496
        %v4498 = vrot.slane %v4493, %v4497
        %v4504 = vunpack.c.l.b16 %v4489
        %v4505 = vunpack.c.l.b16 %v4490
        %v4506 = vunpack.c.l.b16 %v4491
        %v4507 = vunpack.c.l.b16 %v4492
        %v4508 = vpack.c.b16 %v4505, %v4504
        %v4509 = vpack.c.b16 %v4507, %v4506
        %v4513 = vsel %vm2391, %v4488, 0
        %4515 = vmatprep.subr.bf16.mxu0 0
        %4516 = vmatpush1.bf16.msra.mxu0 %v4508
        %4517 = vmatprep.subr.bf16.mxu0 0
        %4518 = vmatpush1.bf16.msra.mxu0 %v4509
        %4519 = vmatprep.subr.bf16.mxu0 0
        %4520 = vmatpush1.bf16.msra.mxu0 0
        %4521 = vmatprep.subr.bf16.mxu0 0
        %4522 = vmatpush1.bf16.msra.mxu0 0
        %4523 = vmatprep.subr.bf16.mxu0 0
        %4524 = vmatpush1.bf16.msra.mxu0 0
        %4525 = vmatprep.subr.bf16.mxu0 0
        %4526 = vmatpush1.bf16.msra.mxu0 0
        %4527 = vmatprep.subr.bf16.mxu0 0
        %4528 = vmatpush1.bf16.msra.mxu0 0
        %4529 = vmatprep.subr.bf16.mxu0 0
        %4530 = vmatpush1.bf16.msra.mxu0 0
        %4531 = vmatprep.subr.bf16.mxu0 0
        %4532 = vmatpush1.bf16.msra.mxu0 0
        %4533 = vmatprep.subr.bf16.mxu0 0
        %4534 = vmatpush1.bf16.msra.mxu0 0
        %4535 = vmatprep.subr.bf16.mxu0 0
        %4536 = vmatpush1.bf16.msra.mxu0 0
        %4537 = vmatprep.subr.bf16.mxu0 0
        %4538 = vmatpush1.bf16.msra.mxu0 0
        %4539 = vmatprep.subr.bf16.mxu0 0
        %4540 = vmatpush1.bf16.msra.mxu0 0
        %4541 = vmatprep.subr.bf16.mxu0 0
        %4542 = vmatpush1.bf16.msra.mxu0 0
        %4543 = vmatprep.subr.bf16.mxu0 0
        %4544 = vmatpush1.bf16.msra.mxu0 0
        %4545 = vmatprep.subr.bf16.mxu0 0
        %4546 = vmatpush1.bf16.msra.mxu0 0
        %4547 = vmatprep.mubr.bf16.mxu0 0
        %4548 = vmatmul.mubr.bf16.gmra.mrb[0].mxu0 %v4513
        %v4549 = vpop.f32.mrb[0].mxu0
        %v4550 = vadd.f32 %v4498, %v4549
        %v4551 = vpop.f32.mrb[0].mxu0
        %v4552 = vpop.f32.mrb[0].mxu0
        %v4553 = vadd.f32 %v4498, %v4552
        %v4554 = vpop.f32.mrb[0].mxu0
        %4555 = vdwg.mxu0
        %v4556 = vadd.f32 %v2184, %v4550
        %v4557 = vadd.f32 %v2187, %v4553
        %v4558 = vld [vmem:[%s3] sm:$0xff]
        %v4559 = vld [vmem:[%s3 + $0x8] sm:$0xff]
        %v4560 = vadd.f32 %v4556, %v4558
        %v4561 = vadd.f32 %v4557, %v4559
        %v4562 = vpack.c.bf16 %v4561, %v4560
        %v4563 = vld [vmem:[%s49] sm:$0xf]
        %v4564 = vld [vmem:[%s49 + $0x4] sm:$0xf]
        %v4565 = vld [vmem:[%s49 + $0x8] sm:$0xf]
        %v4566 = vld [vmem:[%s49 + $0xc] sm:$0xf]
        %v4567 = vld [vmem:[%s51] sm:$0x1]
        %v4569 = vlaneseq
        %v4570 = vshrl.u32 %v4569, 7
        %v4571 = vsub.s32 0, %v4570
        %v4572 = vrot.slane %v4567, %v4571
        %v4578 = vunpack.c.l.b16 %v4563
        %v4579 = vunpack.c.l.b16 %v4564
        %v4580 = vunpack.c.l.b16 %v4565
        %v4581 = vunpack.c.l.b16 %v4566
        %v4582 = vpack.c.b16 %v4579, %v4578
        %v4583 = vpack.c.b16 %v4581, %v4580
        %v4587 = vsel %vm2391, %v4562, 0
        %4589 = vmatprep.subr.bf16.mxu0 0
        %4590 = vmatpush1.bf16.msra.mxu0 %v4582
        %4591 = vmatprep.subr.bf16.mxu0 0
        %4592 = vmatpush1.bf16.msra.mxu0 %v4583
        %4593 = vmatprep.subr.bf16.mxu0 0
        %4594 = vmatpush1.bf16.msra.mxu0 0
        %4595 = vmatprep.subr.bf16.mxu0 0
        %4596 = vmatpush1.bf16.msra.mxu0 0
        %4597 = vmatprep.subr.bf16.mxu0 0
        %4598 = vmatpush1.bf16.msra.mxu0 0
        %4599 = vmatprep.subr.bf16.mxu0 0
        %4600 = vmatpush1.bf16.msra.mxu0 0
        %4601 = vmatprep.subr.bf16.mxu0 0
        %4602 = vmatpush1.bf16.msra.mxu0 0
        %4603 = vmatprep.subr.bf16.mxu0 0
        %4604 = vmatpush1.bf16.msra.mxu0 0
        %4605 = vmatprep.subr.bf16.mxu0 0
        %4606 = vmatpush1.bf16.msra.mxu0 0
        %4607 = vmatprep.subr.bf16.mxu0 0
        %4608 = vmatpush1.bf16.msra.mxu0 0
        %4609 = vmatprep.subr.bf16.mxu0 0
        %4610 = vmatpush1.bf16.msra.mxu0 0
        %4611 = vmatprep.subr.bf16.mxu0 0
        %4612 = vmatpush1.bf16.msra.mxu0 0
        %4613 = vmatprep.subr.bf16.mxu0 0
        %4614 = vmatpush1.bf16.msra.mxu0 0
        %4615 = vmatprep.subr.bf16.mxu0 0
        %4616 = vmatpush1.bf16.msra.mxu0 0
        %4617 = vmatprep.subr.bf16.mxu0 0
        %4618 = vmatpush1.bf16.msra.mxu0 0
        %4619 = vmatprep.subr.bf16.mxu0 0
        %4620 = vmatpush1.bf16.msra.mxu0 0
        %4621 = vmatprep.mubr.bf16.mxu0 0
        %4622 = vmatmul.mubr.bf16.gmra.mrb[0].mxu0 %v4587
        %v4623 = vpop.f32.mrb[0].mxu0
        %v4624 = vadd.f32 %v4572, %v4623
        %v4625 = vpop.f32.mrb[0].mxu0
        %v4626 = vpop.f32.mrb[0].mxu0
        %v4627 = vadd.f32 %v4572, %v4626
        %v4628 = vpop.f32.mrb[0].mxu0
        %4629 = vdwg.mxu0
        %v4630 = vld [vmem:[%s53] sm:$0xf]
        %v4631 = vld [vmem:[%s53 + $0x4] sm:$0xf]
        %v4632 = vld [vmem:[%s53 + $0x8] sm:$0xf]
        %v4633 = vld [vmem:[%s53 + $0xc] sm:$0xf]
        %v4634 = vld [vmem:[%s55] sm:$0x1]
        %v4636 = vlaneseq
        %v4637 = vshrl.u32 %v4636, 7
        %v4638 = vsub.s32 0, %v4637
        %v4639 = vrot.slane %v4634, %v4638
        %v4645 = vunpack.c.l.b16 %v4630
        %v4646 = vunpack.c.l.b16 %v4631
        %v4647 = vunpack.c.l.b16 %v4632
        %v4648 = vunpack.c.l.b16 %v4633
        %v4649 = vpack.c.b16 %v4646, %v4645
        %v4650 = vpack.c.b16 %v4648, %v4647
        %4653 = vmatprep.subr.bf16.mxu0 0
        %4654 = vmatpush1.bf16.msra.mxu0 %v4649
        %4655 = vmatprep.subr.bf16.mxu0 0
        %4656 = vmatpush1.bf16.msra.mxu0 %v4650
        %4657 = vmatprep.subr.bf16.mxu0 0
        %4658 = vmatpush1.bf16.msra.mxu0 0
        %4659 = vmatprep.subr.bf16.mxu0 0
        %4660 = vmatpush1.bf16.msra.mxu0 0
        %4661 = vmatprep.subr.bf16.mxu0 0
        %4662 = vmatpush1.bf16.msra.mxu0 0
        %4663 = vmatprep.subr.bf16.mxu0 0
        %4664 = vmatpush1.bf16.msra.mxu0 0
        %4665 = vmatprep.subr.bf16.mxu0 0
        %4666 = vmatpush1.bf16.msra.mxu0 0
        %4667 = vmatprep.subr.bf16.mxu0 0
        %4668 = vmatpush1.bf16.msra.mxu0 0
        %4669 = vmatprep.subr.bf16.mxu0 0
        %4670 = vmatpush1.bf16.msra.mxu0 0
        %4671 = vmatprep.subr.bf16.mxu0 0
        %4672 = vmatpush1.bf16.msra.mxu0 0
        %4673 = vmatprep.subr.bf16.mxu0 0
        %4674 = vmatpush1.bf16.msra.mxu0 0
        %4675 = vmatprep.subr.bf16.mxu0 0
        %4676 = vmatpush1.bf16.msra.mxu0 0
        %4677 = vmatprep.subr.bf16.mxu0 0
        %4678 = vmatpush1.bf16.msra.mxu0 0
        %4679 = vmatprep.subr.bf16.mxu0 0
        %4680 = vmatpush1.bf16.msra.mxu0 0
        %4681 = vmatprep.subr.bf16.mxu0 0
        %4682 = vmatpush1.bf16.msra.mxu0 0
        %4683 = vmatprep.subr.bf16.mxu0 0
        %4684 = vmatpush1.bf16.msra.mxu0 0
        %4685 = vmatprep.mubr.bf16.mxu0 0
        %4686 = vmatmul.mubr.bf16.gmra.mrb[0].mxu0 %v4587
        %v4687 = vpop.f32.mrb[0].mxu0
        %v4688 = vadd.f32 %v4639, %v4687
        %v4689 = vpop.f32.mrb[0].mxu0
        %v4690 = vpop.f32.mrb[0].mxu0
        %v4691 = vadd.f32 %v4639, %v4690
        %v4692 = vpop.f32.mrb[0].mxu0
        %4693 = vdwg.mxu0
        %v4694 = vld [vmem:[%s57] sm:$0xf]
        %v4695 = vld [vmem:[%s57 + $0x4] sm:$0xf]
        %v4696 = vld [vmem:[%s57 + $0x8] sm:$0xf]
        %v4697 = vld [vmem:[%s57 + $0xc] sm:$0xf]
        %v4698 = vld [vmem:[%s59] sm:$0x1]
        %v4700 = vlaneseq
        %v4701 = vshrl.u32 %v4700, 7
        %v4702 = vsub.s32 0, %v4701
        %v4703 = vrot.slane %v4698, %v4702
        %v4709 = vunpack.c.l.b16 %v4694
        %v4710 = vunpack.c.l.b16 %v4695
        %v4711 = vunpack.c.l.b16 %v4696
        %v4712 = vunpack.c.l.b16 %v4697
        %v4713 = vpack.c.b16 %v4710, %v4709
        %v4714 = vpack.c.b16 %v4712, %v4711
        %4717 = vmatprep.subr.bf16.mxu0 0
        %4718 = vmatpush1.bf16.msra.mxu0 %v4713
        %4719 = vmatprep.subr.bf16.mxu0 0
        %4720 = vmatpush1.bf16.msra.mxu0 %v4714
        %4721 = vmatprep.subr.bf16.mxu0 0
        %4722 = vmatpush1.bf16.msra.mxu0 0
        %4723 = vmatprep.subr.bf16.mxu0 0
        %4724 = vmatpush1.bf16.msra.mxu0 0
        %4725 = vmatprep.subr.bf16.mxu0 0
        %4726 = vmatpush1.bf16.msra.mxu0 0
        %4727 = vmatprep.subr.bf16.mxu0 0
        %4728 = vmatpush1.bf16.msra.mxu0 0
        %4729 = vmatprep.subr.bf16.mxu0 0
        %4730 = vmatpush1.bf16.msra.mxu0 0
        %4731 = vmatprep.subr.bf16.mxu0 0
        %4732 = vmatpush1.bf16.msra.mxu0 0
        %4733 = vmatprep.subr.bf16.mxu0 0
        %4734 = vmatpush1.bf16.msra.mxu0 0
        %4735 = vmatprep.subr.bf16.mxu0 0
        %4736 = vmatpush1.bf16.msra.mxu0 0
        %4737 = vmatprep.subr.bf16.mxu0 0
        %4738 = vmatpush1.bf16.msra.mxu0 0
        %4739 = vmatprep.subr.bf16.mxu0 0
        %4740 = vmatpush1.bf16.msra.mxu0 0
        %4741 = vmatprep.subr.bf16.mxu0 0
        %4742 = vmatpush1.bf16.msra.mxu0 0
        %4743 = vmatprep.subr.bf16.mxu0 0
        %4744 = vmatpush1.bf16.msra.mxu0 0
        %4745 = vmatprep.subr.bf16.mxu0 0
        %4746 = vmatpush1.bf16.msra.mxu0 0
        %4747 = vmatprep.subr.bf16.mxu0 0
        %4748 = vmatpush1.bf16.msra.mxu0 0
        %4749 = vmatprep.mubr.bf16.mxu0 0
        %4750 = vmatmul.mubr.bf16.gmra.mrb[0].mxu0 %v4587
        %v4751 = vpop.f32.mrb[0].mxu0
        %v4752 = vadd.f32 %v4703, %v4751
        %v4753 = vpop.f32.mrb[0].mxu0
        %v4754 = vpop.f32.mrb[0].mxu0
        %v4755 = vadd.f32 %v4703, %v4754
        %v4756 = vpop.f32.mrb[0].mxu0
        %4757 = vdwg.mxu0
        %v4758 = vpack.c.bf16 %v4627, %v4624
        %v4759 = vpack.c.bf16 %v4691, %v4688
        %v4761 = vsel %vm2141, %v4758, 0
        %v4764 = vsel %vm2141, %v4759, 0
        %4766 = vmatprep.subr.bf16.mxu0 0
        %4767 = vmatpush1.bf16.xpose.msra.mxu0 %v4764
        %4768 = vmatprep.subr.bf16.mxu0 0
        %4769 = vmatpush1.bf16.xpose.msra.mxu0 0
        %4770 = vmatprep.subr.bf16.mxu0 0
        %4771 = vmatpush1.bf16.xpose.msra.mxu0 0
        %4772 = vmatprep.subr.bf16.mxu0 0
        %4773 = vmatpush1.bf16.xpose.msra.mxu0 0
        %4774 = vmatprep.subr.bf16.mxu0 0
        %4775 = vmatpush1.bf16.xpose.msra.mxu0 0
        %4776 = vmatprep.subr.bf16.mxu0 0
        %4777 = vmatpush1.bf16.xpose.msra.mxu0 0
        %4778 = vmatprep.subr.bf16.mxu0 0
        %4779 = vmatpush1.bf16.xpose.msra.mxu0 0
        %4780 = vmatprep.subr.bf16.mxu0 0
        %4781 = vmatpush1.bf16.xpose.msra.mxu0 0
        %4782 = vmatprep.subr.bf16.mxu0 0
        %4783 = vmatpush1.bf16.xpose.msra.mxu0 0
        %4784 = vmatprep.subr.bf16.mxu0 0
        %4785 = vmatpush1.bf16.xpose.msra.mxu0 0
        %4786 = vmatprep.subr.bf16.mxu0 0
        %4787 = vmatpush1.bf16.xpose.msra.mxu0 0
        %4788 = vmatprep.subr.bf16.mxu0 0
        %4789 = vmatpush1.bf16.xpose.msra.mxu0 0
        %4790 = vmatprep.subr.bf16.mxu0 0
        %4791 = vmatpush1.bf16.xpose.msra.mxu0 0
        %4792 = vmatprep.subr.bf16.mxu0 0
        %4793 = vmatpush1.bf16.xpose.msra.mxu0 0
        %4794 = vmatprep.subr.bf16.mxu0 0
        %4795 = vmatpush1.bf16.xpose.msra.mxu0 0
        %4796 = vmatprep.subr.bf16.mxu0 0
        %4797 = vmatpush1.bf16.xpose.msra.mxu0 0
        %4798 = vmatprep.mubr.bf16.mxu0 0
        %4799 = vmatmul.mubr.bf16.gmra.mrb[0].mxu0 %v4761
        %v4800 = vpop.f32.mrb[0].mxu0
        %v4801 = vadd.f32 0.0, %v4800
        %v4802 = vpop.f32.mrb[0].mxu0
        %v4803 = vpop.f32.mrb[0].mxu0
        %v4804 = vadd.f32 0.0, %v4803
        %v4805 = vpop.f32.mrb[0].mxu0
        %4806 = vdwg.mxu0
        %v4807 = vmul.f32 %v4801, 0.35355338
        %v4808 = vmul.f32 %v4804, 0.35355338
        %v4809 = vsel %vm2201, %v4807, -inf
        %4810 = vmax.xlane.f32.xlu0 %v4809
        %v4811 = vpop.xlane.xlu0 %4810
        %v4812 = vsel %vm2201, %v4808, -inf
        %4813 = vmax.xlane.f32.xlu0 %v4812
        %v4814 = vpop.xlane.xlu0 %4813
        %v4815 = vsub.f32 %v4807, %v4811
        %v4816 = vsub.f32 %v4808, %v4814
        %v4817 = vmul.f32 %v4815, 1.442695
        %v4818 = vpow.pop %v4817
        %v4819 = vmul.f32 %v4816, 1.442695
        %v4820 = vpow.pop %v4819
        %v4821 = vsel %vm2201, %v4818, 0.0
        %4822 = vadd.xlane.f32.xlu0 %v4821
        %v4823 = vpop.xlane.xlu0 %4822
        %v4824 = vsel %vm2201, %v4820, 0.0
        %4825 = vadd.xlane.f32.xlu0 %v4824
        %v4826 = vpop.xlane.xlu0 %4825
        %v4827 = vrcp.pop %v4823
        %v4828 = vrcp.pop %v4826
        %v4829 = vmul.f32 %v4818, %v4827
        %v4830 = vmul.f32 %v4820, %v4828
        %v4831 = vpack.c.bf16 %v4830, %v4829
        %v4832 = vpack.c.bf16 %v4755, %v4752
        %v4834 = vsel %vm2201, %v4831, 0
        %4836 = vmatprep.subr.bf16.mxu0 0
        %4837 = vmatpush1.bf16.msra.mxu0 %v4832
        %4838 = vmatprep.subr.bf16.mxu0 0
        %4839 = vmatpush1.bf16.msra.mxu0 0
        %4840 = vmatprep.subr.bf16.mxu0 0
        %4841 = vmatpush1.bf16.msra.mxu0 0
        %4842 = vmatprep.subr.bf16.mxu0 0
        %4843 = vmatpush1.bf16.msra.mxu0 0
        %4844 = vmatprep.subr.bf16.mxu0 0
        %4845 = vmatpush1.bf16.msra.mxu0 0
        %4846 = vmatprep.subr.bf16.mxu0 0
        %4847 = vmatpush1.bf16.msra.mxu0 0
        %4848 = vmatprep.subr.bf16.mxu0 0
        %4849 = vmatpush1.bf16.msra.mxu0 0
        %4850 = vmatprep.subr.bf16.mxu0 0
        %4851 = vmatpush1.bf16.msra.mxu0 0
        %4852 = vmatprep.subr.bf16.mxu0 0
        %4853 = vmatpush1.bf16.msra.mxu0 0
        %4854 = vmatprep.subr.bf16.mxu0 0
        %4855 = vmatpush1.bf16.msra.mxu0 0
        %4856 = vmatprep.subr.bf16.mxu0 0
        %4857 = vmatpush1.bf16.msra.mxu0 0
        %4858 = vmatprep.subr.bf16.mxu0 0
        %4859 = vmatpush1.bf16.msra.mxu0 0
        %4860 = vmatprep.subr.bf16.mxu0 0
        %4861 = vmatpush1.bf16.msra.mxu0 0
        %4862 = vmatprep.subr.bf16.mxu0 0
        %4863 = vmatpush1.bf16.msra.mxu0 0
        %4864 = vmatprep.subr.bf16.mxu0 0
        %4865 = vmatpush1.bf16.msra.mxu0 0
        %4866 = vmatprep.subr.bf16.mxu0 0
        %4867 = vmatpush1.bf16.msra.mxu0 0
        %4868 = vmatprep.mubr.bf16.mxu0 0
        %4869 = vmatmul.mubr.bf16.gmra.mrb[0].mxu0 %v4834
        %v4870 = vpop.f32.mrb[0].mxu0
        %v4871 = vadd.f32 0.0, %v4870
        %v4872 = vpop.f32.mrb[0].mxu0
        %v4873 = vpop.f32.mrb[0].mxu0
        %v4874 = vadd.f32 0.0, %v4873
        %v4875 = vpop.f32.mrb[0].mxu0
        %4876 = vdwg.mxu0
        %v4877 = vpack.c.bf16 %v4874, %v4871
        %v4878 = vld [vmem:[%s61] sm:$0xf]
        %s4879 = scalar_lea.vmem %s49, 16
        %v4880 = vld [vmem:[%s4879] sm:$0xf]
        %v4881 = vld [vmem:[%s4879 + $0x4] sm:$0xf]
        %v4882 = vld [vmem:[%s4879 + $0x8] sm:$0xf]
        %v4883 = vld [vmem:[%s4879 + $0xc] sm:$0xf]
        %s4884 = scalar_lea.vmem %s51, 1
        %v4885 = vld [vmem:[%s4884] sm:$0x1]
        %v4887 = vlaneseq
        %v4888 = vshrl.u32 %v4887, 7
        %v4889 = vsub.s32 0, %v4888
        %v4890 = vrot.slane %v4885, %v4889
        %v4896 = vunpack.c.l.b16 %v4880
        %v4897 = vunpack.c.l.b16 %v4881
        %v4898 = vunpack.c.l.b16 %v4882
        %v4899 = vunpack.c.l.b16 %v4883
        %v4900 = vpack.c.b16 %v4897, %v4896
        %v4901 = vpack.c.b16 %v4899, %v4898
        %4904 = vmatprep.subr.bf16.mxu0 0
        %4905 = vmatpush1.bf16.msra.mxu0 %v4900
        %4906 = vmatprep.subr.bf16.mxu0 0
        %4907 = vmatpush1.bf16.msra.mxu0 %v4901
        %4908 = vmatprep.subr.bf16.mxu0 0
        %4909 = vmatpush1.bf16.msra.mxu0 0
        %4910 = vmatprep.subr.bf16.mxu0 0
        %4911 = vmatpush1.bf16.msra.mxu0 0
        %4912 = vmatprep.subr.bf16.mxu0 0
        %4913 = vmatpush1.bf16.msra.mxu0 0
        %4914 = vmatprep.subr.bf16.mxu0 0
        %4915 = vmatpush1.bf16.msra.mxu0 0
        %4916 = vmatprep.subr.bf16.mxu0 0
        %4917 = vmatpush1.bf16.msra.mxu0 0
        %4918 = vmatprep.subr.bf16.mxu0 0
        %4919 = vmatpush1.bf16.msra.mxu0 0
        %4920 = vmatprep.subr.bf16.mxu0 0
        %4921 = vmatpush1.bf16.msra.mxu0 0
        %4922 = vmatprep.subr.bf16.mxu0 0
        %4923 = vmatpush1.bf16.msra.mxu0 0
        %4924 = vmatprep.subr.bf16.mxu0 0
        %4925 = vmatpush1.bf16.msra.mxu0 0
        %4926 = vmatprep.subr.bf16.mxu0 0
        %4927 = vmatpush1.bf16.msra.mxu0 0
        %4928 = vmatprep.subr.bf16.mxu0 0
        %4929 = vmatpush1.bf16.msra.mxu0 0
        %4930 = vmatprep.subr.bf16.mxu0 0
        %4931 = vmatpush1.bf16.msra.mxu0 0
        %4932 = vmatprep.subr.bf16.mxu0 0
        %4933 = vmatpush1.bf16.msra.mxu0 0
        %4934 = vmatprep.subr.bf16.mxu0 0
        %4935 = vmatpush1.bf16.msra.mxu0 0
        %4936 = vmatprep.mubr.bf16.mxu0 0
        %4937 = vmatmul.mubr.bf16.gmra.mrb[0].mxu0 %v4587
        %v4938 = vpop.f32.mrb[0].mxu0
        %v4939 = vadd.f32 %v4890, %v4938
        %v4940 = vpop.f32.mrb[0].mxu0
        %v4941 = vpop.f32.mrb[0].mxu0
        %v4942 = vadd.f32 %v4890, %v4941
        %v4943 = vpop.f32.mrb[0].mxu0
        %4944 = vdwg.mxu0
        %s4945 = scalar_lea.vmem %s53, 16
        %v4946 = vld [vmem:[%s4945] sm:$0xf]
        %v4947 = vld [vmem:[%s4945 + $0x4] sm:$0xf]
        %v4948 = vld [vmem:[%s4945 + $0x8] sm:$0xf]
        %v4949 = vld [vmem:[%s4945 + $0xc] sm:$0xf]
        %s4950 = scalar_lea.vmem %s55, 1
        %v4951 = vld [vmem:[%s4950] sm:$0x1]
        %v4953 = vlaneseq
        %v4954 = vshrl.u32 %v4953, 7
        %v4955 = vsub.s32 0, %v4954
        %v4956 = vrot.slane %v4951, %v4955
        %v4962 = vunpack.c.l.b16 %v4946
        %v4963 = vunpack.c.l.b16 %v4947
        %v4964 = vunpack.c.l.b16 %v4948
        %v4965 = vunpack.c.l.b16 %v4949
        %v4966 = vpack.c.b16 %v4963, %v4962
        %v4967 = vpack.c.b16 %v4965, %v4964
        %4970 = vmatprep.subr.bf16.mxu0 0
        %4971 = vmatpush1.bf16.msra.mxu0 %v4966
        %4972 = vmatprep.subr.bf16.mxu0 0
        %4973 = vmatpush1.bf16.msra.mxu0 %v4967
        %4974 = vmatprep.subr.bf16.mxu0 0
        %4975 = vmatpush1.bf16.msra.mxu0 0
        %4976 = vmatprep.subr.bf16.mxu0 0
        %4977 = vmatpush1.bf16.msra.mxu0 0
        %4978 = vmatprep.subr.bf16.mxu0 0
        %4979 = vmatpush1.bf16.msra.mxu0 0
        %4980 = vmatprep.subr.bf16.mxu0 0
        %4981 = vmatpush1.bf16.msra.mxu0 0
        %4982 = vmatprep.subr.bf16.mxu0 0
        %4983 = vmatpush1.bf16.msra.mxu0 0
        %4984 = vmatprep.subr.bf16.mxu0 0
        %4985 = vmatpush1.bf16.msra.mxu0 0
        %4986 = vmatprep.subr.bf16.mxu0 0
        %4987 = vmatpush1.bf16.msra.mxu0 0
        %4988 = vmatprep.subr.bf16.mxu0 0
        %4989 = vmatpush1.bf16.msra.mxu0 0
        %4990 = vmatprep.subr.bf16.mxu0 0
        %4991 = vmatpush1.bf16.msra.mxu0 0
        %4992 = vmatprep.subr.bf16.mxu0 0
        %4993 = vmatpush1.bf16.msra.mxu0 0
        %4994 = vmatprep.subr.bf16.mxu0 0
        %4995 = vmatpush1.bf16.msra.mxu0 0
        %4996 = vmatprep.subr.bf16.mxu0 0
        %4997 = vmatpush1.bf16.msra.mxu0 0
        %4998 = vmatprep.subr.bf16.mxu0 0
        %4999 = vmatpush1.bf16.msra.mxu0 0
        %5000 = vmatprep.subr.bf16.mxu0 0
        %5001 = vmatpush1.bf16.msra.mxu0 0
        %5002 = vmatprep.mubr.bf16.mxu0 0
        %5003 = vmatmul.mubr.bf16.gmra.mrb[0].mxu0 %v4587
        %v5004 = vpop.f32.mrb[0].mxu0
        %v5005 = vadd.f32 %v4956, %v5004
        %v5006 = vpop.f32.mrb[0].mxu0
        %v5007 = vpop.f32.mrb[0].mxu0
        %v5008 = vadd.f32 %v4956, %v5007
        %v5009 = vpop.f32.mrb[0].mxu0
        %5010 = vdwg.mxu0
        %s5011 = scalar_lea.vmem %s57, 16
        %v5012 = vld [vmem:[%s5011] sm:$0xf]
        %v5013 = vld [vmem:[%s5011 + $0x4] sm:$0xf]
        %v5014 = vld [vmem:[%s5011 + $0x8] sm:$0xf]
        %v5015 = vld [vmem:[%s5011 + $0xc] sm:$0xf]
        %s5016 = scalar_lea.vmem %s59, 1
        %v5017 = vld [vmem:[%s5016] sm:$0x1]
        %v5019 = vlaneseq
        %v5020 = vshrl.u32 %v5019, 7
        %v5021 = vsub.s32 0, %v5020
        %v5022 = vrot.slane %v5017, %v5021
        %v5028 = vunpack.c.l.b16 %v5012
        %v5029 = vunpack.c.l.b16 %v5013
        %v5030 = vunpack.c.l.b16 %v5014
        %v5031 = vunpack.c.l.b16 %v5015
        %v5032 = vpack.c.b16 %v5029, %v5028
        %v5033 = vpack.c.b16 %v5031, %v5030
        %5036 = vmatprep.subr.bf16.mxu0 0
        %5037 = vmatpush1.bf16.msra.mxu0 %v5032
        %5038 = vmatprep.subr.bf16.mxu0 0
        %5039 = vmatpush1.bf16.msra.mxu0 %v5033
        %5040 = vmatprep.subr.bf16.mxu0 0
        %5041 = vmatpush1.bf16.msra.mxu0 0
        %5042 = vmatprep.subr.bf16.mxu0 0
        %5043 = vmatpush1.bf16.msra.mxu0 0
        %5044 = vmatprep.subr.bf16.mxu0 0
        %5045 = vmatpush1.bf16.msra.mxu0 0
        %5046 = vmatprep.subr.bf16.mxu0 0
        %5047 = vmatpush1.bf16.msra.mxu0 0
        %5048 = vmatprep.subr.bf16.mxu0 0
        %5049 = vmatpush1.bf16.msra.mxu0 0
        %5050 = vmatprep.subr.bf16.mxu0 0
        %5051 = vmatpush1.bf16.msra.mxu0 0
        %5052 = vmatprep.subr.bf16.mxu0 0
        %5053 = vmatpush1.bf16.msra.mxu0 0
        %5054 = vmatprep.subr.bf16.mxu0 0
        %5055 = vmatpush1.bf16.msra.mxu0 0
        %5056 = vmatprep.subr.bf16.mxu0 0
        %5057 = vmatpush1.bf16.msra.mxu0 0
        %5058 = vmatprep.subr.bf16.mxu0 0
        %5059 = vmatpush1.bf16.msra.mxu0 0
        %5060 = vmatprep.subr.bf16.mxu0 0
        %5061 = vmatpush1.bf16.msra.mxu0 0
        %5062 = vmatprep.subr.bf16.mxu0 0
        %5063 = vmatpush1.bf16.msra.mxu0 0
        %5064 = vmatprep.subr.bf16.mxu0 0
        %5065 = vmatpush1.bf16.msra.mxu0 0
        %5066 = vmatprep.subr.bf16.mxu0 0
        %5067 = vmatpush1.bf16.msra.mxu0 0
        %5068 = vmatprep.mubr.bf16.mxu0 0
        %5069 = vmatmul.mubr.bf16.gmra.mrb[0].mxu0 %v4587
        %v5070 = vpop.f32.mrb[0].mxu0
        %v5071 = vadd.f32 %v5022, %v5070
        %v5072 = vpop.f32.mrb[0].mxu0
        %v5073 = vpop.f32.mrb[0].mxu0
        %v5074 = vadd.f32 %v5022, %v5073
        %v5075 = vpop.f32.mrb[0].mxu0
        %5076 = vdwg.mxu0
        %v5077 = vpack.c.bf16 %v4942, %v4939
        %v5078 = vpack.c.bf16 %v5008, %v5005
        %v5080 = vsel %vm2141, %v5077, 0
        %v5083 = vsel %vm2141, %v5078, 0
        %5085 = vmatprep.subr.bf16.mxu0 0
        %5086 = vmatpush1.bf16.xpose.msra.mxu0 %v5083
        %5087 = vmatprep.subr.bf16.mxu0 0
        %5088 = vmatpush1.bf16.xpose.msra.mxu0 0
        %5089 = vmatprep.subr.bf16.mxu0 0
        %5090 = vmatpush1.bf16.xpose.msra.mxu0 0
        %5091 = vmatprep.subr.bf16.mxu0 0
        %5092 = vmatpush1.bf16.xpose.msra.mxu0 0
        %5093 = vmatprep.subr.bf16.mxu0 0
        %5094 = vmatpush1.bf16.xpose.msra.mxu0 0
        %5095 = vmatprep.subr.bf16.mxu0 0
        %5096 = vmatpush1.bf16.xpose.msra.mxu0 0
        %5097 = vmatprep.subr.bf16.mxu0 0
        %5098 = vmatpush1.bf16.xpose.msra.mxu0 0
        %5099 = vmatprep.subr.bf16.mxu0 0
        %5100 = vmatpush1.bf16.xpose.msra.mxu0 0
        %5101 = vmatprep.subr.bf16.mxu0 0
        %5102 = vmatpush1.bf16.xpose.msra.mxu0 0
        %5103 = vmatprep.subr.bf16.mxu0 0
        %5104 = vmatpush1.bf16.xpose.msra.mxu0 0
        %5105 = vmatprep.subr.bf16.mxu0 0
        %5106 = vmatpush1.bf16.xpose.msra.mxu0 0
        %5107 = vmatprep.subr.bf16.mxu0 0
        %5108 = vmatpush1.bf16.xpose.msra.mxu0 0
        %5109 = vmatprep.subr.bf16.mxu0 0
        %5110 = vmatpush1.bf16.xpose.msra.mxu0 0
        %5111 = vmatprep.subr.bf16.mxu0 0
        %5112 = vmatpush1.bf16.xpose.msra.mxu0 0
        %5113 = vmatprep.subr.bf16.mxu0 0
        %5114 = vmatpush1.bf16.xpose.msra.mxu0 0
        %5115 = vmatprep.subr.bf16.mxu0 0
        %5116 = vmatpush1.bf16.xpose.msra.mxu0 0
        %5117 = vmatprep.mubr.bf16.mxu0 0
        %5118 = vmatmul.mubr.bf16.gmra.mrb[0].mxu0 %v5080
        %v5119 = vpop.f32.mrb[0].mxu0
        %v5120 = vadd.f32 0.0, %v5119
        %v5121 = vpop.f32.mrb[0].mxu0
        %v5122 = vpop.f32.mrb[0].mxu0
        %v5123 = vadd.f32 0.0, %v5122
        %v5124 = vpop.f32.mrb[0].mxu0
        %5125 = vdwg.mxu0
        %v5126 = vmul.f32 %v5120, 0.35355338
        %v5127 = vmul.f32 %v5123, 0.35355338
        %v5128 = vsel %vm2201, %v5126, -inf
        %5129 = vmax.xlane.f32.xlu0 %v5128
        %v5130 = vpop.xlane.xlu0 %5129
        %v5131 = vsel %vm2201, %v5127, -inf
        %5132 = vmax.xlane.f32.xlu0 %v5131
        %v5133 = vpop.xlane.xlu0 %5132
        %v5134 = vsub.f32 %v5126, %v5130
        %v5135 = vsub.f32 %v5127, %v5133
        %v5136 = vmul.f32 %v5134, 1.442695
        %v5137 = vpow.pop %v5136
        %v5138 = vmul.f32 %v5135, 1.442695
        %v5139 = vpow.pop %v5138
        %v5140 = vsel %vm2201, %v5137, 0.0
        %5141 = vadd.xlane.f32.xlu0 %v5140
        %v5142 = vpop.xlane.xlu0 %5141
        %v5143 = vsel %vm2201, %v5139, 0.0
        %5144 = vadd.xlane.f32.xlu0 %v5143
        %v5145 = vpop.xlane.xlu0 %5144
        %v5146 = vrcp.pop %v5142
        %v5147 = vrcp.pop %v5145
        %v5148 = vmul.f32 %v5137, %v5146
        %v5149 = vmul.f32 %v5139, %v5147
        %v5150 = vpack.c.bf16 %v5149, %v5148
        %v5151 = vpack.c.bf16 %v5074, %v5071
        %v5153 = vsel %vm2201, %v5150, 0
        %5155 = vmatprep.subr.bf16.mxu0 0
        %5156 = vmatpush1.bf16.msra.mxu0 %v5151
        %5157 = vmatprep.subr.bf16.mxu0 0
        %5158 = vmatpush1.bf16.msra.mxu0 0
        %5159 = vmatprep.subr.bf16.mxu0 0
        %5160 = vmatpush1.bf16.msra.mxu0 0
        %5161 = vmatprep.subr.bf16.mxu0 0
        %5162 = vmatpush1.bf16.msra.mxu0 0
        %5163 = vmatprep.subr.bf16.mxu0 0
        %5164 = vmatpush1.bf16.msra.mxu0 0
        %5165 = vmatprep.subr.bf16.mxu0 0
        %5166 = vmatpush1.bf16.msra.mxu0 0
        %5167 = vmatprep.subr.bf16.mxu0 0
        %5168 = vmatpush1.bf16.msra.mxu0 0
        %5169 = vmatprep.subr.bf16.mxu0 0
        %5170 = vmatpush1.bf16.msra.mxu0 0
        %5171 = vmatprep.subr.bf16.mxu0 0
        %5172 = vmatpush1.bf16.msra.mxu0 0
        %5173 = vmatprep.subr.bf16.mxu0 0
        %5174 = vmatpush1.bf16.msra.mxu0 0
        %5175 = vmatprep.subr.bf16.mxu0 0
        %5176 = vmatpush1.bf16.msra.mxu0 0
        %5177 = vmatprep.subr.bf16.mxu0 0
        %5178 = vmatpush1.bf16.msra.mxu0 0
        %5179 = vmatprep.subr.bf16.mxu0 0
        %5180 = vmatpush1.bf16.msra.mxu0 0
        %5181 = vmatprep.subr.bf16.mxu0 0
        %5182 = vmatpush1.bf16.msra.mxu0 0
        %5183 = vmatprep.subr.bf16.mxu0 0
        %5184 = vmatpush1.bf16.msra.mxu0 0
        %5185 = vmatprep.subr.bf16.mxu0 0
        %5186 = vmatpush1.bf16.msra.mxu0 0
        %5187 = vmatprep.mubr.bf16.mxu0 0
        %5188 = vmatmul.mubr.bf16.gmra.mrb[0].mxu0 %v5153
        %v5189 = vpop.f32.mrb[0].mxu0
        %v5190 = vadd.f32 0.0, %v5189
        %v5191 = vpop.f32.mrb[0].mxu0
        %v5192 = vpop.f32.mrb[0].mxu0
        %v5193 = vadd.f32 0.0, %v5192
        %v5194 = vpop.f32.mrb[0].mxu0
        %5195 = vdwg.mxu0
        %v5196 = vpack.c.bf16 %v5193, %v5190
        %s5197 = scalar_lea.vmem %s61, 4
        %v5198 = vld [vmem:[%s5197] sm:$0xf]
        %v5200 = vsel %vm2141, %v5196, 0
        %v5203 = vsel %vm2145, %v5198, 0
        %5205 = vmatprep.subr.bf16.mxu0 0
        %5206 = vmatpush1.bf16.msra.mxu0 %v5203
        %5207 = vmatprep.subr.bf16.mxu0 0
        %5208 = vmatpush1.bf16.msra.mxu0 0
        %5209 = vmatprep.subr.bf16.mxu0 0
        %5210 = vmatpush1.bf16.msra.mxu0 0
        %5211 = vmatprep.subr.bf16.mxu0 0
        %5212 = vmatpush1.bf16.msra.mxu0 0
        %5213 = vmatprep.subr.bf16.mxu0 0
        %5214 = vmatpush1.bf16.msra.mxu0 0
        %5215 = vmatprep.subr.bf16.mxu0 0
        %5216 = vmatpush1.bf16.msra.mxu0 0
        %5217 = vmatprep.subr.bf16.mxu0 0
        %5218 = vmatpush1.bf16.msra.mxu0 0
        %5219 = vmatprep.subr.bf16.mxu0 0
        %5220 = vmatpush1.bf16.msra.mxu0 0
        %5221 = vmatprep.subr.bf16.mxu0 0
        %5222 = vmatpush1.bf16.msra.mxu0 0
        %5223 = vmatprep.subr.bf16.mxu0 0
        %5224 = vmatpush1.bf16.msra.mxu0 0
        %5225 = vmatprep.subr.bf16.mxu0 0
        %5226 = vmatpush1.bf16.msra.mxu0 0
        %5227 = vmatprep.subr.bf16.mxu0 0
        %5228 = vmatpush1.bf16.msra.mxu0 0
        %5229 = vmatprep.subr.bf16.mxu0 0
        %5230 = vmatpush1.bf16.msra.mxu0 0
        %5231 = vmatprep.subr.bf16.mxu0 0
        %5232 = vmatpush1.bf16.msra.mxu0 0
        %5233 = vmatprep.subr.bf16.mxu0 0
        %5234 = vmatpush1.bf16.msra.mxu0 0
        %5235 = vmatprep.subr.bf16.mxu0 0
        %5236 = vmatpush1.bf16.msra.mxu0 0
        %5237 = vmatprep.mubr.bf16.mxu0 0
        %5238 = vmatmul.mubr.bf16.gmra.mrb[0].mxu0 %v5200
        %v5239 = vpop.f32.mrb[0].mxu0
        %v5240 = vadd.f32 0.0, %v5239
        %v5241 = vpop.f32.mrb[0].mxu0
        %v5242 = vpop.f32.mrb[0].mxu0
        %v5243 = vadd.f32 0.0, %v5242
        %v5244 = vpop.f32.mrb[0].mxu0
        %5245 = vdwg.mxu0
        %v5247 = vsel %vm2141, %v4877, 0
        %v5250 = vsel %vm2145, %v4878, 0
        %5252 = vmatprep.subr.bf16.mxu0 0
        %5253 = vmatpush1.bf16.msra.mxu0 %v5250
        %5254 = vmatprep.subr.bf16.mxu0 0
        %5255 = vmatpush1.bf16.msra.mxu0 0
        %5256 = vmatprep.subr.bf16.mxu0 0
        %5257 = vmatpush1.bf16.msra.mxu0 0
        %5258 = vmatprep.subr.bf16.mxu0 0
        %5259 = vmatpush1.bf16.msra.mxu0 0
        %5260 = vmatprep.subr.bf16.mxu0 0
        %5261 = vmatpush1.bf16.msra.mxu0 0
        %5262 = vmatprep.subr.bf16.mxu0 0
        %5263 = vmatpush1.bf16.msra.mxu0 0
        %5264 = vmatprep.subr.bf16.mxu0 0
        %5265 = vmatpush1.bf16.msra.mxu0 0
        %5266 = vmatprep.subr.bf16.mxu0 0
        %5267 = vmatpush1.bf16.msra.mxu0 0
        %5268 = vmatprep.subr.bf16.mxu0 0
        %5269 = vmatpush1.bf16.msra.mxu0 0
        %5270 = vmatprep.subr.bf16.mxu0 0
        %5271 = vmatpush1.bf16.msra.mxu0 0
        %5272 = vmatprep.subr.bf16.mxu0 0
        %5273 = vmatpush1.bf16.msra.mxu0 0
        %5274 = vmatprep.subr.bf16.mxu0 0
        %5275 = vmatpush1.bf16.msra.mxu0 0
        %5276 = vmatprep.subr.bf16.mxu0 0
        %5277 = vmatpush1.bf16.msra.mxu0 0
        %5278 = vmatprep.subr.bf16.mxu0 0
        %5279 = vmatpush1.bf16.msra.mxu0 0
        %5280 = vmatprep.subr.bf16.mxu0 0
        %5281 = vmatpush1.bf16.msra.mxu0 0
        %5282 = vmatprep.subr.bf16.mxu0 0
        %5283 = vmatpush1.bf16.msra.mxu0 0
        %5284 = vmatprep.mubr.bf16.mxu0 0
        %5285 = vmatmul.mubr.bf16.gmra.mrb[0].mxu0 %v5247
        %v5286 = vpop.f32.mrb[0].mxu0
        %v5287 = vadd.f32 %v5240, %v5286
        %v5288 = vpop.f32.mrb[0].mxu0
        %v5289 = vpop.f32.mrb[0].mxu0
        %v5290 = vadd.f32 %v5243, %v5289
        %v5291 = vpop.f32.mrb[0].mxu0
        %5292 = vdwg.mxu0
        %s5293 = scalar_lea.vmem %s49, 32
        %v5294 = vld [vmem:[%s5293] sm:$0xf]
        %v5295 = vld [vmem:[%s5293 + $0x4] sm:$0xf]
        %v5296 = vld [vmem:[%s5293 + $0x8] sm:$0xf]
        %v5297 = vld [vmem:[%s5293 + $0xc] sm:$0xf]
        %s5298 = scalar_lea.vmem %s51, 2
        %v5299 = vld [vmem:[%s5298] sm:$0x1]
        %v5301 = vlaneseq
        %v5302 = vshrl.u32 %v5301, 7
        %v5303 = vsub.s32 0, %v5302
        %v5304 = vrot.slane %v5299, %v5303
        %v5310 = vunpack.c.l.b16 %v5294
        %v5311 = vunpack.c.l.b16 %v5295
        %v5312 = vunpack.c.l.b16 %v5296
        %v5313 = vunpack.c.l.b16 %v5297
        %v5314 = vpack.c.b16 %v5311, %v5310
        %v5315 = vpack.c.b16 %v5313, %v5312
        %5318 = vmatprep.subr.bf16.mxu0 0
        %5319 = vmatpush1.bf16.msra.mxu0 %v5314
        %5320 = vmatprep.subr.bf16.mxu0 0
        %5321 = vmatpush1.bf16.msra.mxu0 %v5315
        %5322 = vmatprep.subr.bf16.mxu0 0
        %5323 = vmatpush1.bf16.msra.mxu0 0
        %5324 = vmatprep.subr.bf16.mxu0 0
        %5325 = vmatpush1.bf16.msra.mxu0 0
        %5326 = vmatprep.subr.bf16.mxu0 0
        %5327 = vmatpush1.bf16.msra.mxu0 0
        %5328 = vmatprep.subr.bf16.mxu0 0
        %5329 = vmatpush1.bf16.msra.mxu0 0
        %5330 = vmatprep.subr.bf16.mxu0 0
        %5331 = vmatpush1.bf16.msra.mxu0 0
        %5332 = vmatprep.subr.bf16.mxu0 0
        %5333 = vmatpush1.bf16.msra.mxu0 0
        %5334 = vmatprep.subr.bf16.mxu0 0
        %5335 = vmatpush1.bf16.msra.mxu0 0
        %5336 = vmatprep.subr.bf16.mxu0 0
        %5337 = vmatpush1.bf16.msra.mxu0 0
        %5338 = vmatprep.subr.bf16.mxu0 0
        %5339 = vmatpush1.bf16.msra.mxu0 0
        %5340 = vmatprep.subr.bf16.mxu0 0
        %5341 = vmatpush1.bf16.msra.mxu0 0
        %5342 = vmatprep.subr.bf16.mxu0 0
        %5343 = vmatpush1.bf16.msra.mxu0 0
        %5344 = vmatprep.subr.bf16.mxu0 0
        %5345 = vmatpush1.bf16.msra.mxu0 0
        %5346 = vmatprep.subr.bf16.mxu0 0
        %5347 = vmatpush1.bf16.msra.mxu0 0
        %5348 = vmatprep.subr.bf16.mxu0 0
        %5349 = vmatpush1.bf16.msra.mxu0 0
        %5350 = vmatprep.mubr.bf16.mxu0 0
        %5351 = vmatmul.mubr.bf16.gmra.mrb[0].mxu0 %v4587
        %v5352 = vpop.f32.mrb[0].mxu0
        %v5353 = vadd.f32 %v5304, %v5352
        %v5354 = vpop.f32.mrb[0].mxu0
        %v5355 = vpop.f32.mrb[0].mxu0
        %v5356 = vadd.f32 %v5304, %v5355
        %v5357 = vpop.f32.mrb[0].mxu0
        %5358 = vdwg.mxu0
        %s5359 = scalar_lea.vmem %s53, 32
        %v5360 = vld [vmem:[%s5359] sm:$0xf]
        %v5361 = vld [vmem:[%s5359 + $0x4] sm:$0xf]
        %v5362 = vld [vmem:[%s5359 + $0x8] sm:$0xf]
        %v5363 = vld [vmem:[%s5359 + $0xc] sm:$0xf]
        %s5364 = scalar_lea.vmem %s55, 2
        %v5365 = vld [vmem:[%s5364] sm:$0x1]
        %v5367 = vlaneseq
        %v5368 = vshrl.u32 %v5367, 7
        %v5369 = vsub.s32 0, %v5368
        %v5370 = vrot.slane %v5365, %v5369
        %v5376 = vunpack.c.l.b16 %v5360
        %v5377 = vunpack.c.l.b16 %v5361
        %v5378 = vunpack.c.l.b16 %v5362
        %v5379 = vunpack.c.l.b16 %v5363
        %v5380 = vpack.c.b16 %v5377, %v5376
        %v5381 = vpack.c.b16 %v5379, %v5378
        %5384 = vmatprep.subr.bf16.mxu0 0
        %5385 = vmatpush1.bf16.msra.mxu0 %v5380
        %5386 = vmatprep.subr.bf16.mxu0 0
        %5387 = vmatpush1.bf16.msra.mxu0 %v5381
        %5388 = vmatprep.subr.bf16.mxu0 0
        %5389 = vmatpush1.bf16.msra.mxu0 0
        %5390 = vmatprep.subr.bf16.mxu0 0
        %5391 = vmatpush1.bf16.msra.mxu0 0
        %5392 = vmatprep.subr.bf16.mxu0 0
        %5393 = vmatpush1.bf16.msra.mxu0 0
        %5394 = vmatprep.subr.bf16.mxu0 0
        %5395 = vmatpush1.bf16.msra.mxu0 0
        %5396 = vmatprep.subr.bf16.mxu0 0
        %5397 = vmatpush1.bf16.msra.mxu0 0
        %5398 = vmatprep.subr.bf16.mxu0 0
        %5399 = vmatpush1.bf16.msra.mxu0 0
        %5400 = vmatprep.subr.bf16.mxu0 0
        %5401 = vmatpush1.bf16.msra.mxu0 0
        %5402 = vmatprep.subr.bf16.mxu0 0
        %5403 = vmatpush1.bf16.msra.mxu0 0
        %5404 = vmatprep.subr.bf16.mxu0 0
        %5405 = vmatpush1.bf16.msra.mxu0 0
        %5406 = vmatprep.subr.bf16.mxu0 0
        %5407 = vmatpush1.bf16.msra.mxu0 0
        %5408 = vmatprep.subr.bf16.mxu0 0
        %5409 = vmatpush1.bf16.msra.mxu0 0
        %5410 = vmatprep.subr.bf16.mxu0 0
        %5411 = vmatpush1.bf16.msra.mxu0 0
        %5412 = vmatprep.subr.bf16.mxu0 0
        %5413 = vmatpush1.bf16.msra.mxu0 0
        %5414 = vmatprep.subr.bf16.mxu0 0
        %5415 = vmatpush1.bf16.msra.mxu0 0
        %5416 = vmatprep.mubr.bf16.mxu0 0
        %5417 = vmatmul.mubr.bf16.gmra.mrb[0].mxu0 %v4587
        %v5418 = vpop.f32.mrb[0].mxu0
        %v5419 = vadd.f32 %v5370, %v5418
        %v5420 = vpop.f32.mrb[0].mxu0
        %v5421 = vpop.f32.mrb[0].mxu0
        %v5422 = vadd.f32 %v5370, %v5421
        %v5423 = vpop.f32.mrb[0].mxu0
        %5424 = vdwg.mxu0
        %s5425 = scalar_lea.vmem %s57, 32
        %v5426 = vld [vmem:[%s5425] sm:$0xf]
        %v5427 = vld [vmem:[%s5425 + $0x4] sm:$0xf]
        %v5428 = vld [vmem:[%s5425 + $0x8] sm:$0xf]
        %v5429 = vld [vmem:[%s5425 + $0xc] sm:$0xf]
        %s5430 = scalar_lea.vmem %s59, 2
        %v5431 = vld [vmem:[%s5430] sm:$0x1]
        %v5433 = vlaneseq
        %v5434 = vshrl.u32 %v5433, 7
        %v5435 = vsub.s32 0, %v5434
        %v5436 = vrot.slane %v5431, %v5435
        %v5442 = vunpack.c.l.b16 %v5426
        %v5443 = vunpack.c.l.b16 %v5427
        %v5444 = vunpack.c.l.b16 %v5428
        %v5445 = vunpack.c.l.b16 %v5429
        %v5446 = vpack.c.b16 %v5443, %v5442
        %v5447 = vpack.c.b16 %v5445, %v5444
        %5450 = vmatprep.subr.bf16.mxu0 0
        %5451 = vmatpush1.bf16.msra.mxu0 %v5446
        %5452 = vmatprep.subr.bf16.mxu0 0
        %5453 = vmatpush1.bf16.msra.mxu0 %v5447
        %5454 = vmatprep.subr.bf16.mxu0 0
        %5455 = vmatpush1.bf16.msra.mxu0 0
        %5456 = vmatprep.subr.bf16.mxu0 0
        %5457 = vmatpush1.bf16.msra.mxu0 0
        %5458 = vmatprep.subr.bf16.mxu0 0
        %5459 = vmatpush1.bf16.msra.mxu0 0
        %5460 = vmatprep.subr.bf16.mxu0 0
        %5461 = vmatpush1.bf16.msra.mxu0 0
        %5462 = vmatprep.subr.bf16.mxu0 0
        %5463 = vmatpush1.bf16.msra.mxu0 0
        %5464 = vmatprep.subr.bf16.mxu0 0
        %5465 = vmatpush1.bf16.msra.mxu0 0
        %5466 = vmatprep.subr.bf16.mxu0 0
        %5467 = vmatpush1.bf16.msra.mxu0 0
        %5468 = vmatprep.subr.bf16.mxu0 0
        %5469 = vmatpush1.bf16.msra.mxu0 0
        %5470 = vmatprep.subr.bf16.mxu0 0
        %5471 = vmatpush1.bf16.msra.mxu0 0
        %5472 = vmatprep.subr.bf16.mxu0 0
        %5473 = vmatpush1.bf16.msra.mxu0 0
        %5474 = vmatprep.subr.bf16.mxu0 0
        %5475 = vmatpush1.bf16.msra.mxu0 0
        %5476 = vmatprep.subr.bf16.mxu0 0
        %5477 = vmatpush1.bf16.msra.mxu0 0
        %5478 = vmatprep.subr.bf16.mxu0 0
        %5479 = vmatpush1.bf16.msra.mxu0 0
        %5480 = vmatprep.subr.bf16.mxu0 0
        %5481 = vmatpush1.bf16.msra.mxu0 0
        %5482 = vmatprep.mubr.bf16.mxu0 0
        %5483 = vmatmul.mubr.bf16.gmra.mrb[0].mxu0 %v4587
        %v5484 = vpop.f32.mrb[0].mxu0
        %v5485 = vadd.f32 %v5436, %v5484
        %v5486 = vpop.f32.mrb[0].mxu0
        %v5487 = vpop.f32.mrb[0].mxu0
        %v5488 = vadd.f32 %v5436, %v5487
        %v5489 = vpop.f32.mrb[0].mxu0
        %5490 = vdwg.mxu0
        %v5491 = vpack.c.bf16 %v5356, %v5353
        %v5492 = vpack.c.bf16 %v5422, %v5419
        %v5494 = vsel %vm2141, %v5491, 0
        %v5497 = vsel %vm2141, %v5492, 0
        %5499 = vmatprep.subr.bf16.mxu0 0
        %5500 = vmatpush1.bf16.xpose.msra.mxu0 %v5497
        %5501 = vmatprep.subr.bf16.mxu0 0
        %5502 = vmatpush1.bf16.xpose.msra.mxu0 0
        %5503 = vmatprep.subr.bf16.mxu0 0
        %5504 = vmatpush1.bf16.xpose.msra.mxu0 0
        %5505 = vmatprep.subr.bf16.mxu0 0
        %5506 = vmatpush1.bf16.xpose.msra.mxu0 0
        %5507 = vmatprep.subr.bf16.mxu0 0
        %5508 = vmatpush1.bf16.xpose.msra.mxu0 0
        %5509 = vmatprep.subr.bf16.mxu0 0
        %5510 = vmatpush1.bf16.xpose.msra.mxu0 0
        %5511 = vmatprep.subr.bf16.mxu0 0
        %5512 = vmatpush1.bf16.xpose.msra.mxu0 0
        %5513 = vmatprep.subr.bf16.mxu0 0
        %5514 = vmatpush1.bf16.xpose.msra.mxu0 0
        %5515 = vmatprep.subr.bf16.mxu0 0
        %5516 = vmatpush1.bf16.xpose.msra.mxu0 0
        %5517 = vmatprep.subr.bf16.mxu0 0
        %5518 = vmatpush1.bf16.xpose.msra.mxu0 0
        %5519 = vmatprep.subr.bf16.mxu0 0
        %5520 = vmatpush1.bf16.xpose.msra.mxu0 0
        %5521 = vmatprep.subr.bf16.mxu0 0
        %5522 = vmatpush1.bf16.xpose.msra.mxu0 0
        %5523 = vmatprep.subr.bf16.mxu0 0
        %5524 = vmatpush1.bf16.xpose.msra.mxu0 0
        %5525 = vmatprep.subr.bf16.mxu0 0
        %5526 = vmatpush1.bf16.xpose.msra.mxu0 0
        %5527 = vmatprep.subr.bf16.mxu0 0
        %5528 = vmatpush1.bf16.xpose.msra.mxu0 0
        %5529 = vmatprep.subr.bf16.mxu0 0
        %5530 = vmatpush1.bf16.xpose.msra.mxu0 0
        %5531 = vmatprep.mubr.bf16.mxu0 0
        %5532 = vmatmul.mubr.bf16.gmra.mrb[0].mxu0 %v5494
        %v5533 = vpop.f32.mrb[0].mxu0
        %v5534 = vadd.f32 0.0, %v5533
        %v5535 = vpop.f32.mrb[0].mxu0
        %v5536 = vpop.f32.mrb[0].mxu0
        %v5537 = vadd.f32 0.0, %v5536
        %v5538 = vpop.f32.mrb[0].mxu0
        %5539 = vdwg.mxu0
        %v5540 = vmul.f32 %v5534, 0.35355338
        %v5541 = vmul.f32 %v5537, 0.35355338
        %v5542 = vsel %vm2201, %v5540, -inf
        %5543 = vmax.xlane.f32.xlu0 %v5542
        %v5544 = vpop.xlane.xlu0 %5543
        %v5545 = vsel %vm2201, %v5541, -inf
        %5546 = vmax.xlane.f32.xlu0 %v5545
        %v5547 = vpop.xlane.xlu0 %5546
        %v5548 = vsub.f32 %v5540, %v5544
        %v5549 = vsub.f32 %v5541, %v5547
        %v5550 = vmul.f32 %v5548, 1.442695
        %v5551 = vpow.pop %v5550
        %v5552 = vmul.f32 %v5549, 1.442695
        %v5553 = vpow.pop %v5552
        %v5554 = vsel %vm2201, %v5551, 0.0
        %5555 = vadd.xlane.f32.xlu0 %v5554
        %v5556 = vpop.xlane.xlu0 %5555
        %v5557 = vsel %vm2201, %v5553, 0.0
        %5558 = vadd.xlane.f32.xlu0 %v5557
        %v5559 = vpop.xlane.xlu0 %5558
        %v5560 = vrcp.pop %v5556
        %v5561 = vrcp.pop %v5559
        %v5562 = vmul.f32 %v5551, %v5560
        %v5563 = vmul.f32 %v5553, %v5561
        %v5564 = vpack.c.bf16 %v5563, %v5562
        %v5565 = vpack.c.bf16 %v5488, %v5485
        %v5567 = vsel %vm2201, %v5564, 0
        %5569 = vmatprep.subr.bf16.mxu0 0
        %5570 = vmatpush1.bf16.msra.mxu0 %v5565
        %5571 = vmatprep.subr.bf16.mxu0 0
        %5572 = vmatpush1.bf16.msra.mxu0 0
        %5573 = vmatprep.subr.bf16.mxu0 0
        %5574 = vmatpush1.bf16.msra.mxu0 0
        %5575 = vmatprep.subr.bf16.mxu0 0
        %5576 = vmatpush1.bf16.msra.mxu0 0
        %5577 = vmatprep.subr.bf16.mxu0 0
        %5578 = vmatpush1.bf16.msra.mxu0 0
        %5579 = vmatprep.subr.bf16.mxu0 0
        %5580 = vmatpush1.bf16.msra.mxu0 0
        %5581 = vmatprep.subr.bf16.mxu0 0
        %5582 = vmatpush1.bf16.msra.mxu0 0
        %5583 = vmatprep.subr.bf16.mxu0 0
        %5584 = vmatpush1.bf16.msra.mxu0 0
        %5585 = vmatprep.subr.bf16.mxu0 0
        %5586 = vmatpush1.bf16.msra.mxu0 0
        %5587 = vmatprep.subr.bf16.mxu0 0
        %5588 = vmatpush1.bf16.msra.mxu0 0
        %5589 = vmatprep.subr.bf16.mxu0 0
        %5590 = vmatpush1.bf16.msra.mxu0 0
        %5591 = vmatprep.subr.bf16.mxu0 0
        %5592 = vmatpush1.bf16.msra.mxu0 0
        %5593 = vmatprep.subr.bf16.mxu0 0
        %5594 = vmatpush1.bf16.msra.mxu0 0
        %5595 = vmatprep.subr.bf16.mxu0 0
        %5596 = vmatpush1.bf16.msra.mxu0 0
        %5597 = vmatprep.subr.bf16.mxu0 0
        %5598 = vmatpush1.bf16.msra.mxu0 0
        %5599 = vmatprep.subr.bf16.mxu0 0
        %5600 = vmatpush1.bf16.msra.mxu0 0
        %5601 = vmatprep.mubr.bf16.mxu0 0
        %5602 = vmatmul.mubr.bf16.gmra.mrb[0].mxu0 %v5567
        %v5603 = vpop.f32.mrb[0].mxu0
        %v5604 = vadd.f32 0.0, %v5603
        %v5605 = vpop.f32.mrb[0].mxu0
        %v5606 = vpop.f32.mrb[0].mxu0
        %v5607 = vadd.f32 0.0, %v5606
        %v5608 = vpop.f32.mrb[0].mxu0
        %5609 = vdwg.mxu0
        %v5610 = vpack.c.bf16 %v5607, %v5604
        %s5611 = scalar_lea.vmem %s61, 8
        %v5612 = vld [vmem:[%s5611] sm:$0xf]
        %v5614 = vsel %vm2141, %v5610, 0
        %v5617 = vsel %vm2145, %v5612, 0
        %5619 = vmatprep.subr.bf16.mxu0 0
        %5620 = vmatpush1.bf16.msra.mxu0 %v5617
        %5621 = vmatprep.subr.bf16.mxu0 0
        %5622 = vmatpush1.bf16.msra.mxu0 0
        %5623 = vmatprep.subr.bf16.mxu0 0
        %5624 = vmatpush1.bf16.msra.mxu0 0
        %5625 = vmatprep.subr.bf16.mxu0 0
        %5626 = vmatpush1.bf16.msra.mxu0 0
        %5627 = vmatprep.subr.bf16.mxu0 0
        %5628 = vmatpush1.bf16.msra.mxu0 0
        %5629 = vmatprep.subr.bf16.mxu0 0
        %5630 = vmatpush1.bf16.msra.mxu0 0
        %5631 = vmatprep.subr.bf16.mxu0 0
        %5632 = vmatpush1.bf16.msra.mxu0 0
        %5633 = vmatprep.subr.bf16.mxu0 0
        %5634 = vmatpush1.bf16.msra.mxu0 0
        %5635 = vmatprep.subr.bf16.mxu0 0
        %5636 = vmatpush1.bf16.msra.mxu0 0
        %5637 = vmatprep.subr.bf16.mxu0 0
        %5638 = vmatpush1.bf16.msra.mxu0 0
        %5639 = vmatprep.subr.bf16.mxu0 0
        %5640 = vmatpush1.bf16.msra.mxu0 0
        %5641 = vmatprep.subr.bf16.mxu0 0
        %5642 = vmatpush1.bf16.msra.mxu0 0
        %5643 = vmatprep.subr.bf16.mxu0 0
        %5644 = vmatpush1.bf16.msra.mxu0 0
        %5645 = vmatprep.subr.bf16.mxu0 0
        %5646 = vmatpush1.bf16.msra.mxu0 0
        %5647 = vmatprep.subr.bf16.mxu0 0
        %5648 = vmatpush1.bf16.msra.mxu0 0
        %5649 = vmatprep.subr.bf16.mxu0 0
        %5650 = vmatpush1.bf16.msra.mxu0 0
        %5651 = vmatprep.mubr.bf16.mxu0 0
        %5652 = vmatmul.mubr.bf16.gmra.mrb[0].mxu0 %v5614
        %v5653 = vpop.f32.mrb[0].mxu0
        %v5654 = vadd.f32 0.0, %v5653
        %v5655 = vpop.f32.mrb[0].mxu0
        %v5656 = vpop.f32.mrb[0].mxu0
        %v5657 = vadd.f32 0.0, %v5656
        %v5658 = vpop.f32.mrb[0].mxu0
        %5659 = vdwg.mxu0
        %v5660 = vadd.f32 %v5287, %v5654
        %v5661 = vadd.f32 %v5290, %v5657
        %s5662 = scalar_lea.vmem %s49, 48
        %v5663 = vld [vmem:[%s5662] sm:$0xf]
        %v5664 = vld [vmem:[%s5662 + $0x4] sm:$0xf]
        %v5665 = vld [vmem:[%s5662 + $0x8] sm:$0xf]
        %v5666 = vld [vmem:[%s5662 + $0xc] sm:$0xf]
        %s5667 = scalar_lea.vmem %s51, 3
        %v5668 = vld [vmem:[%s5667] sm:$0x1]
        %v5670 = vlaneseq
        %v5671 = vshrl.u32 %v5670, 7
        %v5672 = vsub.s32 0, %v5671
        %v5673 = vrot.slane %v5668, %v5672
        %v5679 = vunpack.c.l.b16 %v5663
        %v5680 = vunpack.c.l.b16 %v5664
        %v5681 = vunpack.c.l.b16 %v5665
        %v5682 = vunpack.c.l.b16 %v5666
        %v5683 = vpack.c.b16 %v5680, %v5679
        %v5684 = vpack.c.b16 %v5682, %v5681
        %5687 = vmatprep.subr.bf16.mxu0 0
        %5688 = vmatpush1.bf16.msra.mxu0 %v5683
        %5689 = vmatprep.subr.bf16.mxu0 0
        %5690 = vmatpush1.bf16.msra.mxu0 %v5684
        %5691 = vmatprep.subr.bf16.mxu0 0
        %5692 = vmatpush1.bf16.msra.mxu0 0
        %5693 = vmatprep.subr.bf16.mxu0 0
        %5694 = vmatpush1.bf16.msra.mxu0 0
        %5695 = vmatprep.subr.bf16.mxu0 0
        %5696 = vmatpush1.bf16.msra.mxu0 0
        %5697 = vmatprep.subr.bf16.mxu0 0
        %5698 = vmatpush1.bf16.msra.mxu0 0
        %5699 = vmatprep.subr.bf16.mxu0 0
        %5700 = vmatpush1.bf16.msra.mxu0 0
        %5701 = vmatprep.subr.bf16.mxu0 0
        %5702 = vmatpush1.bf16.msra.mxu0 0
        %5703 = vmatprep.subr.bf16.mxu0 0
        %5704 = vmatpush1.bf16.msra.mxu0 0
        %5705 = vmatprep.subr.bf16.mxu0 0
        %5706 = vmatpush1.bf16.msra.mxu0 0
        %5707 = vmatprep.subr.bf16.mxu0 0
        %5708 = vmatpush1.bf16.msra.mxu0 0
        %5709 = vmatprep.subr.bf16.mxu0 0
        %5710 = vmatpush1.bf16.msra.mxu0 0
        %5711 = vmatprep.subr.bf16.mxu0 0
        %5712 = vmatpush1.bf16.msra.mxu0 0
        %5713 = vmatprep.subr.bf16.mxu0 0
        %5714 = vmatpush1.bf16.msra.mxu0 0
        %5715 = vmatprep.subr.bf16.mxu0 0
        %5716 = vmatpush1.bf16.msra.mxu0 0
        %5717 = vmatprep.subr.bf16.mxu0 0
        %5718 = vmatpush1.bf16.msra.mxu0 0
        %5719 = vmatprep.mubr.bf16.mxu0 0
        %5720 = vmatmul.mubr.bf16.gmra.mrb[0].mxu0 %v4587
        %v5721 = vpop.f32.mrb[0].mxu0
        %v5722 = vadd.f32 %v5673, %v5721
        %v5723 = vpop.f32.mrb[0].mxu0
        %v5724 = vpop.f32.mrb[0].mxu0
        %v5725 = vadd.f32 %v5673, %v5724
        %v5726 = vpop.f32.mrb[0].mxu0
        %5727 = vdwg.mxu0
        %s5728 = scalar_lea.vmem %s53, 48
        %v5729 = vld [vmem:[%s5728] sm:$0xf]
        %v5730 = vld [vmem:[%s5728 + $0x4] sm:$0xf]
        %v5731 = vld [vmem:[%s5728 + $0x8] sm:$0xf]
        %v5732 = vld [vmem:[%s5728 + $0xc] sm:$0xf]
        %s5733 = scalar_lea.vmem %s55, 3
        %v5734 = vld [vmem:[%s5733] sm:$0x1]
        %v5736 = vlaneseq
        %v5737 = vshrl.u32 %v5736, 7
        %v5738 = vsub.s32 0, %v5737
        %v5739 = vrot.slane %v5734, %v5738
        %v5745 = vunpack.c.l.b16 %v5729
        %v5746 = vunpack.c.l.b16 %v5730
        %v5747 = vunpack.c.l.b16 %v5731
        %v5748 = vunpack.c.l.b16 %v5732
        %v5749 = vpack.c.b16 %v5746, %v5745
        %v5750 = vpack.c.b16 %v5748, %v5747
        %5753 = vmatprep.subr.bf16.mxu0 0
        %5754 = vmatpush1.bf16.msra.mxu0 %v5749
        %5755 = vmatprep.subr.bf16.mxu0 0
        %5756 = vmatpush1.bf16.msra.mxu0 %v5750
        %5757 = vmatprep.subr.bf16.mxu0 0
        %5758 = vmatpush1.bf16.msra.mxu0 0
        %5759 = vmatprep.subr.bf16.mxu0 0
        %5760 = vmatpush1.bf16.msra.mxu0 0
        %5761 = vmatprep.subr.bf16.mxu0 0
        %5762 = vmatpush1.bf16.msra.mxu0 0
        %5763 = vmatprep.subr.bf16.mxu0 0
        %5764 = vmatpush1.bf16.msra.mxu0 0
        %5765 = vmatprep.subr.bf16.mxu0 0
        %5766 = vmatpush1.bf16.msra.mxu0 0
        %5767 = vmatprep.subr.bf16.mxu0 0
        %5768 = vmatpush1.bf16.msra.mxu0 0
        %5769 = vmatprep.subr.bf16.mxu0 0
        %5770 = vmatpush1.bf16.msra.mxu0 0
        %5771 = vmatprep.subr.bf16.mxu0 0
        %5772 = vmatpush1.bf16.msra.mxu0 0
        %5773 = vmatprep.subr.bf16.mxu0 0
        %5774 = vmatpush1.bf16.msra.mxu0 0
        %5775 = vmatprep.subr.bf16.mxu0 0
        %5776 = vmatpush1.bf16.msra.mxu0 0
        %5777 = vmatprep.subr.bf16.mxu0 0
        %5778 = vmatpush1.bf16.msra.mxu0 0
        %5779 = vmatprep.subr.bf16.mxu0 0
        %5780 = vmatpush1.bf16.msra.mxu0 0
        %5781 = vmatprep.subr.bf16.mxu0 0
        %5782 = vmatpush1.bf16.msra.mxu0 0
        %5783 = vmatprep.subr.bf16.mxu0 0
        %5784 = vmatpush1.bf16.msra.mxu0 0
        %5785 = vmatprep.mubr.bf16.mxu0 0
        %5786 = vmatmul.mubr.bf16.gmra.mrb[0].mxu0 %v4587
        %v5787 = vpop.f32.mrb[0].mxu0
        %v5788 = vadd.f32 %v5739, %v5787
        %v5789 = vpop.f32.mrb[0].mxu0
        %v5790 = vpop.f32.mrb[0].mxu0
        %v5791 = vadd.f32 %v5739, %v5790
        %v5792 = vpop.f32.mrb[0].mxu0
        %5793 = vdwg.mxu0
        %s5794 = scalar_lea.vmem %s57, 48
        %v5795 = vld [vmem:[%s5794] sm:$0xf]
        %v5796 = vld [vmem:[%s5794 + $0x4] sm:$0xf]
        %v5797 = vld [vmem:[%s5794 + $0x8] sm:$0xf]
        %v5798 = vld [vmem:[%s5794 + $0xc] sm:$0xf]
        %s5799 = scalar_lea.vmem %s59, 3
        %v5800 = vld [vmem:[%s5799] sm:$0x1]
        %v5802 = vlaneseq
        %v5803 = vshrl.u32 %v5802, 7
        %v5804 = vsub.s32 0, %v5803
        %v5805 = vrot.slane %v5800, %v5804
        %v5811 = vunpack.c.l.b16 %v5795
        %v5812 = vunpack.c.l.b16 %v5796
        %v5813 = vunpack.c.l.b16 %v5797
        %v5814 = vunpack.c.l.b16 %v5798
        %v5815 = vpack.c.b16 %v5812, %v5811
        %v5816 = vpack.c.b16 %v5814, %v5813
        %5819 = vmatprep.subr.bf16.mxu0 0
        %5820 = vmatpush1.bf16.msra.mxu0 %v5815
        %5821 = vmatprep.subr.bf16.mxu0 0
        %5822 = vmatpush1.bf16.msra.mxu0 %v5816
        %5823 = vmatprep.subr.bf16.mxu0 0
        %5824 = vmatpush1.bf16.msra.mxu0 0
        %5825 = vmatprep.subr.bf16.mxu0 0
        %5826 = vmatpush1.bf16.msra.mxu0 0
        %5827 = vmatprep.subr.bf16.mxu0 0
        %5828 = vmatpush1.bf16.msra.mxu0 0
        %5829 = vmatprep.subr.bf16.mxu0 0
        %5830 = vmatpush1.bf16.msra.mxu0 0
        %5831 = vmatprep.subr.bf16.mxu0 0
        %5832 = vmatpush1.bf16.msra.mxu0 0
        %5833 = vmatprep.subr.bf16.mxu0 0
        %5834 = vmatpush1.bf16.msra.mxu0 0
        %5835 = vmatprep.subr.bf16.mxu0 0
        %5836 = vmatpush1.bf16.msra.mxu0 0
        %5837 = vmatprep.subr.bf16.mxu0 0
        %5838 = vmatpush1.bf16.msra.mxu0 0
        %5839 = vmatprep.subr.bf16.mxu0 0
        %5840 = vmatpush1.bf16.msra.mxu0 0
        %5841 = vmatprep.subr.bf16.mxu0 0
        %5842 = vmatpush1.bf16.msra.mxu0 0
        %5843 = vmatprep.subr.bf16.mxu0 0
        %5844 = vmatpush1.bf16.msra.mxu0 0
        %5845 = vmatprep.subr.bf16.mxu0 0
        %5846 = vmatpush1.bf16.msra.mxu0 0
        %5847 = vmatprep.subr.bf16.mxu0 0
        %5848 = vmatpush1.bf16.msra.mxu0 0
        %5849 = vmatprep.subr.bf16.mxu0 0
        %5850 = vmatpush1.bf16.msra.mxu0 0
        %5851 = vmatprep.mubr.bf16.mxu0 0
        %5852 = vmatmul.mubr.bf16.gmra.mrb[0].mxu0 %v4587
        %v5853 = vpop.f32.mrb[0].mxu0
        %v5854 = vadd.f32 %v5805, %v5853
        %v5855 = vpop.f32.mrb[0].mxu0
        %v5856 = vpop.f32.mrb[0].mxu0
        %v5857 = vadd.f32 %v5805, %v5856
        %v5858 = vpop.f32.mrb[0].mxu0
        %5859 = vdwg.mxu0
        %v5860 = vpack.c.bf16 %v5725, %v5722
        %v5861 = vpack.c.bf16 %v5791, %v5788
        %v5863 = vsel %vm2141, %v5860, 0
        %v5866 = vsel %vm2141, %v5861, 0
        %5868 = vmatprep.subr.bf16.mxu0 0
        %5869 = vmatpush1.bf16.xpose.msra.mxu0 %v5866
        %5870 = vmatprep.subr.bf16.mxu0 0
        %5871 = vmatpush1.bf16.xpose.msra.mxu0 0
        %5872 = vmatprep.subr.bf16.mxu0 0
        %5873 = vmatpush1.bf16.xpose.msra.mxu0 0
        %5874 = vmatprep.subr.bf16.mxu0 0
        %5875 = vmatpush1.bf16.xpose.msra.mxu0 0
        %5876 = vmatprep.subr.bf16.mxu0 0
        %5877 = vmatpush1.bf16.xpose.msra.mxu0 0
        %5878 = vmatprep.subr.bf16.mxu0 0
        %5879 = vmatpush1.bf16.xpose.msra.mxu0 0
        %5880 = vmatprep.subr.bf16.mxu0 0
        %5881 = vmatpush1.bf16.xpose.msra.mxu0 0
        %5882 = vmatprep.subr.bf16.mxu0 0
        %5883 = vmatpush1.bf16.xpose.msra.mxu0 0
        %5884 = vmatprep.subr.bf16.mxu0 0
        %5885 = vmatpush1.bf16.xpose.msra.mxu0 0
        %5886 = vmatprep.subr.bf16.mxu0 0
        %5887 = vmatpush1.bf16.xpose.msra.mxu0 0
        %5888 = vmatprep.subr.bf16.mxu0 0
        %5889 = vmatpush1.bf16.xpose.msra.mxu0 0
        %5890 = vmatprep.subr.bf16.mxu0 0
        %5891 = vmatpush1.bf16.xpose.msra.mxu0 0
        %5892 = vmatprep.subr.bf16.mxu0 0
        %5893 = vmatpush1.bf16.xpose.msra.mxu0 0
        %5894 = vmatprep.subr.bf16.mxu0 0
        %5895 = vmatpush1.bf16.xpose.msra.mxu0 0
        %5896 = vmatprep.subr.bf16.mxu0 0
        %5897 = vmatpush1.bf16.xpose.msra.mxu0 0
        %5898 = vmatprep.subr.bf16.mxu0 0
        %5899 = vmatpush1.bf16.xpose.msra.mxu0 0
        %5900 = vmatprep.mubr.bf16.mxu0 0
        %5901 = vmatmul.mubr.bf16.gmra.mrb[0].mxu0 %v5863
        %v5902 = vpop.f32.mrb[0].mxu0
        %v5903 = vadd.f32 0.0, %v5902
        %v5904 = vpop.f32.mrb[0].mxu0
        %v5905 = vpop.f32.mrb[0].mxu0
        %v5906 = vadd.f32 0.0, %v5905
        %v5907 = vpop.f32.mrb[0].mxu0
        %5908 = vdwg.mxu0
        %v5909 = vmul.f32 %v5903, 0.35355338
        %v5910 = vmul.f32 %v5906, 0.35355338
        %v5911 = vsel %vm2201, %v5909, -inf
        %5912 = vmax.xlane.f32.xlu0 %v5911
        %v5913 = vpop.xlane.xlu0 %5912
        %v5914 = vsel %vm2201, %v5910, -inf
        %5915 = vmax.xlane.f32.xlu0 %v5914
        %v5916 = vpop.xlane.xlu0 %5915
        %v5917 = vsub.f32 %v5909, %v5913
        %v5918 = vsub.f32 %v5910, %v5916
        %v5919 = vmul.f32 %v5917, 1.442695
        %v5920 = vpow.pop %v5919
        %v5921 = vmul.f32 %v5918, 1.442695
        %v5922 = vpow.pop %v5921
        %v5923 = vsel %vm2201, %v5920, 0.0
        %5924 = vadd.xlane.f32.xlu0 %v5923
        %v5925 = vpop.xlane.xlu0 %5924
        %v5926 = vsel %vm2201, %v5922, 0.0
        %5927 = vadd.xlane.f32.xlu0 %v5926
        %v5928 = vpop.xlane.xlu0 %5927
        %v5929 = vrcp.pop %v5925
        %v5930 = vrcp.pop %v5928
        %v5931 = vmul.f32 %v5920, %v5929
        %v5932 = vmul.f32 %v5922, %v5930
        %v5933 = vpack.c.bf16 %v5932, %v5931
        %v5934 = vpack.c.bf16 %v5857, %v5854
        %v5936 = vsel %vm2201, %v5933, 0
        %5938 = vmatprep.subr.bf16.mxu0 0
        %5939 = vmatpush1.bf16.msra.mxu0 %v5934
        %5940 = vmatprep.subr.bf16.mxu0 0
        %5941 = vmatpush1.bf16.msra.mxu0 0
        %5942 = vmatprep.subr.bf16.mxu0 0
        %5943 = vmatpush1.bf16.msra.mxu0 0
        %5944 = vmatprep.subr.bf16.mxu0 0
        %5945 = vmatpush1.bf16.msra.mxu0 0
        %5946 = vmatprep.subr.bf16.mxu0 0
        %5947 = vmatpush1.bf16.msra.mxu0 0
        %5948 = vmatprep.subr.bf16.mxu0 0
        %5949 = vmatpush1.bf16.msra.mxu0 0
        %5950 = vmatprep.subr.bf16.mxu0 0
        %5951 = vmatpush1.bf16.msra.mxu0 0
        %5952 = vmatprep.subr.bf16.mxu0 0
        %5953 = vmatpush1.bf16.msra.mxu0 0
        %5954 = vmatprep.subr.bf16.mxu0 0
        %5955 = vmatpush1.bf16.msra.mxu0 0
        %5956 = vmatprep.subr.bf16.mxu0 0
        %5957 = vmatpush1.bf16.msra.mxu0 0
        %5958 = vmatprep.subr.bf16.mxu0 0
        %5959 = vmatpush1.bf16.msra.mxu0 0
        %5960 = vmatprep.subr.bf16.mxu0 0
        %5961 = vmatpush1.bf16.msra.mxu0 0
        %5962 = vmatprep.subr.bf16.mxu0 0
        %5963 = vmatpush1.bf16.msra.mxu0 0
        %5964 = vmatprep.subr.bf16.mxu0 0
        %5965 = vmatpush1.bf16.msra.mxu0 0
        %5966 = vmatprep.subr.bf16.mxu0 0
        %5967 = vmatpush1.bf16.msra.mxu0 0
        %5968 = vmatprep.subr.bf16.mxu0 0
        %5969 = vmatpush1.bf16.msra.mxu0 0
        %5970 = vmatprep.mubr.bf16.mxu0 0
        %5971 = vmatmul.mubr.bf16.gmra.mrb[0].mxu0 %v5936
        %v5972 = vpop.f32.mrb[0].mxu0
        %v5973 = vadd.f32 0.0, %v5972
        %v5974 = vpop.f32.mrb[0].mxu0
        %v5975 = vpop.f32.mrb[0].mxu0
        %v5976 = vadd.f32 0.0, %v5975
        %v5977 = vpop.f32.mrb[0].mxu0
        %5978 = vdwg.mxu0
        %v5979 = vpack.c.bf16 %v5976, %v5973
        %s5980 = scalar_lea.vmem %s61, 12
        %v5981 = vld [vmem:[%s5980] sm:$0xf]
        %v5983 = vsel %vm2141, %v5979, 0
        %v5986 = vsel %vm2145, %v5981, 0
        %5988 = vmatprep.subr.bf16.mxu0 0
        %5989 = vmatpush1.bf16.msra.mxu0 %v5986
        %5990 = vmatprep.subr.bf16.mxu0 0
        %5991 = vmatpush1.bf16.msra.mxu0 0
        %5992 = vmatprep.subr.bf16.mxu0 0
        %5993 = vmatpush1.bf16.msra.mxu0 0
        %5994 = vmatprep.subr.bf16.mxu0 0
        %5995 = vmatpush1.bf16.msra.mxu0 0
        %5996 = vmatprep.subr.bf16.mxu0 0
        %5997 = vmatpush1.bf16.msra.mxu0 0
        %5998 = vmatprep.subr.bf16.mxu0 0
        %5999 = vmatpush1.bf16.msra.mxu0 0
        %6000 = vmatprep.subr.bf16.mxu0 0
        %6001 = vmatpush1.bf16.msra.mxu0 0
        %6002 = vmatprep.subr.bf16.mxu0 0
        %6003 = vmatpush1.bf16.msra.mxu0 0
        %6004 = vmatprep.subr.bf16.mxu0 0
        %6005 = vmatpush1.bf16.msra.mxu0 0
        %6006 = vmatprep.subr.bf16.mxu0 0
        %6007 = vmatpush1.bf16.msra.mxu0 0
        %6008 = vmatprep.subr.bf16.mxu0 0
        %6009 = vmatpush1.bf16.msra.mxu0 0
        %6010 = vmatprep.subr.bf16.mxu0 0
        %6011 = vmatpush1.bf16.msra.mxu0 0
        %6012 = vmatprep.subr.bf16.mxu0 0
        %6013 = vmatpush1.bf16.msra.mxu0 0
        %6014 = vmatprep.subr.bf16.mxu0 0
        %6015 = vmatpush1.bf16.msra.mxu0 0
        %6016 = vmatprep.subr.bf16.mxu0 0
        %6017 = vmatpush1.bf16.msra.mxu0 0
        %6018 = vmatprep.subr.bf16.mxu0 0
        %6019 = vmatpush1.bf16.msra.mxu0 0
        %6020 = vmatprep.mubr.bf16.mxu0 0
        %6021 = vmatmul.mubr.bf16.gmra.mrb[0].mxu0 %v5983
        %v6022 = vpop.f32.mrb[0].mxu0
        %v6023 = vadd.f32 0.0, %v6022
        %v6024 = vpop.f32.mrb[0].mxu0
        %v6025 = vpop.f32.mrb[0].mxu0
        %v6026 = vadd.f32 0.0, %v6025
        %v6027 = vpop.f32.mrb[0].mxu0
        %6028 = vdwg.mxu0
        %v6029 = vadd.f32 %v5660, %v6023
        %v6030 = vadd.f32 %v5661, %v6026
        %v6031 = vld [vmem:[%s63] sm:$0x1]
        %v6033 = vlaneseq
        %v6034 = vshrl.u32 %v6033, 7
        %v6035 = vsub.s32 0, %v6034
        %v6036 = vrot.slane %v6031, %v6035
        %v6038 = vadd.f32 %v6029, %v6036
        %v6039 = vadd.f32 %v6030, %v6036
        %v6040 = vadd.f32 %v4560, %v6038
        %v6041 = vadd.f32 %v4561, %v6039
        %v6042 = vld [vmem:[%s73] sm:$0x1]
        %v6043 = vld [vmem:[#allocation5] sm:$0x1]
        %v6044 = vsel %vm2391, %v6040, 0.0
        %6045 = vadd.xlane.f32.xlu0 %v6044
        %v6046 = vpop.xlane.xlu0 %6045
        %v6047 = vsel %vm2391, %v6041, 0.0
        %6048 = vadd.xlane.f32.xlu0 %v6047
        %v6049 = vpop.xlane.xlu0 %6048
        %v6050 = vrcp.pop 32.0
        %v6051 = vmul.f32 %v6046, %v6050
        %v6052 = vmul.f32 %v6049, %v6050
        %v6053 = vsub.f32 %v6040, %v6051
        %v6054 = vsub.f32 %v6041, %v6052
        %v6055 = vmul.f32 %v6053, %v6053
        %v6056 = vmul.f32 %v6054, %v6054
        %v6057 = vsel %vm2391, %v6055, 0.0
        %6058 = vadd.xlane.f32.xlu0 %v6057
        %v6059 = vpop.xlane.xlu0 %6058
        %v6060 = vsel %vm2391, %v6056, 0.0
        %6061 = vadd.xlane.f32.xlu0 %v6060
        %v6062 = vpop.xlane.xlu0 %6061
        %v6063 = vmul.f32 %v6059, %v6050
        %v6064 = vmul.f32 %v6062, %v6050
        %v6065 = vadd.f32 %v6063, 1e-05
        %v6066 = vadd.f32 %v6064, 1e-05
        %v6067 = vrsqrt.pop %v6065
        %v6068 = vrsqrt.pop %v6066
        %v6069 = vmul.f32 %v6053, %v6067
        %v6070 = vmul.f32 %v6054, %v6068
        %v6072 = vlaneseq
        %v6073 = vshrl.u32 %v6072, 7
        %v6074 = vsub.s32 0, %v6073
        %v6075 = vrot.slane %v6042, %v6074
        %v6077 = vmul.f32 %v6069, %v6075
        %v6078 = vmul.f32 %v6070, %v6075
        %v6080 = vlaneseq
        %v6081 = vshrl.u32 %v6080, 7
        %v6082 = vsub.s32 0, %v6081
        %v6083 = vrot.slane %v6043, %v6082
        %v6085 = vadd.f32 %v6077, %v6083
        %v6086 = vadd.f32 %v6078, %v6083
        %v6087 = vpack.c.bf16 %v6086, %v6085
        %v6088 = vld [vmem:[%s65] sm:$0xf]
        %v6089 = vld [vmem:[%s65 + $0x4] sm:$0xf]
        %v6090 = vld [vmem:[%s65 + $0x8] sm:$0xf]
        %v6091 = vld [vmem:[%s65 + $0xc] sm:$0xf]
        %v6092 = vld [vmem:[%s67] sm:$0x1]
        %v6094 = vlaneseq
        %v6095 = vshrl.u32 %v6094, 7
        %v6096 = vsub.s32 0, %v6095
        %v6097 = vrot.slane %v6092, %v6096
        %v6103 = vunpack.c.l.b16 %v6088
        %v6104 = vunpack.c.l.b16 %v6089
        %v6105 = vunpack.c.l.b16 %v6090
        %v6106 = vunpack.c.l.b16 %v6091
        %v6107 = vpack.c.b16 %v6104, %v6103
        %v6108 = vpack.c.b16 %v6106, %v6105
        %v6112 = vsel %vm2391, %v6087, 0
        %6114 = vmatprep.subr.bf16.mxu0 0
        %6115 = vmatpush1.bf16.msra.mxu0 %v6107
        %6116 = vmatprep.subr.bf16.mxu0 0
        %6117 = vmatpush1.bf16.msra.mxu0 %v6108
        %6118 = vmatprep.subr.bf16.mxu0 0
        %6119 = vmatpush1.bf16.msra.mxu0 0
        %6120 = vmatprep.subr.bf16.mxu0 0
        %6121 = vmatpush1.bf16.msra.mxu0 0
        %6122 = vmatprep.subr.bf16.mxu0 0
        %6123 = vmatpush1.bf16.msra.mxu0 0
        %6124 = vmatprep.subr.bf16.mxu0 0
        %6125 = vmatpush1.bf16.msra.mxu0 0
        %6126 = vmatprep.subr.bf16.mxu0 0
        %6127 = vmatpush1.bf16.msra.mxu0 0
        %6128 = vmatprep.subr.bf16.mxu0 0
        %6129 = vmatpush1.bf16.msra.mxu0 0
        %6130 = vmatprep.subr.bf16.mxu0 0
        %6131 = vmatpush1.bf16.msra.mxu0 0
        %6132 = vmatprep.subr.bf16.mxu0 0
        %6133 = vmatpush1.bf16.msra.mxu0 0
        %6134 = vmatprep.subr.bf16.mxu0 0
        %6135 = vmatpush1.bf16.msra.mxu0 0
        %6136 = vmatprep.subr.bf16.mxu0 0
        %6137 = vmatpush1.bf16.msra.mxu0 0
        %6138 = vmatprep.subr.bf16.mxu0 0
        %6139 = vmatpush1.bf16.msra.mxu0 0
        %6140 = vmatprep.subr.bf16.mxu0 0
        %6141 = vmatpush1.bf16.msra.mxu0 0
        %6142 = vmatprep.subr.bf16.mxu0 0
        %6143 = vmatpush1.bf16.msra.mxu0 0
        %6144 = vmatprep.subr.bf16.mxu0 0
        %6145 = vmatpush1.bf16.msra.mxu0 0
        %6146 = vmatprep.mubr.bf16.mxu0 0
        %6147 = vmatmul.mubr.bf16.gmra.mrb[0].mxu0 %v6112
        %v6148 = vpop.f32.mrb[0].mxu0
        %v6149 = vadd.f32 %v6097, %v6148
        %v6150 = vpop.f32.mrb[0].mxu0
        %v6151 = vpop.f32.mrb[0].mxu0
        %v6152 = vadd.f32 %v6097, %v6151
        %v6153 = vpop.f32.mrb[0].mxu0
        %6154 = vdwg.mxu0
        %v6155 = vmul.f32 %v6149, 0.5
        %v6156 = vmul.f32 %v6152, 0.5
        %v6157 = vmul.f32 %v6149, 0.044715
        %v6158 = vmul.f32 %v6152, 0.044715
        %v6159 = vmul.f32 %v6157, %v6149
        %v6160 = vmul.f32 %v6158, %v6152
        %v6161 = vmul.f32 %v6159, %v6149
        %v6162 = vmul.f32 %v6160, %v6152
        %v6163 = vadd.f32 %v6149, %v6161
        %v6164 = vadd.f32 %v6152, %v6162
        %v6165 = vmul.f32 %v6163, 0.7978846
        %v6166 = vmul.f32 %v6164, 0.7978846
        %v6167 = vtanh.pop %v6165
        %v6168 = vtanh.pop %v6166
        %v6169 = vadd.f32 %v6167, 1.0
        %v6170 = vadd.f32 %v6168, 1.0
        %v6171 = vmul.f32 %v6155, %v6169
        %v6172 = vmul.f32 %v6156, %v6170
        %v6173 = vpack.c.bf16 %v6172, %v6171
        %v6174 = vld [vmem:[%s69] sm:$0xf]
        %v6175 = vld [vmem:[%s69 + $0x4] sm:$0xf]
        %v6176 = vld [vmem:[%s69 + $0x8] sm:$0xf]
        %v6177 = vld [vmem:[%s69 + $0xc] sm:$0xf]
        %v6178 = vld [vmem:[%s69 + $0x10] sm:$0xf]
        %v6179 = vld [vmem:[%s69 + $0x14] sm:$0xf]
        %v6180 = vld [vmem:[%s69 + $0x18] sm:$0xf]
        %v6181 = vld [vmem:[%s69 + $0x1c] sm:$0xf]
        %v6182 = vld [vmem:[%s71] sm:$0x1]
        %v6184 = vlaneseq
        %v6185 = vshrl.u32 %v6184, 7
        %v6186 = vsub.s32 0, %v6185
        %v6187 = vrot.slane %v6182, %v6186
        %v6197 = vunpack.c.l.b16 %v6174
        %v6198 = vunpack.c.l.b16 %v6175
        %v6199 = vunpack.c.l.b16 %v6176
        %v6200 = vunpack.c.l.b16 %v6177
        %v6201 = vunpack.c.l.b16 %v6178
        %v6202 = vunpack.c.l.b16 %v6179
        %v6203 = vunpack.c.l.b16 %v6180
        %v6204 = vunpack.c.l.b16 %v6181
        %v6205 = vpack.c.b16 %v6198, %v6197
        %v6206 = vpack.c.b16 %v6200, %v6199
        %v6207 = vpack.c.b16 %v6202, %v6201
        %v6208 = vpack.c.b16 %v6204, %v6203
        %vm6213 = vcmask 523264
        %v6215 = vsel %vm6213, %v6173, 0
        %6217 = vmatprep.subr.bf16.mxu0 0
        %6218 = vmatpush1.bf16.msra.mxu0 %v6205
        %6219 = vmatprep.subr.bf16.mxu0 0
        %6220 = vmatpush1.bf16.msra.mxu0 %v6206
        %6221 = vmatprep.subr.bf16.mxu0 0
        %6222 = vmatpush1.bf16.msra.mxu0 %v6207
        %6223 = vmatprep.subr.bf16.mxu0 0
        %6224 = vmatpush1.bf16.msra.mxu0 %v6208
        %6225 = vmatprep.subr.bf16.mxu0 0
        %6226 = vmatpush1.bf16.msra.mxu0 0
        %6227 = vmatprep.subr.bf16.mxu0 0
        %6228 = vmatpush1.bf16.msra.mxu0 0
        %6229 = vmatprep.subr.bf16.mxu0 0
        %6230 = vmatpush1.bf16.msra.mxu0 0
        %6231 = vmatprep.subr.bf16.mxu0 0
        %6232 = vmatpush1.bf16.msra.mxu0 0
        %6233 = vmatprep.subr.bf16.mxu0 0
        %6234 = vmatpush1.bf16.msra.mxu0 0
        %6235 = vmatprep.subr.bf16.mxu0 0
        %6236 = vmatpush1.bf16.msra.mxu0 0
        %6237 = vmatprep.subr.bf16.mxu0 0
        %6238 = vmatpush1.bf16.msra.mxu0 0
        %6239 = vmatprep.subr.bf16.mxu0 0
        %6240 = vmatpush1.bf16.msra.mxu0 0
        %6241 = vmatprep.subr.bf16.mxu0 0
        %6242 = vmatpush1.bf16.msra.mxu0 0
        %6243 = vmatprep.subr.bf16.mxu0 0
        %6244 = vmatpush1.bf16.msra.mxu0 0
        %6245 = vmatprep.subr.bf16.mxu0 0
        %6246 = vmatpush1.bf16.msra.mxu0 0
        %6247 = vmatprep.subr.bf16.mxu0 0
        %6248 = vmatpush1.bf16.msra.mxu0 0
        %6249 = vmatprep.mubr.bf16.mxu0 0
        %6250 = vmatmul.mubr.bf16.gmra.mrb[0].mxu0 %v6215
        %v6251 = vpop.f32.mrb[0].mxu0
        %v6252 = vadd.f32 %v6187, %v6251
        %v6253 = vpop.f32.mrb[0].mxu0
        %v6254 = vpop.f32.mrb[0].mxu0
        %v6255 = vadd.f32 %v6187, %v6254
        %v6256 = vpop.f32.mrb[0].mxu0
        %6257 = vdwg.mxu0
        %v6258 = vadd.f32 %v6085, %v6252
        %v6259 = vadd.f32 %v6086, %v6255
        %v6260 = vld [vmem:[#allocation7] sm:$0x1]
        %v6261 = vld [vmem:[#allocation9] sm:$0x1]
        %v6262 = vsel %vm2391, %v6258, 0.0
        %6263 = vadd.xlane.f32.xlu0 %v6262
        %v6264 = vpop.xlane.xlu0 %6263
        %v6265 = vsel %vm2391, %v6259, 0.0
        %6266 = vadd.xlane.f32.xlu0 %v6265
        %v6267 = vpop.xlane.xlu0 %6266
        %v6268 = vmul.f32 %v6264, %v6050
        %v6269 = vmul.f32 %v6267, %v6050
        %v6270 = vsub.f32 %v6258, %v6268
        %v6271 = vsub.f32 %v6259, %v6269
        %v6272 = vmul.f32 %v6270, %v6270
        %v6273 = vmul.f32 %v6271, %v6271
        %v6274 = vsel %vm2391, %v6272, 0.0
        %6275 = vadd.xlane.f32.xlu0 %v6274
        %v6276 = vpop.xlane.xlu0 %6275
        %v6277 = vsel %vm2391, %v6273, 0.0
        %6278 = vadd.xlane.f32.xlu0 %v6277
        %v6279 = vpop.xlane.xlu0 %6278
        %v6280 = vmul.f32 %v6276, %v6050
        %v6281 = vmul.f32 %v6279, %v6050
        %v6282 = vadd.f32 %v6280, 1e-05
        %v6283 = vadd.f32 %v6281, 1e-05
        %v6284 = vrsqrt.pop %v6282
        %v6285 = vrsqrt.pop %v6283
        %v6286 = vmul.f32 %v6270, %v6284
        %v6287 = vmul.f32 %v6271, %v6285
        %v6289 = vlaneseq
        %v6290 = vshrl.u32 %v6289, 7
        %v6291 = vsub.s32 0, %v6290
        %v6292 = vrot.slane %v6260, %v6291
        %v6294 = vmul.f32 %v6286, %v6292
        %v6295 = vmul.f32 %v6287, %v6292
        %v6297 = vlaneseq
        %v6298 = vshrl.u32 %v6297, 7
        %v6299 = vsub.s32 0, %v6298
        %v6300 = vrot.slane %v6261, %v6299
        %v6302 = vadd.f32 %v6294, %v6300
        %v6303 = vadd.f32 %v6295, %v6300
        %v6304 = vpack.c.bf16 %v6303, %v6302
        %v6305 = vld [vmem:[%s81] sm:$0xf]
        %v6306 = vld [vmem:[%s81 + $0x4] sm:$0xf]
        %v6307 = vld [vmem:[%s81 + $0x8] sm:$0xf]
        %v6308 = vld [vmem:[%s81 + $0xc] sm:$0xf]
        %v6309 = vld [vmem:[%s83] sm:$0x1]
        %v6311 = vlaneseq
        %v6312 = vshrl.u32 %v6311, 7
        %v6313 = vsub.s32 0, %v6312
        %v6314 = vrot.slane %v6309, %v6313
        %v6320 = vunpack.c.l.b16 %v6305
        %v6321 = vunpack.c.l.b16 %v6306
        %v6322 = vunpack.c.l.b16 %v6307
        %v6323 = vunpack.c.l.b16 %v6308
        %v6324 = vpack.c.b16 %v6321, %v6320
        %v6325 = vpack.c.b16 %v6323, %v6322
        %v6329 = vsel %vm2391, %v6304, 0
        %6331 = vmatprep.subr.bf16.mxu0 0
        %6332 = vmatpush1.bf16.msra.mxu0 %v6324
        %6333 = vmatprep.subr.bf16.mxu0 0
        %6334 = vmatpush1.bf16.msra.mxu0 %v6325
        %6335 = vmatprep.subr.bf16.mxu0 0
        %6336 = vmatpush1.bf16.msra.mxu0 0
        %6337 = vmatprep.subr.bf16.mxu0 0
        %6338 = vmatpush1.bf16.msra.mxu0 0
        %6339 = vmatprep.subr.bf16.mxu0 0
        %6340 = vmatpush1.bf16.msra.mxu0 0
        %6341 = vmatprep.subr.bf16.mxu0 0
        %6342 = vmatpush1.bf16.msra.mxu0 0
        %6343 = vmatprep.subr.bf16.mxu0 0
        %6344 = vmatpush1.bf16.msra.mxu0 0
        %6345 = vmatprep.subr.bf16.mxu0 0
        %6346 = vmatpush1.bf16.msra.mxu0 0
        %6347 = vmatprep.subr.bf16.mxu0 0
        %6348 = vmatpush1.bf16.msra.mxu0 0
        %6349 = vmatprep.subr.bf16.mxu0 0
        %6350 = vmatpush1.bf16.msra.mxu0 0
        %6351 = vmatprep.subr.bf16.mxu0 0
        %6352 = vmatpush1.bf16.msra.mxu0 0
        %6353 = vmatprep.subr.bf16.mxu0 0
        %6354 = vmatpush1.bf16.msra.mxu0 0
        %6355 = vmatprep.subr.bf16.mxu0 0
        %6356 = vmatpush1.bf16.msra.mxu0 0
        %6357 = vmatprep.subr.bf16.mxu0 0
        %6358 = vmatpush1.bf16.msra.mxu0 0
        %6359 = vmatprep.subr.bf16.mxu0 0
        %6360 = vmatpush1.bf16.msra.mxu0 0
        %6361 = vmatprep.subr.bf16.mxu0 0
        %6362 = vmatpush1.bf16.msra.mxu0 0
        %6363 = vmatprep.mubr.bf16.mxu0 0
        %6364 = vmatmul.mubr.bf16.gmra.mrb[0].mxu0 %v6329
        %v6365 = vpop.f32.mrb[0].mxu0
        %v6366 = vadd.f32 %v6314, %v6365
        %v6367 = vpop.f32.mrb[0].mxu0
        %v6368 = vpop.f32.mrb[0].mxu0
        %v6369 = vadd.f32 %v6314, %v6368
        %v6370 = vpop.f32.mrb[0].mxu0
        %6371 = vdwg.mxu0
        %v6372 = vld [vmem:[%s85] sm:$0xf]
        %v6373 = vld [vmem:[%s85 + $0x4] sm:$0xf]
        %v6374 = vld [vmem:[%s85 + $0x8] sm:$0xf]
        %v6375 = vld [vmem:[%s85 + $0xc] sm:$0xf]
        %v6376 = vld [vmem:[%s87] sm:$0x1]
        %v6378 = vlaneseq
        %v6379 = vshrl.u32 %v6378, 7
        %v6380 = vsub.s32 0, %v6379
        %v6381 = vrot.slane %v6376, %v6380
        %v6387 = vunpack.c.l.b16 %v6372
        %v6388 = vunpack.c.l.b16 %v6373
        %v6389 = vunpack.c.l.b16 %v6374
        %v6390 = vunpack.c.l.b16 %v6375
        %v6391 = vpack.c.b16 %v6388, %v6387
        %v6392 = vpack.c.b16 %v6390, %v6389
        %6395 = vmatprep.subr.bf16.mxu0 0
        %6396 = vmatpush1.bf16.msra.mxu0 %v6391
        %6397 = vmatprep.subr.bf16.mxu0 0
        %6398 = vmatpush1.bf16.msra.mxu0 %v6392
        %6399 = vmatprep.subr.bf16.mxu0 0
        %6400 = vmatpush1.bf16.msra.mxu0 0
        %6401 = vmatprep.subr.bf16.mxu0 0
        %6402 = vmatpush1.bf16.msra.mxu0 0
        %6403 = vmatprep.subr.bf16.mxu0 0
        %6404 = vmatpush1.bf16.msra.mxu0 0
        %6405 = vmatprep.subr.bf16.mxu0 0
        %6406 = vmatpush1.bf16.msra.mxu0 0
        %6407 = vmatprep.subr.bf16.mxu0 0
        %6408 = vmatpush1.bf16.msra.mxu0 0
        %6409 = vmatprep.subr.bf16.mxu0 0
        %6410 = vmatpush1.bf16.msra.mxu0 0
        %6411 = vmatprep.subr.bf16.mxu0 0
        %6412 = vmatpush1.bf16.msra.mxu0 0
        %6413 = vmatprep.subr.bf16.mxu0 0
        %6414 = vmatpush1.bf16.msra.mxu0 0
        %6415 = vmatprep.subr.bf16.mxu0 0
        %6416 = vmatpush1.bf16.msra.mxu0 0
        %6417 = vmatprep.subr.bf16.mxu0 0
        %6418 = vmatpush1.bf16.msra.mxu0 0
        %6419 = vmatprep.subr.bf16.mxu0 0
        %6420 = vmatpush1.bf16.msra.mxu0 0
        %6421 = vmatprep.subr.bf16.mxu0 0
        %6422 = vmatpush1.bf16.msra.mxu0 0
        %6423 = vmatprep.subr.bf16.mxu0 0
        %6424 = vmatpush1.bf16.msra.mxu0 0
        %6425 = vmatprep.subr.bf16.mxu0 0
        %6426 = vmatpush1.bf16.msra.mxu0 0
        %6427 = vmatprep.mubr.bf16.mxu0 0
        %6428 = vmatmul.mubr.bf16.gmra.mrb[0].mxu0 %v6329
        %v6429 = vpop.f32.mrb[0].mxu0
        %v6430 = vadd.f32 %v6381, %v6429
        %v6431 = vpop.f32.mrb[0].mxu0
        %v6432 = vpop.f32.mrb[0].mxu0
        %v6433 = vadd.f32 %v6381, %v6432
        %v6434 = vpop.f32.mrb[0].mxu0
        %6435 = vdwg.mxu0
        %v6436 = vld [vmem:[%s89] sm:$0xf]
        %v6437 = vld [vmem:[%s89 + $0x4] sm:$0xf]
        %v6438 = vld [vmem:[%s89 + $0x8] sm:$0xf]
        %v6439 = vld [vmem:[%s89 + $0xc] sm:$0xf]
        %v6440 = vld [vmem:[%s91] sm:$0x1]
        %v6442 = vlaneseq
        %v6443 = vshrl.u32 %v6442, 7
        %v6444 = vsub.s32 0, %v6443
        %v6445 = vrot.slane %v6440, %v6444
        %v6451 = vunpack.c.l.b16 %v6436
        %v6452 = vunpack.c.l.b16 %v6437
        %v6453 = vunpack.c.l.b16 %v6438
        %v6454 = vunpack.c.l.b16 %v6439
        %v6455 = vpack.c.b16 %v6452, %v6451
        %v6456 = vpack.c.b16 %v6454, %v6453
        %6459 = vmatprep.subr.bf16.mxu0 0
        %6460 = vmatpush1.bf16.msra.mxu0 %v6455
        %6461 = vmatprep.subr.bf16.mxu0 0
        %6462 = vmatpush1.bf16.msra.mxu0 %v6456
        %6463 = vmatprep.subr.bf16.mxu0 0
        %6464 = vmatpush1.bf16.msra.mxu0 0
        %6465 = vmatprep.subr.bf16.mxu0 0
        %6466 = vmatpush1.bf16.msra.mxu0 0
        %6467 = vmatprep.subr.bf16.mxu0 0
        %6468 = vmatpush1.bf16.msra.mxu0 0
        %6469 = vmatprep.subr.bf16.mxu0 0
        %6470 = vmatpush1.bf16.msra.mxu0 0
        %6471 = vmatprep.subr.bf16.mxu0 0
        %6472 = vmatpush1.bf16.msra.mxu0 0
        %6473 = vmatprep.subr.bf16.mxu0 0
        %6474 = vmatpush1.bf16.msra.mxu0 0
        %6475 = vmatprep.subr.bf16.mxu0 0
        %6476 = vmatpush1.bf16.msra.mxu0 0
        %6477 = vmatprep.subr.bf16.mxu0 0
        %6478 = vmatpush1.bf16.msra.mxu0 0
        %6479 = vmatprep.subr.bf16.mxu0 0
        %6480 = vmatpush1.bf16.msra.mxu0 0
        %6481 = vmatprep.subr.bf16.mxu0 0
        %6482 = vmatpush1.bf16.msra.mxu0 0
        %6483 = vmatprep.subr.bf16.mxu0 0
        %6484 = vmatpush1.bf16.msra.mxu0 0
        %6485 = vmatprep.subr.bf16.mxu0 0
        %6486 = vmatpush1.bf16.msra.mxu0 0
        %6487 = vmatprep.subr.bf16.mxu0 0
        %6488 = vmatpush1.bf16.msra.mxu0 0
        %6489 = vmatprep.subr.bf16.mxu0 0
        %6490 = vmatpush1.bf16.msra.mxu0 0
        %6491 = vmatprep.mubr.bf16.mxu0 0
        %6492 = vmatmul.mubr.bf16.gmra.mrb[0].mxu0 %v6329
        %v6493 = vpop.f32.mrb[0].mxu0
        %v6494 = vadd.f32 %v6445, %v6493
        %v6495 = vpop.f32.mrb[0].mxu0
        %v6496 = vpop.f32.mrb[0].mxu0
        %v6497 = vadd.f32 %v6445, %v6496
        %v6498 = vpop.f32.mrb[0].mxu0
        %6499 = vdwg.mxu0
        %v6500 = vpack.c.bf16 %v6369, %v6366
        %v6501 = vpack.c.bf16 %v6433, %v6430
        %v6503 = vsel %vm2141, %v6500, 0
        %v6506 = vsel %vm2141, %v6501, 0
        %6508 = vmatprep.subr.bf16.mxu0 0
        %6509 = vmatpush1.bf16.xpose.msra.mxu0 %v6506
        %6510 = vmatprep.subr.bf16.mxu0 0
        %6511 = vmatpush1.bf16.xpose.msra.mxu0 0
        %6512 = vmatprep.subr.bf16.mxu0 0
        %6513 = vmatpush1.bf16.xpose.msra.mxu0 0
        %6514 = vmatprep.subr.bf16.mxu0 0
        %6515 = vmatpush1.bf16.xpose.msra.mxu0 0
        %6516 = vmatprep.subr.bf16.mxu0 0
        %6517 = vmatpush1.bf16.xpose.msra.mxu0 0
        %6518 = vmatprep.subr.bf16.mxu0 0
        %6519 = vmatpush1.bf16.xpose.msra.mxu0 0
        %6520 = vmatprep.subr.bf16.mxu0 0
        %6521 = vmatpush1.bf16.xpose.msra.mxu0 0
        %6522 = vmatprep.subr.bf16.mxu0 0
        %6523 = vmatpush1.bf16.xpose.msra.mxu0 0
        %6524 = vmatprep.subr.bf16.mxu0 0
        %6525 = vmatpush1.bf16.xpose.msra.mxu0 0
        %6526 = vmatprep.subr.bf16.mxu0 0
        %6527 = vmatpush1.bf16.xpose.msra.mxu0 0
        %6528 = vmatprep.subr.bf16.mxu0 0
        %6529 = vmatpush1.bf16.xpose.msra.mxu0 0
        %6530 = vmatprep.subr.bf16.mxu0 0
        %6531 = vmatpush1.bf16.xpose.msra.mxu0 0
        %6532 = vmatprep.subr.bf16.mxu0 0
        %6533 = vmatpush1.bf16.xpose.msra.mxu0 0
        %6534 = vmatprep.subr.bf16.mxu0 0
        %6535 = vmatpush1.bf16.xpose.msra.mxu0 0
        %6536 = vmatprep.subr.bf16.mxu0 0
        %6537 = vmatpush1.bf16.xpose.msra.mxu0 0
        %6538 = vmatprep.subr.bf16.mxu0 0
        %6539 = vmatpush1.bf16.xpose.msra.mxu0 0
        %6540 = vmatprep.mubr.bf16.mxu0 0
        %6541 = vmatmul.mubr.bf16.gmra.mrb[0].mxu0 %v6503
        %v6542 = vpop.f32.mrb[0].mxu0
        %v6543 = vadd.f32 0.0, %v6542
        %v6544 = vpop.f32.mrb[0].mxu0
        %v6545 = vpop.f32.mrb[0].mxu0
        %v6546 = vadd.f32 0.0, %v6545
        %v6547 = vpop.f32.mrb[0].mxu0
        %6548 = vdwg.mxu0
        %v6549 = vmul.f32 %v6543, 0.35355338
        %v6550 = vmul.f32 %v6546, 0.35355338
        %v6551 = vsel %vm2201, %v6549, -inf
        %6552 = vmax.xlane.f32.xlu0 %v6551
        %v6553 = vpop.xlane.xlu0 %6552
        %v6554 = vsel %vm2201, %v6550, -inf
        %6555 = vmax.xlane.f32.xlu0 %v6554
        %v6556 = vpop.xlane.xlu0 %6555
        %v6557 = vsub.f32 %v6549, %v6553
        %v6558 = vsub.f32 %v6550, %v6556
        %v6559 = vmul.f32 %v6557, 1.442695
        %v6560 = vpow.pop %v6559
        %v6561 = vmul.f32 %v6558, 1.442695
        %v6562 = vpow.pop %v6561
        %v6563 = vsel %vm2201, %v6560, 0.0
        %6564 = vadd.xlane.f32.xlu0 %v6563
        %v6565 = vpop.xlane.xlu0 %6564
        %v6566 = vsel %vm2201, %v6562, 0.0
        %6567 = vadd.xlane.f32.xlu0 %v6566
        %v6568 = vpop.xlane.xlu0 %6567
        %v6569 = vrcp.pop %v6565
        %v6570 = vrcp.pop %v6568
        %v6571 = vmul.f32 %v6560, %v6569
        %v6572 = vmul.f32 %v6562, %v6570
        %v6573 = vpack.c.bf16 %v6572, %v6571
        %v6574 = vpack.c.bf16 %v6497, %v6494
        %v6576 = vsel %vm2201, %v6573, 0
        %6578 = vmatprep.subr.bf16.mxu0 0
        %6579 = vmatpush1.bf16.msra.mxu0 %v6574
        %6580 = vmatprep.subr.bf16.mxu0 0
        %6581 = vmatpush1.bf16.msra.mxu0 0
        %6582 = vmatprep.subr.bf16.mxu0 0
        %6583 = vmatpush1.bf16.msra.mxu0 0
        %6584 = vmatprep.subr.bf16.mxu0 0
        %6585 = vmatpush1.bf16.msra.mxu0 0
        %6586 = vmatprep.subr.bf16.mxu0 0
        %6587 = vmatpush1.bf16.msra.mxu0 0
        %6588 = vmatprep.subr.bf16.mxu0 0
        %6589 = vmatpush1.bf16.msra.mxu0 0
        %6590 = vmatprep.subr.bf16.mxu0 0
        %6591 = vmatpush1.bf16.msra.mxu0 0
        %6592 = vmatprep.subr.bf16.mxu0 0
        %6593 = vmatpush1.bf16.msra.mxu0 0
        %6594 = vmatprep.subr.bf16.mxu0 0
        %6595 = vmatpush1.bf16.msra.mxu0 0
        %6596 = vmatprep.subr.bf16.mxu0 0
        %6597 = vmatpush1.bf16.msra.mxu0 0
        %6598 = vmatprep.subr.bf16.mxu0 0
        %6599 = vmatpush1.bf16.msra.mxu0 0
        %6600 = vmatprep.subr.bf16.mxu0 0
        %6601 = vmatpush1.bf16.msra.mxu0 0
        %6602 = vmatprep.subr.bf16.mxu0 0
        %6603 = vmatpush1.bf16.msra.mxu0 0
        %6604 = vmatprep.subr.bf16.mxu0 0
        %6605 = vmatpush1.bf16.msra.mxu0 0
        %6606 = vmatprep.subr.bf16.mxu0 0
        %6607 = vmatpush1.bf16.msra.mxu0 0
        %6608 = vmatprep.subr.bf16.mxu0 0
        %6609 = vmatpush1.bf16.msra.mxu0 0
        %6610 = vmatprep.mubr.bf16.mxu0 0
        %6611 = vmatmul.mubr.bf16.gmra.mrb[0].mxu0 %v6576
        %v6612 = vpop.f32.mrb[0].mxu0
        %v6613 = vadd.f32 0.0, %v6612
        %v6614 = vpop.f32.mrb[0].mxu0
        %v6615 = vpop.f32.mrb[0].mxu0
        %v6616 = vadd.f32 0.0, %v6615
        %v6617 = vpop.f32.mrb[0].mxu0
        %6618 = vdwg.mxu0
        %v6619 = vpack.c.bf16 %v6616, %v6613
        %v6620 = vld [vmem:[%s93] sm:$0xf]
        %s6621 = scalar_lea.vmem %s81, 16
        %v6622 = vld [vmem:[%s6621] sm:$0xf]
        %v6623 = vld [vmem:[%s6621 + $0x4] sm:$0xf]
        %v6624 = vld [vmem:[%s6621 + $0x8] sm:$0xf]
        %v6625 = vld [vmem:[%s6621 + $0xc] sm:$0xf]
        %s6626 = scalar_lea.vmem %s83, 1
        %v6627 = vld [vmem:[%s6626] sm:$0x1]
        %v6629 = vlaneseq
        %v6630 = vshrl.u32 %v6629, 7
        %v6631 = vsub.s32 0, %v6630
        %v6632 = vrot.slane %v6627, %v6631
        %v6638 = vunpack.c.l.b16 %v6622
        %v6639 = vunpack.c.l.b16 %v6623
        %v6640 = vunpack.c.l.b16 %v6624
        %v6641 = vunpack.c.l.b16 %v6625
        %v6642 = vpack.c.b16 %v6639, %v6638
        %v6643 = vpack.c.b16 %v6641, %v6640
        %6646 = vmatprep.subr.bf16.mxu0 0
        %6647 = vmatpush1.bf16.msra.mxu0 %v6642
        %6648 = vmatprep.subr.bf16.mxu0 0
        %6649 = vmatpush1.bf16.msra.mxu0 %v6643
        %6650 = vmatprep.subr.bf16.mxu0 0
        %6651 = vmatpush1.bf16.msra.mxu0 0
        %6652 = vmatprep.subr.bf16.mxu0 0
        %6653 = vmatpush1.bf16.msra.mxu0 0
        %6654 = vmatprep.subr.bf16.mxu0 0
        %6655 = vmatpush1.bf16.msra.mxu0 0
        %6656 = vmatprep.subr.bf16.mxu0 0
        %6657 = vmatpush1.bf16.msra.mxu0 0
        %6658 = vmatprep.subr.bf16.mxu0 0
        %6659 = vmatpush1.bf16.msra.mxu0 0
        %6660 = vmatprep.subr.bf16.mxu0 0
        %6661 = vmatpush1.bf16.msra.mxu0 0
        %6662 = vmatprep.subr.bf16.mxu0 0
        %6663 = vmatpush1.bf16.msra.mxu0 0
        %6664 = vmatprep.subr.bf16.mxu0 0
        %6665 = vmatpush1.bf16.msra.mxu0 0
        %6666 = vmatprep.subr.bf16.mxu0 0
        %6667 = vmatpush1.bf16.msra.mxu0 0
        %6668 = vmatprep.subr.bf16.mxu0 0
        %6669 = vmatpush1.bf16.msra.mxu0 0
        %6670 = vmatprep.subr.bf16.mxu0 0
        %6671 = vmatpush1.bf16.msra.mxu0 0
        %6672 = vmatprep.subr.bf16.mxu0 0
        %6673 = vmatpush1.bf16.msra.mxu0 0
        %6674 = vmatprep.subr.bf16.mxu0 0
        %6675 = vmatpush1.bf16.msra.mxu0 0
        %6676 = vmatprep.subr.bf16.mxu0 0
        %6677 = vmatpush1.bf16.msra.mxu0 0
        %6678 = vmatprep.mubr.bf16.mxu0 0
        %6679 = vmatmul.mubr.bf16.gmra.mrb[0].mxu0 %v6329
        %v6680 = vpop.f32.mrb[0].mxu0
        %v6681 = vadd.f32 %v6632, %v6680
        %v6682 = vpop.f32.mrb[0].mxu0
        %v6683 = vpop.f32.mrb[0].mxu0
        %v6684 = vadd.f32 %v6632, %v6683
        %v6685 = vpop.f32.mrb[0].mxu0
        %6686 = vdwg.mxu0
        %s6687 = scalar_lea.vmem %s85, 16
        %v6688 = vld [vmem:[%s6687] sm:$0xf]
        %v6689 = vld [vmem:[%s6687 + $0x4] sm:$0xf]
        %v6690 = vld [vmem:[%s6687 + $0x8] sm:$0xf]
        %v6691 = vld [vmem:[%s6687 + $0xc] sm:$0xf]
        %s6692 = scalar_lea.vmem %s87, 1
        %v6693 = vld [vmem:[%s6692] sm:$0x1]
        %v6695 = vlaneseq
        %v6696 = vshrl.u32 %v6695, 7
        %v6697 = vsub.s32 0, %v6696
        %v6698 = vrot.slane %v6693, %v6697
        %v6704 = vunpack.c.l.b16 %v6688
        %v6705 = vunpack.c.l.b16 %v6689
        %v6706 = vunpack.c.l.b16 %v6690
        %v6707 = vunpack.c.l.b16 %v6691
        %v6708 = vpack.c.b16 %v6705, %v6704
        %v6709 = vpack.c.b16 %v6707, %v6706
        %6712 = vmatprep.subr.bf16.mxu0 0
        %6713 = vmatpush1.bf16.msra.mxu0 %v6708
        %6714 = vmatprep.subr.bf16.mxu0 0
        %6715 = vmatpush1.bf16.msra.mxu0 %v6709
        %6716 = vmatprep.subr.bf16.mxu0 0
        %6717 = vmatpush1.bf16.msra.mxu0 0
        %6718 = vmatprep.subr.bf16.mxu0 0
        %6719 = vmatpush1.bf16.msra.mxu0 0
        %6720 = vmatprep.subr.bf16.mxu0 0
        %6721 = vmatpush1.bf16.msra.mxu0 0
        %6722 = vmatprep.subr.bf16.mxu0 0
        %6723 = vmatpush1.bf16.msra.mxu0 0
        %6724 = vmatprep.subr.bf16.mxu0 0
        %6725 = vmatpush1.bf16.msra.mxu0 0
        %6726 = vmatprep.subr.bf16.mxu0 0
        %6727 = vmatpush1.bf16.msra.mxu0 0
        %6728 = vmatprep.subr.bf16.mxu0 0
        %6729 = vmatpush1.bf16.msra.mxu0 0
        %6730 = vmatprep.subr.bf16.mxu0 0
        %6731 = vmatpush1.bf16.msra.mxu0 0
        %6732 = vmatprep.subr.bf16.mxu0 0
        %6733 = vmatpush1.bf16.msra.mxu0 0
        %6734 = vmatprep.subr.bf16.mxu0 0
        %6735 = vmatpush1.bf16.msra.mxu0 0
        %6736 = vmatprep.subr.bf16.mxu0 0
        %6737 = vmatpush1.bf16.msra.mxu0 0
        %6738 = vmatprep.subr.bf16.mxu0 0
        %6739 = vmatpush1.bf16.msra.mxu0 0
        %6740 = vmatprep.subr.bf16.mxu0 0
        %6741 = vmatpush1.bf16.msra.mxu0 0
        %6742 = vmatprep.subr.bf16.mxu0 0
        %6743 = vmatpush1.bf16.msra.mxu0 0
        %6744 = vmatprep.mubr.bf16.mxu0 0
        %6745 = vmatmul.mubr.bf16.gmra.mrb[0].mxu0 %v6329
        %v6746 = vpop.f32.mrb[0].mxu0
        %v6747 = vadd.f32 %v6698, %v6746
        %v6748 = vpop.f32.mrb[0].mxu0
        %v6749 = vpop.f32.mrb[0].mxu0
        %v6750 = vadd.f32 %v6698, %v6749
        %v6751 = vpop.f32.mrb[0].mxu0
        %6752 = vdwg.mxu0
        %s6753 = scalar_lea.vmem %s89, 16
        %v6754 = vld [vmem:[%s6753] sm:$0xf]
        %v6755 = vld [vmem:[%s6753 + $0x4] sm:$0xf]
        %v6756 = vld [vmem:[%s6753 + $0x8] sm:$0xf]
        %v6757 = vld [vmem:[%s6753 + $0xc] sm:$0xf]
        %s6758 = scalar_lea.vmem %s91, 1
        %v6759 = vld [vmem:[%s6758] sm:$0x1]
        %v6761 = vlaneseq
        %v6762 = vshrl.u32 %v6761, 7
        %v6763 = vsub.s32 0, %v6762
        %v6764 = vrot.slane %v6759, %v6763
        %v6770 = vunpack.c.l.b16 %v6754
        %v6771 = vunpack.c.l.b16 %v6755
        %v6772 = vunpack.c.l.b16 %v6756
        %v6773 = vunpack.c.l.b16 %v6757
        %v6774 = vpack.c.b16 %v6771, %v6770
        %v6775 = vpack.c.b16 %v6773, %v6772
        %6778 = vmatprep.subr.bf16.mxu0 0
        %6779 = vmatpush1.bf16.msra.mxu0 %v6774
        %6780 = vmatprep.subr.bf16.mxu0 0
        %6781 = vmatpush1.bf16.msra.mxu0 %v6775
        %6782 = vmatprep.subr.bf16.mxu0 0
        %6783 = vmatpush1.bf16.msra.mxu0 0
        %6784 = vmatprep.subr.bf16.mxu0 0
        %6785 = vmatpush1.bf16.msra.mxu0 0
        %6786 = vmatprep.subr.bf16.mxu0 0
        %6787 = vmatpush1.bf16.msra.mxu0 0
        %6788 = vmatprep.subr.bf16.mxu0 0
        %6789 = vmatpush1.bf16.msra.mxu0 0
        %6790 = vmatprep.subr.bf16.mxu0 0
        %6791 = vmatpush1.bf16.msra.mxu0 0
        %6792 = vmatprep.subr.bf16.mxu0 0
        %6793 = vmatpush1.bf16.msra.mxu0 0
        %6794 = vmatprep.subr.bf16.mxu0 0
        %6795 = vmatpush1.bf16.msra.mxu0 0
        %6796 = vmatprep.subr.bf16.mxu0 0
        %6797 = vmatpush1.bf16.msra.mxu0 0
        %6798 = vmatprep.subr.bf16.mxu0 0
        %6799 = vmatpush1.bf16.msra.mxu0 0
        %6800 = vmatprep.subr.bf16.mxu0 0
        %6801 = vmatpush1.bf16.msra.mxu0 0
        %6802 = vmatprep.subr.bf16.mxu0 0
        %6803 = vmatpush1.bf16.msra.mxu0 0
        %6804 = vmatprep.subr.bf16.mxu0 0
        %6805 = vmatpush1.bf16.msra.mxu0 0
        %6806 = vmatprep.subr.bf16.mxu0 0
        %6807 = vmatpush1.bf16.msra.mxu0 0
        %6808 = vmatprep.subr.bf16.mxu0 0
        %6809 = vmatpush1.bf16.msra.mxu0 0
        %6810 = vmatprep.mubr.bf16.mxu0 0
        %6811 = vmatmul.mubr.bf16.gmra.mrb[0].mxu0 %v6329
        %v6812 = vpop.f32.mrb[0].mxu0
        %v6813 = vadd.f32 %v6764, %v6812
        %v6814 = vpop.f32.mrb[0].mxu0
        %v6815 = vpop.f32.mrb[0].mxu0
        %v6816 = vadd.f32 %v6764, %v6815
        %v6817 = vpop.f32.mrb[0].mxu0
        %6818 = vdwg.mxu0
        %v6819 = vpack.c.bf16 %v6684, %v6681
        %v6820 = vpack.c.bf16 %v6750, %v6747
        %v6822 = vsel %vm2141, %v6819, 0
        %v6825 = vsel %vm2141, %v6820, 0
        %6827 = vmatprep.subr.bf16.mxu0 0
        %6828 = vmatpush1.bf16.xpose.msra.mxu0 %v6825
        %6829 = vmatprep.subr.bf16.mxu0 0
        %6830 = vmatpush1.bf16.xpose.msra.mxu0 0
        %6831 = vmatprep.subr.bf16.mxu0 0
        %6832 = vmatpush1.bf16.xpose.msra.mxu0 0
        %6833 = vmatprep.subr.bf16.mxu0 0
        %6834 = vmatpush1.bf16.xpose.msra.mxu0 0
        %6835 = vmatprep.subr.bf16.mxu0 0
        %6836 = vmatpush1.bf16.xpose.msra.mxu0 0
        %6837 = vmatprep.subr.bf16.mxu0 0
        %6838 = vmatpush1.bf16.xpose.msra.mxu0 0
        %6839 = vmatprep.subr.bf16.mxu0 0
        %6840 = vmatpush1.bf16.xpose.msra.mxu0 0
        %6841 = vmatprep.subr.bf16.mxu0 0
        %6842 = vmatpush1.bf16.xpose.msra.mxu0 0
        %6843 = vmatprep.subr.bf16.mxu0 0
        %6844 = vmatpush1.bf16.xpose.msra.mxu0 0
        %6845 = vmatprep.subr.bf16.mxu0 0
        %6846 = vmatpush1.bf16.xpose.msra.mxu0 0
        %6847 = vmatprep.subr.bf16.mxu0 0
        %6848 = vmatpush1.bf16.xpose.msra.mxu0 0
        %6849 = vmatprep.subr.bf16.mxu0 0
        %6850 = vmatpush1.bf16.xpose.msra.mxu0 0
        %6851 = vmatprep.subr.bf16.mxu0 0
        %6852 = vmatpush1.bf16.xpose.msra.mxu0 0
        %6853 = vmatprep.subr.bf16.mxu0 0
        %6854 = vmatpush1.bf16.xpose.msra.mxu0 0
        %6855 = vmatprep.subr.bf16.mxu0 0
        %6856 = vmatpush1.bf16.xpose.msra.mxu0 0
        %6857 = vmatprep.subr.bf16.mxu0 0
        %6858 = vmatpush1.bf16.xpose.msra.mxu0 0
        %6859 = vmatprep.mubr.bf16.mxu0 0
        %6860 = vmatmul.mubr.bf16.gmra.mrb[0].mxu0 %v6822
        %v6861 = vpop.f32.mrb[0].mxu0
        %v6862 = vadd.f32 0.0, %v6861
        %v6863 = vpop.f32.mrb[0].mxu0
        %v6864 = vpop.f32.mrb[0].mxu0
        %v6865 = vadd.f32 0.0, %v6864
        %v6866 = vpop.f32.mrb[0].mxu0
        %6867 = vdwg.mxu0
        %v6868 = vmul.f32 %v6862, 0.35355338
        %v6869 = vmul.f32 %v6865, 0.35355338
        %v6870 = vsel %vm2201, %v6868, -inf
        %6871 = vmax.xlane.f32.xlu0 %v6870
        %v6872 = vpop.xlane.xlu0 %6871
        %v6873 = vsel %vm2201, %v6869, -inf
        %6874 = vmax.xlane.f32.xlu0 %v6873
        %v6875 = vpop.xlane.xlu0 %6874
        %v6876 = vsub.f32 %v6868, %v6872
        %v6877 = vsub.f32 %v6869, %v6875
        %v6878 = vmul.f32 %v6876, 1.442695
        %v6879 = vpow.pop %v6878
        %v6880 = vmul.f32 %v6877, 1.442695
        %v6881 = vpow.pop %v6880
        %v6882 = vsel %vm2201, %v6879, 0.0
        %6883 = vadd.xlane.f32.xlu0 %v6882
        %v6884 = vpop.xlane.xlu0 %6883
        %v6885 = vsel %vm2201, %v6881, 0.0
        %6886 = vadd.xlane.f32.xlu0 %v6885
        %v6887 = vpop.xlane.xlu0 %6886
        %v6888 = vrcp.pop %v6884
        %v6889 = vrcp.pop %v6887
        %v6890 = vmul.f32 %v6879, %v6888
        %v6891 = vmul.f32 %v6881, %v6889
        %v6892 = vpack.c.bf16 %v6891, %v6890
        %v6893 = vpack.c.bf16 %v6816, %v6813
        %v6895 = vsel %vm2201, %v6892, 0
        %6897 = vmatprep.subr.bf16.mxu0 0
        %6898 = vmatpush1.bf16.msra.mxu0 %v6893
        %6899 = vmatprep.subr.bf16.mxu0 0
        %6900 = vmatpush1.bf16.msra.mxu0 0
        %6901 = vmatprep.subr.bf16.mxu0 0
        %6902 = vmatpush1.bf16.msra.mxu0 0
        %6903 = vmatprep.subr.bf16.mxu0 0
        %6904 = vmatpush1.bf16.msra.mxu0 0
        %6905 = vmatprep.subr.bf16.mxu0 0
        %6906 = vmatpush1.bf16.msra.mxu0 0
        %6907 = vmatprep.subr.bf16.mxu0 0
        %6908 = vmatpush1.bf16.msra.mxu0 0
        %6909 = vmatprep.subr.bf16.mxu0 0
        %6910 = vmatpush1.bf16.msra.mxu0 0
        %6911 = vmatprep.subr.bf16.mxu0 0
        %6912 = vmatpush1.bf16.msra.mxu0 0
        %6913 = vmatprep.subr.bf16.mxu0 0
        %6914 = vmatpush1.bf16.msra.mxu0 0
        %6915 = vmatprep.subr.bf16.mxu0 0
        %6916 = vmatpush1.bf16.msra.mxu0 0
        %6917 = vmatprep.subr.bf16.mxu0 0
        %6918 = vmatpush1.bf16.msra.mxu0 0
        %6919 = vmatprep.subr.bf16.mxu0 0
        %6920 = vmatpush1.bf16.msra.mxu0 0
        %6921 = vmatprep.subr.bf16.mxu0 0
        %6922 = vmatpush1.bf16.msra.mxu0 0
        %6923 = vmatprep.subr.bf16.mxu0 0
        %6924 = vmatpush1.bf16.msra.mxu0 0
        %6925 = vmatprep.subr.bf16.mxu0 0
        %6926 = vmatpush1.bf16.msra.mxu0 0
        %6927 = vmatprep.subr.bf16.mxu0 0
        %6928 = vmatpush1.bf16.msra.mxu0 0
        %6929 = vmatprep.mubr.bf16.mxu0 0
        %6930 = vmatmul.mubr.bf16.gmra.mrb[0].mxu0 %v6895
        %v6931 = vpop.f32.mrb[0].mxu0
        %v6932 = vadd.f32 0.0, %v6931
        %v6933 = vpop.f32.mrb[0].mxu0
        %v6934 = vpop.f32.mrb[0].mxu0
        %v6935 = vadd.f32 0.0, %v6934
        %v6936 = vpop.f32.mrb[0].mxu0
        %6937 = vdwg.mxu0
        %v6938 = vpack.c.bf16 %v6935, %v6932
        %s6939 = scalar_lea.vmem %s93, 4
        %v6940 = vld [vmem:[%s6939] sm:$0xf]
        %v6942 = vsel %vm2141, %v6938, 0
        %v6945 = vsel %vm2145, %v6940, 0
        %6947 = vmatprep.subr.bf16.mxu0 0
        %6948 = vmatpush1.bf16.msra.mxu0 %v6945
        %6949 = vmatprep.subr.bf16.mxu0 0
        %6950 = vmatpush1.bf16.msra.mxu0 0
        %6951 = vmatprep.subr.bf16.mxu0 0
        %6952 = vmatpush1.bf16.msra.mxu0 0
        %6953 = vmatprep.subr.bf16.mxu0 0
        %6954 = vmatpush1.bf16.msra.mxu0 0
        %6955 = vmatprep.subr.bf16.mxu0 0
        %6956 = vmatpush1.bf16.msra.mxu0 0
        %6957 = vmatprep.subr.bf16.mxu0 0
        %6958 = vmatpush1.bf16.msra.mxu0 0
        %6959 = vmatprep.subr.bf16.mxu0 0
        %6960 = vmatpush1.bf16.msra.mxu0 0
        %6961 = vmatprep.subr.bf16.mxu0 0
        %6962 = vmatpush1.bf16.msra.mxu0 0
        %6963 = vmatprep.subr.bf16.mxu0 0
        %6964 = vmatpush1.bf16.msra.mxu0 0
        %6965 = vmatprep.subr.bf16.mxu0 0
        %6966 = vmatpush1.bf16.msra.mxu0 0
        %6967 = vmatprep.subr.bf16.mxu0 0
        %6968 = vmatpush1.bf16.msra.mxu0 0
        %6969 = vmatprep.subr.bf16.mxu0 0
        %6970 = vmatpush1.bf16.msra.mxu0 0
        %6971 = vmatprep.subr.bf16.mxu0 0
        %6972 = vmatpush1.bf16.msra.mxu0 0
        %6973 = vmatprep.subr.bf16.mxu0 0
        %6974 = vmatpush1.bf16.msra.mxu0 0
        %6975 = vmatprep.subr.bf16.mxu0 0
        %6976 = vmatpush1.bf16.msra.mxu0 0
        %6977 = vmatprep.subr.bf16.mxu0 0
        %6978 = vmatpush1.bf16.msra.mxu0 0
        %6979 = vmatprep.mubr.bf16.mxu0 0
        %6980 = vmatmul.mubr.bf16.gmra.mrb[0].mxu0 %v6942
        %v6981 = vpop.f32.mrb[0].mxu0
        %v6982 = vadd.f32 0.0, %v6981
        %v6983 = vpop.f32.mrb[0].mxu0
        %v6984 = vpop.f32.mrb[0].mxu0
        %v6985 = vadd.f32 0.0, %v6984
        %v6986 = vpop.f32.mrb[0].mxu0
        %6987 = vdwg.mxu0
        %v6989 = vsel %vm2141, %v6619, 0
        %v6992 = vsel %vm2145, %v6620, 0
        %6994 = vmatprep.subr.bf16.mxu0 0
        %6995 = vmatpush1.bf16.msra.mxu0 %v6992
        %6996 = vmatprep.subr.bf16.mxu0 0
        %6997 = vmatpush1.bf16.msra.mxu0 0
        %6998 = vmatprep.subr.bf16.mxu0 0
        %6999 = vmatpush1.bf16.msra.mxu0 0
        %7000 = vmatprep.subr.bf16.mxu0 0
        %7001 = vmatpush1.bf16.msra.mxu0 0
        %7002 = vmatprep.subr.bf16.mxu0 0
        %7003 = vmatpush1.bf16.msra.mxu0 0
        %7004 = vmatprep.subr.bf16.mxu0 0
        %7005 = vmatpush1.bf16.msra.mxu0 0
        %7006 = vmatprep.subr.bf16.mxu0 0
        %7007 = vmatpush1.bf16.msra.mxu0 0
        %7008 = vmatprep.subr.bf16.mxu0 0
        %7009 = vmatpush1.bf16.msra.mxu0 0
        %7010 = vmatprep.subr.bf16.mxu0 0
        %7011 = vmatpush1.bf16.msra.mxu0 0
        %7012 = vmatprep.subr.bf16.mxu0 0
        %7013 = vmatpush1.bf16.msra.mxu0 0
        %7014 = vmatprep.subr.bf16.mxu0 0
        %7015 = vmatpush1.bf16.msra.mxu0 0
        %7016 = vmatprep.subr.bf16.mxu0 0
        %7017 = vmatpush1.bf16.msra.mxu0 0
        %7018 = vmatprep.subr.bf16.mxu0 0
        %7019 = vmatpush1.bf16.msra.mxu0 0
        %7020 = vmatprep.subr.bf16.mxu0 0
        %7021 = vmatpush1.bf16.msra.mxu0 0
        %7022 = vmatprep.subr.bf16.mxu0 0
        %7023 = vmatpush1.bf16.msra.mxu0 0
        %7024 = vmatprep.subr.bf16.mxu0 0
        %7025 = vmatpush1.bf16.msra.mxu0 0
        %7026 = vmatprep.mubr.bf16.mxu0 0
        %7027 = vmatmul.mubr.bf16.gmra.mrb[0].mxu0 %v6989
        %v7028 = vpop.f32.mrb[0].mxu0
        %v7029 = vadd.f32 %v6982, %v7028
        %v7030 = vpop.f32.mrb[0].mxu0
        %v7031 = vpop.f32.mrb[0].mxu0
        %v7032 = vadd.f32 %v6985, %v7031
        %v7033 = vpop.f32.mrb[0].mxu0
        %7034 = vdwg.mxu0
        %s7035 = scalar_lea.vmem %s81, 32
        %v7036 = vld [vmem:[%s7035] sm:$0xf]
        %v7037 = vld [vmem:[%s7035 + $0x4] sm:$0xf]
        %v7038 = vld [vmem:[%s7035 + $0x8] sm:$0xf]
        %v7039 = vld [vmem:[%s7035 + $0xc] sm:$0xf]
        %s7040 = scalar_lea.vmem %s83, 2
        %v7041 = vld [vmem:[%s7040] sm:$0x1]
        %v7043 = vlaneseq
        %v7044 = vshrl.u32 %v7043, 7
        %v7045 = vsub.s32 0, %v7044
        %v7046 = vrot.slane %v7041, %v7045
        %v7052 = vunpack.c.l.b16 %v7036
        %v7053 = vunpack.c.l.b16 %v7037
        %v7054 = vunpack.c.l.b16 %v7038
        %v7055 = vunpack.c.l.b16 %v7039
        %v7056 = vpack.c.b16 %v7053, %v7052
        %v7057 = vpack.c.b16 %v7055, %v7054
        %7060 = vmatprep.subr.bf16.mxu0 0
        %7061 = vmatpush1.bf16.msra.mxu0 %v7056
        %7062 = vmatprep.subr.bf16.mxu0 0
        %7063 = vmatpush1.bf16.msra.mxu0 %v7057
        %7064 = vmatprep.subr.bf16.mxu0 0
        %7065 = vmatpush1.bf16.msra.mxu0 0
        %7066 = vmatprep.subr.bf16.mxu0 0
        %7067 = vmatpush1.bf16.msra.mxu0 0
        %7068 = vmatprep.subr.bf16.mxu0 0
        %7069 = vmatpush1.bf16.msra.mxu0 0
        %7070 = vmatprep.subr.bf16.mxu0 0
        %7071 = vmatpush1.bf16.msra.mxu0 0
        %7072 = vmatprep.subr.bf16.mxu0 0
        %7073 = vmatpush1.bf16.msra.mxu0 0
        %7074 = vmatprep.subr.bf16.mxu0 0
        %7075 = vmatpush1.bf16.msra.mxu0 0
        %7076 = vmatprep.subr.bf16.mxu0 0
        %7077 = vmatpush1.bf16.msra.mxu0 0
        %7078 = vmatprep.subr.bf16.mxu0 0
        %7079 = vmatpush1.bf16.msra.mxu0 0
        %7080 = vmatprep.subr.bf16.mxu0 0
        %7081 = vmatpush1.bf16.msra.mxu0 0
        %7082 = vmatprep.subr.bf16.mxu0 0
        %7083 = vmatpush1.bf16.msra.mxu0 0
        %7084 = vmatprep.subr.bf16.mxu0 0
        %7085 = vmatpush1.bf16.msra.mxu0 0
        %7086 = vmatprep.subr.bf16.mxu0 0
        %7087 = vmatpush1.bf16.msra.mxu0 0
        %7088 = vmatprep.subr.bf16.mxu0 0
        %7089 = vmatpush1.bf16.msra.mxu0 0
        %7090 = vmatprep.subr.bf16.mxu0 0
        %7091 = vmatpush1.bf16.msra.mxu0 0
        %7092 = vmatprep.mubr.bf16.mxu0 0
        %7093 = vmatmul.mubr.bf16.gmra.mrb[0].mxu0 %v6329
        %v7094 = vpop.f32.mrb[0].mxu0
        %v7095 = vadd.f32 %v7046, %v7094
        %v7096 = vpop.f32.mrb[0].mxu0
        %v7097 = vpop.f32.mrb[0].mxu0
        %v7098 = vadd.f32 %v7046, %v7097
        %v7099 = vpop.f32.mrb[0].mxu0
        %7100 = vdwg.mxu0
        %s7101 = scalar_lea.vmem %s85, 32
        %v7102 = vld [vmem:[%s7101] sm:$0xf]
        %v7103 = vld [vmem:[%s7101 + $0x4] sm:$0xf]
        %v7104 = vld [vmem:[%s7101 + $0x8] sm:$0xf]
        %v7105 = vld [vmem:[%s7101 + $0xc] sm:$0xf]
        %s7106 = scalar_lea.vmem %s87, 2
        %v7107 = vld [vmem:[%s7106] sm:$0x1]
        %v7109 = vlaneseq
        %v7110 = vshrl.u32 %v7109, 7
        %v7111 = vsub.s32 0, %v7110
        %v7112 = vrot.slane %v7107, %v7111
        %v7118 = vunpack.c.l.b16 %v7102
        %v7119 = vunpack.c.l.b16 %v7103
        %v7120 = vunpack.c.l.b16 %v7104
        %v7121 = vunpack.c.l.b16 %v7105
        %v7122 = vpack.c.b16 %v7119, %v7118
        %v7123 = vpack.c.b16 %v7121, %v7120
        %7126 = vmatprep.subr.bf16.mxu0 0
        %7127 = vmatpush1.bf16.msra.mxu0 %v7122
        %7128 = vmatprep.subr.bf16.mxu0 0
        %7129 = vmatpush1.bf16.msra.mxu0 %v7123
        %7130 = vmatprep.subr.bf16.mxu0 0
        %7131 = vmatpush1.bf16.msra.mxu0 0
        %7132 = vmatprep.subr.bf16.mxu0 0
        %7133 = vmatpush1.bf16.msra.mxu0 0
        %7134 = vmatprep.subr.bf16.mxu0 0
        %7135 = vmatpush1.bf16.msra.mxu0 0
        %7136 = vmatprep.subr.bf16.mxu0 0
        %7137 = vmatpush1.bf16.msra.mxu0 0
        %7138 = vmatprep.subr.bf16.mxu0 0
        %7139 = vmatpush1.bf16.msra.mxu0 0
        %7140 = vmatprep.subr.bf16.mxu0 0
        %7141 = vmatpush1.bf16.msra.mxu0 0
        %7142 = vmatprep.subr.bf16.mxu0 0
        %7143 = vmatpush1.bf16.msra.mxu0 0
        %7144 = vmatprep.subr.bf16.mxu0 0
        %7145 = vmatpush1.bf16.msra.mxu0 0
        %7146 = vmatprep.subr.bf16.mxu0 0
        %7147 = vmatpush1.bf16.msra.mxu0 0
        %7148 = vmatprep.subr.bf16.mxu0 0
        %7149 = vmatpush1.bf16.msra.mxu0 0
        %7150 = vmatprep.subr.bf16.mxu0 0
        %7151 = vmatpush1.bf16.msra.mxu0 0
        %7152 = vmatprep.subr.bf16.mxu0 0
        %7153 = vmatpush1.bf16.msra.mxu0 0
        %7154 = vmatprep.subr.bf16.mxu0 0
        %7155 = vmatpush1.bf16.msra.mxu0 0
        %7156 = vmatprep.subr.bf16.mxu0 0
        %7157 = vmatpush1.bf16.msra.mxu0 0
        %7158 = vmatprep.mubr.bf16.mxu0 0
        %7159 = vmatmul.mubr.bf16.gmra.mrb[0].mxu0 %v6329
        %v7160 = vpop.f32.mrb[0].mxu0
        %v7161 = vadd.f32 %v7112, %v7160
        %v7162 = vpop.f32.mrb[0].mxu0
        %v7163 = vpop.f32.mrb[0].mxu0
        %v7164 = vadd.f32 %v7112, %v7163
        %v7165 = vpop.f32.mrb[0].mxu0
        %7166 = vdwg.mxu0
        %s7167 = scalar_lea.vmem %s89, 32
        %v7168 = vld [vmem:[%s7167] sm:$0xf]
        %v7169 = vld [vmem:[%s7167 + $0x4] sm:$0xf]
        %v7170 = vld [vmem:[%s7167 + $0x8] sm:$0xf]
        %v7171 = vld [vmem:[%s7167 + $0xc] sm:$0xf]
        %s7172 = scalar_lea.vmem %s91, 2
        %v7173 = vld [vmem:[%s7172] sm:$0x1]
        %v7175 = vlaneseq
        %v7176 = vshrl.u32 %v7175, 7
        %v7177 = vsub.s32 0, %v7176
        %v7178 = vrot.slane %v7173, %v7177
        %v7184 = vunpack.c.l.b16 %v7168
        %v7185 = vunpack.c.l.b16 %v7169
        %v7186 = vunpack.c.l.b16 %v7170
        %v7187 = vunpack.c.l.b16 %v7171
        %v7188 = vpack.c.b16 %v7185, %v7184
        %v7189 = vpack.c.b16 %v7187, %v7186
        %7192 = vmatprep.subr.bf16.mxu0 0
        %7193 = vmatpush1.bf16.msra.mxu0 %v7188
        %7194 = vmatprep.subr.bf16.mxu0 0
        %7195 = vmatpush1.bf16.msra.mxu0 %v7189
        %7196 = vmatprep.subr.bf16.mxu0 0
        %7197 = vmatpush1.bf16.msra.mxu0 0
        %7198 = vmatprep.subr.bf16.mxu0 0
        %7199 = vmatpush1.bf16.msra.mxu0 0
        %7200 = vmatprep.subr.bf16.mxu0 0
        %7201 = vmatpush1.bf16.msra.mxu0 0
        %7202 = vmatprep.subr.bf16.mxu0 0
        %7203 = vmatpush1.bf16.msra.mxu0 0
        %7204 = vmatprep.subr.bf16.mxu0 0
        %7205 = vmatpush1.bf16.msra.mxu0 0
        %7206 = vmatprep.subr.bf16.mxu0 0
        %7207 = vmatpush1.bf16.msra.mxu0 0
        %7208 = vmatprep.subr.bf16.mxu0 0
        %7209 = vmatpush1.bf16.msra.mxu0 0
        %7210 = vmatprep.subr.bf16.mxu0 0
        %7211 = vmatpush1.bf16.msra.mxu0 0
        %7212 = vmatprep.subr.bf16.mxu0 0
        %7213 = vmatpush1.bf16.msra.mxu0 0
        %7214 = vmatprep.subr.bf16.mxu0 0
        %7215 = vmatpush1.bf16.msra.mxu0 0
        %7216 = vmatprep.subr.bf16.mxu0 0
        %7217 = vmatpush1.bf16.msra.mxu0 0
        %7218 = vmatprep.subr.bf16.mxu0 0
        %7219 = vmatpush1.bf16.msra.mxu0 0
        %7220 = vmatprep.subr.bf16.mxu0 0
        %7221 = vmatpush1.bf16.msra.mxu0 0
        %7222 = vmatprep.subr.bf16.mxu0 0
        %7223 = vmatpush1.bf16.msra.mxu0 0
        %7224 = vmatprep.mubr.bf16.mxu0 0
        %7225 = vmatmul.mubr.bf16.gmra.mrb[0].mxu0 %v6329
        %v7226 = vpop.f32.mrb[0].mxu0
        %v7227 = vadd.f32 %v7178, %v7226
        %v7228 = vpop.f32.mrb[0].mxu0
        %v7229 = vpop.f32.mrb[0].mxu0
        %v7230 = vadd.f32 %v7178, %v7229
        %v7231 = vpop.f32.mrb[0].mxu0
        %7232 = vdwg.mxu0
        %v7233 = vpack.c.bf16 %v7098, %v7095
        %v7234 = vpack.c.bf16 %v7164, %v7161
        %v7236 = vsel %vm2141, %v7233, 0
        %v7239 = vsel %vm2141, %v7234, 0
        %7241 = vmatprep.subr.bf16.mxu0 0
        %7242 = vmatpush1.bf16.xpose.msra.mxu0 %v7239
        %7243 = vmatprep.subr.bf16.mxu0 0
        %7244 = vmatpush1.bf16.xpose.msra.mxu0 0
        %7245 = vmatprep.subr.bf16.mxu0 0
        %7246 = vmatpush1.bf16.xpose.msra.mxu0 0
        %7247 = vmatprep.subr.bf16.mxu0 0
        %7248 = vmatpush1.bf16.xpose.msra.mxu0 0
        %7249 = vmatprep.subr.bf16.mxu0 0
        %7250 = vmatpush1.bf16.xpose.msra.mxu0 0
        %7251 = vmatprep.subr.bf16.mxu0 0
        %7252 = vmatpush1.bf16.xpose.msra.mxu0 0
        %7253 = vmatprep.subr.bf16.mxu0 0
        %7254 = vmatpush1.bf16.xpose.msra.mxu0 0
        %7255 = vmatprep.subr.bf16.mxu0 0
        %7256 = vmatpush1.bf16.xpose.msra.mxu0 0
        %7257 = vmatprep.subr.bf16.mxu0 0
        %7258 = vmatpush1.bf16.xpose.msra.mxu0 0
        %7259 = vmatprep.subr.bf16.mxu0 0
        %7260 = vmatpush1.bf16.xpose.msra.mxu0 0
        %7261 = vmatprep.subr.bf16.mxu0 0
        %7262 = vmatpush1.bf16.xpose.msra.mxu0 0
        %7263 = vmatprep.subr.bf16.mxu0 0
        %7264 = vmatpush1.bf16.xpose.msra.mxu0 0
        %7265 = vmatprep.subr.bf16.mxu0 0
        %7266 = vmatpush1.bf16.xpose.msra.mxu0 0
        %7267 = vmatprep.subr.bf16.mxu0 0
        %7268 = vmatpush1.bf16.xpose.msra.mxu0 0
        %7269 = vmatprep.subr.bf16.mxu0 0
        %7270 = vmatpush1.bf16.xpose.msra.mxu0 0
        %7271 = vmatprep.subr.bf16.mxu0 0
        %7272 = vmatpush1.bf16.xpose.msra.mxu0 0
        %7273 = vmatprep.mubr.bf16.mxu0 0
        %7274 = vmatmul.mubr.bf16.gmra.mrb[0].mxu0 %v7236
        %v7275 = vpop.f32.mrb[0].mxu0
        %v7276 = vadd.f32 0.0, %v7275
        %v7277 = vpop.f32.mrb[0].mxu0
        %v7278 = vpop.f32.mrb[0].mxu0
        %v7279 = vadd.f32 0.0, %v7278
        %v7280 = vpop.f32.mrb[0].mxu0
        %7281 = vdwg.mxu0
        %v7282 = vmul.f32 %v7276, 0.35355338
        %v7283 = vmul.f32 %v7279, 0.35355338
        %v7284 = vsel %vm2201, %v7282, -inf
        %7285 = vmax.xlane.f32.xlu0 %v7284
        %v7286 = vpop.xlane.xlu0 %7285
        %v7287 = vsel %vm2201, %v7283, -inf
        %7288 = vmax.xlane.f32.xlu0 %v7287
        %v7289 = vpop.xlane.xlu0 %7288
        %v7290 = vsub.f32 %v7282, %v7286
        %v7291 = vsub.f32 %v7283, %v7289
        %v7292 = vmul.f32 %v7290, 1.442695
        %v7293 = vpow.pop %v7292
        %v7294 = vmul.f32 %v7291, 1.442695
        %v7295 = vpow.pop %v7294
        %v7296 = vsel %vm2201, %v7293, 0.0
        %7297 = vadd.xlane.f32.xlu0 %v7296
        %v7298 = vpop.xlane.xlu0 %7297
        %v7299 = vsel %vm2201, %v7295, 0.0
        %7300 = vadd.xlane.f32.xlu0 %v7299
        %v7301 = vpop.xlane.xlu0 %7300
        %v7302 = vrcp.pop %v7298
        %v7303 = vrcp.pop %v7301
        %v7304 = vmul.f32 %v7293, %v7302
        %v7305 = vmul.f32 %v7295, %v7303
        %v7306 = vpack.c.bf16 %v7305, %v7304
        %v7307 = vpack.c.bf16 %v7230, %v7227
        %v7309 = vsel %vm2201, %v7306, 0
        %7311 = vmatprep.subr.bf16.mxu0 0
        %7312 = vmatpush1.bf16.msra.mxu0 %v7307
        %7313 = vmatprep.subr.bf16.mxu0 0
        %7314 = vmatpush1.bf16.msra.mxu0 0
        %7315 = vmatprep.subr.bf16.mxu0 0
        %7316 = vmatpush1.bf16.msra.mxu0 0
        %7317 = vmatprep.subr.bf16.mxu0 0
        %7318 = vmatpush1.bf16.msra.mxu0 0
        %7319 = vmatprep.subr.bf16.mxu0 0
        %7320 = vmatpush1.bf16.msra.mxu0 0
        %7321 = vmatprep.subr.bf16.mxu0 0
        %7322 = vmatpush1.bf16.msra.mxu0 0
        %7323 = vmatprep.subr.bf16.mxu0 0
        %7324 = vmatpush1.bf16.msra.mxu0 0
        %7325 = vmatprep.subr.bf16.mxu0 0
        %7326 = vmatpush1.bf16.msra.mxu0 0
        %7327 = vmatprep.subr.bf16.mxu0 0
        %7328 = vmatpush1.bf16.msra.mxu0 0
        %7329 = vmatprep.subr.bf16.mxu0 0
        %7330 = vmatpush1.bf16.msra.mxu0 0
        %7331 = vmatprep.subr.bf16.mxu0 0
        %7332 = vmatpush1.bf16.msra.mxu0 0
        %7333 = vmatprep.subr.bf16.mxu0 0
        %7334 = vmatpush1.bf16.msra.mxu0 0
        %7335 = vmatprep.subr.bf16.mxu0 0
        %7336 = vmatpush1.bf16.msra.mxu0 0
        %7337 = vmatprep.subr.bf16.mxu0 0
        %7338 = vmatpush1.bf16.msra.mxu0 0
        %7339 = vmatprep.subr.bf16.mxu0 0
        %7340 = vmatpush1.bf16.msra.mxu0 0
        %7341 = vmatprep.subr.bf16.mxu0 0
        %7342 = vmatpush1.bf16.msra.mxu0 0
        %7343 = vmatprep.mubr.bf16.mxu0 0
        %7344 = vmatmul.mubr.bf16.gmra.mrb[0].mxu0 %v7309
        %v7345 = vpop.f32.mrb[0].mxu0
        %v7346 = vadd.f32 0.0, %v7345
        %v7347 = vpop.f32.mrb[0].mxu0
        %v7348 = vpop.f32.mrb[0].mxu0
        %v7349 = vadd.f32 0.0, %v7348
        %v7350 = vpop.f32.mrb[0].mxu0
        %7351 = vdwg.mxu0
        %v7352 = vpack.c.bf16 %v7349, %v7346
        %s7353 = scalar_lea.vmem %s93, 8
        %v7354 = vld [vmem:[%s7353] sm:$0xf]
        %v7356 = vsel %vm2141, %v7352, 0
        %v7359 = vsel %vm2145, %v7354, 0
        %7361 = vmatprep.subr.bf16.mxu0 0
        %7362 = vmatpush1.bf16.msra.mxu0 %v7359
        %7363 = vmatprep.subr.bf16.mxu0 0
        %7364 = vmatpush1.bf16.msra.mxu0 0
        %7365 = vmatprep.subr.bf16.mxu0 0
        %7366 = vmatpush1.bf16.msra.mxu0 0
        %7367 = vmatprep.subr.bf16.mxu0 0
        %7368 = vmatpush1.bf16.msra.mxu0 0
        %7369 = vmatprep.subr.bf16.mxu0 0
        %7370 = vmatpush1.bf16.msra.mxu0 0
        %7371 = vmatprep.subr.bf16.mxu0 0
        %7372 = vmatpush1.bf16.msra.mxu0 0
        %7373 = vmatprep.subr.bf16.mxu0 0
        %7374 = vmatpush1.bf16.msra.mxu0 0
        %7375 = vmatprep.subr.bf16.mxu0 0
        %7376 = vmatpush1.bf16.msra.mxu0 0
        %7377 = vmatprep.subr.bf16.mxu0 0
        %7378 = vmatpush1.bf16.msra.mxu0 0
        %7379 = vmatprep.subr.bf16.mxu0 0
        %7380 = vmatpush1.bf16.msra.mxu0 0
        %7381 = vmatprep.subr.bf16.mxu0 0
        %7382 = vmatpush1.bf16.msra.mxu0 0
        %7383 = vmatprep.subr.bf16.mxu0 0
        %7384 = vmatpush1.bf16.msra.mxu0 0
        %7385 = vmatprep.subr.bf16.mxu0 0
        %7386 = vmatpush1.bf16.msra.mxu0 0
        %7387 = vmatprep.subr.bf16.mxu0 0
        %7388 = vmatpush1.bf16.msra.mxu0 0
        %7389 = vmatprep.subr.bf16.mxu0 0
        %7390 = vmatpush1.bf16.msra.mxu0 0
        %7391 = vmatprep.subr.bf16.mxu0 0
        %7392 = vmatpush1.bf16.msra.mxu0 0
        %7393 = vmatprep.mubr.bf16.mxu0 0
        %7394 = vmatmul.mubr.bf16.gmra.mrb[0].mxu0 %v7356
        %v7395 = vpop.f32.mrb[0].mxu0
        %v7396 = vadd.f32 0.0, %v7395
        %v7397 = vpop.f32.mrb[0].mxu0
        %v7398 = vpop.f32.mrb[0].mxu0
        %v7399 = vadd.f32 0.0, %v7398
        %v7400 = vpop.f32.mrb[0].mxu0
        %7401 = vdwg.mxu0
        %v7402 = vadd.f32 %v7029, %v7396
        %v7403 = vadd.f32 %v7032, %v7399
        %s7404 = scalar_lea.vmem %s81, 48
        %v7405 = vld [vmem:[%s7404] sm:$0xf]
        %v7406 = vld [vmem:[%s7404 + $0x4] sm:$0xf]
        %v7407 = vld [vmem:[%s7404 + $0x8] sm:$0xf]
        %v7408 = vld [vmem:[%s7404 + $0xc] sm:$0xf]
        %s7409 = scalar_lea.vmem %s83, 3
        %v7410 = vld [vmem:[%s7409] sm:$0x1]
        %v7412 = vlaneseq
        %v7413 = vshrl.u32 %v7412, 7
        %v7414 = vsub.s32 0, %v7413
        %v7415 = vrot.slane %v7410, %v7414
        %v7421 = vunpack.c.l.b16 %v7405
        %v7422 = vunpack.c.l.b16 %v7406
        %v7423 = vunpack.c.l.b16 %v7407
        %v7424 = vunpack.c.l.b16 %v7408
        %v7425 = vpack.c.b16 %v7422, %v7421
        %v7426 = vpack.c.b16 %v7424, %v7423
        %7429 = vmatprep.subr.bf16.mxu0 0
        %7430 = vmatpush1.bf16.msra.mxu0 %v7425
        %7431 = vmatprep.subr.bf16.mxu0 0
        %7432 = vmatpush1.bf16.msra.mxu0 %v7426
        %7433 = vmatprep.subr.bf16.mxu0 0
        %7434 = vmatpush1.bf16.msra.mxu0 0
        %7435 = vmatprep.subr.bf16.mxu0 0
        %7436 = vmatpush1.bf16.msra.mxu0 0
        %7437 = vmatprep.subr.bf16.mxu0 0
        %7438 = vmatpush1.bf16.msra.mxu0 0
        %7439 = vmatprep.subr.bf16.mxu0 0
        %7440 = vmatpush1.bf16.msra.mxu0 0
        %7441 = vmatprep.subr.bf16.mxu0 0
        %7442 = vmatpush1.bf16.msra.mxu0 0
        %7443 = vmatprep.subr.bf16.mxu0 0
        %7444 = vmatpush1.bf16.msra.mxu0 0
        %7445 = vmatprep.subr.bf16.mxu0 0
        %7446 = vmatpush1.bf16.msra.mxu0 0
        %7447 = vmatprep.subr.bf16.mxu0 0
        %7448 = vmatpush1.bf16.msra.mxu0 0
        %7449 = vmatprep.subr.bf16.mxu0 0
        %7450 = vmatpush1.bf16.msra.mxu0 0
        %7451 = vmatprep.subr.bf16.mxu0 0
        %7452 = vmatpush1.bf16.msra.mxu0 0
        %7453 = vmatprep.subr.bf16.mxu0 0
        %7454 = vmatpush1.bf16.msra.mxu0 0
        %7455 = vmatprep.subr.bf16.mxu0 0
        %7456 = vmatpush1.bf16.msra.mxu0 0
        %7457 = vmatprep.subr.bf16.mxu0 0
        %7458 = vmatpush1.bf16.msra.mxu0 0
        %7459 = vmatprep.subr.bf16.mxu0 0
        %7460 = vmatpush1.bf16.msra.mxu0 0
        %7461 = vmatprep.mubr.bf16.mxu0 0
        %7462 = vmatmul.mubr.bf16.gmra.mrb[0].mxu0 %v6329
        %v7463 = vpop.f32.mrb[0].mxu0
        %v7464 = vadd.f32 %v7415, %v7463
        %v7465 = vpop.f32.mrb[0].mxu0
        %v7466 = vpop.f32.mrb[0].mxu0
        %v7467 = vadd.f32 %v7415, %v7466
        %v7468 = vpop.f32.mrb[0].mxu0
        %7469 = vdwg.mxu0
        %s7470 = scalar_lea.vmem %s85, 48
        %v7471 = vld [vmem:[%s7470] sm:$0xf]
        %v7472 = vld [vmem:[%s7470 + $0x4] sm:$0xf]
        %v7473 = vld [vmem:[%s7470 + $0x8] sm:$0xf]
        %v7474 = vld [vmem:[%s7470 + $0xc] sm:$0xf]
        %s7475 = scalar_lea.vmem %s87, 3
        %v7476 = vld [vmem:[%s7475] sm:$0x1]
        %v7478 = vlaneseq
        %v7479 = vshrl.u32 %v7478, 7
        %v7480 = vsub.s32 0, %v7479
        %v7481 = vrot.slane %v7476, %v7480
        %v7487 = vunpack.c.l.b16 %v7471
        %v7488 = vunpack.c.l.b16 %v7472
        %v7489 = vunpack.c.l.b16 %v7473
        %v7490 = vunpack.c.l.b16 %v7474
        %v7491 = vpack.c.b16 %v7488, %v7487
        %v7492 = vpack.c.b16 %v7490, %v7489
        %7495 = vmatprep.subr.bf16.mxu0 0
        %7496 = vmatpush1.bf16.msra.mxu0 %v7491
        %7497 = vmatprep.subr.bf16.mxu0 0
        %7498 = vmatpush1.bf16.msra.mxu0 %v7492
        %7499 = vmatprep.subr.bf16.mxu0 0
        %7500 = vmatpush1.bf16.msra.mxu0 0
        %7501 = vmatprep.subr.bf16.mxu0 0
        %7502 = vmatpush1.bf16.msra.mxu0 0
        %7503 = vmatprep.subr.bf16.mxu0 0
        %7504 = vmatpush1.bf16.msra.mxu0 0
        %7505 = vmatprep.subr.bf16.mxu0 0
        %7506 = vmatpush1.bf16.msra.mxu0 0
        %7507 = vmatprep.subr.bf16.mxu0 0
        %7508 = vmatpush1.bf16.msra.mxu0 0
        %7509 = vmatprep.subr.bf16.mxu0 0
        %7510 = vmatpush1.bf16.msra.mxu0 0
        %7511 = vmatprep.subr.bf16.mxu0 0
        %7512 = vmatpush1.bf16.msra.mxu0 0
        %7513 = vmatprep.subr.bf16.mxu0 0
        %7514 = vmatpush1.bf16.msra.mxu0 0
        %7515 = vmatprep.subr.bf16.mxu0 0
        %7516 = vmatpush1.bf16.msra.mxu0 0
        %7517 = vmatprep.subr.bf16.mxu0 0
        %7518 = vmatpush1.bf16.msra.mxu0 0
        %7519 = vmatprep.subr.bf16.mxu0 0
        %7520 = vmatpush1.bf16.msra.mxu0 0
        %7521 = vmatprep.subr.bf16.mxu0 0
        %7522 = vmatpush1.bf16.msra.mxu0 0
        %7523 = vmatprep.subr.bf16.mxu0 0
        %7524 = vmatpush1.bf16.msra.mxu0 0
        %7525 = vmatprep.subr.bf16.mxu0 0
        %7526 = vmatpush1.bf16.msra.mxu0 0
        %7527 = vmatprep.mubr.bf16.mxu0 0
        %7528 = vmatmul.mubr.bf16.gmra.mrb[0].mxu0 %v6329
        %v7529 = vpop.f32.mrb[0].mxu0
        %v7530 = vadd.f32 %v7481, %v7529
        %v7531 = vpop.f32.mrb[0].mxu0
        %v7532 = vpop.f32.mrb[0].mxu0
        %v7533 = vadd.f32 %v7481, %v7532
        %v7534 = vpop.f32.mrb[0].mxu0
        %7535 = vdwg.mxu0
        %s7536 = scalar_lea.vmem %s89, 48
        %v7537 = vld [vmem:[%s7536] sm:$0xf]
        %v7538 = vld [vmem:[%s7536 + $0x4] sm:$0xf]
        %v7539 = vld [vmem:[%s7536 + $0x8] sm:$0xf]
        %v7540 = vld [vmem:[%s7536 + $0xc] sm:$0xf]
        %s7541 = scalar_lea.vmem %s91, 3
        %v7542 = vld [vmem:[%s7541] sm:$0x1]
        %v7544 = vlaneseq
        %v7545 = vshrl.u32 %v7544, 7
        %v7546 = vsub.s32 0, %v7545
        %v7547 = vrot.slane %v7542, %v7546
        %v7553 = vunpack.c.l.b16 %v7537
        %v7554 = vunpack.c.l.b16 %v7538
        %v7555 = vunpack.c.l.b16 %v7539
        %v7556 = vunpack.c.l.b16 %v7540
        %v7557 = vpack.c.b16 %v7554, %v7553
        %v7558 = vpack.c.b16 %v7556, %v7555
        %7561 = vmatprep.subr.bf16.mxu0 0
        %7562 = vmatpush1.bf16.msra.mxu0 %v7557
        %7563 = vmatprep.subr.bf16.mxu0 0
        %7564 = vmatpush1.bf16.msra.mxu0 %v7558
        %7565 = vmatprep.subr.bf16.mxu0 0
        %7566 = vmatpush1.bf16.msra.mxu0 0
        %7567 = vmatprep.subr.bf16.mxu0 0
        %7568 = vmatpush1.bf16.msra.mxu0 0
        %7569 = vmatprep.subr.bf16.mxu0 0
        %7570 = vmatpush1.bf16.msra.mxu0 0
        %7571 = vmatprep.subr.bf16.mxu0 0
        %7572 = vmatpush1.bf16.msra.mxu0 0
        %7573 = vmatprep.subr.bf16.mxu0 0
        %7574 = vmatpush1.bf16.msra.mxu0 0
        %7575 = vmatprep.subr.bf16.mxu0 0
        %7576 = vmatpush1.bf16.msra.mxu0 0
        %7577 = vmatprep.subr.bf16.mxu0 0
        %7578 = vmatpush1.bf16.msra.mxu0 0
        %7579 = vmatprep.subr.bf16.mxu0 0
        %7580 = vmatpush1.bf16.msra.mxu0 0
        %7581 = vmatprep.subr.bf16.mxu0 0
        %7582 = vmatpush1.bf16.msra.mxu0 0
        %7583 = vmatprep.subr.bf16.mxu0 0
        %7584 = vmatpush1.bf16.msra.mxu0 0
        %7585 = vmatprep.subr.bf16.mxu0 0
        %7586 = vmatpush1.bf16.msra.mxu0 0
        %7587 = vmatprep.subr.bf16.mxu0 0
        %7588 = vmatpush1.bf16.msra.mxu0 0
        %7589 = vmatprep.subr.bf16.mxu0 0
        %7590 = vmatpush1.bf16.msra.mxu0 0
        %7591 = vmatprep.subr.bf16.mxu0 0
        %7592 = vmatpush1.bf16.msra.mxu0 0
        %7593 = vmatprep.mubr.bf16.mxu0 0
        %7594 = vmatmul.mubr.bf16.gmra.mrb[0].mxu0 %v6329
        %v7595 = vpop.f32.mrb[0].mxu0
        %v7596 = vadd.f32 %v7547, %v7595
        %v7597 = vpop.f32.mrb[0].mxu0
        %v7598 = vpop.f32.mrb[0].mxu0
        %v7599 = vadd.f32 %v7547, %v7598
        %v7600 = vpop.f32.mrb[0].mxu0
        %7601 = vdwg.mxu0
        %v7602 = vpack.c.bf16 %v7467, %v7464
        %v7603 = vpack.c.bf16 %v7533, %v7530
        %v7605 = vsel %vm2141, %v7602, 0
        %v7608 = vsel %vm2141, %v7603, 0
        %7610 = vmatprep.subr.bf16.mxu0 0
        %7611 = vmatpush1.bf16.xpose.msra.mxu0 %v7608
        %7612 = vmatprep.subr.bf16.mxu0 0
        %7613 = vmatpush1.bf16.xpose.msra.mxu0 0
        %7614 = vmatprep.subr.bf16.mxu0 0
        %7615 = vmatpush1.bf16.xpose.msra.mxu0 0
        %7616 = vmatprep.subr.bf16.mxu0 0
        %7617 = vmatpush1.bf16.xpose.msra.mxu0 0
        %7618 = vmatprep.subr.bf16.mxu0 0
        %7619 = vmatpush1.bf16.xpose.msra.mxu0 0
        %7620 = vmatprep.subr.bf16.mxu0 0
        %7621 = vmatpush1.bf16.xpose.msra.mxu0 0
        %7622 = vmatprep.subr.bf16.mxu0 0
        %7623 = vmatpush1.bf16.xpose.msra.mxu0 0
        %7624 = vmatprep.subr.bf16.mxu0 0
        %7625 = vmatpush1.bf16.xpose.msra.mxu0 0
        %7626 = vmatprep.subr.bf16.mxu0 0
        %7627 = vmatpush1.bf16.xpose.msra.mxu0 0
        %7628 = vmatprep.subr.bf16.mxu0 0
        %7629 = vmatpush1.bf16.xpose.msra.mxu0 0
        %7630 = vmatprep.subr.bf16.mxu0 0
        %7631 = vmatpush1.bf16.xpose.msra.mxu0 0
        %7632 = vmatprep.subr.bf16.mxu0 0
        %7633 = vmatpush1.bf16.xpose.msra.mxu0 0
        %7634 = vmatprep.subr.bf16.mxu0 0
        %7635 = vmatpush1.bf16.xpose.msra.mxu0 0
        %7636 = vmatprep.subr.bf16.mxu0 0
        %7637 = vmatpush1.bf16.xpose.msra.mxu0 0
        %7638 = vmatprep.subr.bf16.mxu0 0
        %7639 = vmatpush1.bf16.xpose.msra.mxu0 0
        %7640 = vmatprep.subr.bf16.mxu0 0
        %7641 = vmatpush1.bf16.xpose.msra.mxu0 0
        %7642 = vmatprep.mubr.bf16.mxu0 0
        %7643 = vmatmul.mubr.bf16.gmra.mrb[0].mxu0 %v7605
        %v7644 = vpop.f32.mrb[0].mxu0
        %v7645 = vadd.f32 0.0, %v7644
        %v7646 = vpop.f32.mrb[0].mxu0
        %v7647 = vpop.f32.mrb[0].mxu0
        %v7648 = vadd.f32 0.0, %v7647
        %v7649 = vpop.f32.mrb[0].mxu0
        %7650 = vdwg.mxu0
        %v7651 = vmul.f32 %v7645, 0.35355338
        %v7652 = vmul.f32 %v7648, 0.35355338
        %v7653 = vsel %vm2201, %v7651, -inf
        %7654 = vmax.xlane.f32.xlu0 %v7653
        %v7655 = vpop.xlane.xlu0 %7654
        %v7656 = vsel %vm2201, %v7652, -inf
        %7657 = vmax.xlane.f32.xlu0 %v7656
        %v7658 = vpop.xlane.xlu0 %7657
        %v7659 = vsub.f32 %v7651, %v7655
        %v7660 = vsub.f32 %v7652, %v7658
        %v7661 = vmul.f32 %v7659, 1.442695
        %v7662 = vpow.pop %v7661
        %v7663 = vmul.f32 %v7660, 1.442695
        %v7664 = vpow.pop %v7663
        %v7665 = vsel %vm2201, %v7662, 0.0
        %7666 = vadd.xlane.f32.xlu0 %v7665
        %v7667 = vpop.xlane.xlu0 %7666
        %v7668 = vsel %vm2201, %v7664, 0.0
        %7669 = vadd.xlane.f32.xlu0 %v7668
        %v7670 = vpop.xlane.xlu0 %7669
        %v7671 = vrcp.pop %v7667
        %v7672 = vrcp.pop %v7670
        %v7673 = vmul.f32 %v7662, %v7671
        %v7674 = vmul.f32 %v7664, %v7672
        %v7675 = vpack.c.bf16 %v7674, %v7673
        %v7676 = vpack.c.bf16 %v7599, %v7596
        %v7678 = vsel %vm2201, %v7675, 0
        %7680 = vmatprep.subr.bf16.mxu0 0
        %7681 = vmatpush1.bf16.msra.mxu0 %v7676
        %7682 = vmatprep.subr.bf16.mxu0 0
        %7683 = vmatpush1.bf16.msra.mxu0 0
        %7684 = vmatprep.subr.bf16.mxu0 0
        %7685 = vmatpush1.bf16.msra.mxu0 0
        %7686 = vmatprep.subr.bf16.mxu0 0
        %7687 = vmatpush1.bf16.msra.mxu0 0
        %7688 = vmatprep.subr.bf16.mxu0 0
        %7689 = vmatpush1.bf16.msra.mxu0 0
        %7690 = vmatprep.subr.bf16.mxu0 0
        %7691 = vmatpush1.bf16.msra.mxu0 0
        %7692 = vmatprep.subr.bf16.mxu0 0
        %7693 = vmatpush1.bf16.msra.mxu0 0
        %7694 = vmatprep.subr.bf16.mxu0 0
        %7695 = vmatpush1.bf16.msra.mxu0 0
        %7696 = vmatprep.subr.bf16.mxu0 0
        %7697 = vmatpush1.bf16.msra.mxu0 0
        %7698 = vmatprep.subr.bf16.mxu0 0
        %7699 = vmatpush1.bf16.msra.mxu0 0
        %7700 = vmatprep.subr.bf16.mxu0 0
        %7701 = vmatpush1.bf16.msra.mxu0 0
        %7702 = vmatprep.subr.bf16.mxu0 0
        %7703 = vmatpush1.bf16.msra.mxu0 0
        %7704 = vmatprep.subr.bf16.mxu0 0
        %7705 = vmatpush1.bf16.msra.mxu0 0
        %7706 = vmatprep.subr.bf16.mxu0 0
        %7707 = vmatpush1.bf16.msra.mxu0 0
        %7708 = vmatprep.subr.bf16.mxu0 0
        %7709 = vmatpush1.bf16.msra.mxu0 0
        %7710 = vmatprep.subr.bf16.mxu0 0
        %7711 = vmatpush1.bf16.msra.mxu0 0
        %7712 = vmatprep.mubr.bf16.mxu0 0
        %7713 = vmatmul.mubr.bf16.gmra.mrb[0].mxu0 %v7678
        %v7714 = vpop.f32.mrb[0].mxu0
        %v7715 = vadd.f32 0.0, %v7714
        %v7716 = vpop.f32.mrb[0].mxu0
        %v7717 = vpop.f32.mrb[0].mxu0
        %v7718 = vadd.f32 0.0, %v7717
        %v7719 = vpop.f32.mrb[0].mxu0
        %7720 = vdwg.mxu0
        %v7721 = vpack.c.bf16 %v7718, %v7715
        %s7722 = scalar_lea.vmem %s93, 12
        %v7723 = vld [vmem:[%s7722] sm:$0xf]
        %v7725 = vsel %vm2141, %v7721, 0
        %v7728 = vsel %vm2145, %v7723, 0
        %7730 = vmatprep.subr.bf16.mxu0 0
        %7731 = vmatpush1.bf16.msra.mxu0 %v7728
        %7732 = vmatprep.subr.bf16.mxu0 0
        %7733 = vmatpush1.bf16.msra.mxu0 0
        %7734 = vmatprep.subr.bf16.mxu0 0
        %7735 = vmatpush1.bf16.msra.mxu0 0
        %7736 = vmatprep.subr.bf16.mxu0 0
        %7737 = vmatpush1.bf16.msra.mxu0 0
        %7738 = vmatprep.subr.bf16.mxu0 0
        %7739 = vmatpush1.bf16.msra.mxu0 0
        %7740 = vmatprep.subr.bf16.mxu0 0
        %7741 = vmatpush1.bf16.msra.mxu0 0
        %7742 = vmatprep.subr.bf16.mxu0 0
        %7743 = vmatpush1.bf16.msra.mxu0 0
        %7744 = vmatprep.subr.bf16.mxu0 0
        %7745 = vmatpush1.bf16.msra.mxu0 0
        %7746 = vmatprep.subr.bf16.mxu0 0
        %7747 = vmatpush1.bf16.msra.mxu0 0
        %7748 = vmatprep.subr.bf16.mxu0 0
        %7749 = vmatpush1.bf16.msra.mxu0 0
        %7750 = vmatprep.subr.bf16.mxu0 0
        %7751 = vmatpush1.bf16.msra.mxu0 0
        %7752 = vmatprep.subr.bf16.mxu0 0
        %7753 = vmatpush1.bf16.msra.mxu0 0
        %7754 = vmatprep.subr.bf16.mxu0 0
        %7755 = vmatpush1.bf16.msra.mxu0 0
        %7756 = vmatprep.subr.bf16.mxu0 0
        %7757 = vmatpush1.bf16.msra.mxu0 0
        %7758 = vmatprep.subr.bf16.mxu0 0
        %7759 = vmatpush1.bf16.msra.mxu0 0
        %7760 = vmatprep.subr.bf16.mxu0 0
        %7761 = vmatpush1.bf16.msra.mxu0 0
        %7762 = vmatprep.mubr.bf16.mxu0 0
        %7763 = vmatmul.mubr.bf16.gmra.mrb[0].mxu0 %v7725
        %v7764 = vpop.f32.mrb[0].mxu0
        %v7765 = vadd.f32 0.0, %v7764
        %v7766 = vpop.f32.mrb[0].mxu0
        %v7767 = vpop.f32.mrb[0].mxu0
        %v7768 = vadd.f32 0.0, %v7767
        %v7769 = vpop.f32.mrb[0].mxu0
        %7770 = vdwg.mxu0
        %v7771 = vadd.f32 %v7402, %v7765
        %v7772 = vadd.f32 %v7403, %v7768
        %v7773 = vld [vmem:[#allocation10] sm:$0x1]
        %v7775 = vlaneseq
        %v7776 = vshrl.u32 %v7775, 7
        %v7777 = vsub.s32 0, %v7776
        %v7778 = vrot.slane %v7773, %v7777
        %v7780 = vadd.f32 %v7771, %v7778
        %v7781 = vadd.f32 %v7772, %v7778
        %v7782 = vadd.f32 %v6302, %v7780
        %v7783 = vadd.f32 %v6303, %v7781
        %v7784 = vld [vmem:[#allocation15] sm:$0x1]
        %v7785 = vld [vmem:[#allocation16] sm:$0x1]
        %v7786 = vsel %vm2391, %v7782, 0.0
        %7787 = vadd.xlane.f32.xlu0 %v7786
        %v7788 = vpop.xlane.xlu0 %7787
        %v7789 = vsel %vm2391, %v7783, 0.0
        %7790 = vadd.xlane.f32.xlu0 %v7789
        %v7791 = vpop.xlane.xlu0 %7790
        %v7792 = vmul.f32 %v7788, %v6050
        %v7793 = vmul.f32 %v7791, %v6050
        %v7794 = vsub.f32 %v7782, %v7792
        %v7795 = vsub.f32 %v7783, %v7793
        %v7796 = vmul.f32 %v7794, %v7794
        %v7797 = vmul.f32 %v7795, %v7795
        %v7798 = vsel %vm2391, %v7796, 0.0
        %7799 = vadd.xlane.f32.xlu0 %v7798
        %v7800 = vpop.xlane.xlu0 %7799
        %v7801 = vsel %vm2391, %v7797, 0.0
        %7802 = vadd.xlane.f32.xlu0 %v7801
        %v7803 = vpop.xlane.xlu0 %7802
        %v7804 = vmul.f32 %v7800, %v6050
        %v7805 = vmul.f32 %v7803, %v6050
        %v7806 = vadd.f32 %v7804, 1e-05
        %v7807 = vadd.f32 %v7805, 1e-05
        %v7808 = vrsqrt.pop %v7806
        %v7809 = vrsqrt.pop %v7807
        %v7810 = vmul.f32 %v7794, %v7808
        %v7811 = vmul.f32 %v7795, %v7809
        %v7813 = vlaneseq
        %v7814 = vshrl.u32 %v7813, 7
        %v7815 = vsub.s32 0, %v7814
        %v7816 = vrot.slane %v7784, %v7815
        %v7818 = vmul.f32 %v7810, %v7816
        %v7819 = vmul.f32 %v7811, %v7816
        %v7821 = vlaneseq
        %v7822 = vshrl.u32 %v7821, 7
        %v7823 = vsub.s32 0, %v7822
        %v7824 = vrot.slane %v7785, %v7823
        %v7826 = vadd.f32 %v7818, %v7824
        %v7827 = vadd.f32 %v7819, %v7824
        %v7828 = vpack.c.bf16 %v7827, %v7826
        %v7829 = vld [vmem:[%s97] sm:$0xf]
        %v7830 = vld [vmem:[%s97 + $0x4] sm:$0xf]
        %v7831 = vld [vmem:[%s97 + $0x8] sm:$0xf]
        %v7832 = vld [vmem:[%s97 + $0xc] sm:$0xf]
        %v7833 = vld [vmem:[#allocation12] sm:$0x1]
        %v7835 = vlaneseq
        %v7836 = vshrl.u32 %v7835, 7
        %v7837 = vsub.s32 0, %v7836
        %v7838 = vrot.slane %v7833, %v7837
        %v7844 = vunpack.c.l.b16 %v7829
        %v7845 = vunpack.c.l.b16 %v7830
        %v7846 = vunpack.c.l.b16 %v7831
        %v7847 = vunpack.c.l.b16 %v7832
        %v7848 = vpack.c.b16 %v7845, %v7844
        %v7849 = vpack.c.b16 %v7847, %v7846
        %v7853 = vsel %vm2391, %v7828, 0
        %7855 = vmatprep.subr.bf16.mxu0 0
        %7856 = vmatpush1.bf16.msra.mxu0 %v7848
        %7857 = vmatprep.subr.bf16.mxu0 0
        %7858 = vmatpush1.bf16.msra.mxu0 %v7849
        %7859 = vmatprep.subr.bf16.mxu0 0
        %7860 = vmatpush1.bf16.msra.mxu0 0
        %7861 = vmatprep.subr.bf16.mxu0 0
        %7862 = vmatpush1.bf16.msra.mxu0 0
        %7863 = vmatprep.subr.bf16.mxu0 0
        %7864 = vmatpush1.bf16.msra.mxu0 0
        %7865 = vmatprep.subr.bf16.mxu0 0
        %7866 = vmatpush1.bf16.msra.mxu0 0
        %7867 = vmatprep.subr.bf16.mxu0 0
        %7868 = vmatpush1.bf16.msra.mxu0 0
        %7869 = vmatprep.subr.bf16.mxu0 0
        %7870 = vmatpush1.bf16.msra.mxu0 0
        %7871 = vmatprep.subr.bf16.mxu0 0
        %7872 = vmatpush1.bf16.msra.mxu0 0
        %7873 = vmatprep.subr.bf16.mxu0 0
        %7874 = vmatpush1.bf16.msra.mxu0 0
        %7875 = vmatprep.subr.bf16.mxu0 0
        %7876 = vmatpush1.bf16.msra.mxu0 0
        %7877 = vmatprep.subr.bf16.mxu0 0
        %7878 = vmatpush1.bf16.msra.mxu0 0
        %7879 = vmatprep.subr.bf16.mxu0 0
        %7880 = vmatpush1.bf16.msra.mxu0 0
        %7881 = vmatprep.subr.bf16.mxu0 0
        %7882 = vmatpush1.bf16.msra.mxu0 0
        %7883 = vmatprep.subr.bf16.mxu0 0
        %7884 = vmatpush1.bf16.msra.mxu0 0
        %7885 = vmatprep.subr.bf16.mxu0 0
        %7886 = vmatpush1.bf16.msra.mxu0 0
        %7887 = vmatprep.mubr.bf16.mxu0 0
        %7888 = vmatmul.mubr.bf16.gmra.mrb[0].mxu0 %v7853
        %v7889 = vpop.f32.mrb[0].mxu0
        %v7890 = vadd.f32 %v7838, %v7889
        %v7891 = vpop.f32.mrb[0].mxu0
        %v7892 = vpop.f32.mrb[0].mxu0
        %v7893 = vadd.f32 %v7838, %v7892
        %v7894 = vpop.f32.mrb[0].mxu0
        %7895 = vdwg.mxu0
        %v7896 = vmul.f32 %v7890, 0.5
        %v7897 = vmul.f32 %v7893, 0.5
        %v7898 = vmul.f32 %v7890, 0.044715
        %v7899 = vmul.f32 %v7893, 0.044715
        %v7900 = vmul.f32 %v7898, %v7890
        %v7901 = vmul.f32 %v7899, %v7893
        %v7902 = vmul.f32 %v7900, %v7890
        %v7903 = vmul.f32 %v7901, %v7893
        %v7904 = vadd.f32 %v7890, %v7902
        %v7905 = vadd.f32 %v7893, %v7903
        %v7906 = vmul.f32 %v7904, 0.7978846
        %v7907 = vmul.f32 %v7905, 0.7978846
        %v7908 = vtanh.pop %v7906
        %v7909 = vtanh.pop %v7907
        %v7910 = vadd.f32 %v7908, 1.0
        %v7911 = vadd.f32 %v7909, 1.0
        %v7912 = vmul.f32 %v7896, %v7910
        %v7913 = vmul.f32 %v7897, %v7911
        %v7914 = vpack.c.bf16 %v7913, %v7912
        %v7915 = vld [vmem:[%s101] sm:$0xf]
        %v7916 = vld [vmem:[%s101 + $0x4] sm:$0xf]
        %v7917 = vld [vmem:[%s101 + $0x8] sm:$0xf]
        %v7918 = vld [vmem:[%s101 + $0xc] sm:$0xf]
        %v7919 = vld [vmem:[%s101 + $0x10] sm:$0xf]
        %v7920 = vld [vmem:[%s101 + $0x14] sm:$0xf]
        %v7921 = vld [vmem:[%s101 + $0x18] sm:$0xf]
        %v7922 = vld [vmem:[%s101 + $0x1c] sm:$0xf]
        %v7923 = vld [vmem:[#allocation13] sm:$0x1]
        %v7925 = vlaneseq
        %v7926 = vshrl.u32 %v7925, 7
        %v7927 = vsub.s32 0, %v7926
        %v7928 = vrot.slane %v7923, %v7927
        %v7938 = vunpack.c.l.b16 %v7915
        %v7939 = vunpack.c.l.b16 %v7916
        %v7940 = vunpack.c.l.b16 %v7917
        %v7941 = vunpack.c.l.b16 %v7918
        %v7942 = vunpack.c.l.b16 %v7919
        %v7943 = vunpack.c.l.b16 %v7920
        %v7944 = vunpack.c.l.b16 %v7921
        %v7945 = vunpack.c.l.b16 %v7922
        %v7946 = vpack.c.b16 %v7939, %v7938
        %v7947 = vpack.c.b16 %v7941, %v7940
        %v7948 = vpack.c.b16 %v7943, %v7942
        %v7949 = vpack.c.b16 %v7945, %v7944
        %v7955 = vsel %vm6213, %v7914, 0
        %7957 = vmatprep.subr.bf16.mxu0 0
        %7958 = vmatpush1.bf16.msra.mxu0 %v7946
        %7959 = vmatprep.subr.bf16.mxu0 0
        %7960 = vmatpush1.bf16.msra.mxu0 %v7947
        %7961 = vmatprep.subr.bf16.mxu0 0
        %7962 = vmatpush1.bf16.msra.mxu0 %v7948
        %7963 = vmatprep.subr.bf16.mxu0 0
        %7964 = vmatpush1.bf16.msra.mxu0 %v7949
        %7965 = vmatprep.subr.bf16.mxu0 0
        %7966 = vmatpush1.bf16.msra.mxu0 0
        %7967 = vmatprep.subr.bf16.mxu0 0
        %7968 = vmatpush1.bf16.msra.mxu0 0
        %7969 = vmatprep.subr.bf16.mxu0 0
        %7970 = vmatpush1.bf16.msra.mxu0 0
        %7971 = vmatprep.subr.bf16.mxu0 0
        %7972 = vmatpush1.bf16.msra.mxu0 0
        %7973 = vmatprep.subr.bf16.mxu0 0
        %7974 = vmatpush1.bf16.msra.mxu0 0
        %7975 = vmatprep.subr.bf16.mxu0 0
        %7976 = vmatpush1.bf16.msra.mxu0 0
        %7977 = vmatprep.subr.bf16.mxu0 0
        %7978 = vmatpush1.bf16.msra.mxu0 0
        %7979 = vmatprep.subr.bf16.mxu0 0
        %7980 = vmatpush1.bf16.msra.mxu0 0
        %7981 = vmatprep.subr.bf16.mxu0 0
        %7982 = vmatpush1.bf16.msra.mxu0 0
        %7983 = vmatprep.subr.bf16.mxu0 0
        %7984 = vmatpush1.bf16.msra.mxu0 0
        %7985 = vmatprep.subr.bf16.mxu0 0
        %7986 = vmatpush1.bf16.msra.mxu0 0
        %7987 = vmatprep.subr.bf16.mxu0 0
        %7988 = vmatpush1.bf16.msra.mxu0 0
        %7989 = vmatprep.mubr.bf16.mxu0 0
        %7990 = vmatmul.mubr.bf16.gmra.mrb[0].mxu0 %v7955
        %v7991 = vpop.f32.mrb[0].mxu0
        %v7992 = vadd.f32 %v7928, %v7991
        %v7993 = vpop.f32.mrb[0].mxu0
        %v7994 = vpop.f32.mrb[0].mxu0
        %v7995 = vadd.f32 %v7928, %v7994
        %v7996 = vpop.f32.mrb[0].mxu0
        %7997 = vdwg.mxu0
        %v7998 = vadd.f32 %v7826, %v7992
        %v7999 = vadd.f32 %v7827, %v7995
        %v8000 = vld [vmem:[#allocation18] sm:$0x1]
        %v8001 = vld [vmem:[#allocation19] sm:$0x1]
        %v8002 = vsel %vm2391, %v7998, 0.0
        %8003 = vadd.xlane.f32.xlu0 %v8002
        %v8004 = vpop.xlane.xlu0 %8003
        %v8005 = vsel %vm2391, %v7999, 0.0
        %8006 = vadd.xlane.f32.xlu0 %v8005
        %v8007 = vpop.xlane.xlu0 %8006
        %v8008 = vmul.f32 %v8004, %v6050
        %v8009 = vmul.f32 %v8007, %v6050
        %v8010 = vsub.f32 %v7998, %v8008
        %v8011 = vsub.f32 %v7999, %v8009
        %v8012 = vmul.f32 %v8010, %v8010
        %v8013 = vmul.f32 %v8011, %v8011
        %v8014 = vsel %vm2391, %v8012, 0.0
        %8015 = vadd.xlane.f32.xlu0 %v8014
        %v8016 = vpop.xlane.xlu0 %8015
        %v8017 = vsel %vm2391, %v8013, 0.0
        %8018 = vadd.xlane.f32.xlu0 %v8017
        %v8019 = vpop.xlane.xlu0 %8018
        %v8020 = vmul.f32 %v8016, %v6050
        %v8021 = vmul.f32 %v8019, %v6050
        %v8022 = vadd.f32 %v8020, 1e-05
        %v8023 = vadd.f32 %v8021, 1e-05
        %v8024 = vrsqrt.pop %v8022
        %v8025 = vrsqrt.pop %v8023
        %v8026 = vmul.f32 %v8010, %v8024
        %v8027 = vmul.f32 %v8011, %v8025
        %v8029 = vlaneseq
        %v8030 = vshrl.u32 %v8029, 7
        %v8031 = vsub.s32 0, %v8030
        %v8032 = vrot.slane %v8000, %v8031
        %v8034 = vmul.f32 %v8026, %v8032
        %v8035 = vmul.f32 %v8027, %v8032
        %v8037 = vlaneseq
        %v8038 = vshrl.u32 %v8037, 7
        %v8039 = vsub.s32 0, %v8038
        %v8040 = vrot.slane %v8001, %v8039
        %v8042 = vadd.f32 %v8034, %v8040
        %v8043 = vadd.f32 %v8035, %v8040
        %v8044 = vpack.c.bf16 %v8043, %v8042
        %v8045 = vld [vmem:[%s113] sm:$0xf]
        %v8046 = vld [vmem:[%s113 + $0x4] sm:$0xf]
        %v8047 = vld [vmem:[%s113 + $0x8] sm:$0xf]
        %v8048 = vld [vmem:[%s113 + $0xc] sm:$0xf]
        %v8049 = vld [vmem:[#allocation2] sm:$0x1]
        %v8051 = vlaneseq
        %v8052 = vshrl.u32 %v8051, 7
        %v8053 = vsub.s32 0, %v8052
        %v8054 = vrot.slane %v8049, %v8053
        %v8060 = vunpack.c.l.b16 %v8045
        %v8061 = vunpack.c.l.b16 %v8046
        %v8062 = vunpack.c.l.b16 %v8047
        %v8063 = vunpack.c.l.b16 %v8048
        %v8064 = vpack.c.b16 %v8061, %v8060
        %v8065 = vpack.c.b16 %v8063, %v8062
        %v8069 = vsel %vm2391, %v8044, 0
        %8071 = vmatprep.subr.bf16.mxu0 0
        %8072 = vmatpush1.bf16.msra.mxu0 %v8064
        %8073 = vmatprep.subr.bf16.mxu0 0
        %8074 = vmatpush1.bf16.msra.mxu0 %v8065
        %8075 = vmatprep.subr.bf16.mxu0 0
        %8076 = vmatpush1.bf16.msra.mxu0 0
        %8077 = vmatprep.subr.bf16.mxu0 0
        %8078 = vmatpush1.bf16.msra.mxu0 0
        %8079 = vmatprep.subr.bf16.mxu0 0
        %8080 = vmatpush1.bf16.msra.mxu0 0
        %8081 = vmatprep.subr.bf16.mxu0 0
        %8082 = vmatpush1.bf16.msra.mxu0 0
        %8083 = vmatprep.subr.bf16.mxu0 0
        %8084 = vmatpush1.bf16.msra.mxu0 0
        %8085 = vmatprep.subr.bf16.mxu0 0
        %8086 = vmatpush1.bf16.msra.mxu0 0
        %8087 = vmatprep.subr.bf16.mxu0 0
        %8088 = vmatpush1.bf16.msra.mxu0 0
        %8089 = vmatprep.subr.bf16.mxu0 0
        %8090 = vmatpush1.bf16.msra.mxu0 0
        %8091 = vmatprep.subr.bf16.mxu0 0
        %8092 = vmatpush1.bf16.msra.mxu0 0
        %8093 = vmatprep.subr.bf16.mxu0 0
        %8094 = vmatpush1.bf16.msra.mxu0 0
        %8095 = vmatprep.subr.bf16.mxu0 0
        %8096 = vmatpush1.bf16.msra.mxu0 0
        %8097 = vmatprep.subr.bf16.mxu0 0
        %8098 = vmatpush1.bf16.msra.mxu0 0
        %8099 = vmatprep.subr.bf16.mxu0 0
        %8100 = vmatpush1.bf16.msra.mxu0 0
        %8101 = vmatprep.subr.bf16.mxu0 0
        %8102 = vmatpush1.bf16.msra.mxu0 0
        %8103 = vmatprep.mubr.bf16.mxu0 0
        %8104 = vmatmul.mubr.bf16.gmra.mrb[0].mxu0 %v8069
        %v8105 = vpop.f32.mrb[0].mxu0
        %v8106 = vadd.f32 %v8054, %v8105
        %v8107 = vpop.f32.mrb[0].mxu0
        %v8108 = vpop.f32.mrb[0].mxu0
        %v8109 = vadd.f32 %v8054, %v8108
        %v8110 = vpop.f32.mrb[0].mxu0
        %8111 = vdwg.mxu0
        %vm8112 = vcmask 7168
        %v8113 = vsel %vm8112, %v8106, -inf
        %v8114 = vsel %vm8112, %v8109, -inf
        %v8115 = vmax.f32 %v8113, %v8114
        %v8116 = vrot.slane %v8115, 4
        %v8117 = vmax.f32 %v8115, %v8116
        %v8118 = vrot.slane %v8117, 2
        %v8119 = vmax.f32 %v8117, %v8118
        %v8120 = vrot.slane %v8119, 1
        %v8121 = vmax.f32 %v8119, %v8120
        %v8122 = vsub.f32 %v8106, %v8121
        %v8123 = vsub.f32 %v8109, %v8121
        %v8124 = vmul.f32 %v8122, 1.442695
        %v8125 = vpow.pop %v8124
        %v8126 = vmul.f32 %v8123, 1.442695
        %v8127 = vpow.pop %v8126
        %v8128 = vsel %vm8112, %v8125, 0.0
        %v8129 = vsel %vm8112, %v8127, 0.0
        %v8130 = vadd.f32 %v8128, %v8129
        %v8131 = vrot.slane %v8130, 4
        %v8132 = vadd.f32 %v8130, %v8131
        %v8133 = vrot.slane %v8132, 2
        %v8134 = vadd.f32 %v8132, %v8133
        %v8135 = vrot.slane %v8134, 1
        %v8136 = vadd.f32 %v8134, %v8135
        %v8137 = vrcp.pop %v8136
        %v8138 = vmul.f32 %v8125, %v8137
        %v8139 = vmul.f32 %v8127, %v8137
        %8141 = vset.pattern.permute.xlu0 0
        %8142 = vperm.xlu0 %8141, %v8138
        %v8143 = vpop.permute.xlu0 %8142
        %8146 = vset.pattern.permute.xlu0 0
        %8147 = vperm.xlu0 %8146, %v8139
        %v8148 = vpop.permute.xlu0 %8147
        %v8150 = vmul.f32 %v8042, %v8143
        %v8151 = vmul.f32 %v8043, %v8148
        %v8152 = vsel %vm2391, %v8150, 0.0
        %v8153 = vsel %vm2391, %v8151, 0.0
        %v8154 = vadd.f32 %v8152, %v8153
        %v8155 = vrot.slane %v8154, 4
        %v8156 = vadd.f32 %v8154, %v8155
        %v8157 = vrot.slane %v8156, 2
        %v8158 = vadd.f32 %v8156, %v8157
        %v8159 = vrot.slane %v8158, 1
        %v8160 = vadd.f32 %v8158, %v8159
        %v8161 = vpack.c.bf16 %v8160, %v8160
        %v8162 = vld [vmem:[%s117] sm:$0xf]
        %v8163 = vld [vmem:[%s117 + $0x4] sm:$0xf]
        %v8164 = vld [vmem:[%s117 + $0x8] sm:$0xf]
        %v8165 = vld [vmem:[%s117 + $0xc] sm:$0xf]
        %v8166 = vld [vmem:[#allocation21] sm:$0x1]
        %v8171 = vunpack.c.l.b16 %v8162
        %v8172 = vunpack.c.l.b16 %v8163
        %v8173 = vunpack.c.l.b16 %v8164
        %v8174 = vunpack.c.l.b16 %v8165
        %v8175 = vpack.c.b16 %v8172, %v8171
        %v8176 = vpack.c.b16 %v8174, %v8173
        %v8180 = vsel %vm2391, %v8161, 0
        %8182 = vmatprep.subr.bf16.mxu0 0
        %8183 = vmatpush1.bf16.msra.mxu0 %v8175
        %8184 = vmatprep.subr.bf16.mxu0 0
        %8185 = vmatpush1.bf16.msra.mxu0 %v8176
        %8186 = vmatprep.subr.bf16.mxu0 0
        %8187 = vmatpush1.bf16.msra.mxu0 0
        %8188 = vmatprep.subr.bf16.mxu0 0
        %8189 = vmatpush1.bf16.msra.mxu0 0
        %8190 = vmatprep.subr.bf16.mxu0 0
        %8191 = vmatpush1.bf16.msra.mxu0 0
        %8192 = vmatprep.subr.bf16.mxu0 0
        %8193 = vmatpush1.bf16.msra.mxu0 0
        %8194 = vmatprep.subr.bf16.mxu0 0
        %8195 = vmatpush1.bf16.msra.mxu0 0
        %8196 = vmatprep.subr.bf16.mxu0 0
        %8197 = vmatpush1.bf16.msra.mxu0 0
        %8198 = vmatprep.subr.bf16.mxu0 0
        %8199 = vmatpush1.bf16.msra.mxu0 0
        %8200 = vmatprep.subr.bf16.mxu0 0
        %8201 = vmatpush1.bf16.msra.mxu0 0
        %8202 = vmatprep.subr.bf16.mxu0 0
        %8203 = vmatpush1.bf16.msra.mxu0 0
        %8204 = vmatprep.subr.bf16.mxu0 0
        %8205 = vmatpush1.bf16.msra.mxu0 0
        %8206 = vmatprep.subr.bf16.mxu0 0
        %8207 = vmatpush1.bf16.msra.mxu0 0
        %8208 = vmatprep.subr.bf16.mxu0 0
        %8209 = vmatpush1.bf16.msra.mxu0 0
        %8210 = vmatprep.subr.bf16.mxu0 0
        %8211 = vmatpush1.bf16.msra.mxu0 0
        %8212 = vmatprep.subr.bf16.mxu0 0
        %8213 = vmatpush1.bf16.msra.mxu0 0
        %8214 = vmatprep.mubr.bf16.mxu0 0
        %8215 = vmatmul.mubr.bf16.gmra.mrb[0].mxu0 %v8180
        %v8216 = vpop.f32.mrb[0].mxu0
        %v8217 = vadd.f32 %v8166, %v8216
        %v8218 = vpop.f32.mrb[0].mxu0
        %v8219 = vpop.f32.mrb[0].mxu0
        %v8220 = vpop.f32.mrb[0].mxu0
        %8221 = vdwg.mxu0
        %v8222 = vmul.f32 %v8217, 0.5
        %v8223 = vmul.f32 %v8217, 0.044715
        %v8224 = vmul.f32 %v8223, %v8217
        %v8225 = vmul.f32 %v8224, %v8217
        %v8226 = vadd.f32 %v8217, %v8225
        %v8227 = vmul.f32 %v8226, 0.7978846
        %v8228 = vtanh.pop %v8227
        %v8229 = vadd.f32 %v8228, 1.0
        %v8230 = vmul.f32 %v8222, %v8229
        %v8231 = vpack.c.bf16 %v8230, %v8230
        %v8232 = vld [vmem:[%s121] sm:$0xf]
        %v8233 = vld [vmem:[%s121 + $0x4] sm:$0xf]
        %v8234 = vld [vmem:[#allocation3] sm:$0x1]
        %v8237 = vunpack.c.l.b16 %v8232
        %v8238 = vunpack.c.l.b16 %v8233
        %v8239 = vpack.c.b16 %v8238, %v8237
        %v8242 = vsel %vm2201, %v8231, 0
        %8244 = vmatprep.subr.bf16.mxu0 0
        %8245 = vmatpush1.bf16.msra.mxu0 %v8239
        %8246 = vmatprep.subr.bf16.mxu0 0
        %8247 = vmatpush1.bf16.msra.mxu0 0
        %8248 = vmatprep.subr.bf16.mxu0 0
        %8249 = vmatpush1.bf16.msra.mxu0 0
        %8250 = vmatprep.subr.bf16.mxu0 0
        %8251 = vmatpush1.bf16.msra.mxu0 0
        %8252 = vmatprep.subr.bf16.mxu0 0
        %8253 = vmatpush1.bf16.msra.mxu0 0
        %8254 = vmatprep.subr.bf16.mxu0 0
        %8255 = vmatpush1.bf16.msra.mxu0 0
        %8256 = vmatprep.subr.bf16.mxu0 0
        %8257 = vmatpush1.bf16.msra.mxu0 0
        %8258 = vmatprep.subr.bf16.mxu0 0
        %8259 = vmatpush1.bf16.msra.mxu0 0
        %8260 = vmatprep.subr.bf16.mxu0 0
        %8261 = vmatpush1.bf16.msra.mxu0 0
        %8262 = vmatprep.subr.bf16.mxu0 0
        %8263 = vmatpush1.bf16.msra.mxu0 0
        %8264 = vmatprep.subr.bf16.mxu0 0
        %8265 = vmatpush1.bf16.msra.mxu0 0
        %8266 = vmatprep.subr.bf16.mxu0 0
        %8267 = vmatpush1.bf16.msra.mxu0 0
        %8268 = vmatprep.subr.bf16.mxu0 0
        %8269 = vmatpush1.bf16.msra.mxu0 0
        %8270 = vmatprep.subr.bf16.mxu0 0
        %8271 = vmatpush1.bf16.msra.mxu0 0
        %8272 = vmatprep.subr.bf16.mxu0 0
        %8273 = vmatpush1.bf16.msra.mxu0 0
        %8274 = vmatprep.subr.bf16.mxu0 0
        %8275 = vmatpush1.bf16.msra.mxu0 0
        %8276 = vmatprep.mubr.bf16.mxu0 0
        %8277 = vmatmul.mubr.bf16.gmra.mrb[0].mxu0 %v8242
        %v8278 = vpop.f32.mrb[0].mxu0
        %v8279 = vadd.f32 %v8234, %v8278
        %v8280 = vpop.f32.mrb[0].mxu0
        %v8281 = vpop.f32.mrb[0].mxu0
        %v8282 = vpop.f32.mrb[0].mxu0
        %8283 = vdwg.mxu0
        %vm8284 = vcmask 0
        %8285 = vst.msk [vmem:[%s2125] sm:$0x1] %vm8284, %v8279
        %v8286 = vld [vmem:[%s125] sm:$0xf]
        %v8287 = vld [vmem:[%s125 + $0x4] sm:$0xf]
        %v8288 = vld [vmem:[%s125 + $0x8] sm:$0xf]
        %v8289 = vld [vmem:[%s125 + $0xc] sm:$0xf]
        %v8290 = vld [vmem:[#allocation22] sm:$0x1]
        %v8295 = vunpack.c.l.b16 %v8286
        %v8296 = vunpack.c.l.b16 %v8287
        %v8297 = vunpack.c.l.b16 %v8288
        %v8298 = vunpack.c.l.b16 %v8289
        %v8299 = vpack.c.b16 %v8296, %v8295
        %v8300 = vpack.c.b16 %v8298, %v8297
        %8303 = vmatprep.subr.bf16.mxu0 0
        %8304 = vmatpush1.bf16.msra.mxu0 %v8299
        %8305 = vmatprep.subr.bf16.mxu0 0
        %8306 = vmatpush1.bf16.msra.mxu0 %v8300
        %8307 = vmatprep.subr.bf16.mxu0 0
        %8308 = vmatpush1.bf16.msra.mxu0 0
        %8309 = vmatprep.subr.bf16.mxu0 0
        %8310 = vmatpush1.bf16.msra.mxu0 0
        %8311 = vmatprep.subr.bf16.mxu0 0
        %8312 = vmatpush1.bf16.msra.mxu0 0
        %8313 = vmatprep.subr.bf16.mxu0 0
        %8314 = vmatpush1.bf16.msra.mxu0 0
        %8315 = vmatprep.subr.bf16.mxu0 0
        %8316 = vmatpush1.bf16.msra.mxu0 0
        %8317 = vmatprep.subr.bf16.mxu0 0
        %8318 = vmatpush1.bf16.msra.mxu0 0
        %8319 = vmatprep.subr.bf16.mxu0 0
        %8320 = vmatpush1.bf16.msra.mxu0 0
        %8321 = vmatprep.subr.bf16.mxu0 0
        %8322 = vmatpush1.bf16.msra.mxu0 0
        %8323 = vmatprep.subr.bf16.mxu0 0
        %8324 = vmatpush1.bf16.msra.mxu0 0
        %8325 = vmatprep.subr.bf16.mxu0 0
        %8326 = vmatpush1.bf16.msra.mxu0 0
        %8327 = vmatprep.subr.bf16.mxu0 0
        %8328 = vmatpush1.bf16.msra.mxu0 0
        %8329 = vmatprep.subr.bf16.mxu0 0
        %8330 = vmatpush1.bf16.msra.mxu0 0
        %8331 = vmatprep.subr.bf16.mxu0 0
        %8332 = vmatpush1.bf16.msra.mxu0 0
        %8333 = vmatprep.subr.bf16.mxu0 0
        %8334 = vmatpush1.bf16.msra.mxu0 0
        %8335 = vmatprep.mubr.bf16.mxu0 0
        %8336 = vmatmul.mubr.bf16.gmra.mrb[0].mxu0 %v8180
        %v8337 = vpop.f32.mrb[0].mxu0
        %v8338 = vadd.f32 %v8290, %v8337
        %v8339 = vpop.f32.mrb[0].mxu0
        %v8340 = vpop.f32.mrb[0].mxu0
        %v8341 = vpop.f32.mrb[0].mxu0
        %8342 = vdwg.mxu0
        %v8343 = vmul.f32 %v8338, 0.5
        %v8344 = vmul.f32 %v8338, 0.044715
        %v8345 = vmul.f32 %v8344, %v8338
        %v8346 = vmul.f32 %v8345, %v8338
        %v8347 = vadd.f32 %v8338, %v8346
        %v8348 = vmul.f32 %v8347, 0.7978846
        %v8349 = vtanh.pop %v8348
        %v8350 = vadd.f32 %v8349, 1.0
        %v8351 = vmul.f32 %v8343, %v8350
        %v8352 = vpack.c.bf16 %v8351, %v8351
        %v8353 = vld [vmem:[%s129] sm:$0xf]
        %v8354 = vld [vmem:[%s129 + $0x4] sm:$0xf]
        %v8355 = vld [vmem:[#allocation4] sm:$0x1]
        %v8358 = vunpack.c.l.b16 %v8353
        %v8359 = vunpack.c.l.b16 %v8354
        %v8360 = vpack.c.b16 %v8359, %v8358
        %v8363 = vsel %vm2201, %v8352, 0
        %8365 = vmatprep.subr.bf16.mxu0 0
        %8366 = vmatpush1.bf16.msra.mxu0 %v8360
        %8367 = vmatprep.subr.bf16.mxu0 0
        %8368 = vmatpush1.bf16.msra.mxu0 0
        %8369 = vmatprep.subr.bf16.mxu0 0
        %8370 = vmatpush1.bf16.msra.mxu0 0
        %8371 = vmatprep.subr.bf16.mxu0 0
        %8372 = vmatpush1.bf16.msra.mxu0 0
        %8373 = vmatprep.subr.bf16.mxu0 0
        %8374 = vmatpush1.bf16.msra.mxu0 0
        %8375 = vmatprep.subr.bf16.mxu0 0
        %8376 = vmatpush1.bf16.msra.mxu0 0
        %8377 = vmatprep.subr.bf16.mxu0 0
        %8378 = vmatpush1.bf16.msra.mxu0 0
        %8379 = vmatprep.subr.bf16.mxu0 0
        %8380 = vmatpush1.bf16.msra.mxu0 0
        %8381 = vmatprep.subr.bf16.mxu0 0
        %8382 = vmatpush1.bf16.msra.mxu0 0
        %8383 = vmatprep.subr.bf16.mxu0 0
        %8384 = vmatpush1.bf16.msra.mxu0 0
        %8385 = vmatprep.subr.bf16.mxu0 0
        %8386 = vmatpush1.bf16.msra.mxu0 0
        %8387 = vmatprep.subr.bf16.mxu0 0
        %8388 = vmatpush1.bf16.msra.mxu0 0
        %8389 = vmatprep.subr.bf16.mxu0 0
        %8390 = vmatpush1.bf16.msra.mxu0 0
        %8391 = vmatprep.subr.bf16.mxu0 0
        %8392 = vmatpush1.bf16.msra.mxu0 0
        %8393 = vmatprep.subr.bf16.mxu0 0
        %8394 = vmatpush1.bf16.msra.mxu0 0
        %8395 = vmatprep.subr.bf16.mxu0 0
        %8396 = vmatpush1.bf16.msra.mxu0 0
        %8397 = vmatprep.mubr.bf16.mxu0 0
        %8398 = vmatmul.mubr.bf16.gmra.mrb[0].mxu0 %v8363
        %v8399 = vpop.f32.mrb[0].mxu0
        %v8400 = vadd.f32 %v8355, %v8399
        %v8401 = vpop.f32.mrb[0].mxu0
        %v8402 = vpop.f32.mrb[0].mxu0
        %v8403 = vpop.f32.mrb[0].mxu0
        %8404 = vdwg.mxu0
        %vm8405 = vcmp.gt.f32.partialorder %v8400, 20.0
        %v8406 = vmin.f32 %v8400, 20.0
        %v8407 = vmul.f32 %v8406, 1.442695
        %v8408 = vpow.pop %v8407
        %v8409 = vadd.f32 %v8408, 1.0
        %v8410 = vlog2.pop %v8409
        %v8411 = vmul.f32 %v8410, 0.6931472
        %v8412 = vsel %vm8405, %v8400, %v8411
        %8413 = vst.msk [vmem:[%s2128] sm:$0x1] %vm8284, %v8412
        %p8414 = scmp.lt.s32.totalorder %s160, 1
        %s8415 = scalar_select %p8414, %s160, 1
        %s8416 = scalar_lea.vmem %s133, %s8415
        %p8417 = scmp.lt.s32.totalorder %s160, 1
        %s8418 = scalar_select %p8417, %s160, 1
        %s8419 = scalar_lea.vmem %s135, %s8418
        // Predicated region
        $region333: #{forward.1} parent=283 // pred_check
          %p8420 = pneg %p1569
        $region334: #{forward.1} parent=283 // pred_check_branch
          %8422 = sbr.rel (%p8420) target = $region336
        $region335: #{forward.1} parent=283 // pred_region
          _
        $region336: #{forward.1} parent=283 // pred_fallthru
          _
        // Predicated region
        $region337: #{forward.1} parent=283 // pred_check
          %p8423 = pneg %p1595
        $region338: #{forward.1} parent=283 // pred_check_branch
          %8425 = sbr.rel (%p8423) target = $region340
        $region339: #{forward.1} parent=283 // pred_region
          _
        $region340: #{forward.1} parent=283 // pred_fallthru
          _
      $region284: #{forward.1} parent=5 // pred_fallthru
        _
      %p8426 = scmp.le.s32.totalorder 2, %s155
      // Predicated region
      $region341: #{forward.1} parent=5 // pred_check
        %p8427 = pneg %p8426
      $region342: #{forward.1} parent=5 // pred_check_branch
        %8429 = sbr.rel (%p8427) target = $region344
      $region343: #{forward.1} parent=5 // pred_region
        %s8430 = ssub.s32 %s155, 2
        // Predicated region
        $region345: #{forward.1} parent=343 // pred_check
          %p8431 = pneg %p1575
        $region346: #{forward.1} parent=343 // pred_check_branch
          %8433 = sbr.rel (%p8431) target = $region348
        $region347: #{forward.1} parent=343 // pred_region
          %p8434 = scmp.lt.s32.totalorder %s161, 1
          %s8435 = scalar_select %p8434, %s161, 1
          %s8436 = scalar_lea.vmem %s133, %s8435
        $region348: #{forward.1} parent=343 // pred_fallthru
          _
        // Predicated region
        $region349: #{forward.1} parent=343 // pred_check
          %p8437 = pneg %p1601
        $region350: #{forward.1} parent=343 // pred_check_branch
          %8439 = sbr.rel (%p8437) target = $region352
        $region351: #{forward.1} parent=343 // pred_region
          %p8440 = scmp.lt.s32.totalorder %s161, 1
          %s8441 = scalar_select %p8440, %s161, 1
          %s8442 = scalar_lea.vmem %s135, %s8441
        $region352: #{forward.1} parent=343 // pred_fallthru
          _
      $region344: #{forward.1} parent=5 // pred_fallthru
        _
    $region6: #{forward.1} parent=1 // loop_footer
      %s159 = sadd.s32 1, %s155
    $region7: #{forward.1} parent=1 // loop_footer_branch
      %154 = sbr.rel target = $region3
    $region8: #{forward.1} parent=1 // loop_exit
      _
    %8443 = vsyncpa [#allocation6], 1
    %s8444 = scalar_lea.sflag [#allocation6], 1
    %8445 = vsyncpa %s8444, 1
    %8446 = vsyncpa [#allocation8], 1
    %8447 = vsyncpa [#allocation11], 1
    %8448 = vsyncpa [#allocation14], 1
    %8449 = vsyncpa [#allocation17], 1
    %8450 = vsyncpa [#allocation20], 1
    %8451 = vsyncpa [#allocation23], 1

</llo_original>
